<compile_context>
chip_gen: v5e
topology: v5e:2x2
jax: 0.10.0
libtpu: 0.0.40
codegen_flags: <defaults>
</compile_context>

<pallas_src>
import jax
import jax.numpy as jnp
from jax import lax
from jax.experimental import pallas as pl
from jax.experimental.pallas import tpu as pltpu

BF = jnp.bfloat16


def _alstm_kernel(x_ref, w_in_ref, b_in_ref,
                  w_ih_ref, w_hh_ref, b_gi_ref, b_hn_ref,
                  gamma_ref, beta_ref,
                  wa1_ref, ba1_ref, wa2_ref,
                  w_last_ref, w_att_ref, b_out_ref,
                  out_ref, seq_ref, gi_ref):
    T, F, N = x_ref.shape
    H = w_in_ref.shape[0]
    L = w_ih_ref.shape[0]

    def mxu(a_bf, b_bf):
        # bf16 MXU matmul, f32 accumulation.
        return jnp.dot(a_bf, b_bf, preferred_element_type=jnp.float32)

    # ---- fc_in + tanh: per-timestep (H,F)@(F,N), lane-dense aligned stores -------
    w_in = w_in_ref[...]                                  # (H, F) bf16
    b_in = b_in_ref[...]                                  # (H, 1) f32
    for t in range(T):
        x_t = x_ref[t].astype(BF)                         # (F, N)
        seq_ref[:, t * N:(t + 1) * N] = jnp.tanh(mxu(w_in, x_t) + b_in)

    # ---- stacked GRU (batch_first, h0 = 0) ---------------------------------------
    for l in range(L):
        # Hoisted, gate-fused input-side matmul: one (3H,H)@(H,T*N) per layer.
        gi_ref[...] = mxu(w_ih_ref[l], seq_ref[...].astype(BF)) + b_gi_ref[l]
        w_hh_l = w_hh_ref[l]                              # (3H, H) bf16
        b_hn_l = b_hn_ref[l]                              # (H, 1) f32

        h = jnp.zeros((H, N), jnp.float32)
        # T is small (8): static unroll with statically aligned lane slices into
        # the packed gi/seq scratches keeps the live set bounded.
        # TODO(synk): for large T, switch to lax.fori_loop over a (T,3H,N) gi scratch.
        for t in range(T):
            lo, hi = t * N, (t + 1) * N
            gh = mxu(w_hh_l, h.astype(BF))                # ONE fused (3H,H)@(H,N)
            r = jax.nn.sigmoid(gi_ref[0:H, lo:hi] + gh[0:H])
            z = jax.nn.sigmoid(gi_ref[H:2 * H, lo:hi] + gh[H:2 * H])
            n = jnp.tanh(gi_ref[2 * H:, lo:hi] + r * (gh[2 * H:] + b_hn_l))
            h = (1.0 - z) * n + z * h
            seq_ref[:, lo:hi] = h                         # lane-dense, unmasked store

    # ---- LayerNorm over the feature (sublane) axis --------------------------------
    seq = seq_ref[...]                                    # (H, T*N) f32
    mean = jnp.mean(seq, axis=0, keepdims=True)
    var = jnp.mean(jnp.square(seq - mean), axis=0, keepdims=True)
    rnn = (seq - mean) * lax.rsqrt(var + 1e-5) * gamma_ref[...] + beta_ref[...]

    # ---- attention over the time axis ----------------------------------------------
    a1 = jnp.tanh(mxu(wa1_ref[...], rnn.astype(BF)) + ba1_ref[...])   # (H/2, T*N)
    score = jnp.sum(a1 * wa2_ref[...], axis=0, keepdims=True)         # (1, T*N)

    # softmax over time done with aligned per-timestep lane slices (no relayout)
    m = score[:, 0:N]
    for t in range(1, T):
        m = jnp.maximum(m, score[:, t * N:(t + 1) * N])
    es = [jnp.exp(score[:, t * N:(t + 1) * N] - m) for t in range(T)]
    denom = es[0]
    for t in range(1, T):
        denom = denom + es[t]
    inv = 1.0 / denom                                                 # exact divide

    out_att = jnp.zeros((H, N), jnp.float32)
    for t in range(T):
        out_att = out_att + rnn[:, t * N:(t + 1) * N] * (es[t] * inv)
    last = rnn[:, (T - 1) * N:]

    # ---- fc_out: split weights, f32 cross-sublane reduce, lane-dense (1, N) output --
    out_ref[...] = (jnp.sum(w_last_ref[...] * last + w_att_ref[...] * out_att,
                            axis=0, keepdims=True) + b_out_ref[...])


def _round_up(x, m):
    return -(-x // m) * m


def _default_batch_tile():
    # Single-TensorCore parts (v5e / v6e): grid steps are a serial loop, so use a
    # bigger tile (256 keeps vreg pressure of the unrolled recurrence in check).
    # Dual-TC parts (v7x / megacore): 128-row tiles keep the grid >= 2 so
    # dimension_semantics=("parallel",) shards it across the two TensorCores.
    try:
        kind = jax.devices()[0].device_kind.lower()
    except Exception:
        return 256
    if "lite" in kind or "v5e" in kind or "v6" in kind:
        return 256
    return 128


def _prep_params(params):
    """Wrapper-side layout plumbing for the transposed (batch-in-lanes) kernel."""
    H = params['w_in'].shape[0]
    L = params['w_ih'].shape[0]
    b_ih = params['b_ih'].reshape(L, 3 * H)
    b_hh = params['b_hh'].reshape(L, 3 * H)
    # Fold b_hr / b_hz into the hoisted input-side bias; b_hn stays inside r*(...).
    fold = jnp.concatenate([b_hh[:, :2 * H], jnp.zeros((L, H), jnp.float32)], axis=1)
    return dict(
        w_in=params['w_in'].astype(BF),                   # (H, F)
        b_in=params['b_in'].reshape(H, 1),                # (H, 1)
        w_ih=params['w_ih'].astype(BF),                   # (L, 3H, H)
        w_hh=params['w_hh'].astype(BF),                   # (L, 3H, H)
        b_gi=(b_ih + fold)[..., None],                    # (L, 3H, 1)
        b_hn=b_hh[:, 2 * H:][..., None],                  # (L, H, 1)
        gamma=params['gamma'].reshape(H, 1),
        beta=params['beta'].reshape(H, 1),
        wa1=params['wa1'].astype(BF),                     # (H/2, H)
        ba1=params['ba1'].reshape(-1, 1),                 # (H/2, 1)
        wa2=params['wa2'].reshape(-1, 1),                 # (H/2, 1)
        w_last=params['w_out'][0, :H].reshape(H, 1),      # (H, 1) f32
        w_att=params['w_out'][0, H:].reshape(H, 1),       # (H, 1) f32
        b_out=params['b_out'],                            # (1, 1)
    )


def alstm_forward(x, params, *, d_feat, hidden_size, seq_len, batch_tile=None):
    N = x.shape[0]
    T, F, H = seq_len, d_feat, hidden_size
    L = params['w_ih'].shape[0]
    p = _prep_params(params)

    tile_target = batch_tile if batch_tile is not None else _default_batch_tile()
    tile_target = max(128, (tile_target // 128) * 128)
    n_tile = min(tile_target, _round_up(N, 128))          # always a multiple of 128
    n_pad = _round_up(N, n_tile)

    x = x.astype(jnp.float32)
    if n_pad != N:
        x = jnp.pad(x, ((0, n_pad - N), (0, 0)))
    # (N, F*T) -> (N, F, T) -> (T, F, N): batch in the lane (minor) dim.
    x_seq = jnp.transpose(x.reshape(n_pad, F, T), (2, 1, 0))

    args = (x_seq, p['w_in'], p['b_in'], p['w_ih'], p['w_hh'], p['b_gi'], p['b_hn'],
            p['gamma'], p['beta'], p['wa1'], p['ba1'], p['wa2'],
            p['w_last'], p['w_att'], p['b_out'])

    def const_spec(a):
        z = (0,) * a.ndim
        return pl.BlockSpec(a.shape, lambda i, _z=z: _z)

    in_specs = [pl.BlockSpec((T, F, n_tile), lambda i: (0, 0, i))]
    in_specs += [const_spec(a) for a in args[1:]]

    flops = n_pad * (2 * T * F * H + L * 12 * T * H * H + 2 * T * H * (H // 2) + 4 * H)
    transcendentals = n_pad * T * (H + L * 3 * H + H // 2 + 1)
    bytes_accessed = sum(int(a.size) * a.dtype.itemsize for a in args) + n_pad * 4

    out = pl.pallas_call(
        _alstm_kernel,
        out_shape=jax.ShapeDtypeStruct((1, n_pad), jnp.float32),
        grid=(n_pad // n_tile,),
        in_specs=in_specs,
        out_specs=pl.BlockSpec((1, n_tile), lambda i: (0, i)),
        scratch_shapes=[pltpu.VMEM((H, T * n_tile), jnp.float32),        # seq
                        pltpu.VMEM((3 * H, T * n_tile), jnp.float32)],   # fused gates
        compiler_params=pltpu.CompilerParams(
            dimension_semantics=("parallel",)),
        cost_estimate=pl.CostEstimate(flops=flops,
                                      transcendentals=transcendentals,
                                      bytes_accessed=bytes_accessed),
    )(*args)
    return out[0, :N]


def alstm_reference(x, params, *, d_feat, hidden_size, seq_len):
    """Pure-JAX reference mirroring the PyTorch forward (MXU operands in bf16 with
    f32 accumulation — same numerics contract as the kernel; fc_out in f32)."""
    N = x.shape[0]
    T, F, H = seq_len, d_feat, hidden_size

    def bdot(a, b):
        return jnp.dot(a.astype(BF), b.astype(BF), preferred_element_type=jnp.float32)

    xs = jnp.transpose(x.astype(jnp.float32).reshape(N, F, T), (0, 2, 1))   # (N, T, F)
    seq = jnp.tanh(bdot(xs, params['w_in'].T) + params['b_in'][0])          # (N, T, H)
    for l in range(params['w_ih'].shape[0]):
        w_ih, w_hh = params['w_ih'][l], params['w_hh'][l]
        b_ih, b_hh = params['b_ih'][l][0], params['b_hh'][l][0]
        h = jnp.zeros((N, H), jnp.float32)
        outs = []
        for t in range(T):
            gi = bdot(seq[:, t, :], w_ih.T) + b_ih
            gh = bdot(h, w_hh.T) + b_hh
            r = jax.nn.sigmoid(gi[:, :H] + gh[:, :H])
            z = jax.nn.sigmoid(gi[:, H:2 * H] + gh[:, H:2 * H])
            n = jnp.tanh(gi[:, 2 * H:] + r * gh[:, 2 * H:])
            h = (1.0 - z) * n + z * h
            outs.append(h)
        seq = jnp.stack(outs, axis=1)                                       # (N, T, H)
    mean = jnp.mean(seq, axis=-1, keepdims=True)
    var = jnp.mean(jnp.square(seq - mean), axis=-1, keepdims=True)
    rnn = (seq - mean) / jnp.sqrt(var + 1e-5) * params['gamma'][0] + params['beta'][0]
    a1 = jnp.tanh(bdot(rnn, params['wa1'].T) + params['ba1'][0])
    score = jnp.sum(a1 * params['wa2'][0], axis=-1, keepdims=True)          # (N, T, 1)
    att = jax.nn.softmax(score, axis=1)
    out_att = jnp.sum(rnn * att, axis=1)                                    # (N, H)
    cat = jnp.concatenate([rnn[:, -1, :], out_att], axis=-1)                # (N, 2H)
    out = jnp.dot(cat, params['w_out'].T) + params['b_out'][0]              # f32
    return out[:, 0]


def init_params(key, d_feat, H, L):
    keys = jax.random.split(key, 16)

    def u(k, shape, fan):
        bnd = 1.0 / jnp.sqrt(jnp.float32(fan))
        return jax.random.uniform(k, shape, jnp.float32, -bnd, bnd)

    return {
        'w_in': u(keys[0], (H, d_feat), d_feat),
        'b_in': u(keys[1], (1, H), d_feat),
        'w_ih': jnp.stack([u(keys[2 + l], (3 * H, H), H) for l in range(L)]),
        'w_hh': jnp.stack([u(keys[4 + l], (3 * H, H), H) for l in range(L)]),
        'b_ih': jnp.stack([u(keys[6 + l], (1, 3 * H), H) for l in range(L)]),
        'b_hh': jnp.stack([u(keys[8 + l], (1, 3 * H), H) for l in range(L)]),
        'gamma': jnp.ones((1, H), jnp.float32),
        'beta': jnp.zeros((1, H), jnp.float32),
        'wa1': u(keys[10], (H // 2, H), H),
        'ba1': u(keys[11], (1, H // 2), H),
        'wa2': u(keys[12], (1, H // 2), H // 2),
        'w_out': u(keys[13], (1, 2 * H), 2 * H),
        'b_out': u(keys[14], (1, 1), 2 * H),
    }


if __name__ == "__main__":
    D_FEAT, HID, LAYERS, SEQ = 6, 32, 2, 8

    key = jax.random.PRNGKey(0)
    k_x, k_p, k_x2 = jax.random.split(key, 3)
    params = init_params(k_p, D_FEAT, HID, LAYERS)

    # Small batch (single 128-lane tile, grid = 1).
    x_small = jax.random.normal(k_x, (4, D_FEAT * SEQ), jnp.float32)
    out_s = jax.block_until_ready(
        alstm_forward(x_small, params, d_feat=D_FEAT, hidden_size=HID, seq_len=SEQ))
    ref_s = jax.block_until_ready(
        alstm_reference(x_small, params, d_feat=D_FEAT, hidden_size=HID, seq_len=SEQ))
    assert out_s.shape == (4,)
    assert bool(jnp.all(jnp.isfinite(out_s)))
    assert bool(jnp.allclose(out_s, ref_s, atol=1e-3, rtol=1e-3)), (out_s, ref_s)

    # Larger batch exercising the batch tiling + parallel grid.
    x_big = jax.random.normal(k_x2, (256, D_FEAT * SEQ), jnp.float32)
    out_b = jax.block_until_ready(
        alstm_forward(x_big, params, d_feat=D_FEAT, hidden_size=HID, seq_len=SEQ))
    ref_b = jax.block_until_ready(
        alstm_reference(x_big, params, d_feat=D_FEAT, hidden_size=HID, seq_len=SEQ))
    assert out_b.shape == (256,)
    assert bool(jnp.all(jnp.isfinite(out_b)))
    assert bool(jnp.allclose(out_b, ref_b, atol=1e-3, rtol=1e-3))

    print("KERNEL_OK")
</pallas_src>

<mosaic_0001>
module attributes {stable_mosaic.version = 11 : i64} {
  func.func @_alstm_kernel(%arg0: i32, %arg1: memref<8x6x128xf32, #tpu.memory_space<vmem>>, %arg2: memref<32x6xbf16, #tpu.memory_space<vmem>>, %arg3: memref<32x1xf32, #tpu.memory_space<vmem>>, %arg4: memref<2x96x32xbf16, #tpu.memory_space<vmem>>, %arg5: memref<2x96x32xbf16, #tpu.memory_space<vmem>>, %arg6: memref<2x96x1xf32, #tpu.memory_space<vmem>>, %arg7: memref<2x32x1xf32, #tpu.memory_space<vmem>>, %arg8: memref<32x1xf32, #tpu.memory_space<vmem>>, %arg9: memref<32x1xf32, #tpu.memory_space<vmem>>, %arg10: memref<16x32xbf16, #tpu.memory_space<vmem>>, %arg11: memref<16x1xf32, #tpu.memory_space<vmem>>, %arg12: memref<16x1xf32, #tpu.memory_space<vmem>>, %arg13: memref<32x1xf32, #tpu.memory_space<vmem>>, %arg14: memref<32x1xf32, #tpu.memory_space<vmem>>, %arg15: memref<1x1xf32, #tpu.memory_space<vmem>>, %arg16: memref<1x128xf32, #tpu.memory_space<vmem>>, %arg17: memref<32x1024xf32, #tpu.memory_space<vmem>>, %arg18: memref<96x1024xf32, #tpu.memory_space<vmem>>) attributes {dimension_semantics = [#tpu.dimension_semantics<parallel>], iteration_bounds = array<i64: 1>, scalar_prefetch = 0 : i64, scratch_operands = 2 : i64, tpu.core_type = #tpu.core_type<tc>, window_params = [{transform_indices = @transform_0, window_bounds = array<i64: 8, 6, 128>}, {pipeline_mode = #tpu.pipeline_mode<synchronous>, transform_indices = @transform_1, window_bounds = array<i64: 32, 6>}, {pipeline_mode = #tpu.pipeline_mode<synchronous>, transform_indices = @transform_2, window_bounds = array<i64: 32, 1>}, {pipeline_mode = #tpu.pipeline_mode<synchronous>, transform_indices = @transform_3, window_bounds = array<i64: 2, 96, 32>}, {pipeline_mode = #tpu.pipeline_mode<synchronous>, transform_indices = @transform_4, window_bounds = array<i64: 2, 96, 32>}, {pipeline_mode = #tpu.pipeline_mode<synchronous>, transform_indices = @transform_5, window_bounds = array<i64: 2, 96, 1>}, {pipeline_mode = #tpu.pipeline_mode<synchronous>, transform_indices = @transform_6, window_bounds = array<i64: 2, 32, 1>}, {pipeline_mode = #tpu.pipeline_mode<synchronous>, transform_indices = @transform_7, window_bounds = array<i64: 32, 1>}, {pipeline_mode = #tpu.pipeline_mode<synchronous>, transform_indices = @transform_8, window_bounds = array<i64: 32, 1>}, {pipeline_mode = #tpu.pipeline_mode<synchronous>, transform_indices = @transform_9, window_bounds = array<i64: 16, 32>}, {pipeline_mode = #tpu.pipeline_mode<synchronous>, transform_indices = @transform_10, window_bounds = array<i64: 16, 1>}, {pipeline_mode = #tpu.pipeline_mode<synchronous>, transform_indices = @transform_11, window_bounds = array<i64: 16, 1>}, {pipeline_mode = #tpu.pipeline_mode<synchronous>, transform_indices = @transform_12, window_bounds = array<i64: 32, 1>}, {pipeline_mode = #tpu.pipeline_mode<synchronous>, transform_indices = @transform_13, window_bounds = array<i64: 32, 1>}, {pipeline_mode = #tpu.pipeline_mode<synchronous>, transform_indices = @transform_14, window_bounds = array<i64: 1, 1>}, {transform_indices = @transform_15, window_bounds = array<i64: 1, 128>}]} {
    %c0 = arith.constant 0 : index
    %c0_0 = arith.constant 0 : index
    %0 = vector.load %arg2[%c0, %c0_0] : memref<32x6xbf16, #tpu.memory_space<vmem>>, vector<32x6xbf16>
    %c0_1 = arith.constant 0 : index
    %c0_2 = arith.constant 0 : index
    %1 = vector.load %arg3[%c0_1, %c0_2] : memref<32x1xf32, #tpu.memory_space<vmem>>, vector<32x1xf32>
    %c0_3 = arith.constant 0 : index
    %c0_4 = arith.constant 0 : index
    %c0_5 = arith.constant 0 : index
    %2 = vector.load %arg1[%c0_3, %c0_4, %c0_5] : memref<8x6x128xf32, #tpu.memory_space<vmem>>, vector<1x6x128xf32>
    %3 = vector.shape_cast %2 : vector<1x6x128xf32> to vector<6x128xf32>
    %4 = arith.truncf %3 : vector<6x128xf32> to vector<6x128xbf16>
    %cst = arith.constant dense<0.000000e+00> : vector<32x128xf32>
    %5 = tpu.matmul %0, %4, %cst {dimension_numbers = #tpu.dot_dimension_numbers<[1], [0], [0], [1], [0, 0, 1, 1], [], []>} : vector<32x6xbf16>, vector<6x128xbf16>, vector<32x128xf32> -> vector<32x128xf32>
    %6 = vector.broadcast %1 : vector<32x1xf32> to vector<32x128xf32>
    %7 = arith.addf %5, %6 : vector<32x128xf32>
    %8 = math.tanh %7 : vector<32x128xf32>
    %c0_6 = arith.constant 0 : index
    %c0_7 = arith.constant 0 : index
    %9 = vector.load %arg17[%c0_6, %c0_7] : memref<32x1024xf32, #tpu.memory_space<vmem>>, vector<32x128xf32>
    tpu.vector_store %arg17[%c0_6, %c0_7], %8 {strides = array<i32>} : memref<32x1024xf32, #tpu.memory_space<vmem>>, vector<32x128xf32>,
    %c1 = arith.constant 1 : index
    %c0_8 = arith.constant 0 : index
    %c0_9 = arith.constant 0 : index
    %10 = vector.load %arg1[%c1, %c0_8, %c0_9] : memref<8x6x128xf32, #tpu.memory_space<vmem>>, vector<1x6x128xf32>
    %11 = vector.shape_cast %10 : vector<1x6x128xf32> to vector<6x128xf32>
    %12 = arith.truncf %11 : vector<6x128xf32> to vector<6x128xbf16>
    %cst_10 = arith.constant dense<0.000000e+00> : vector<32x128xf32>
    %13 = tpu.matmul %0, %12, %cst_10 {dimension_numbers = #tpu.dot_dimension_numbers<[1], [0], [0], [1], [0, 0, 1, 1], [], []>} : vector<32x6xbf16>, vector<6x128xbf16>, vector<32x128xf32> -> vector<32x128xf32>
    %14 = vector.broadcast %1 : vector<32x1xf32> to vector<32x128xf32>
    %15 = arith.addf %13, %14 : vector<32x128xf32>
    %16 = math.tanh %15 : vector<32x128xf32>
    %c0_11 = arith.constant 0 : index
    %c128 = arith.constant 128 : index
    %17 = vector.load %arg17[%c0_11, %c128] : memref<32x1024xf32, #tpu.memory_space<vmem>>, vector<32x128xf32>
    tpu.vector_store %arg17[%c0_11, %c128], %16 {strides = array<i32>} : memref<32x1024xf32, #tpu.memory_space<vmem>>, vector<32x128xf32>,
    %c2 = arith.constant 2 : index
    %c0_12 = arith.constant 0 : index
    %c0_13 = arith.constant 0 : index
    %18 = vector.load %arg1[%c2, %c0_12, %c0_13] : memref<8x6x128xf32, #tpu.memory_space<vmem>>, vector<1x6x128xf32>
    %19 = vector.shape_cast %18 : vector<1x6x128xf32> to vector<6x128xf32>
    %20 = arith.truncf %19 : vector<6x128xf32> to vector<6x128xbf16>
    %cst_14 = arith.constant dense<0.000000e+00> : vector<32x128xf32>
    %21 = tpu.matmul %0, %20, %cst_14 {dimension_numbers = #tpu.dot_dimension_numbers<[1], [0], [0], [1], [0, 0, 1, 1], [], []>} : vector<32x6xbf16>, vector<6x128xbf16>, vector<32x128xf32> -> vector<32x128xf32>
    %22 = vector.broadcast %1 : vector<32x1xf32> to vector<32x128xf32>
    %23 = arith.addf %21, %22 : vector<32x128xf32>
    %24 = math.tanh %23 : vector<32x128xf32>
    %c0_15 = arith.constant 0 : index
    %c256 = arith.constant 256 : index
    %25 = vector.load %arg17[%c0_15, %c256] : memref<32x1024xf32, #tpu.memory_space<vmem>>, vector<32x128xf32>
    tpu.vector_store %arg17[%c0_15, %c256], %24 {strides = array<i32>} : memref<32x1024xf32, #tpu.memory_space<vmem>>, vector<32x128xf32>,
    %c3 = arith.constant 3 : index
    %c0_16 = arith.constant 0 : index
    %c0_17 = arith.constant 0 : index
    %26 = vector.load %arg1[%c3, %c0_16, %c0_17] : memref<8x6x128xf32, #tpu.memory_space<vmem>>, vector<1x6x128xf32>
    %27 = vector.shape_cast %26 : vector<1x6x128xf32> to vector<6x128xf32>
    %28 = arith.truncf %27 : vector<6x128xf32> to vector<6x128xbf16>
    %cst_18 = arith.constant dense<0.000000e+00> : vector<32x128xf32>
    %29 = tpu.matmul %0, %28, %cst_18 {dimension_numbers = #tpu.dot_dimension_numbers<[1], [0], [0], [1], [0, 0, 1, 1], [], []>} : vector<32x6xbf16>, vector<6x128xbf16>, vector<32x128xf32> -> vector<32x128xf32>
    %30 = vector.broadcast %1 : vector<32x1xf32> to vector<32x128xf32>
    %31 = arith.addf %29, %30 : vector<32x128xf32>
    %32 = math.tanh %31 : vector<32x128xf32>
    %c0_19 = arith.constant 0 : index
    %c384 = arith.constant 384 : index
    %33 = vector.load %arg17[%c0_19, %c384] : memref<32x1024xf32, #tpu.memory_space<vmem>>, vector<32x128xf32>
    tpu.vector_store %arg17[%c0_19, %c384], %32 {strides = array<i32>} : memref<32x1024xf32, #tpu.memory_space<vmem>>, vector<32x128xf32>,
    %c4 = arith.constant 4 : index
    %c0_20 = arith.constant 0 : index
    %c0_21 = arith.constant 0 : index
    %34 = vector.load %arg1[%c4, %c0_20, %c0_21] : memref<8x6x128xf32, #tpu.memory_space<vmem>>, vector<1x6x128xf32>
    %35 = vector.shape_cast %34 : vector<1x6x128xf32> to vector<6x128xf32>
    %36 = arith.truncf %35 : vector<6x128xf32> to vector<6x128xbf16>
    %cst_22 = arith.constant dense<0.000000e+00> : vector<32x128xf32>
    %37 = tpu.matmul %0, %36, %cst_22 {dimension_numbers = #tpu.dot_dimension_numbers<[1], [0], [0], [1], [0, 0, 1, 1], [], []>} : vector<32x6xbf16>, vector<6x128xbf16>, vector<32x128xf32> -> vector<32x128xf32>
    %38 = vector.broadcast %1 : vector<32x1xf32> to vector<32x128xf32>
    %39 = arith.addf %37, %38 : vector<32x128xf32>
    %40 = math.tanh %39 : vector<32x128xf32>
    %c0_23 = arith.constant 0 : index
    %c512 = arith.constant 512 : index
    %41 = vector.load %arg17[%c0_23, %c512] : memref<32x1024xf32, #tpu.memory_space<vmem>>, vector<32x128xf32>
    tpu.vector_store %arg17[%c0_23, %c512], %40 {strides = array<i32>} : memref<32x1024xf32, #tpu.memory_space<vmem>>, vector<32x128xf32>,
    %c5 = arith.constant 5 : index
    %c0_24 = arith.constant 0 : index
    %c0_25 = arith.constant 0 : index
    %42 = vector.load %arg1[%c5, %c0_24, %c0_25] : memref<8x6x128xf32, #tpu.memory_space<vmem>>, vector<1x6x128xf32>
    %43 = vector.shape_cast %42 : vector<1x6x128xf32> to vector<6x128xf32>
    %44 = arith.truncf %43 : vector<6x128xf32> to vector<6x128xbf16>
    %cst_26 = arith.constant dense<0.000000e+00> : vector<32x128xf32>
    %45 = tpu.matmul %0, %44, %cst_26 {dimension_numbers = #tpu.dot_dimension_numbers<[1], [0], [0], [1], [0, 0, 1, 1], [], []>} : vector<32x6xbf16>, vector<6x128xbf16>, vector<32x128xf32> -> vector<32x128xf32>
    %46 = vector.broadcast %1 : vector<32x1xf32> to vector<32x128xf32>
    %47 = arith.addf %45, %46 : vector<32x128xf32>
    %48 = math.tanh %47 : vector<32x128xf32>
    %c0_27 = arith.constant 0 : index
    %c640 = arith.constant 640 : index
    %49 = vector.load %arg17[%c0_27, %c640] : memref<32x1024xf32, #tpu.memory_space<vmem>>, vector<32x128xf32>
    tpu.vector_store %arg17[%c0_27, %c640], %48 {strides = array<i32>} : memref<32x1024xf32, #tpu.memory_space<vmem>>, vector<32x128xf32>,
    %c6 = arith.constant 6 : index
    %c0_28 = arith.constant 0 : index
    %c0_29 = arith.constant 0 : index
    %50 = vector.load %arg1[%c6, %c0_28, %c0_29] : memref<8x6x128xf32, #tpu.memory_space<vmem>>, vector<1x6x128xf32>
    %51 = vector.shape_cast %50 : vector<1x6x128xf32> to vector<6x128xf32>
    %52 = arith.truncf %51 : vector<6x128xf32> to vector<6x128xbf16>
    %cst_30 = arith.constant dense<0.000000e+00> : vector<32x128xf32>
    %53 = tpu.matmul %0, %52, %cst_30 {dimension_numbers = #tpu.dot_dimension_numbers<[1], [0], [0], [1], [0, 0, 1, 1], [], []>} : vector<32x6xbf16>, vector<6x128xbf16>, vector<32x128xf32> -> vector<32x128xf32>
    %54 = vector.broadcast %1 : vector<32x1xf32> to vector<32x128xf32>
    %55 = arith.addf %53, %54 : vector<32x128xf32>
    %56 = math.tanh %55 : vector<32x128xf32>
    %c0_31 = arith.constant 0 : index
    %c768 = arith.constant 768 : index
    %57 = vector.load %arg17[%c0_31, %c768] : memref<32x1024xf32, #tpu.memory_space<vmem>>, vector<32x128xf32>
    tpu.vector_store %arg17[%c0_31, %c768], %56 {strides = array<i32>} : memref<32x1024xf32, #tpu.memory_space<vmem>>, vector<32x128xf32>,
    %c7 = arith.constant 7 : index
    %c0_32 = arith.constant 0 : index
    %c0_33 = arith.constant 0 : index
    %58 = vector.load %arg1[%c7, %c0_32, %c0_33] : memref<8x6x128xf32, #tpu.memory_space<vmem>>, vector<1x6x128xf32>
    %59 = vector.shape_cast %58 : vector<1x6x128xf32> to vector<6x128xf32>
    %60 = arith.truncf %59 : vector<6x128xf32> to vector<6x128xbf16>
    %cst_34 = arith.constant dense<0.000000e+00> : vector<32x128xf32>
    %61 = tpu.matmul %0, %60, %cst_34 {dimension_numbers = #tpu.dot_dimension_numbers<[1], [0], [0], [1], [0, 0, 1, 1], [], []>} : vector<32x6xbf16>, vector<6x128xbf16>, vector<32x128xf32> -> vector<32x128xf32>
    %62 = vector.broadcast %1 : vector<32x1xf32> to vector<32x128xf32>
    %63 = arith.addf %61, %62 : vector<32x128xf32>
    %64 = math.tanh %63 : vector<32x128xf32>
    %c0_35 = arith.constant 0 : index
    %c896 = arith.constant 896 : index
    %65 = vector.load %arg17[%c0_35, %c896] : memref<32x1024xf32, #tpu.memory_space<vmem>>, vector<32x128xf32>
    tpu.vector_store %arg17[%c0_35, %c896], %64 {strides = array<i32>} : memref<32x1024xf32, #tpu.memory_space<vmem>>, vector<32x128xf32>,
    %c0_36 = arith.constant 0 : index
    %c0_37 = arith.constant 0 : index
    %c0_38 = arith.constant 0 : index
    %66 = vector.load %arg4[%c0_36, %c0_37, %c0_38] : memref<2x96x32xbf16, #tpu.memory_space<vmem>>, vector<1x96x32xbf16>
    %67 = vector.shape_cast %66 : vector<1x96x32xbf16> to vector<96x32xbf16>
    %c0_39 = arith.constant 0 : index
    %c0_40 = arith.constant 0 : index
    %68 = vector.load %arg17[%c0_39, %c0_40] : memref<32x1024xf32, #tpu.memory_space<vmem>>, vector<32x1024xf32>
    %69 = arith.truncf %68 : vector<32x1024xf32> to vector<32x1024xbf16>
    %cst_41 = arith.constant dense<0.000000e+00> : vector<96x1024xf32>
    %70 = tpu.matmul %67, %69, %cst_41 {dimension_numbers = #tpu.dot_dimension_numbers<[1], [0], [0], [1], [0, 0, 1, 1], [], []>} : vector<96x32xbf16>, vector<32x1024xbf16>, vector<96x1024xf32> -> vector<96x1024xf32>
    %c0_42 = arith.constant 0 : index
    %c0_43 = arith.constant 0 : index
    %c0_44 = arith.constant 0 : index
    %71 = vector.load %arg6[%c0_42, %c0_43, %c0_44] : memref<2x96x1xf32, #tpu.memory_space<vmem>>, vector<1x96x1xf32>
    %72 = vector.shape_cast %71 : vector<1x96x1xf32> to vector<96x1xf32>
    %73 = vector.broadcast %72 : vector<96x1xf32> to vector<96x1024xf32>
    %74 = arith.addf %70, %73 : vector<96x1024xf32>
    %c0_45 = arith.constant 0 : index
    %c0_46 = arith.constant 0 : index
    %75 = vector.load %arg18[%c0_45, %c0_46] : memref<96x1024xf32, #tpu.memory_space<vmem>>, vector<96x1024xf32>
    tpu.vector_store %arg18[%c0_45, %c0_46], %74 {strides = array<i32>} : memref<96x1024xf32, #tpu.memory_space<vmem>>, vector<96x1024xf32>,
    %c0_47 = arith.constant 0 : index
    %c0_48 = arith.constant 0 : index
    %c0_49 = arith.constant 0 : index
    %76 = vector.load %arg5[%c0_47, %c0_48, %c0_49] : memref<2x96x32xbf16, #tpu.memory_space<vmem>>, vector<1x96x32xbf16>
    %77 = vector.shape_cast %76 : vector<1x96x32xbf16> to vector<96x32xbf16>
    %c0_50 = arith.constant 0 : index
    %c0_51 = arith.constant 0 : index
    %c0_52 = arith.constant 0 : index
    %78 = vector.load %arg7[%c0_50, %c0_51, %c0_52] : memref<2x32x1xf32, #tpu.memory_space<vmem>>, vector<1x32x1xf32>
    %79 = vector.shape_cast %78 : vector<1x32x1xf32> to vector<32x1xf32>
    %cst_53 = arith.constant 0.000000e+00 : f32
    %80 = vector.broadcast %cst_53 : f32 to vector<32x128xf32>
    %81 = arith.truncf %80 : vector<32x128xf32> to vector<32x128xbf16>
    %cst_54 = arith.constant dense<0.000000e+00> : vector<96x128xf32>
    %82 = tpu.matmul %77, %81, %cst_54 {dimension_numbers = #tpu.dot_dimension_numbers<[1], [0], [0], [1], [0, 0, 1, 1], [], []>} : vector<96x32xbf16>, vector<32x128xbf16>, vector<96x128xf32> -> vector<96x128xf32>
    %c0_55 = arith.constant 0 : index
    %c0_56 = arith.constant 0 : index
    %83 = vector.load %arg18[%c0_55, %c0_56] : memref<96x1024xf32, #tpu.memory_space<vmem>>, vector<32x128xf32>
    %84 = vector.extract_strided_slice %82 {offsets = [0, 0], sizes = [32, 128], strides = [1, 1]} : vector<96x128xf32> to vector<32x128xf32>
    %85 = arith.addf %83, %84 : vector<32x128xf32>
    %86 = arith.negf %85 : vector<32x128xf32>
    %87 = math.exp %86 : vector<32x128xf32>
    %cst_57 = arith.constant 1.000000e+00 : f32
    %88 = vector.broadcast %cst_57 : f32 to vector<32x128xf32>
    %89 = arith.addf %88, %87 : vector<32x128xf32>
    %90 = arith.divf %88, %89 : vector<32x128xf32>
    %c32 = arith.constant 32 : index
    %c0_58 = arith.constant 0 : index
    %91 = vector.load %arg18[%c32, %c0_58] : memref<96x1024xf32, #tpu.memory_space<vmem>>, vector<32x128xf32>
    %92 = vector.extract_strided_slice %82 {offsets = [32, 0], sizes = [32, 128], strides = [1, 1]} : vector<96x128xf32> to vector<32x128xf32>
    %93 = arith.addf %91, %92 : vector<32x128xf32>
    %94 = arith.negf %93 : vector<32x128xf32>
    %95 = math.exp %94 : vector<32x128xf32>
    %cst_59 = arith.constant 1.000000e+00 : f32
    %96 = vector.broadcast %cst_59 : f32 to vector<32x128xf32>
    %97 = arith.addf %96, %95 : vector<32x128xf32>
    %98 = arith.divf %96, %97 : vector<32x128xf32>
    %c64 = arith.constant 64 : index
    %c0_60 = arith.constant 0 : index
    %99 = vector.load %arg18[%c64, %c0_60] : memref<96x1024xf32, #tpu.memory_space<vmem>>, vector<32x128xf32>
    %100 = vector.extract_strided_slice %82 {offsets = [64, 0], sizes = [32, 128], strides = [1, 1]} : vector<96x128xf32> to vector<32x128xf32>
    %101 = vector.broadcast %79 : vector<32x1xf32> to vector<32x128xf32>
    %102 = arith.addf %100, %101 : vector<32x128xf32>
    %103 = arith.mulf %90, %102 : vector<32x128xf32>
    %104 = arith.addf %99, %103 : vector<32x128xf32>
    %105 = math.tanh %104 : vector<32x128xf32>
    %cst_61 = arith.constant 1.000000e+00 : f32
    %106 = vector.broadcast %cst_61 : f32 to vector<32x128xf32>
    %107 = arith.subf %106, %98 : vector<32x128xf32>
    %108 = arith.mulf %107, %105 : vector<32x128xf32>
    %109 = arith.mulf %98, %80 : vector<32x128xf32>
    %110 = arith.addf %108, %109 : vector<32x128xf32>
    %c0_62 = arith.constant 0 : index
    %c0_63 = arith.constant 0 : index
    %111 = vector.load %arg17[%c0_62, %c0_63] : memref<32x1024xf32, #tpu.memory_space<vmem>>, vector<32x128xf32>
    tpu.vector_store %arg17[%c0_62, %c0_63], %110 {strides = array<i32>} : memref<32x1024xf32, #tpu.memory_space<vmem>>, vector<32x128xf32>,
    %112 = arith.truncf %110 : vector<32x128xf32> to vector<32x128xbf16>
    %cst_64 = arith.constant dense<0.000000e+00> : vector<96x128xf32>
    %113 = tpu.matmul %77, %112, %cst_64 {dimension_numbers = #tpu.dot_dimension_numbers<[1], [0], [0], [1], [0, 0, 1, 1], [], []>} : vector<96x32xbf16>, vector<32x128xbf16>, vector<96x128xf32> -> vector<96x128xf32>
    %c0_65 = arith.constant 0 : index
    %c128_66 = arith.constant 128 : index
    %114 = vector.load %arg18[%c0_65, %c128_66] : memref<96x1024xf32, #tpu.memory_space<vmem>>, vector<32x128xf32>
    %115 = vector.extract_strided_slice %113 {offsets = [0, 0], sizes = [32, 128], strides = [1, 1]} : vector<96x128xf32> to vector<32x128xf32>
    %116 = arith.addf %114, %115 : vector<32x128xf32>
    %117 = arith.negf %116 : vector<32x128xf32>
    %118 = math.exp %117 : vector<32x128xf32>
    %cst_67 = arith.constant 1.000000e+00 : f32
    %119 = vector.broadcast %cst_67 : f32 to vector<32x128xf32>
    %120 = arith.addf %119, %118 : vector<32x128xf32>
    %121 = arith.divf %119, %120 : vector<32x128xf32>
    %c32_68 = arith.constant 32 : index
    %c128_69 = arith.constant 128 : index
    %122 = vector.load %arg18[%c32_68, %c128_69] : memref<96x1024xf32, #tpu.memory_space<vmem>>, vector<32x128xf32>
    %123 = vector.extract_strided_slice %113 {offsets = [32, 0], sizes = [32, 128], strides = [1, 1]} : vector<96x128xf32> to vector<32x128xf32>
    %124 = arith.addf %122, %123 : vector<32x128xf32>
    %125 = arith.negf %124 : vector<32x128xf32>
    %126 = math.exp %125 : vector<32x128xf32>
    %cst_70 = arith.constant 1.000000e+00 : f32
    %127 = vector.broadcast %cst_70 : f32 to vector<32x128xf32>
    %128 = arith.addf %127, %126 : vector<32x128xf32>
    %129 = arith.divf %127, %128 : vector<32x128xf32>
    %c64_71 = arith.constant 64 : index
    %c128_72 = arith.constant 128 : index
    %130 = vector.load %arg18[%c64_71, %c128_72] : memref<96x1024xf32, #tpu.memory_space<vmem>>, vector<32x128xf32>
    %131 = vector.extract_strided_slice %113 {offsets = [64, 0], sizes = [32, 128], strides = [1, 1]} : vector<96x128xf32> to vector<32x128xf32>
    %132 = vector.broadcast %79 : vector<32x1xf32> to vector<32x128xf32>
    %133 = arith.addf %131, %132 : vector<32x128xf32>
    %134 = arith.mulf %121, %133 : vector<32x128xf32>
    %135 = arith.addf %130, %134 : vector<32x128xf32>
    %136 = math.tanh %135 : vector<32x128xf32>
    %cst_73 = arith.constant 1.000000e+00 : f32
    %137 = vector.broadcast %cst_73 : f32 to vector<32x128xf32>
    %138 = arith.subf %137, %129 : vector<32x128xf32>
    %139 = arith.mulf %138, %136 : vector<32x128xf32>
    %140 = arith.mulf %129, %110 : vector<32x128xf32>
    %141 = arith.addf %139, %140 : vector<32x128xf32>
    %c0_74 = arith.constant 0 : index
    %c128_75 = arith.constant 128 : index
    %142 = vector.load %arg17[%c0_74, %c128_75] : memref<32x1024xf32, #tpu.memory_space<vmem>>, vector<32x128xf32>
    tpu.vector_store %arg17[%c0_74, %c128_75], %141 {strides = array<i32>} : memref<32x1024xf32, #tpu.memory_space<vmem>>, vector<32x128xf32>,
    %143 = arith.truncf %141 : vector<32x128xf32> to vector<32x128xbf16>
    %cst_76 = arith.constant dense<0.000000e+00> : vector<96x128xf32>
    %144 = tpu.matmul %77, %143, %cst_76 {dimension_numbers = #tpu.dot_dimension_numbers<[1], [0], [0], [1], [0, 0, 1, 1], [], []>} : vector<96x32xbf16>, vector<32x128xbf16>, vector<96x128xf32> -> vector<96x128xf32>
    %c0_77 = arith.constant 0 : index
    %c256_78 = arith.constant 256 : index
    %145 = vector.load %arg18[%c0_77, %c256_78] : memref<96x1024xf32, #tpu.memory_space<vmem>>, vector<32x128xf32>
    %146 = vector.extract_strided_slice %144 {offsets = [0, 0], sizes = [32, 128], strides = [1, 1]} : vector<96x128xf32> to vector<32x128xf32>
    %147 = arith.addf %145, %146 : vector<32x128xf32>
    %148 = arith.negf %147 : vector<32x128xf32>
    %149 = math.exp %148 : vector<32x128xf32>
    %cst_79 = arith.constant 1.000000e+00 : f32
    %150 = vector.broadcast %cst_79 : f32 to vector<32x128xf32>
    %151 = arith.addf %150, %149 : vector<32x128xf32>
    %152 = arith.divf %150, %151 : vector<32x128xf32>
    %c32_80 = arith.constant 32 : index
    %c256_81 = arith.constant 256 : index
    %153 = vector.load %arg18[%c32_80, %c256_81] : memref<96x1024xf32, #tpu.memory_space<vmem>>, vector<32x128xf32>
    %154 = vector.extract_strided_slice %144 {offsets = [32, 0], sizes = [32, 128], strides = [1, 1]} : vector<96x128xf32> to vector<32x128xf32>
    %155 = arith.addf %153, %154 : vector<32x128xf32>
    %156 = arith.negf %155 : vector<32x128xf32>
    %157 = math.exp %156 : vector<32x128xf32>
    %cst_82 = arith.constant 1.000000e+00 : f32
    %158 = vector.broadcast %cst_82 : f32 to vector<32x128xf32>
    %159 = arith.addf %158, %157 : vector<32x128xf32>
    %160 = arith.divf %158, %159 : vector<32x128xf32>
    %c64_83 = arith.constant 64 : index
    %c256_84 = arith.constant 256 : index
    %161 = vector.load %arg18[%c64_83, %c256_84] : memref<96x1024xf32, #tpu.memory_space<vmem>>, vector<32x128xf32>
    %162 = vector.extract_strided_slice %144 {offsets = [64, 0], sizes = [32, 128], strides = [1, 1]} : vector<96x128xf32> to vector<32x128xf32>
    %163 = vector.broadcast %79 : vector<32x1xf32> to vector<32x128xf32>
    %164 = arith.addf %162, %163 : vector<32x128xf32>
    %165 = arith.mulf %152, %164 : vector<32x128xf32>
    %166 = arith.addf %161, %165 : vector<32x128xf32>
    %167 = math.tanh %166 : vector<32x128xf32>
    %cst_85 = arith.constant 1.000000e+00 : f32
    %168 = vector.broadcast %cst_85 : f32 to vector<32x128xf32>
    %169 = arith.subf %168, %160 : vector<32x128xf32>
    %170 = arith.mulf %169, %167 : vector<32x128xf32>
    %171 = arith.mulf %160, %141 : vector<32x128xf32>
    %172 = arith.addf %170, %171 : vector<32x128xf32>
    %c0_86 = arith.constant 0 : index
    %c256_87 = arith.constant 256 : index
    %173 = vector.load %arg17[%c0_86, %c256_87] : memref<32x1024xf32, #tpu.memory_space<vmem>>, vector<32x128xf32>
    tpu.vector_store %arg17[%c0_86, %c256_87], %172 {strides = array<i32>} : memref<32x1024xf32, #tpu.memory_space<vmem>>, vector<32x128xf32>,
    %174 = arith.truncf %172 : vector<32x128xf32> to vector<32x128xbf16>
    %cst_88 = arith.constant dense<0.000000e+00> : vector<96x128xf32>
    %175 = tpu.matmul %77, %174, %cst_88 {dimension_numbers = #tpu.dot_dimension_numbers<[1], [0], [0], [1], [0, 0, 1, 1], [], []>} : vector<96x32xbf16>, vector<32x128xbf16>, vector<96x128xf32> -> vector<96x128xf32>
    %c0_89 = arith.constant 0 : index
    %c384_90 = arith.constant 384 : index
    %176 = vector.load %arg18[%c0_89, %c384_90] : memref<96x1024xf32, #tpu.memory_space<vmem>>, vector<32x128xf32>
    %177 = vector.extract_strided_slice %175 {offsets = [0, 0], sizes = [32, 128], strides = [1, 1]} : vector<96x128xf32> to vector<32x128xf32>
    %178 = arith.addf %176, %177 : vector<32x128xf32>
    %179 = arith.negf %178 : vector<32x128xf32>
    %180 = math.exp %179 : vector<32x128xf32>
    %cst_91 = arith.constant 1.000000e+00 : f32
    %181 = vector.broadcast %cst_91 : f32 to vector<32x128xf32>
    %182 = arith.addf %181, %180 : vector<32x128xf32>
    %183 = arith.divf %181, %182 : vector<32x128xf32>
    %c32_92 = arith.constant 32 : index
    %c384_93 = arith.constant 384 : index
    %184 = vector.load %arg18[%c32_92, %c384_93] : memref<96x1024xf32, #tpu.memory_space<vmem>>, vector<32x128xf32>
    %185 = vector.extract_strided_slice %175 {offsets = [32, 0], sizes = [32, 128], strides = [1, 1]} : vector<96x128xf32> to vector<32x128xf32>
    %186 = arith.addf %184, %185 : vector<32x128xf32>
    %187 = arith.negf %186 : vector<32x128xf32>
    %188 = math.exp %187 : vector<32x128xf32>
    %cst_94 = arith.constant 1.000000e+00 : f32
    %189 = vector.broadcast %cst_94 : f32 to vector<32x128xf32>
    %190 = arith.addf %189, %188 : vector<32x128xf32>
    %191 = arith.divf %189, %190 : vector<32x128xf32>
    %c64_95 = arith.constant 64 : index
    %c384_96 = arith.constant 384 : index
    %192 = vector.load %arg18[%c64_95, %c384_96] : memref<96x1024xf32, #tpu.memory_space<vmem>>, vector<32x128xf32>
    %193 = vector.extract_strided_slice %175 {offsets = [64, 0], sizes = [32, 128], strides = [1, 1]} : vector<96x128xf32> to vector<32x128xf32>
    %194 = vector.broadcast %79 : vector<32x1xf32> to vector<32x128xf32>
    %195 = arith.addf %193, %194 : vector<32x128xf32>
    %196 = arith.mulf %183, %195 : vector<32x128xf32>
    %197 = arith.addf %192, %196 : vector<32x128xf32>
    %198 = math.tanh %197 : vector<32x128xf32>
    %cst_97 = arith.constant 1.000000e+00 : f32
    %199 = vector.broadcast %cst_97 : f32 to vector<32x128xf32>
    %200 = arith.subf %199, %191 : vector<32x128xf32>
    %201 = arith.mulf %200, %198 : vector<32x128xf32>
    %202 = arith.mulf %191, %172 : vector<32x128xf32>
    %203 = arith.addf %201, %202 : vector<32x128xf32>
    %c0_98 = arith.constant 0 : index
    %c384_99 = arith.constant 384 : index
    %204 = vector.load %arg17[%c0_98, %c384_99] : memref<32x1024xf32, #tpu.memory_space<vmem>>, vector<32x128xf32>
    tpu.vector_store %arg17[%c0_98, %c384_99], %203 {strides = array<i32>} : memref<32x1024xf32, #tpu.memory_space<vmem>>, vector<32x128xf32>,
    %205 = arith.truncf %203 : vector<32x128xf32> to vector<32x128xbf16>
    %cst_100 = arith.constant dense<0.000000e+00> : vector<96x128xf32>
    %206 = tpu.matmul %77, %205, %cst_100 {dimension_numbers = #tpu.dot_dimension_numbers<[1], [0], [0], [1], [0, 0, 1, 1], [], []>} : vector<96x32xbf16>, vector<32x128xbf16>, vector<96x128xf32> -> vector<96x128xf32>
    %c0_101 = arith.constant 0 : index
    %c512_102 = arith.constant 512 : index
    %207 = vector.load %arg18[%c0_101, %c512_102] : memref<96x1024xf32, #tpu.memory_space<vmem>>, vector<32x128xf32>
    %208 = vector.extract_strided_slice %206 {offsets = [0, 0], sizes = [32, 128], strides = [1, 1]} : vector<96x128xf32> to vector<32x128xf32>
    %209 = arith.addf %207, %208 : vector<32x128xf32>
    %210 = arith.negf %209 : vector<32x128xf32>
    %211 = math.exp %210 : vector<32x128xf32>
    %cst_103 = arith.constant 1.000000e+00 : f32
    %212 = vector.broadcast %cst_103 : f32 to vector<32x128xf32>
    %213 = arith.addf %212, %211 : vector<32x128xf32>
    %214 = arith.divf %212, %213 : vector<32x128xf32>
    %c32_104 = arith.constant 32 : index
    %c512_105 = arith.constant 512 : index
    %215 = vector.load %arg18[%c32_104, %c512_105] : memref<96x1024xf32, #tpu.memory_space<vmem>>, vector<32x128xf32>
    %216 = vector.extract_strided_slice %206 {offsets = [32, 0], sizes = [32, 128], strides = [1, 1]} : vector<96x128xf32> to vector<32x128xf32>
    %217 = arith.addf %215, %216 : vector<32x128xf32>
    %218 = arith.negf %217 : vector<32x128xf32>
    %219 = math.exp %218 : vector<32x128xf32>
    %cst_106 = arith.constant 1.000000e+00 : f32
    %220 = vector.broadcast %cst_106 : f32 to vector<32x128xf32>
    %221 = arith.addf %220, %219 : vector<32x128xf32>
    %222 = arith.divf %220, %221 : vector<32x128xf32>
    %c64_107 = arith.constant 64 : index
    %c512_108 = arith.constant 512 : index
    %223 = vector.load %arg18[%c64_107, %c512_108] : memref<96x1024xf32, #tpu.memory_space<vmem>>, vector<32x128xf32>
    %224 = vector.extract_strided_slice %206 {offsets = [64, 0], sizes = [32, 128], strides = [1, 1]} : vector<96x128xf32> to vector<32x128xf32>
    %225 = vector.broadcast %79 : vector<32x1xf32> to vector<32x128xf32>
    %226 = arith.addf %224, %225 : vector<32x128xf32>
    %227 = arith.mulf %214, %226 : vector<32x128xf32>
    %228 = arith.addf %223, %227 : vector<32x128xf32>
    %229 = math.tanh %228 : vector<32x128xf32>
    %cst_109 = arith.constant 1.000000e+00 : f32
    %230 = vector.broadcast %cst_109 : f32 to vector<32x128xf32>
    %231 = arith.subf %230, %222 : vector<32x128xf32>
    %232 = arith.mulf %231, %229 : vector<32x128xf32>
    %233 = arith.mulf %222, %203 : vector<32x128xf32>
    %234 = arith.addf %232, %233 : vector<32x128xf32>
    %c0_110 = arith.constant 0 : index
    %c512_111 = arith.constant 512 : index
    %235 = vector.load %arg17[%c0_110, %c512_111] : memref<32x1024xf32, #tpu.memory_space<vmem>>, vector<32x128xf32>
    tpu.vector_store %arg17[%c0_110, %c512_111], %234 {strides = array<i32>} : memref<32x1024xf32, #tpu.memory_space<vmem>>, vector<32x128xf32>,
    %236 = arith.truncf %234 : vector<32x128xf32> to vector<32x128xbf16>
    %cst_112 = arith.constant dense<0.000000e+00> : vector<96x128xf32>
    %237 = tpu.matmul %77, %236, %cst_112 {dimension_numbers = #tpu.dot_dimension_numbers<[1], [0], [0], [1], [0, 0, 1, 1], [], []>} : vector<96x32xbf16>, vector<32x128xbf16>, vector<96x128xf32> -> vector<96x128xf32>
    %c0_113 = arith.constant 0 : index
    %c640_114 = arith.constant 640 : index
    %238 = vector.load %arg18[%c0_113, %c640_114] : memref<96x1024xf32, #tpu.memory_space<vmem>>, vector<32x128xf32>
    %239 = vector.extract_strided_slice %237 {offsets = [0, 0], sizes = [32, 128], strides = [1, 1]} : vector<96x128xf32> to vector<32x128xf32>
    %240 = arith.addf %238, %239 : vector<32x128xf32>
    %241 = arith.negf %240 : vector<32x128xf32>
    %242 = math.exp %241 : vector<32x128xf32>
    %cst_115 = arith.constant 1.000000e+00 : f32
    %243 = vector.broadcast %cst_115 : f32 to vector<32x128xf32>
    %244 = arith.addf %243, %242 : vector<32x128xf32>
    %245 = arith.divf %243, %244 : vector<32x128xf32>
    %c32_116 = arith.constant 32 : index
    %c640_117 = arith.constant 640 : index
    %246 = vector.load %arg18[%c32_116, %c640_117] : memref<96x1024xf32, #tpu.memory_space<vmem>>, vector<32x128xf32>
    %247 = vector.extract_strided_slice %237 {offsets = [32, 0], sizes = [32, 128], strides = [1, 1]} : vector<96x128xf32> to vector<32x128xf32>
    %248 = arith.addf %246, %247 : vector<32x128xf32>
    %249 = arith.negf %248 : vector<32x128xf32>
    %250 = math.exp %249 : vector<32x128xf32>
    %cst_118 = arith.constant 1.000000e+00 : f32
    %251 = vector.broadcast %cst_118 : f32 to vector<32x128xf32>
    %252 = arith.addf %251, %250 : vector<32x128xf32>
    %253 = arith.divf %251, %252 : vector<32x128xf32>
    %c64_119 = arith.constant 64 : index
    %c640_120 = arith.constant 640 : index
    %254 = vector.load %arg18[%c64_119, %c640_120] : memref<96x1024xf32, #tpu.memory_space<vmem>>, vector<32x128xf32>
    %255 = vector.extract_strided_slice %237 {offsets = [64, 0], sizes = [32, 128], strides = [1, 1]} : vector<96x128xf32> to vector<32x128xf32>
    %256 = vector.broadcast %79 : vector<32x1xf32> to vector<32x128xf32>
    %257 = arith.addf %255, %256 : vector<32x128xf32>
    %258 = arith.mulf %245, %257 : vector<32x128xf32>
    %259 = arith.addf %254, %258 : vector<32x128xf32>
    %260 = math.tanh %259 : vector<32x128xf32>
    %cst_121 = arith.constant 1.000000e+00 : f32
    %261 = vector.broadcast %cst_121 : f32 to vector<32x128xf32>
    %262 = arith.subf %261, %253 : vector<32x128xf32>
    %263 = arith.mulf %262, %260 : vector<32x128xf32>
    %264 = arith.mulf %253, %234 : vector<32x128xf32>
    %265 = arith.addf %263, %264 : vector<32x128xf32>
    %c0_122 = arith.constant 0 : index
    %c640_123 = arith.constant 640 : index
    %266 = vector.load %arg17[%c0_122, %c640_123] : memref<32x1024xf32, #tpu.memory_space<vmem>>, vector<32x128xf32>
    tpu.vector_store %arg17[%c0_122, %c640_123], %265 {strides = array<i32>} : memref<32x1024xf32, #tpu.memory_space<vmem>>, vector<32x128xf32>,
    %267 = arith.truncf %265 : vector<32x128xf32> to vector<32x128xbf16>
    %cst_124 = arith.constant dense<0.000000e+00> : vector<96x128xf32>
    %268 = tpu.matmul %77, %267, %cst_124 {dimension_numbers = #tpu.dot_dimension_numbers<[1], [0], [0], [1], [0, 0, 1, 1], [], []>} : vector<96x32xbf16>, vector<32x128xbf16>, vector<96x128xf32> -> vector<96x128xf32>
    %c0_125 = arith.constant 0 : index
    %c768_126 = arith.constant 768 : index
    %269 = vector.load %arg18[%c0_125, %c768_126] : memref<96x1024xf32, #tpu.memory_space<vmem>>, vector<32x128xf32>
    %270 = vector.extract_strided_slice %268 {offsets = [0, 0], sizes = [32, 128], strides = [1, 1]} : vector<96x128xf32> to vector<32x128xf32>
    %271 = arith.addf %269, %270 : vector<32x128xf32>
    %272 = arith.negf %271 : vector<32x128xf32>
    %273 = math.exp %272 : vector<32x128xf32>
    %cst_127 = arith.constant 1.000000e+00 : f32
    %274 = vector.broadcast %cst_127 : f32 to vector<32x128xf32>
    %275 = arith.addf %274, %273 : vector<32x128xf32>
    %276 = arith.divf %274, %275 : vector<32x128xf32>
    %c32_128 = arith.constant 32 : index
    %c768_129 = arith.constant 768 : index
    %277 = vector.load %arg18[%c32_128, %c768_129] : memref<96x1024xf32, #tpu.memory_space<vmem>>, vector<32x128xf32>
    %278 = vector.extract_strided_slice %268 {offsets = [32, 0], sizes = [32, 128], strides = [1, 1]} : vector<96x128xf32> to vector<32x128xf32>
    %279 = arith.addf %277, %278 : vector<32x128xf32>
    %280 = arith.negf %279 : vector<32x128xf32>
    %281 = math.exp %280 : vector<32x128xf32>
    %cst_130 = arith.constant 1.000000e+00 : f32
    %282 = vector.broadcast %cst_130 : f32 to vector<32x128xf32>
    %283 = arith.addf %282, %281 : vector<32x128xf32>
    %284 = arith.divf %282, %283 : vector<32x128xf32>
    %c64_131 = arith.constant 64 : index
    %c768_132 = arith.constant 768 : index
    %285 = vector.load %arg18[%c64_131, %c768_132] : memref<96x1024xf32, #tpu.memory_space<vmem>>, vector<32x128xf32>
    %286 = vector.extract_strided_slice %268 {offsets = [64, 0], sizes = [32, 128], strides = [1, 1]} : vector<96x128xf32> to vector<32x128xf32>
    %287 = vector.broadcast %79 : vector<32x1xf32> to vector<32x128xf32>
    %288 = arith.addf %286, %287 : vector<32x128xf32>
    %289 = arith.mulf %276, %288 : vector<32x128xf32>
    %290 = arith.addf %285, %289 : vector<32x128xf32>
    %291 = math.tanh %290 : vector<32x128xf32>
    %cst_133 = arith.constant 1.000000e+00 : f32
    %292 = vector.broadcast %cst_133 : f32 to vector<32x128xf32>
    %293 = arith.subf %292, %284 : vector<32x128xf32>
    %294 = arith.mulf %293, %291 : vector<32x128xf32>
    %295 = arith.mulf %284, %265 : vector<32x128xf32>
    %296 = arith.addf %294, %295 : vector<32x128xf32>
    %c0_134 = arith.constant 0 : index
    %c768_135 = arith.constant 768 : index
    %297 = vector.load %arg17[%c0_134, %c768_135] : memref<32x1024xf32, #tpu.memory_space<vmem>>, vector<32x128xf32>
    tpu.vector_store %arg17[%c0_134, %c768_135], %296 {strides = array<i32>} : memref<32x1024xf32, #tpu.memory_space<vmem>>, vector<32x128xf32>,
    %298 = arith.truncf %296 : vector<32x128xf32> to vector<32x128xbf16>
    %cst_136 = arith.constant dense<0.000000e+00> : vector<96x128xf32>
    %299 = tpu.matmul %77, %298, %cst_136 {dimension_numbers = #tpu.dot_dimension_numbers<[1], [0], [0], [1], [0, 0, 1, 1], [], []>} : vector<96x32xbf16>, vector<32x128xbf16>, vector<96x128xf32> -> vector<96x128xf32>
    %c0_137 = arith.constant 0 : index
    %c896_138 = arith.constant 896 : index
    %300 = vector.load %arg18[%c0_137, %c896_138] : memref<96x1024xf32, #tpu.memory_space<vmem>>, vector<32x128xf32>
    %301 = vector.extract_strided_slice %299 {offsets = [0, 0], sizes = [32, 128], strides = [1, 1]} : vector<96x128xf32> to vector<32x128xf32>
    %302 = arith.addf %300, %301 : vector<32x128xf32>
    %303 = arith.negf %302 : vector<32x128xf32>
    %304 = math.exp %303 : vector<32x128xf32>
    %cst_139 = arith.constant 1.000000e+00 : f32
    %305 = vector.broadcast %cst_139 : f32 to vector<32x128xf32>
    %306 = arith.addf %305, %304 : vector<32x128xf32>
    %307 = arith.divf %305, %306 : vector<32x128xf32>
    %c32_140 = arith.constant 32 : index
    %c896_141 = arith.constant 896 : index
    %308 = vector.load %arg18[%c32_140, %c896_141] : memref<96x1024xf32, #tpu.memory_space<vmem>>, vector<32x128xf32>
    %309 = vector.extract_strided_slice %299 {offsets = [32, 0], sizes = [32, 128], strides = [1, 1]} : vector<96x128xf32> to vector<32x128xf32>
    %310 = arith.addf %308, %309 : vector<32x128xf32>
    %311 = arith.negf %310 : vector<32x128xf32>
    %312 = math.exp %311 : vector<32x128xf32>
    %cst_142 = arith.constant 1.000000e+00 : f32
    %313 = vector.broadcast %cst_142 : f32 to vector<32x128xf32>
    %314 = arith.addf %313, %312 : vector<32x128xf32>
    %315 = arith.divf %313, %314 : vector<32x128xf32>
    %c64_143 = arith.constant 64 : index
    %c896_144 = arith.constant 896 : index
    %316 = vector.load %arg18[%c64_143, %c896_144] : memref<96x1024xf32, #tpu.memory_space<vmem>>, vector<32x128xf32>
    %317 = vector.extract_strided_slice %299 {offsets = [64, 0], sizes = [32, 128], strides = [1, 1]} : vector<96x128xf32> to vector<32x128xf32>
    %318 = vector.broadcast %79 : vector<32x1xf32> to vector<32x128xf32>
    %319 = arith.addf %317, %318 : vector<32x128xf32>
    %320 = arith.mulf %307, %319 : vector<32x128xf32>
    %321 = arith.addf %316, %320 : vector<32x128xf32>
    %322 = math.tanh %321 : vector<32x128xf32>
    %cst_145 = arith.constant 1.000000e+00 : f32
    %323 = vector.broadcast %cst_145 : f32 to vector<32x128xf32>
    %324 = arith.subf %323, %315 : vector<32x128xf32>
    %325 = arith.mulf %324, %322 : vector<32x128xf32>
    %326 = arith.mulf %315, %296 : vector<32x128xf32>
    %327 = arith.addf %325, %326 : vector<32x128xf32>
    %c0_146 = arith.constant 0 : index
    %c896_147 = arith.constant 896 : index
    %328 = vector.load %arg17[%c0_146, %c896_147] : memref<32x1024xf32, #tpu.memory_space<vmem>>, vector<32x128xf32>
    tpu.vector_store %arg17[%c0_146, %c896_147], %327 {strides = array<i32>} : memref<32x1024xf32, #tpu.memory_space<vmem>>, vector<32x128xf32>,
    %c1_148 = arith.constant 1 : index
    %c0_149 = arith.constant 0 : index
    %c0_150 = arith.constant 0 : index
    %329 = vector.load %arg4[%c1_148, %c0_149, %c0_150] : memref<2x96x32xbf16, #tpu.memory_space<vmem>>, vector<1x96x32xbf16>
    %330 = vector.shape_cast %329 : vector<1x96x32xbf16> to vector<96x32xbf16>
    %c0_151 = arith.constant 0 : index
    %c0_152 = arith.constant 0 : index
    %331 = vector.load %arg17[%c0_151, %c0_152] : memref<32x1024xf32, #tpu.memory_space<vmem>>, vector<32x1024xf32>
    %332 = arith.truncf %331 : vector<32x1024xf32> to vector<32x1024xbf16>
    %cst_153 = arith.constant dense<0.000000e+00> : vector<96x1024xf32>
    %333 = tpu.matmul %330, %332, %cst_153 {dimension_numbers = #tpu.dot_dimension_numbers<[1], [0], [0], [1], [0, 0, 1, 1], [], []>} : vector<96x32xbf16>, vector<32x1024xbf16>, vector<96x1024xf32> -> vector<96x1024xf32>
    %c1_154 = arith.constant 1 : index
    %c0_155 = arith.constant 0 : index
    %c0_156 = arith.constant 0 : index
    %334 = vector.load %arg6[%c1_154, %c0_155, %c0_156] : memref<2x96x1xf32, #tpu.memory_space<vmem>>, vector<1x96x1xf32>
    %335 = vector.shape_cast %334 : vector<1x96x1xf32> to vector<96x1xf32>
    %336 = vector.broadcast %335 : vector<96x1xf32> to vector<96x1024xf32>
    %337 = arith.addf %333, %336 : vector<96x1024xf32>
    %c0_157 = arith.constant 0 : index
    %c0_158 = arith.constant 0 : index
    %338 = vector.load %arg18[%c0_157, %c0_158] : memref<96x1024xf32, #tpu.memory_space<vmem>>, vector<96x1024xf32>
    tpu.vector_store %arg18[%c0_157, %c0_158], %337 {strides = array<i32>} : memref<96x1024xf32, #tpu.memory_space<vmem>>, vector<96x1024xf32>,
    %c1_159 = arith.constant 1 : index
    %c0_160 = arith.constant 0 : index
    %c0_161 = arith.constant 0 : index
    %339 = vector.load %arg5[%c1_159, %c0_160, %c0_161] : memref<2x96x32xbf16, #tpu.memory_space<vmem>>, vector<1x96x32xbf16>
    %340 = vector.shape_cast %339 : vector<1x96x32xbf16> to vector<96x32xbf16>
    %c1_162 = arith.constant 1 : index
    %c0_163 = arith.constant 0 : index
    %c0_164 = arith.constant 0 : index
    %341 = vector.load %arg7[%c1_162, %c0_163, %c0_164] : memref<2x32x1xf32, #tpu.memory_space<vmem>>, vector<1x32x1xf32>
    %342 = vector.shape_cast %341 : vector<1x32x1xf32> to vector<32x1xf32>
    %cst_165 = arith.constant 0.000000e+00 : f32
    %343 = vector.broadcast %cst_165 : f32 to vector<32x128xf32>
    %344 = arith.truncf %343 : vector<32x128xf32> to vector<32x128xbf16>
    %cst_166 = arith.constant dense<0.000000e+00> : vector<96x128xf32>
    %345 = tpu.matmul %340, %344, %cst_166 {dimension_numbers = #tpu.dot_dimension_numbers<[1], [0], [0], [1], [0, 0, 1, 1], [], []>} : vector<96x32xbf16>, vector<32x128xbf16>, vector<96x128xf32> -> vector<96x128xf32>
    %c0_167 = arith.constant 0 : index
    %c0_168 = arith.constant 0 : index
    %346 = vector.load %arg18[%c0_167, %c0_168] : memref<96x1024xf32, #tpu.memory_space<vmem>>, vector<32x128xf32>
    %347 = vector.extract_strided_slice %345 {offsets = [0, 0], sizes = [32, 128], strides = [1, 1]} : vector<96x128xf32> to vector<32x128xf32>
    %348 = arith.addf %346, %347 : vector<32x128xf32>
    %349 = arith.negf %348 : vector<32x128xf32>
    %350 = math.exp %349 : vector<32x128xf32>
    %cst_169 = arith.constant 1.000000e+00 : f32
    %351 = vector.broadcast %cst_169 : f32 to vector<32x128xf32>
    %352 = arith.addf %351, %350 : vector<32x128xf32>
    %353 = arith.divf %351, %352 : vector<32x128xf32>
    %c32_170 = arith.constant 32 : index
    %c0_171 = arith.constant 0 : index
    %354 = vector.load %arg18[%c32_170, %c0_171] : memref<96x1024xf32, #tpu.memory_space<vmem>>, vector<32x128xf32>
    %355 = vector.extract_strided_slice %345 {offsets = [32, 0], sizes = [32, 128], strides = [1, 1]} : vector<96x128xf32> to vector<32x128xf32>
    %356 = arith.addf %354, %355 : vector<32x128xf32>
    %357 = arith.negf %356 : vector<32x128xf32>
    %358 = math.exp %357 : vector<32x128xf32>
    %cst_172 = arith.constant 1.000000e+00 : f32
    %359 = vector.broadcast %cst_172 : f32 to vector<32x128xf32>
    %360 = arith.addf %359, %358 : vector<32x128xf32>
    %361 = arith.divf %359, %360 : vector<32x128xf32>
    %c64_173 = arith.constant 64 : index
    %c0_174 = arith.constant 0 : index
    %362 = vector.load %arg18[%c64_173, %c0_174] : memref<96x1024xf32, #tpu.memory_space<vmem>>, vector<32x128xf32>
    %363 = vector.extract_strided_slice %345 {offsets = [64, 0], sizes = [32, 128], strides = [1, 1]} : vector<96x128xf32> to vector<32x128xf32>
    %364 = vector.broadcast %342 : vector<32x1xf32> to vector<32x128xf32>
    %365 = arith.addf %363, %364 : vector<32x128xf32>
    %366 = arith.mulf %353, %365 : vector<32x128xf32>
    %367 = arith.addf %362, %366 : vector<32x128xf32>
    %368 = math.tanh %367 : vector<32x128xf32>
    %cst_175 = arith.constant 1.000000e+00 : f32
    %369 = vector.broadcast %cst_175 : f32 to vector<32x128xf32>
    %370 = arith.subf %369, %361 : vector<32x128xf32>
    %371 = arith.mulf %370, %368 : vector<32x128xf32>
    %372 = arith.mulf %361, %343 : vector<32x128xf32>
    %373 = arith.addf %371, %372 : vector<32x128xf32>
    %c0_176 = arith.constant 0 : index
    %c0_177 = arith.constant 0 : index
    %374 = vector.load %arg17[%c0_176, %c0_177] : memref<32x1024xf32, #tpu.memory_space<vmem>>, vector<32x128xf32>
    tpu.vector_store %arg17[%c0_176, %c0_177], %373 {strides = array<i32>} : memref<32x1024xf32, #tpu.memory_space<vmem>>, vector<32x128xf32>,
    %375 = arith.truncf %373 : vector<32x128xf32> to vector<32x128xbf16>
    %cst_178 = arith.constant dense<0.000000e+00> : vector<96x128xf32>
    %376 = tpu.matmul %340, %375, %cst_178 {dimension_numbers = #tpu.dot_dimension_numbers<[1], [0], [0], [1], [0, 0, 1, 1], [], []>} : vector<96x32xbf16>, vector<32x128xbf16>, vector<96x128xf32> -> vector<96x128xf32>
    %c0_179 = arith.constant 0 : index
    %c128_180 = arith.constant 128 : index
    %377 = vector.load %arg18[%c0_179, %c128_180] : memref<96x1024xf32, #tpu.memory_space<vmem>>, vector<32x128xf32>
    %378 = vector.extract_strided_slice %376 {offsets = [0, 0], sizes = [32, 128], strides = [1, 1]} : vector<96x128xf32> to vector<32x128xf32>
    %379 = arith.addf %377, %378 : vector<32x128xf32>
    %380 = arith.negf %379 : vector<32x128xf32>
    %381 = math.exp %380 : vector<32x128xf32>
    %cst_181 = arith.constant 1.000000e+00 : f32
    %382 = vector.broadcast %cst_181 : f32 to vector<32x128xf32>
    %383 = arith.addf %382, %381 : vector<32x128xf32>
    %384 = arith.divf %382, %383 : vector<32x128xf32>
    %c32_182 = arith.constant 32 : index
    %c128_183 = arith.constant 128 : index
    %385 = vector.load %arg18[%c32_182, %c128_183] : memref<96x1024xf32, #tpu.memory_space<vmem>>, vector<32x128xf32>
    %386 = vector.extract_strided_slice %376 {offsets = [32, 0], sizes = [32, 128], strides = [1, 1]} : vector<96x128xf32> to vector<32x128xf32>
    %387 = arith.addf %385, %386 : vector<32x128xf32>
    %388 = arith.negf %387 : vector<32x128xf32>
    %389 = math.exp %388 : vector<32x128xf32>
    %cst_184 = arith.constant 1.000000e+00 : f32
    %390 = vector.broadcast %cst_184 : f32 to vector<32x128xf32>
    %391 = arith.addf %390, %389 : vector<32x128xf32>
    %392 = arith.divf %390, %391 : vector<32x128xf32>
    %c64_185 = arith.constant 64 : index
    %c128_186 = arith.constant 128 : index
    %393 = vector.load %arg18[%c64_185, %c128_186] : memref<96x1024xf32, #tpu.memory_space<vmem>>, vector<32x128xf32>
    %394 = vector.extract_strided_slice %376 {offsets = [64, 0], sizes = [32, 128], strides = [1, 1]} : vector<96x128xf32> to vector<32x128xf32>
    %395 = vector.broadcast %342 : vector<32x1xf32> to vector<32x128xf32>
    %396 = arith.addf %394, %395 : vector<32x128xf32>
    %397 = arith.mulf %384, %396 : vector<32x128xf32>
    %398 = arith.addf %393, %397 : vector<32x128xf32>
    %399 = math.tanh %398 : vector<32x128xf32>
    %cst_187 = arith.constant 1.000000e+00 : f32
    %400 = vector.broadcast %cst_187 : f32 to vector<32x128xf32>
    %401 = arith.subf %400, %392 : vector<32x128xf32>
    %402 = arith.mulf %401, %399 : vector<32x128xf32>
    %403 = arith.mulf %392, %373 : vector<32x128xf32>
    %404 = arith.addf %402, %403 : vector<32x128xf32>
    %c0_188 = arith.constant 0 : index
    %c128_189 = arith.constant 128 : index
    %405 = vector.load %arg17[%c0_188, %c128_189] : memref<32x1024xf32, #tpu.memory_space<vmem>>, vector<32x128xf32>
    tpu.vector_store %arg17[%c0_188, %c128_189], %404 {strides = array<i32>} : memref<32x1024xf32, #tpu.memory_space<vmem>>, vector<32x128xf32>,
    %406 = arith.truncf %404 : vector<32x128xf32> to vector<32x128xbf16>
    %cst_190 = arith.constant dense<0.000000e+00> : vector<96x128xf32>
    %407 = tpu.matmul %340, %406, %cst_190 {dimension_numbers = #tpu.dot_dimension_numbers<[1], [0], [0], [1], [0, 0, 1, 1], [], []>} : vector<96x32xbf16>, vector<32x128xbf16>, vector<96x128xf32> -> vector<96x128xf32>
    %c0_191 = arith.constant 0 : index
    %c256_192 = arith.constant 256 : index
    %408 = vector.load %arg18[%c0_191, %c256_192] : memref<96x1024xf32, #tpu.memory_space<vmem>>, vector<32x128xf32>
    %409 = vector.extract_strided_slice %407 {offsets = [0, 0], sizes = [32, 128], strides = [1, 1]} : vector<96x128xf32> to vector<32x128xf32>
    %410 = arith.addf %408, %409 : vector<32x128xf32>
    %411 = arith.negf %410 : vector<32x128xf32>
    %412 = math.exp %411 : vector<32x128xf32>
    %cst_193 = arith.constant 1.000000e+00 : f32
    %413 = vector.broadcast %cst_193 : f32 to vector<32x128xf32>
    %414 = arith.addf %413, %412 : vector<32x128xf32>
    %415 = arith.divf %413, %414 : vector<32x128xf32>
    %c32_194 = arith.constant 32 : index
    %c256_195 = arith.constant 256 : index
    %416 = vector.load %arg18[%c32_194, %c256_195] : memref<96x1024xf32, #tpu.memory_space<vmem>>, vector<32x128xf32>
    %417 = vector.extract_strided_slice %407 {offsets = [32, 0], sizes = [32, 128], strides = [1, 1]} : vector<96x128xf32> to vector<32x128xf32>
    %418 = arith.addf %416, %417 : vector<32x128xf32>
    %419 = arith.negf %418 : vector<32x128xf32>
    %420 = math.exp %419 : vector<32x128xf32>
    %cst_196 = arith.constant 1.000000e+00 : f32
    %421 = vector.broadcast %cst_196 : f32 to vector<32x128xf32>
    %422 = arith.addf %421, %420 : vector<32x128xf32>
    %423 = arith.divf %421, %422 : vector<32x128xf32>
    %c64_197 = arith.constant 64 : index
    %c256_198 = arith.constant 256 : index
    %424 = vector.load %arg18[%c64_197, %c256_198] : memref<96x1024xf32, #tpu.memory_space<vmem>>, vector<32x128xf32>
    %425 = vector.extract_strided_slice %407 {offsets = [64, 0], sizes = [32, 128], strides = [1, 1]} : vector<96x128xf32> to vector<32x128xf32>
    %426 = vector.broadcast %342 : vector<32x1xf32> to vector<32x128xf32>
    %427 = arith.addf %425, %426 : vector<32x128xf32>
    %428 = arith.mulf %415, %427 : vector<32x128xf32>
    %429 = arith.addf %424, %428 : vector<32x128xf32>
    %430 = math.tanh %429 : vector<32x128xf32>
    %cst_199 = arith.constant 1.000000e+00 : f32
    %431 = vector.broadcast %cst_199 : f32 to vector<32x128xf32>
    %432 = arith.subf %431, %423 : vector<32x128xf32>
    %433 = arith.mulf %432, %430 : vector<32x128xf32>
    %434 = arith.mulf %423, %404 : vector<32x128xf32>
    %435 = arith.addf %433, %434 : vector<32x128xf32>
    %c0_200 = arith.constant 0 : index
    %c256_201 = arith.constant 256 : index
    %436 = vector.load %arg17[%c0_200, %c256_201] : memref<32x1024xf32, #tpu.memory_space<vmem>>, vector<32x128xf32>
    tpu.vector_store %arg17[%c0_200, %c256_201], %435 {strides = array<i32>} : memref<32x1024xf32, #tpu.memory_space<vmem>>, vector<32x128xf32>,
    %437 = arith.truncf %435 : vector<32x128xf32> to vector<32x128xbf16>
    %cst_202 = arith.constant dense<0.000000e+00> : vector<96x128xf32>
    %438 = tpu.matmul %340, %437, %cst_202 {dimension_numbers = #tpu.dot_dimension_numbers<[1], [0], [0], [1], [0, 0, 1, 1], [], []>} : vector<96x32xbf16>, vector<32x128xbf16>, vector<96x128xf32> -> vector<96x128xf32>
    %c0_203 = arith.constant 0 : index
    %c384_204 = arith.constant 384 : index
    %439 = vector.load %arg18[%c0_203, %c384_204] : memref<96x1024xf32, #tpu.memory_space<vmem>>, vector<32x128xf32>
    %440 = vector.extract_strided_slice %438 {offsets = [0, 0], sizes = [32, 128], strides = [1, 1]} : vector<96x128xf32> to vector<32x128xf32>
    %441 = arith.addf %439, %440 : vector<32x128xf32>
    %442 = arith.negf %441 : vector<32x128xf32>
    %443 = math.exp %442 : vector<32x128xf32>
    %cst_205 = arith.constant 1.000000e+00 : f32
    %444 = vector.broadcast %cst_205 : f32 to vector<32x128xf32>
    %445 = arith.addf %444, %443 : vector<32x128xf32>
    %446 = arith.divf %444, %445 : vector<32x128xf32>
    %c32_206 = arith.constant 32 : index
    %c384_207 = arith.constant 384 : index
    %447 = vector.load %arg18[%c32_206, %c384_207] : memref<96x1024xf32, #tpu.memory_space<vmem>>, vector<32x128xf32>
    %448 = vector.extract_strided_slice %438 {offsets = [32, 0], sizes = [32, 128], strides = [1, 1]} : vector<96x128xf32> to vector<32x128xf32>
    %449 = arith.addf %447, %448 : vector<32x128xf32>
    %450 = arith.negf %449 : vector<32x128xf32>
    %451 = math.exp %450 : vector<32x128xf32>
    %cst_208 = arith.constant 1.000000e+00 : f32
    %452 = vector.broadcast %cst_208 : f32 to vector<32x128xf32>
    %453 = arith.addf %452, %451 : vector<32x128xf32>
    %454 = arith.divf %452, %453 : vector<32x128xf32>
    %c64_209 = arith.constant 64 : index
    %c384_210 = arith.constant 384 : index
    %455 = vector.load %arg18[%c64_209, %c384_210] : memref<96x1024xf32, #tpu.memory_space<vmem>>, vector<32x128xf32>
    %456 = vector.extract_strided_slice %438 {offsets = [64, 0], sizes = [32, 128], strides = [1, 1]} : vector<96x128xf32> to vector<32x128xf32>
    %457 = vector.broadcast %342 : vector<32x1xf32> to vector<32x128xf32>
    %458 = arith.addf %456, %457 : vector<32x128xf32>
    %459 = arith.mulf %446, %458 : vector<32x128xf32>
    %460 = arith.addf %455, %459 : vector<32x128xf32>
    %461 = math.tanh %460 : vector<32x128xf32>
    %cst_211 = arith.constant 1.000000e+00 : f32
    %462 = vector.broadcast %cst_211 : f32 to vector<32x128xf32>
    %463 = arith.subf %462, %454 : vector<32x128xf32>
    %464 = arith.mulf %463, %461 : vector<32x128xf32>
    %465 = arith.mulf %454, %435 : vector<32x128xf32>
    %466 = arith.addf %464, %465 : vector<32x128xf32>
    %c0_212 = arith.constant 0 : index
    %c384_213 = arith.constant 384 : index
    %467 = vector.load %arg17[%c0_212, %c384_213] : memref<32x1024xf32, #tpu.memory_space<vmem>>, vector<32x128xf32>
    tpu.vector_store %arg17[%c0_212, %c384_213], %466 {strides = array<i32>} : memref<32x1024xf32, #tpu.memory_space<vmem>>, vector<32x128xf32>,
    %468 = arith.truncf %466 : vector<32x128xf32> to vector<32x128xbf16>
    %cst_214 = arith.constant dense<0.000000e+00> : vector<96x128xf32>
    %469 = tpu.matmul %340, %468, %cst_214 {dimension_numbers = #tpu.dot_dimension_numbers<[1], [0], [0], [1], [0, 0, 1, 1], [], []>} : vector<96x32xbf16>, vector<32x128xbf16>, vector<96x128xf32> -> vector<96x128xf32>
    %c0_215 = arith.constant 0 : index
    %c512_216 = arith.constant 512 : index
    %470 = vector.load %arg18[%c0_215, %c512_216] : memref<96x1024xf32, #tpu.memory_space<vmem>>, vector<32x128xf32>
    %471 = vector.extract_strided_slice %469 {offsets = [0, 0], sizes = [32, 128], strides = [1, 1]} : vector<96x128xf32> to vector<32x128xf32>
    %472 = arith.addf %470, %471 : vector<32x128xf32>
    %473 = arith.negf %472 : vector<32x128xf32>
    %474 = math.exp %473 : vector<32x128xf32>
    %cst_217 = arith.constant 1.000000e+00 : f32
    %475 = vector.broadcast %cst_217 : f32 to vector<32x128xf32>
    %476 = arith.addf %475, %474 : vector<32x128xf32>
    %477 = arith.divf %475, %476 : vector<32x128xf32>
    %c32_218 = arith.constant 32 : index
    %c512_219 = arith.constant 512 : index
    %478 = vector.load %arg18[%c32_218, %c512_219] : memref<96x1024xf32, #tpu.memory_space<vmem>>, vector<32x128xf32>
    %479 = vector.extract_strided_slice %469 {offsets = [32, 0], sizes = [32, 128], strides = [1, 1]} : vector<96x128xf32> to vector<32x128xf32>
    %480 = arith.addf %478, %479 : vector<32x128xf32>
    %481 = arith.negf %480 : vector<32x128xf32>
    %482 = math.exp %481 : vector<32x128xf32>
    %cst_220 = arith.constant 1.000000e+00 : f32
    %483 = vector.broadcast %cst_220 : f32 to vector<32x128xf32>
    %484 = arith.addf %483, %482 : vector<32x128xf32>
    %485 = arith.divf %483, %484 : vector<32x128xf32>
    %c64_221 = arith.constant 64 : index
    %c512_222 = arith.constant 512 : index
    %486 = vector.load %arg18[%c64_221, %c512_222] : memref<96x1024xf32, #tpu.memory_space<vmem>>, vector<32x128xf32>
    %487 = vector.extract_strided_slice %469 {offsets = [64, 0], sizes = [32, 128], strides = [1, 1]} : vector<96x128xf32> to vector<32x128xf32>
    %488 = vector.broadcast %342 : vector<32x1xf32> to vector<32x128xf32>
    %489 = arith.addf %487, %488 : vector<32x128xf32>
    %490 = arith.mulf %477, %489 : vector<32x128xf32>
    %491 = arith.addf %486, %490 : vector<32x128xf32>
    %492 = math.tanh %491 : vector<32x128xf32>
    %cst_223 = arith.constant 1.000000e+00 : f32
    %493 = vector.broadcast %cst_223 : f32 to vector<32x128xf32>
    %494 = arith.subf %493, %485 : vector<32x128xf32>
    %495 = arith.mulf %494, %492 : vector<32x128xf32>
    %496 = arith.mulf %485, %466 : vector<32x128xf32>
    %497 = arith.addf %495, %496 : vector<32x128xf32>
    %c0_224 = arith.constant 0 : index
    %c512_225 = arith.constant 512 : index
    %498 = vector.load %arg17[%c0_224, %c512_225] : memref<32x1024xf32, #tpu.memory_space<vmem>>, vector<32x128xf32>
    tpu.vector_store %arg17[%c0_224, %c512_225], %497 {strides = array<i32>} : memref<32x1024xf32, #tpu.memory_space<vmem>>, vector<32x128xf32>,
    %499 = arith.truncf %497 : vector<32x128xf32> to vector<32x128xbf16>
    %cst_226 = arith.constant dense<0.000000e+00> : vector<96x128xf32>
    %500 = tpu.matmul %340, %499, %cst_226 {dimension_numbers = #tpu.dot_dimension_numbers<[1], [0], [0], [1], [0, 0, 1, 1], [], []>} : vector<96x32xbf16>, vector<32x128xbf16>, vector<96x128xf32> -> vector<96x128xf32>
    %c0_227 = arith.constant 0 : index
    %c640_228 = arith.constant 640 : index
    %501 = vector.load %arg18[%c0_227, %c640_228] : memref<96x1024xf32, #tpu.memory_space<vmem>>, vector<32x128xf32>
    %502 = vector.extract_strided_slice %500 {offsets = [0, 0], sizes = [32, 128], strides = [1, 1]} : vector<96x128xf32> to vector<32x128xf32>
    %503 = arith.addf %501, %502 : vector<32x128xf32>
    %504 = arith.negf %503 : vector<32x128xf32>
    %505 = math.exp %504 : vector<32x128xf32>
    %cst_229 = arith.constant 1.000000e+00 : f32
    %506 = vector.broadcast %cst_229 : f32 to vector<32x128xf32>
    %507 = arith.addf %506, %505 : vector<32x128xf32>
    %508 = arith.divf %506, %507 : vector<32x128xf32>
    %c32_230 = arith.constant 32 : index
    %c640_231 = arith.constant 640 : index
    %509 = vector.load %arg18[%c32_230, %c640_231] : memref<96x1024xf32, #tpu.memory_space<vmem>>, vector<32x128xf32>
    %510 = vector.extract_strided_slice %500 {offsets = [32, 0], sizes = [32, 128], strides = [1, 1]} : vector<96x128xf32> to vector<32x128xf32>
    %511 = arith.addf %509, %510 : vector<32x128xf32>
    %512 = arith.negf %511 : vector<32x128xf32>
    %513 = math.exp %512 : vector<32x128xf32>
    %cst_232 = arith.constant 1.000000e+00 : f32
    %514 = vector.broadcast %cst_232 : f32 to vector<32x128xf32>
    %515 = arith.addf %514, %513 : vector<32x128xf32>
    %516 = arith.divf %514, %515 : vector<32x128xf32>
    %c64_233 = arith.constant 64 : index
    %c640_234 = arith.constant 640 : index
    %517 = vector.load %arg18[%c64_233, %c640_234] : memref<96x1024xf32, #tpu.memory_space<vmem>>, vector<32x128xf32>
    %518 = vector.extract_strided_slice %500 {offsets = [64, 0], sizes = [32, 128], strides = [1, 1]} : vector<96x128xf32> to vector<32x128xf32>
    %519 = vector.broadcast %342 : vector<32x1xf32> to vector<32x128xf32>
    %520 = arith.addf %518, %519 : vector<32x128xf32>
    %521 = arith.mulf %508, %520 : vector<32x128xf32>
    %522 = arith.addf %517, %521 : vector<32x128xf32>
    %523 = math.tanh %522 : vector<32x128xf32>
    %cst_235 = arith.constant 1.000000e+00 : f32
    %524 = vector.broadcast %cst_235 : f32 to vector<32x128xf32>
    %525 = arith.subf %524, %516 : vector<32x128xf32>
    %526 = arith.mulf %525, %523 : vector<32x128xf32>
    %527 = arith.mulf %516, %497 : vector<32x128xf32>
    %528 = arith.addf %526, %527 : vector<32x128xf32>
    %c0_236 = arith.constant 0 : index
    %c640_237 = arith.constant 640 : index
    %529 = vector.load %arg17[%c0_236, %c640_237] : memref<32x1024xf32, #tpu.memory_space<vmem>>, vector<32x128xf32>
    tpu.vector_store %arg17[%c0_236, %c640_237], %528 {strides = array<i32>} : memref<32x1024xf32, #tpu.memory_space<vmem>>, vector<32x128xf32>,
    %530 = arith.truncf %528 : vector<32x128xf32> to vector<32x128xbf16>
    %cst_238 = arith.constant dense<0.000000e+00> : vector<96x128xf32>
    %531 = tpu.matmul %340, %530, %cst_238 {dimension_numbers = #tpu.dot_dimension_numbers<[1], [0], [0], [1], [0, 0, 1, 1], [], []>} : vector<96x32xbf16>, vector<32x128xbf16>, vector<96x128xf32> -> vector<96x128xf32>
    %c0_239 = arith.constant 0 : index
    %c768_240 = arith.constant 768 : index
    %532 = vector.load %arg18[%c0_239, %c768_240] : memref<96x1024xf32, #tpu.memory_space<vmem>>, vector<32x128xf32>
    %533 = vector.extract_strided_slice %531 {offsets = [0, 0], sizes = [32, 128], strides = [1, 1]} : vector<96x128xf32> to vector<32x128xf32>
    %534 = arith.addf %532, %533 : vector<32x128xf32>
    %535 = arith.negf %534 : vector<32x128xf32>
    %536 = math.exp %535 : vector<32x128xf32>
    %cst_241 = arith.constant 1.000000e+00 : f32
    %537 = vector.broadcast %cst_241 : f32 to vector<32x128xf32>
    %538 = arith.addf %537, %536 : vector<32x128xf32>
    %539 = arith.divf %537, %538 : vector<32x128xf32>
    %c32_242 = arith.constant 32 : index
    %c768_243 = arith.constant 768 : index
    %540 = vector.load %arg18[%c32_242, %c768_243] : memref<96x1024xf32, #tpu.memory_space<vmem>>, vector<32x128xf32>
    %541 = vector.extract_strided_slice %531 {offsets = [32, 0], sizes = [32, 128], strides = [1, 1]} : vector<96x128xf32> to vector<32x128xf32>
    %542 = arith.addf %540, %541 : vector<32x128xf32>
    %543 = arith.negf %542 : vector<32x128xf32>
    %544 = math.exp %543 : vector<32x128xf32>
    %cst_244 = arith.constant 1.000000e+00 : f32
    %545 = vector.broadcast %cst_244 : f32 to vector<32x128xf32>
    %546 = arith.addf %545, %544 : vector<32x128xf32>
    %547 = arith.divf %545, %546 : vector<32x128xf32>
    %c64_245 = arith.constant 64 : index
    %c768_246 = arith.constant 768 : index
    %548 = vector.load %arg18[%c64_245, %c768_246] : memref<96x1024xf32, #tpu.memory_space<vmem>>, vector<32x128xf32>
    %549 = vector.extract_strided_slice %531 {offsets = [64, 0], sizes = [32, 128], strides = [1, 1]} : vector<96x128xf32> to vector<32x128xf32>
    %550 = vector.broadcast %342 : vector<32x1xf32> to vector<32x128xf32>
    %551 = arith.addf %549, %550 : vector<32x128xf32>
    %552 = arith.mulf %539, %551 : vector<32x128xf32>
    %553 = arith.addf %548, %552 : vector<32x128xf32>
    %554 = math.tanh %553 : vector<32x128xf32>
    %cst_247 = arith.constant 1.000000e+00 : f32
    %555 = vector.broadcast %cst_247 : f32 to vector<32x128xf32>
    %556 = arith.subf %555, %547 : vector<32x128xf32>
    %557 = arith.mulf %556, %554 : vector<32x128xf32>
    %558 = arith.mulf %547, %528 : vector<32x128xf32>
    %559 = arith.addf %557, %558 : vector<32x128xf32>
    %c0_248 = arith.constant 0 : index
    %c768_249 = arith.constant 768 : index
    %560 = vector.load %arg17[%c0_248, %c768_249] : memref<32x1024xf32, #tpu.memory_space<vmem>>, vector<32x128xf32>
    tpu.vector_store %arg17[%c0_248, %c768_249], %559 {strides = array<i32>} : memref<32x1024xf32, #tpu.memory_space<vmem>>, vector<32x128xf32>,
    %561 = arith.truncf %559 : vector<32x128xf32> to vector<32x128xbf16>
    %cst_250 = arith.constant dense<0.000000e+00> : vector<96x128xf32>
    %562 = tpu.matmul %340, %561, %cst_250 {dimension_numbers = #tpu.dot_dimension_numbers<[1], [0], [0], [1], [0, 0, 1, 1], [], []>} : vector<96x32xbf16>, vector<32x128xbf16>, vector<96x128xf32> -> vector<96x128xf32>
    %c0_251 = arith.constant 0 : index
    %c896_252 = arith.constant 896 : index
    %563 = vector.load %arg18[%c0_251, %c896_252] : memref<96x1024xf32, #tpu.memory_space<vmem>>, vector<32x128xf32>
    %564 = vector.extract_strided_slice %562 {offsets = [0, 0], sizes = [32, 128], strides = [1, 1]} : vector<96x128xf32> to vector<32x128xf32>
    %565 = arith.addf %563, %564 : vector<32x128xf32>
    %566 = arith.negf %565 : vector<32x128xf32>
    %567 = math.exp %566 : vector<32x128xf32>
    %cst_253 = arith.constant 1.000000e+00 : f32
    %568 = vector.broadcast %cst_253 : f32 to vector<32x128xf32>
    %569 = arith.addf %568, %567 : vector<32x128xf32>
    %570 = arith.divf %568, %569 : vector<32x128xf32>
    %c32_254 = arith.constant 32 : index
    %c896_255 = arith.constant 896 : index
    %571 = vector.load %arg18[%c32_254, %c896_255] : memref<96x1024xf32, #tpu.memory_space<vmem>>, vector<32x128xf32>
    %572 = vector.extract_strided_slice %562 {offsets = [32, 0], sizes = [32, 128], strides = [1, 1]} : vector<96x128xf32> to vector<32x128xf32>
    %573 = arith.addf %571, %572 : vector<32x128xf32>
    %574 = arith.negf %573 : vector<32x128xf32>
    %575 = math.exp %574 : vector<32x128xf32>
    %cst_256 = arith.constant 1.000000e+00 : f32
    %576 = vector.broadcast %cst_256 : f32 to vector<32x128xf32>
    %577 = arith.addf %576, %575 : vector<32x128xf32>
    %578 = arith.divf %576, %577 : vector<32x128xf32>
    %c64_257 = arith.constant 64 : index
    %c896_258 = arith.constant 896 : index
    %579 = vector.load %arg18[%c64_257, %c896_258] : memref<96x1024xf32, #tpu.memory_space<vmem>>, vector<32x128xf32>
    %580 = vector.extract_strided_slice %562 {offsets = [64, 0], sizes = [32, 128], strides = [1, 1]} : vector<96x128xf32> to vector<32x128xf32>
    %581 = vector.broadcast %342 : vector<32x1xf32> to vector<32x128xf32>
    %582 = arith.addf %580, %581 : vector<32x128xf32>
    %583 = arith.mulf %570, %582 : vector<32x128xf32>
    %584 = arith.addf %579, %583 : vector<32x128xf32>
    %585 = math.tanh %584 : vector<32x128xf32>
    %cst_259 = arith.constant 1.000000e+00 : f32
    %586 = vector.broadcast %cst_259 : f32 to vector<32x128xf32>
    %587 = arith.subf %586, %578 : vector<32x128xf32>
    %588 = arith.mulf %587, %585 : vector<32x128xf32>
    %589 = arith.mulf %578, %559 : vector<32x128xf32>
    %590 = arith.addf %588, %589 : vector<32x128xf32>
    %c0_260 = arith.constant 0 : index
    %c896_261 = arith.constant 896 : index
    %591 = vector.load %arg17[%c0_260, %c896_261] : memref<32x1024xf32, #tpu.memory_space<vmem>>, vector<32x128xf32>
    tpu.vector_store %arg17[%c0_260, %c896_261], %590 {strides = array<i32>} : memref<32x1024xf32, #tpu.memory_space<vmem>>, vector<32x128xf32>,
    %c0_262 = arith.constant 0 : index
    %c0_263 = arith.constant 0 : index
    %592 = vector.load %arg17[%c0_262, %c0_263] : memref<32x1024xf32, #tpu.memory_space<vmem>>, vector<32x1024xf32>
    %cst_264 = arith.constant dense<0.000000e+00> : vector<1024xf32>
    %593 = vector.multi_reduction <add>, %592, %cst_264 [0] : vector<32x1024xf32> to vector<1024xf32>
    %594 = vector.shape_cast %593 : vector<1024xf32> to vector<1x1024xf32>
    %cst_265 = arith.constant 3.200000e+01 : f32
    %595 = vector.broadcast %cst_265 : f32 to vector<1x1024xf32>
    %596 = arith.divf %594, %595 : vector<1x1024xf32>
    %597 = vector.broadcast %596 : vector<1x1024xf32> to vector<32x1024xf32>
    %598 = arith.subf %592, %597 : vector<32x1024xf32>
    %599 = arith.mulf %598, %598 : vector<32x1024xf32>
    %cst_266 = arith.constant dense<0.000000e+00> : vector<1024xf32>
    %600 = vector.multi_reduction <add>, %599, %cst_266 [0] : vector<32x1024xf32> to vector<1024xf32>
    %601 = vector.shape_cast %600 : vector<1024xf32> to vector<1x1024xf32>
    %cst_267 = arith.constant 3.200000e+01 : f32
    %602 = vector.broadcast %cst_267 : f32 to vector<1x1024xf32>
    %603 = arith.divf %601, %602 : vector<1x1024xf32>
    %604 = vector.broadcast %596 : vector<1x1024xf32> to vector<32x1024xf32>
    %605 = arith.subf %592, %604 : vector<32x1024xf32>
    %cst_268 = arith.constant 9.99999974E-6 : f32
    %606 = vector.broadcast %cst_268 : f32 to vector<1x1024xf32>
    %607 = arith.addf %603, %606 : vector<1x1024xf32>
    %608 = math.rsqrt %607 : vector<1x1024xf32>
    %609 = vector.broadcast %608 : vector<1x1024xf32> to vector<32x1024xf32>
    %610 = arith.mulf %605, %609 : vector<32x1024xf32>
    %c0_269 = arith.constant 0 : index
    %c0_270 = arith.constant 0 : index
    %611 = vector.load %arg8[%c0_269, %c0_270] : memref<32x1xf32, #tpu.memory_space<vmem>>, vector<32x1xf32>
    %612 = vector.broadcast %611 : vector<32x1xf32> to vector<32x1024xf32>
    %613 = arith.mulf %610, %612 : vector<32x1024xf32>
    %c0_271 = arith.constant 0 : index
    %c0_272 = arith.constant 0 : index
    %614 = vector.load %arg9[%c0_271, %c0_272] : memref<32x1xf32, #tpu.memory_space<vmem>>, vector<32x1xf32>
    %615 = vector.broadcast %614 : vector<32x1xf32> to vector<32x1024xf32>
    %616 = arith.addf %613, %615 : vector<32x1024xf32>
    %c0_273 = arith.constant 0 : index
    %c0_274 = arith.constant 0 : index
    %617 = vector.load %arg10[%c0_273, %c0_274] : memref<16x32xbf16, #tpu.memory_space<vmem>>, vector<16x32xbf16>
    %618 = arith.truncf %616 : vector<32x1024xf32> to vector<32x1024xbf16>
    %cst_275 = arith.constant dense<0.000000e+00> : vector<16x1024xf32>
    %619 = tpu.matmul %617, %618, %cst_275 {dimension_numbers = #tpu.dot_dimension_numbers<[1], [0], [0], [1], [0, 0, 1, 1], [], []>} : vector<16x32xbf16>, vector<32x1024xbf16>, vector<16x1024xf32> -> vector<16x1024xf32>
    %c0_276 = arith.constant 0 : index
    %c0_277 = arith.constant 0 : index
    %620 = vector.load %arg11[%c0_276, %c0_277] : memref<16x1xf32, #tpu.memory_space<vmem>>, vector<16x1xf32>
    %621 = vector.broadcast %620 : vector<16x1xf32> to vector<16x1024xf32>
    %622 = arith.addf %619, %621 : vector<16x1024xf32>
    %623 = math.tanh %622 : vector<16x1024xf32>
    %c0_278 = arith.constant 0 : index
    %c0_279 = arith.constant 0 : index
    %624 = vector.load %arg12[%c0_278, %c0_279] : memref<16x1xf32, #tpu.memory_space<vmem>>, vector<16x1xf32>
    %625 = vector.broadcast %624 : vector<16x1xf32> to vector<16x1024xf32>
    %626 = arith.mulf %623, %625 : vector<16x1024xf32>
    %cst_280 = arith.constant dense<0.000000e+00> : vector<1024xf32>
    %627 = vector.multi_reduction <add>, %626, %cst_280 [0] : vector<16x1024xf32> to vector<1024xf32>
    %628 = vector.shape_cast %627 : vector<1024xf32> to vector<1x1024xf32>
    %629 = vector.extract_strided_slice %628 {offsets = [0, 0], sizes = [1, 128], strides = [1, 1]} : vector<1x1024xf32> to vector<1x128xf32>
    %630 = vector.extract_strided_slice %628 {offsets = [0, 128], sizes = [1, 128], strides = [1, 1]} : vector<1x1024xf32> to vector<1x128xf32>
    %631 = arith.maximumf %629, %630 : vector<1x128xf32>
    %632 = vector.extract_strided_slice %628 {offsets = [0, 256], sizes = [1, 128], strides = [1, 1]} : vector<1x1024xf32> to vector<1x128xf32>
    %633 = arith.maximumf %631, %632 : vector<1x128xf32>
    %634 = vector.extract_strided_slice %628 {offsets = [0, 384], sizes = [1, 128], strides = [1, 1]} : vector<1x1024xf32> to vector<1x128xf32>
    %635 = arith.maximumf %633, %634 : vector<1x128xf32>
    %636 = vector.extract_strided_slice %628 {offsets = [0, 512], sizes = [1, 128], strides = [1, 1]} : vector<1x1024xf32> to vector<1x128xf32>
    %637 = arith.maximumf %635, %636 : vector<1x128xf32>
    %638 = vector.extract_strided_slice %628 {offsets = [0, 640], sizes = [1, 128], strides = [1, 1]} : vector<1x1024xf32> to vector<1x128xf32>
    %639 = arith.maximumf %637, %638 : vector<1x128xf32>
    %640 = vector.extract_strided_slice %628 {offsets = [0, 768], sizes = [1, 128], strides = [1, 1]} : vector<1x1024xf32> to vector<1x128xf32>
    %641 = arith.maximumf %639, %640 : vector<1x128xf32>
    %642 = vector.extract_strided_slice %628 {offsets = [0, 896], sizes = [1, 128], strides = [1, 1]} : vector<1x1024xf32> to vector<1x128xf32>
    %643 = arith.maximumf %641, %642 : vector<1x128xf32>
    %644 = vector.extract_strided_slice %628 {offsets = [0, 0], sizes = [1, 128], strides = [1, 1]} : vector<1x1024xf32> to vector<1x128xf32>
    %645 = arith.subf %644, %643 : vector<1x128xf32>
    %646 = math.exp %645 : vector<1x128xf32>
    %647 = vector.extract_strided_slice %628 {offsets = [0, 128], sizes = [1, 128], strides = [1, 1]} : vector<1x1024xf32> to vector<1x128xf32>
    %648 = arith.subf %647, %643 : vector<1x128xf32>
    %649 = math.exp %648 : vector<1x128xf32>
    %650 = vector.extract_strided_slice %628 {offsets = [0, 256], sizes = [1, 128], strides = [1, 1]} : vector<1x1024xf32> to vector<1x128xf32>
    %651 = arith.subf %650, %643 : vector<1x128xf32>
    %652 = math.exp %651 : vector<1x128xf32>
    %653 = vector.extract_strided_slice %628 {offsets = [0, 384], sizes = [1, 128], strides = [1, 1]} : vector<1x1024xf32> to vector<1x128xf32>
    %654 = arith.subf %653, %643 : vector<1x128xf32>
    %655 = math.exp %654 : vector<1x128xf32>
    %656 = vector.extract_strided_slice %628 {offsets = [0, 512], sizes = [1, 128], strides = [1, 1]} : vector<1x1024xf32> to vector<1x128xf32>
    %657 = arith.subf %656, %643 : vector<1x128xf32>
    %658 = math.exp %657 : vector<1x128xf32>
    %659 = vector.extract_strided_slice %628 {offsets = [0, 640], sizes = [1, 128], strides = [1, 1]} : vector<1x1024xf32> to vector<1x128xf32>
    %660 = arith.subf %659, %643 : vector<1x128xf32>
    %661 = math.exp %660 : vector<1x128xf32>
    %662 = vector.extract_strided_slice %628 {offsets = [0, 768], sizes = [1, 128], strides = [1, 1]} : vector<1x1024xf32> to vector<1x128xf32>
    %663 = arith.subf %662, %643 : vector<1x128xf32>
    %664 = math.exp %663 : vector<1x128xf32>
    %665 = vector.extract_strided_slice %628 {offsets = [0, 896], sizes = [1, 128], strides = [1, 1]} : vector<1x1024xf32> to vector<1x128xf32>
    %666 = arith.subf %665, %643 : vector<1x128xf32>
    %667 = math.exp %666 : vector<1x128xf32>
    %668 = arith.addf %646, %649 : vector<1x128xf32>
    %669 = arith.addf %668, %652 : vector<1x128xf32>
    %670 = arith.addf %669, %655 : vector<1x128xf32>
    %671 = arith.addf %670, %658 : vector<1x128xf32>
    %672 = arith.addf %671, %661 : vector<1x128xf32>
    %673 = arith.addf %672, %664 : vector<1x128xf32>
    %674 = arith.addf %673, %667 : vector<1x128xf32>
    %cst_281 = arith.constant 1.000000e+00 : f32
    %675 = vector.broadcast %cst_281 : f32 to vector<1x128xf32>
    %676 = arith.divf %675, %674 : vector<1x128xf32>
    %cst_282 = arith.constant 0.000000e+00 : f32
    %677 = vector.broadcast %cst_282 : f32 to vector<32x128xf32>
    %678 = vector.extract_strided_slice %616 {offsets = [0, 0], sizes = [32, 128], strides = [1, 1]} : vector<32x1024xf32> to vector<32x128xf32>
    %679 = arith.mulf %646, %676 : vector<1x128xf32>
    %680 = vector.broadcast %679 : vector<1x128xf32> to vector<32x128xf32>
    %681 = arith.mulf %678, %680 : vector<32x128xf32>
    %682 = arith.addf %677, %681 : vector<32x128xf32>
    %683 = vector.extract_strided_slice %616 {offsets = [0, 128], sizes = [32, 128], strides = [1, 1]} : vector<32x1024xf32> to vector<32x128xf32>
    %684 = arith.mulf %649, %676 : vector<1x128xf32>
    %685 = vector.broadcast %684 : vector<1x128xf32> to vector<32x128xf32>
    %686 = arith.mulf %683, %685 : vector<32x128xf32>
    %687 = arith.addf %682, %686 : vector<32x128xf32>
    %688 = vector.extract_strided_slice %616 {offsets = [0, 256], sizes = [32, 128], strides = [1, 1]} : vector<32x1024xf32> to vector<32x128xf32>
    %689 = arith.mulf %652, %676 : vector<1x128xf32>
    %690 = vector.broadcast %689 : vector<1x128xf32> to vector<32x128xf32>
    %691 = arith.mulf %688, %690 : vector<32x128xf32>
    %692 = arith.addf %687, %691 : vector<32x128xf32>
    %693 = vector.extract_strided_slice %616 {offsets = [0, 384], sizes = [32, 128], strides = [1, 1]} : vector<32x1024xf32> to vector<32x128xf32>
    %694 = arith.mulf %655, %676 : vector<1x128xf32>
    %695 = vector.broadcast %694 : vector<1x128xf32> to vector<32x128xf32>
    %696 = arith.mulf %693, %695 : vector<32x128xf32>
    %697 = arith.addf %692, %696 : vector<32x128xf32>
    %698 = vector.extract_strided_slice %616 {offsets = [0, 512], sizes = [32, 128], strides = [1, 1]} : vector<32x1024xf32> to vector<32x128xf32>
    %699 = arith.mulf %658, %676 : vector<1x128xf32>
    %700 = vector.broadcast %699 : vector<1x128xf32> to vector<32x128xf32>
    %701 = arith.mulf %698, %700 : vector<32x128xf32>
    %702 = arith.addf %697, %701 : vector<32x128xf32>
    %703 = vector.extract_strided_slice %616 {offsets = [0, 640], sizes = [32, 128], strides = [1, 1]} : vector<32x1024xf32> to vector<32x128xf32>
    %704 = arith.mulf %661, %676 : vector<1x128xf32>
    %705 = vector.broadcast %704 : vector<1x128xf32> to vector<32x128xf32>
    %706 = arith.mulf %703, %705 : vector<32x128xf32>
    %707 = arith.addf %702, %706 : vector<32x128xf32>
    %708 = vector.extract_strided_slice %616 {offsets = [0, 768], sizes = [32, 128], strides = [1, 1]} : vector<32x1024xf32> to vector<32x128xf32>
    %709 = arith.mulf %664, %676 : vector<1x128xf32>
    %710 = vector.broadcast %709 : vector<1x128xf32> to vector<32x128xf32>
    %711 = arith.mulf %708, %710 : vector<32x128xf32>
    %712 = arith.addf %707, %711 : vector<32x128xf32>
    %713 = vector.extract_strided_slice %616 {offsets = [0, 896], sizes = [32, 128], strides = [1, 1]} : vector<32x1024xf32> to vector<32x128xf32>
    %714 = arith.mulf %667, %676 : vector<1x128xf32>
    %715 = vector.broadcast %714 : vector<1x128xf32> to vector<32x128xf32>
    %716 = arith.mulf %713, %715 : vector<32x128xf32>
    %717 = arith.addf %712, %716 : vector<32x128xf32>
    %718 = vector.extract_strided_slice %616 {offsets = [0, 896], sizes = [32, 128], strides = [1, 1]} : vector<32x1024xf32> to vector<32x128xf32>
    %c0_283 = arith.constant 0 : index
    %c0_284 = arith.constant 0 : index
    %719 = vector.load %arg13[%c0_283, %c0_284] : memref<32x1xf32, #tpu.memory_space<vmem>>, vector<32x1xf32>
    %720 = vector.broadcast %719 : vector<32x1xf32> to vector<32x128xf32>
    %721 = arith.mulf %720, %718 : vector<32x128xf32>
    %c0_285 = arith.constant 0 : index
    %c0_286 = arith.constant 0 : index
    %722 = vector.load %arg14[%c0_285, %c0_286] : memref<32x1xf32, #tpu.memory_space<vmem>>, vector<32x1xf32>
    %723 = vector.broadcast %722 : vector<32x1xf32> to vector<32x128xf32>
    %724 = arith.mulf %723, %717 : vector<32x128xf32>
    %725 = arith.addf %721, %724 : vector<32x128xf32>
    %cst_287 = arith.constant dense<0.000000e+00> : vector<128xf32>
    %726 = vector.multi_reduction <add>, %725, %cst_287 [0] : vector<32x128xf32> to vector<128xf32>
    %727 = vector.shape_cast %726 : vector<128xf32> to vector<1x128xf32>
    %c0_288 = arith.constant 0 : index
    %c0_289 = arith.constant 0 : index
    %728 = vector.load %arg15[%c0_288, %c0_289] : memref<1x1xf32, #tpu.memory_space<vmem>>, vector<1x1xf32>
    %729 = vector.broadcast %728 : vector<1x1xf32> to vector<1x128xf32>
    %730 = arith.addf %727, %729 : vector<1x128xf32>
    %c0_290 = arith.constant 0 : index
    %c0_291 = arith.constant 0 : index
    %731 = vector.load %arg16[%c0_290, %c0_291] : memref<1x128xf32, #tpu.memory_space<vmem>>, vector<1x128xf32>
    tpu.vector_store %arg16[%c0_290, %c0_291], %730 {strides = array<i32>} : memref<1x128xf32, #tpu.memory_space<vmem>>, vector<1x128xf32>,
    return
  }
  func.func @transform_0(%arg0: i32) -> (i32, i32, i32) {
    %c0_i32 = arith.constant 0 : i32
    %c0_i32_0 = arith.constant 0 : i32
    %c0_i32_1 = arith.constant 0 : i32
    return %c0_i32, %c0_i32_0, %arg0 : i32, i32, i32
  }
  func.func @transform_1(%arg0: i32) -> (i32, i32) {
    %c0_i32 = arith.constant 0 : i32
    %c0_i32_0 = arith.constant 0 : i32
    %c0_i32_1 = arith.constant 0 : i32
    return %c0_i32, %c0_i32_0 : i32, i32
  }
  func.func @transform_2(%arg0: i32) -> (i32, i32) {
    %c0_i32 = arith.constant 0 : i32
    %c0_i32_0 = arith.constant 0 : i32
    %c0_i32_1 = arith.constant 0 : i32
    return %c0_i32, %c0_i32_0 : i32, i32
  }
  func.func @transform_3(%arg0: i32) -> (i32, i32, i32) {
    %c0_i32 = arith.constant 0 : i32
    %c0_i32_0 = arith.constant 0 : i32
    %c0_i32_1 = arith.constant 0 : i32
    %c0_i32_2 = arith.constant 0 : i32
    return %c0_i32, %c0_i32_0, %c0_i32_1 : i32, i32, i32
  }
  func.func @transform_4(%arg0: i32) -> (i32, i32, i32) {
    %c0_i32 = arith.constant 0 : i32
    %c0_i32_0 = arith.constant 0 : i32
    %c0_i32_1 = arith.constant 0 : i32
    %c0_i32_2 = arith.constant 0 : i32
    return %c0_i32, %c0_i32_0, %c0_i32_1 : i32, i32, i32
  }
  func.func @transform_5(%arg0: i32) -> (i32, i32, i32) {
    %c0_i32 = arith.constant 0 : i32
    %c0_i32_0 = arith.constant 0 : i32
    %c0_i32_1 = arith.constant 0 : i32
    %c0_i32_2 = arith.constant 0 : i32
    return %c0_i32, %c0_i32_0, %c0_i32_1 : i32, i32, i32
  }
  func.func @transform_6(%arg0: i32) -> (i32, i32, i32) {
    %c0_i32 = arith.constant 0 : i32
    %c0_i32_0 = arith.constant 0 : i32
    %c0_i32_1 = arith.constant 0 : i32
    %c0_i32_2 = arith.constant 0 : i32
    return %c0_i32, %c0_i32_0, %c0_i32_1 : i32, i32, i32
  }
  func.func @transform_7(%arg0: i32) -> (i32, i32) {
    %c0_i32 = arith.constant 0 : i32
    %c0_i32_0 = arith.constant 0 : i32
    %c0_i32_1 = arith.constant 0 : i32
    return %c0_i32, %c0_i32_0 : i32, i32
  }
  func.func @transform_8(%arg0: i32) -> (i32, i32) {
    %c0_i32 = arith.constant 0 : i32
    %c0_i32_0 = arith.constant 0 : i32
    %c0_i32_1 = arith.constant 0 : i32
    return %c0_i32, %c0_i32_0 : i32, i32
  }
  func.func @transform_9(%arg0: i32) -> (i32, i32) {
    %c0_i32 = arith.constant 0 : i32
    %c0_i32_0 = arith.constant 0 : i32
    %c0_i32_1 = arith.constant 0 : i32
    return %c0_i32, %c0_i32_0 : i32, i32
  }
  func.func @transform_10(%arg0: i32) -> (i32, i32) {
    %c0_i32 = arith.constant 0 : i32
    %c0_i32_0 = arith.constant 0 : i32
    %c0_i32_1 = arith.constant 0 : i32
    return %c0_i32, %c0_i32_0 : i32, i32
  }
  func.func @transform_11(%arg0: i32) -> (i32, i32) {
    %c0_i32 = arith.constant 0 : i32
    %c0_i32_0 = arith.constant 0 : i32
    %c0_i32_1 = arith.constant 0 : i32
    return %c0_i32, %c0_i32_0 : i32, i32
  }
  func.func @transform_12(%arg0: i32) -> (i32, i32) {
    %c0_i32 = arith.constant 0 : i32
    %c0_i32_0 = arith.constant 0 : i32
    %c0_i32_1 = arith.constant 0 : i32
    return %c0_i32, %c0_i32_0 : i32, i32
  }
  func.func @transform_13(%arg0: i32) -> (i32, i32) {
    %c0_i32 = arith.constant 0 : i32
    %c0_i32_0 = arith.constant 0 : i32
    %c0_i32_1 = arith.constant 0 : i32
    return %c0_i32, %c0_i32_0 : i32, i32
  }
  func.func @transform_14(%arg0: i32) -> (i32, i32) {
    %c0_i32 = arith.constant 0 : i32
    %c0_i32_0 = arith.constant 0 : i32
    %c0_i32_1 = arith.constant 0 : i32
    return %c0_i32, %c0_i32_0 : i32, i32
  }
  func.func @transform_15(%arg0: i32) -> (i32, i32) {
    %c0_i32 = arith.constant 0 : i32
    %c0_i32_0 = arith.constant 0 : i32
    return %c0_i32, %arg0 : i32, i32
  }
}

</mosaic_0001>

<llo_original>
// kernel: tpu_custom_call.1
$region0: #{tpu_custom_call.1}
  #allocation0 [shape = 'u32[]', space=smem, size = 0x4, offset = 0x4, fixed_abs, tag = 'smem constant byte address 0x4 - core index']
  #allocation1 [shape = 'u32[72,128]{1,0:T(1,128)}', space=vmem, size = 0x9000, scoped, tag = 'internal scratch']
  #allocation2 [shape = 'f32[32,1024]{1,0:T(8,128)}', space=vmem, size = 0x20000, scoped, tag = 'scratch operand']
  #allocation3 [shape = 'f32[96,1024]{1,0:T(8,128)}', space=vmem, size = 0x60000, scoped, tag = 'scratch operand']
  #allocation4 [shape = 'f32[1,1]{1,0:T(1,128)S(1)}', space=vmem, size = 0x200, scoped, tag = 'scoped memory for tpu_custom_call.1']
  %s0 = inlined_call_operand.vmem [shape: f32[8,6,128], index: 0, kind: input, shape index: {}]
  %s1 = inlined_call_operand.vmem [shape: bf16[32,6], index: 1, kind: input, shape index: {}]
  %s2 = inlined_call_operand.vmem [shape: f32[32,1], index: 2, kind: input, shape index: {}]
  %s3 = inlined_call_operand.vmem [shape: bf16[2,96,32], index: 3, kind: input, shape index: {}]
  %s4 = inlined_call_operand.vmem [shape: bf16[2,96,32], index: 4, kind: input, shape index: {}]
  %s5 = inlined_call_operand.vmem [shape: f32[2,96,1], index: 5, kind: input, shape index: {}]
  %s6 = inlined_call_operand.vmem [shape: f32[2,32,1], index: 6, kind: input, shape index: {}]
  %s7 = inlined_call_operand.vmem [shape: f32[32,1], index: 7, kind: input, shape index: {}]
  %s8 = inlined_call_operand.vmem [shape: f32[32,1], index: 8, kind: input, shape index: {}]
  %s9 = inlined_call_operand.vmem [shape: bf16[16,32], index: 9, kind: input, shape index: {}]
  %s10 = inlined_call_operand.vmem [shape: f32[16,1], index: 10, kind: input, shape index: {}]
  %s11 = inlined_call_operand.vmem [shape: f32[16,1], index: 11, kind: input, shape index: {}]
  %s12 = inlined_call_operand.vmem [shape: f32[32,1], index: 12, kind: input, shape index: {}]
  %s13 = inlined_call_operand.vmem [shape: f32[32,1], index: 13, kind: input, shape index: {}]
  %s14 = inlined_call_operand.<no memory space> [shape: f32[1,1], index: 14, kind: input, shape index: {}]
  %s15 = inlined_call_operand.hbm [shape: f32[1,128], index: 15, kind: output, shape index: {}]
  %s16 = sld [smem:[#allocation0]]
  $region70: #{tpu_custom_call.1} parent=0
    _
  %s18 = ssub.s32 1, %s16
  %s19 = scalar_select 0, %s18, %s16
  %v20 = vstv %s14
  %21 = vst [vmem:[#allocation4] sm:$0x1] %v20
  $region1: #{tpu_custom_call.1} parent=0
    #allocation5 [shape = 'u8[512]{0}', space=vmem, size = 0x400, scoped, tag = 'output window, operand 0, single buffered']
    #allocation6 [shape = 's32[1]{0}', space=sflag, size = 0x4, scoped, tag = 'scoped memory for tpu_custom_call.1']
    %22 = vsyncpa [#allocation6], 0
    // Predicated region
    $region2: #{tpu_custom_call.1} parent=1 // pred_check
      _
    $region3: #{tpu_custom_call.1} parent=1 // pred_check_branch
      %24 = sbr.rel (0) target = $region5
    $region4: #{tpu_custom_call.1} parent=1 // pred_region
      _
    $region5: #{tpu_custom_call.1} parent=1 // pred_fallthru
      _
    // Predicated region
    $region6: #{tpu_custom_call.1} parent=1 // pred_check
      _
    $region7: #{tpu_custom_call.1} parent=1 // pred_check_branch
      %26 = sbr.rel (0) target = $region9
    $region8: #{tpu_custom_call.1} parent=1 // pred_region
      _
    $region9: #{tpu_custom_call.1} parent=1 // pred_fallthru
      _
    // Predicated region
    $region10: #{tpu_custom_call.1} parent=1 // pred_check
      _
    $region11: #{tpu_custom_call.1} parent=1 // pred_check_branch
      %28 = sbr.rel (0) target = $region13
    $region12: #{tpu_custom_call.1} parent=1 // pred_region
      _
    $region13: #{tpu_custom_call.1} parent=1 // pred_fallthru
      _
    // Predicated region
    $region14: #{tpu_custom_call.1} parent=1 // pred_check
      _
    $region15: #{tpu_custom_call.1} parent=1 // pred_check_branch
      %30 = sbr.rel (0) target = $region17
    $region16: #{tpu_custom_call.1} parent=1 // pred_region
      _
    $region17: #{tpu_custom_call.1} parent=1 // pred_fallthru
      _
    // Predicated region
    $region18: #{tpu_custom_call.1} parent=1 // pred_check
      _
    $region19: #{tpu_custom_call.1} parent=1 // pred_check_branch
      %32 = sbr.rel (0) target = $region21
    $region20: #{tpu_custom_call.1} parent=1 // pred_region
      _
    $region21: #{tpu_custom_call.1} parent=1 // pred_fallthru
      _
    // Predicated region
    $region22: #{tpu_custom_call.1} parent=1 // pred_check
      _
    $region23: #{tpu_custom_call.1} parent=1 // pred_check_branch
      %34 = sbr.rel (0) target = $region25
    $region24: #{tpu_custom_call.1} parent=1 // pred_region
      _
    $region25: #{tpu_custom_call.1} parent=1 // pred_fallthru
      _
    // Predicated region
    $region26: #{tpu_custom_call.1} parent=1 // pred_check
      _
    $region27: #{tpu_custom_call.1} parent=1 // pred_check_branch
      %36 = sbr.rel (0) target = $region29
    $region28: #{tpu_custom_call.1} parent=1 // pred_region
      _
    $region29: #{tpu_custom_call.1} parent=1 // pred_fallthru
      _
    // Predicated region
    $region30: #{tpu_custom_call.1} parent=1 // pred_check
      _
    $region31: #{tpu_custom_call.1} parent=1 // pred_check_branch
      %38 = sbr.rel (0) target = $region33
    $region32: #{tpu_custom_call.1} parent=1 // pred_region
      _
    $region33: #{tpu_custom_call.1} parent=1 // pred_fallthru
      _
    // Predicated region
    $region34: #{tpu_custom_call.1} parent=1 // pred_check
      _
    $region35: #{tpu_custom_call.1} parent=1 // pred_check_branch
      %40 = sbr.rel (0) target = $region37
    $region36: #{tpu_custom_call.1} parent=1 // pred_region
      _
    $region37: #{tpu_custom_call.1} parent=1 // pred_fallthru
      _
    // Predicated region
    $region38: #{tpu_custom_call.1} parent=1 // pred_check
      _
    $region39: #{tpu_custom_call.1} parent=1 // pred_check_branch
      %42 = sbr.rel (0) target = $region41
    $region40: #{tpu_custom_call.1} parent=1 // pred_region
      _
    $region41: #{tpu_custom_call.1} parent=1 // pred_fallthru
      _
    // Predicated region
    $region42: #{tpu_custom_call.1} parent=1 // pred_check
      _
    $region43: #{tpu_custom_call.1} parent=1 // pred_check_branch
      %44 = sbr.rel (0) target = $region45
    $region44: #{tpu_custom_call.1} parent=1 // pred_region
      _
    $region45: #{tpu_custom_call.1} parent=1 // pred_fallthru
      _
    // Predicated region
    $region46: #{tpu_custom_call.1} parent=1 // pred_check
      _
    $region47: #{tpu_custom_call.1} parent=1 // pred_check_branch
      %46 = sbr.rel (0) target = $region49
    $region48: #{tpu_custom_call.1} parent=1 // pred_region
      _
    $region49: #{tpu_custom_call.1} parent=1 // pred_fallthru
      _
    // Predicated region
    $region50: #{tpu_custom_call.1} parent=1 // pred_check
      _
    $region51: #{tpu_custom_call.1} parent=1 // pred_check_branch
      %48 = sbr.rel (0) target = $region53
    $region52: #{tpu_custom_call.1} parent=1 // pred_region
      _
    $region53: #{tpu_custom_call.1} parent=1 // pred_fallthru
      _
    // Predicated region
    $region54: #{tpu_custom_call.1} parent=1 // pred_check
      _
    $region55: #{tpu_custom_call.1} parent=1 // pred_check_branch
      %50 = sbr.rel (0) target = $region57
    $region56: #{tpu_custom_call.1} parent=1 // pred_region
      _
    $region57: #{tpu_custom_call.1} parent=1 // pred_fallthru
      _
    // Predicated region
    $region58: #{tpu_custom_call.1} parent=1 // pred_check
      _
    $region59: #{tpu_custom_call.1} parent=1 // pred_check_branch
      %52 = sbr.rel (0) target = $region61
    $region60: #{tpu_custom_call.1} parent=1 // pred_region
      _
    $region61: #{tpu_custom_call.1} parent=1 // pred_fallthru
      _
    %v54 = vld [vmem:[%s1] sm:$0xf]
    %v55 = vld [vmem:[%s1 + $0x4] sm:$0xf]
    %v56 = vld [vmem:[%s1 + $0x8] sm:$0xf]
    %v57 = vld [vmem:[%s1 + $0xc] sm:$0xf]
    %v58 = vld [vmem:[%s2] sm:$0xff]
    %v59 = vld [vmem:[%s2 + $0x8] sm:$0xff]
    %v60 = vld [vmem:[%s2 + $0x10] sm:$0xff]
    %v61 = vld [vmem:[%s2 + $0x18] sm:$0xff]
    %v62 = vld [vmem:[%s0] sm:$0x3f]
    %v63 = vpack.c.bf16 %v62, %v62
    %65 = vset.pattern.permute.xlu0 0
    %66 = vperm.xlu0 %65, %v58
    %v67 = vpop.permute.xlu0 %66
    %70 = vset.pattern.permute.xlu0 0
    %71 = vperm.xlu0 %70, %v59
    %v72 = vpop.permute.xlu0 %71
    %75 = vset.pattern.permute.xlu0 0
    %76 = vperm.xlu0 %75, %v60
    %v77 = vpop.permute.xlu0 %76
    %80 = vset.pattern.permute.xlu0 0
    %81 = vperm.xlu0 %80, %v61
    %v82 = vpop.permute.xlu0 %81
    %v88 = vunpack.c.l.b16 %v54
    %v89 = vunpack.c.l.b16 %v55
    %v90 = vunpack.c.l.b16 %v56
    %v91 = vunpack.c.l.b16 %v57
    %v92 = vpack.c.b16 %v89, %v88
    %v93 = vpack.c.b16 %v91, %v90
    %vm94 = vcmask 48128
    %v96 = vsel %vm94, %v92, 0
    %v99 = vsel %vm94, %v93, 0
    %vm101 = vcmask 1042432
    %v103 = vsel %vm101, %v63, 0
    %105 = vmatpush.bf16.msra.mxu0 0
    %106 = vmatpush.bf16.msra.mxu0 0
    %107 = vmatpush.bf16.msra.mxu0 0
    %108 = vmatpush.bf16.msra.mxu0 0
    %109 = vmatpush.bf16.msra.mxu0 0
    %110 = vmatpush.bf16.msra.mxu0 0
    %111 = vmatpush.bf16.msra.mxu0 0
    %112 = vmatpush.bf16.msra.mxu0 %v103
    %113 = vmatmul.bf16.gmra.mxu0 %v96
    %v114 = vpop.f32.mrf.mxu0
    %v115 = vadd.f32 %v67, %v114
    %v116 = vpop.f32.mrf.mxu0
    %v117 = vadd.f32 %v72, %v116
    %118 = vmatmul.bf16.gmra.mxu0 %v99
    %v119 = vpop.f32.mrf.mxu0
    %v120 = vadd.f32 %v77, %v119
    %v121 = vpop.f32.mrf.mxu0
    %v122 = vadd.f32 %v82, %v121
    %123 = vdwg.mxu0
    %v124 = vtanh.pop %v115
    %v125 = vtanh.pop %v117
    %v126 = vtanh.pop %v120
    %v127 = vtanh.pop %v122
    %128 = vst [vmem:[#allocation2] sm:$0xff] %v124
    %129 = vst [vmem:[#allocation2 + $0x40] sm:$0xff] %v125
    %130 = vst [vmem:[#allocation2 + $0x80] sm:$0xff] %v126
    %131 = vst [vmem:[#allocation2 + $0xc0] sm:$0xff] %v127
    %s132 = scalar_lea.vmem %s0, 8
    %v133 = vld [vmem:[%s132] sm:$0x3f]
    %v134 = vpack.c.bf16 %v133, %v133
    %v136 = vsel %vm101, %v134, 0
    %138 = vmatpush.bf16.msra.mxu0 0
    %139 = vmatpush.bf16.msra.mxu0 0
    %140 = vmatpush.bf16.msra.mxu0 0
    %141 = vmatpush.bf16.msra.mxu0 0
    %142 = vmatpush.bf16.msra.mxu0 0
    %143 = vmatpush.bf16.msra.mxu0 0
    %144 = vmatpush.bf16.msra.mxu0 0
    %145 = vmatpush.bf16.msra.mxu0 %v136
    %146 = vmatmul.bf16.gmra.mxu0 %v96
    %v147 = vpop.f32.mrf.mxu0
    %v148 = vadd.f32 %v67, %v147
    %v149 = vpop.f32.mrf.mxu0
    %v150 = vadd.f32 %v72, %v149
    %151 = vmatmul.bf16.gmra.mxu0 %v99
    %v152 = vpop.f32.mrf.mxu0
    %v153 = vadd.f32 %v77, %v152
    %v154 = vpop.f32.mrf.mxu0
    %v155 = vadd.f32 %v82, %v154
    %156 = vdwg.mxu0
    %v157 = vtanh.pop %v148
    %v158 = vtanh.pop %v150
    %v159 = vtanh.pop %v153
    %v160 = vtanh.pop %v155
    %161 = vst [vmem:[#allocation2 + $0x8] sm:$0xff] %v157
    %162 = vst [vmem:[#allocation2 + $0x48] sm:$0xff] %v158
    %163 = vst [vmem:[#allocation2 + $0x88] sm:$0xff] %v159
    %164 = vst [vmem:[#allocation2 + $0xc8] sm:$0xff] %v160
    %s165 = scalar_lea.vmem %s0, 16
    %v166 = vld [vmem:[%s165] sm:$0x3f]
    %v167 = vpack.c.bf16 %v166, %v166
    %v169 = vsel %vm101, %v167, 0
    %171 = vmatpush.bf16.msra.mxu0 0
    %172 = vmatpush.bf16.msra.mxu0 0
    %173 = vmatpush.bf16.msra.mxu0 0
    %174 = vmatpush.bf16.msra.mxu0 0
    %175 = vmatpush.bf16.msra.mxu0 0
    %176 = vmatpush.bf16.msra.mxu0 0
    %177 = vmatpush.bf16.msra.mxu0 0
    %178 = vmatpush.bf16.msra.mxu0 %v169
    %179 = vmatmul.bf16.gmra.mxu0 %v96
    %v180 = vpop.f32.mrf.mxu0
    %v181 = vadd.f32 %v67, %v180
    %v182 = vpop.f32.mrf.mxu0
    %v183 = vadd.f32 %v72, %v182
    %184 = vmatmul.bf16.gmra.mxu0 %v99
    %v185 = vpop.f32.mrf.mxu0
    %v186 = vadd.f32 %v77, %v185
    %v187 = vpop.f32.mrf.mxu0
    %v188 = vadd.f32 %v82, %v187
    %189 = vdwg.mxu0
    %v190 = vtanh.pop %v181
    %v191 = vtanh.pop %v183
    %v192 = vtanh.pop %v186
    %v193 = vtanh.pop %v188
    %194 = vst [vmem:[#allocation2 + $0x10] sm:$0xff] %v190
    %195 = vst [vmem:[#allocation2 + $0x50] sm:$0xff] %v191
    %196 = vst [vmem:[#allocation2 + $0x90] sm:$0xff] %v192
    %197 = vst [vmem:[#allocation2 + $0xd0] sm:$0xff] %v193
    %s198 = scalar_lea.vmem %s0, 24
    %v199 = vld [vmem:[%s198] sm:$0x3f]
    %v200 = vpack.c.bf16 %v199, %v199
    %v202 = vsel %vm101, %v200, 0
    %204 = vmatpush.bf16.msra.mxu0 0
    %205 = vmatpush.bf16.msra.mxu0 0
    %206 = vmatpush.bf16.msra.mxu0 0
    %207 = vmatpush.bf16.msra.mxu0 0
    %208 = vmatpush.bf16.msra.mxu0 0
    %209 = vmatpush.bf16.msra.mxu0 0
    %210 = vmatpush.bf16.msra.mxu0 0
    %211 = vmatpush.bf16.msra.mxu0 %v202
    %212 = vmatmul.bf16.gmra.mxu0 %v96
    %v213 = vpop.f32.mrf.mxu0
    %v214 = vadd.f32 %v67, %v213
    %v215 = vpop.f32.mrf.mxu0
    %v216 = vadd.f32 %v72, %v215
    %217 = vmatmul.bf16.gmra.mxu0 %v99
    %v218 = vpop.f32.mrf.mxu0
    %v219 = vadd.f32 %v77, %v218
    %v220 = vpop.f32.mrf.mxu0
    %v221 = vadd.f32 %v82, %v220
    %222 = vdwg.mxu0
    %v223 = vtanh.pop %v214
    %v224 = vtanh.pop %v216
    %v225 = vtanh.pop %v219
    %v226 = vtanh.pop %v221
    %227 = vst [vmem:[#allocation2 + $0x18] sm:$0xff] %v223
    %228 = vst [vmem:[#allocation2 + $0x58] sm:$0xff] %v224
    %229 = vst [vmem:[#allocation2 + $0x98] sm:$0xff] %v225
    %230 = vst [vmem:[#allocation2 + $0xd8] sm:$0xff] %v226
    %s231 = scalar_lea.vmem %s0, 32
    %v232 = vld [vmem:[%s231] sm:$0x3f]
    %v233 = vpack.c.bf16 %v232, %v232
    %v235 = vsel %vm101, %v233, 0
    %237 = vmatpush.bf16.msra.mxu0 0
    %238 = vmatpush.bf16.msra.mxu0 0
    %239 = vmatpush.bf16.msra.mxu0 0
    %240 = vmatpush.bf16.msra.mxu0 0
    %241 = vmatpush.bf16.msra.mxu0 0
    %242 = vmatpush.bf16.msra.mxu0 0
    %243 = vmatpush.bf16.msra.mxu0 0
    %244 = vmatpush.bf16.msra.mxu0 %v235
    %245 = vmatmul.bf16.gmra.mxu0 %v96
    %v246 = vpop.f32.mrf.mxu0
    %v247 = vadd.f32 %v67, %v246
    %v248 = vpop.f32.mrf.mxu0
    %v249 = vadd.f32 %v72, %v248
    %250 = vmatmul.bf16.gmra.mxu0 %v99
    %v251 = vpop.f32.mrf.mxu0
    %v252 = vadd.f32 %v77, %v251
    %v253 = vpop.f32.mrf.mxu0
    %v254 = vadd.f32 %v82, %v253
    %255 = vdwg.mxu0
    %v256 = vtanh.pop %v247
    %v257 = vtanh.pop %v249
    %v258 = vtanh.pop %v252
    %v259 = vtanh.pop %v254
    %260 = vst [vmem:[#allocation2 + $0x20] sm:$0xff] %v256
    %261 = vst [vmem:[#allocation2 + $0x60] sm:$0xff] %v257
    %262 = vst [vmem:[#allocation2 + $0xa0] sm:$0xff] %v258
    %263 = vst [vmem:[#allocation2 + $0xe0] sm:$0xff] %v259
    %s264 = scalar_lea.vmem %s0, 40
    %v265 = vld [vmem:[%s264] sm:$0x3f]
    %v266 = vpack.c.bf16 %v265, %v265
    %v268 = vsel %vm101, %v266, 0
    %270 = vmatpush.bf16.msra.mxu0 0
    %271 = vmatpush.bf16.msra.mxu0 0
    %272 = vmatpush.bf16.msra.mxu0 0
    %273 = vmatpush.bf16.msra.mxu0 0
    %274 = vmatpush.bf16.msra.mxu0 0
    %275 = vmatpush.bf16.msra.mxu0 0
    %276 = vmatpush.bf16.msra.mxu0 0
    %277 = vmatpush.bf16.msra.mxu0 %v268
    %278 = vmatmul.bf16.gmra.mxu0 %v96
    %v279 = vpop.f32.mrf.mxu0
    %v280 = vadd.f32 %v67, %v279
    %v281 = vpop.f32.mrf.mxu0
    %v282 = vadd.f32 %v72, %v281
    %283 = vmatmul.bf16.gmra.mxu0 %v99
    %v284 = vpop.f32.mrf.mxu0
    %v285 = vadd.f32 %v77, %v284
    %v286 = vpop.f32.mrf.mxu0
    %v287 = vadd.f32 %v82, %v286
    %288 = vdwg.mxu0
    %v289 = vtanh.pop %v280
    %v290 = vtanh.pop %v282
    %v291 = vtanh.pop %v285
    %v292 = vtanh.pop %v287
    %293 = vst [vmem:[#allocation2 + $0x28] sm:$0xff] %v289
    %294 = vst [vmem:[#allocation2 + $0x68] sm:$0xff] %v290
    %295 = vst [vmem:[#allocation2 + $0xa8] sm:$0xff] %v291
    %296 = vst [vmem:[#allocation2 + $0xe8] sm:$0xff] %v292
    %s297 = scalar_lea.vmem %s0, 48
    %v298 = vld [vmem:[%s297] sm:$0x3f]
    %v299 = vpack.c.bf16 %v298, %v298
    %v301 = vsel %vm101, %v299, 0
    %303 = vmatpush.bf16.msra.mxu0 0
    %304 = vmatpush.bf16.msra.mxu0 0
    %305 = vmatpush.bf16.msra.mxu0 0
    %306 = vmatpush.bf16.msra.mxu0 0
    %307 = vmatpush.bf16.msra.mxu0 0
    %308 = vmatpush.bf16.msra.mxu0 0
    %309 = vmatpush.bf16.msra.mxu0 0
    %310 = vmatpush.bf16.msra.mxu0 %v301
    %311 = vmatmul.bf16.gmra.mxu0 %v96
    %v312 = vpop.f32.mrf.mxu0
    %v313 = vadd.f32 %v67, %v312
    %v314 = vpop.f32.mrf.mxu0
    %v315 = vadd.f32 %v72, %v314
    %316 = vmatmul.bf16.gmra.mxu0 %v99
    %v317 = vpop.f32.mrf.mxu0
    %v318 = vadd.f32 %v77, %v317
    %v319 = vpop.f32.mrf.mxu0
    %v320 = vadd.f32 %v82, %v319
    %321 = vdwg.mxu0
    %v322 = vtanh.pop %v313
    %v323 = vtanh.pop %v315
    %v324 = vtanh.pop %v318
    %v325 = vtanh.pop %v320
    %326 = vst [vmem:[#allocation2 + $0x30] sm:$0xff] %v322
    %327 = vst [vmem:[#allocation2 + $0x70] sm:$0xff] %v323
    %328 = vst [vmem:[#allocation2 + $0xb0] sm:$0xff] %v324
    %329 = vst [vmem:[#allocation2 + $0xf0] sm:$0xff] %v325
    %s330 = scalar_lea.vmem %s0, 56
    %v331 = vld [vmem:[%s330] sm:$0x3f]
    %v332 = vpack.c.bf16 %v331, %v331
    %v334 = vsel %vm101, %v332, 0
    %336 = vmatpush.bf16.msra.mxu0 0
    %337 = vmatpush.bf16.msra.mxu0 0
    %338 = vmatpush.bf16.msra.mxu0 0
    %339 = vmatpush.bf16.msra.mxu0 0
    %340 = vmatpush.bf16.msra.mxu0 0
    %341 = vmatpush.bf16.msra.mxu0 0
    %342 = vmatpush.bf16.msra.mxu0 0
    %343 = vmatpush.bf16.msra.mxu0 %v334
    %344 = vmatmul.bf16.gmra.mxu0 %v96
    %v345 = vpop.f32.mrf.mxu0
    %v346 = vadd.f32 %v67, %v345
    %v347 = vpop.f32.mrf.mxu0
    %v348 = vadd.f32 %v72, %v347
    %349 = vmatmul.bf16.gmra.mxu0 %v99
    %v350 = vpop.f32.mrf.mxu0
    %v351 = vadd.f32 %v77, %v350
    %v352 = vpop.f32.mrf.mxu0
    %v353 = vadd.f32 %v82, %v352
    %354 = vdwg.mxu0
    %v355 = vtanh.pop %v346
    %v356 = vtanh.pop %v348
    %v357 = vtanh.pop %v351
    %v358 = vtanh.pop %v353
    %359 = vst [vmem:[#allocation2 + $0x38] sm:$0xff] %v355
    %360 = vst [vmem:[#allocation2 + $0x78] sm:$0xff] %v356
    %361 = vst [vmem:[#allocation2 + $0xb8] sm:$0xff] %v357
    %362 = vst [vmem:[#allocation2 + $0xf8] sm:$0xff] %v358
    %v363 = vld [vmem:[%s3] sm:$0xf]
    %v364 = vld [vmem:[%s3 + $0x4] sm:$0xf]
    %v365 = vld [vmem:[%s3 + $0x8] sm:$0xf]
    %v366 = vld [vmem:[%s3 + $0xc] sm:$0xf]
    %v367 = vld [vmem:[%s3 + $0x10] sm:$0xf]
    %v368 = vld [vmem:[%s3 + $0x14] sm:$0xf]
    %v369 = vld [vmem:[%s3 + $0x18] sm:$0xf]
    %v370 = vld [vmem:[%s3 + $0x1c] sm:$0xf]
    %v371 = vld [vmem:[%s3 + $0x20] sm:$0xf]
    %v372 = vld [vmem:[%s3 + $0x24] sm:$0xf]
    %v373 = vld [vmem:[%s3 + $0x28] sm:$0xf]
    %v374 = vld [vmem:[%s3 + $0x2c] sm:$0xf]
    %v375 = vld [vmem:[#allocation2] sm:$0xff]
    %v376 = vld [vmem:[#allocation2 + $0x8] sm:$0xff]
    %v377 = vld [vmem:[#allocation2 + $0x10] sm:$0xff]
    %v378 = vld [vmem:[#allocation2 + $0x18] sm:$0xff]
    %v379 = vld [vmem:[#allocation2 + $0x20] sm:$0xff]
    %v380 = vld [vmem:[#allocation2 + $0x28] sm:$0xff]
    %v381 = vld [vmem:[#allocation2 + $0x30] sm:$0xff]
    %v382 = vld [vmem:[#allocation2 + $0x38] sm:$0xff]
    %v383 = vld [vmem:[#allocation2 + $0x40] sm:$0xff]
    %v384 = vld [vmem:[#allocation2 + $0x48] sm:$0xff]
    %v385 = vld [vmem:[#allocation2 + $0x50] sm:$0xff]
    %v386 = vld [vmem:[#allocation2 + $0x58] sm:$0xff]
    %v387 = vld [vmem:[#allocation2 + $0x60] sm:$0xff]
    %v388 = vld [vmem:[#allocation2 + $0x68] sm:$0xff]
    %v389 = vld [vmem:[#allocation2 + $0x70] sm:$0xff]
    %v390 = vld [vmem:[#allocation2 + $0x78] sm:$0xff]
    %v391 = vld [vmem:[#allocation2 + $0x80] sm:$0xff]
    %v392 = vld [vmem:[#allocation2 + $0x88] sm:$0xff]
    %v393 = vld [vmem:[#allocation2 + $0x90] sm:$0xff]
    %v394 = vld [vmem:[#allocation2 + $0x98] sm:$0xff]
    %v395 = vld [vmem:[#allocation2 + $0xa0] sm:$0xff]
    %v396 = vld [vmem:[#allocation2 + $0xa8] sm:$0xff]
    %v397 = vld [vmem:[#allocation2 + $0xb0] sm:$0xff]
    %v398 = vld [vmem:[#allocation2 + $0xb8] sm:$0xff]
    %v399 = vld [vmem:[#allocation2 + $0xc0] sm:$0xff]
    %v400 = vld [vmem:[#allocation2 + $0xc8] sm:$0xff]
    %v401 = vld [vmem:[#allocation2 + $0xd0] sm:$0xff]
    %v402 = vld [vmem:[#allocation2 + $0xd8] sm:$0xff]
    %v403 = vld [vmem:[#allocation2 + $0xe0] sm:$0xff]
    %v404 = vld [vmem:[#allocation2 + $0xe8] sm:$0xff]
    %v405 = vld [vmem:[#allocation2 + $0xf0] sm:$0xff]
    %v406 = vld [vmem:[#allocation2 + $0xf8] sm:$0xff]
    %v407 = vpack.c.bf16 %v383, %v375
    %v408 = vpack.c.bf16 %v384, %v376
    %v409 = vpack.c.bf16 %v385, %v377
    %v410 = vpack.c.bf16 %v386, %v378
    %v411 = vpack.c.bf16 %v387, %v379
    %v412 = vpack.c.bf16 %v388, %v380
    %v413 = vpack.c.bf16 %v389, %v381
    %v414 = vpack.c.bf16 %v390, %v382
    %v415 = vpack.c.bf16 %v399, %v391
    %v416 = vpack.c.bf16 %v400, %v392
    %v417 = vpack.c.bf16 %v401, %v393
    %v418 = vpack.c.bf16 %v402, %v394
    %v419 = vpack.c.bf16 %v403, %v395
    %v420 = vpack.c.bf16 %v404, %v396
    %v421 = vpack.c.bf16 %v405, %v397
    %v422 = vpack.c.bf16 %v406, %v398
    %v423 = vld [vmem:[%s5] sm:$0xff]
    %v424 = vld [vmem:[%s5 + $0x8] sm:$0xff]
    %v425 = vld [vmem:[%s5 + $0x10] sm:$0xff]
    %v426 = vld [vmem:[%s5 + $0x18] sm:$0xff]
    %v427 = vld [vmem:[%s5 + $0x20] sm:$0xff]
    %v428 = vld [vmem:[%s5 + $0x28] sm:$0xff]
    %v429 = vld [vmem:[%s5 + $0x30] sm:$0xff]
    %v430 = vld [vmem:[%s5 + $0x38] sm:$0xff]
    %v431 = vld [vmem:[%s5 + $0x40] sm:$0xff]
    %v432 = vld [vmem:[%s5 + $0x48] sm:$0xff]
    %v433 = vld [vmem:[%s5 + $0x50] sm:$0xff]
    %v434 = vld [vmem:[%s5 + $0x58] sm:$0xff]
    %436 = vset.pattern.permute.xlu0 0
    %437 = vperm.xlu0 %436, %v423
    %v438 = vpop.permute.xlu0 %437
    %441 = vset.pattern.permute.xlu0 0
    %442 = vperm.xlu0 %441, %v424
    %v443 = vpop.permute.xlu0 %442
    %446 = vset.pattern.permute.xlu0 0
    %447 = vperm.xlu0 %446, %v425
    %v448 = vpop.permute.xlu0 %447
    %451 = vset.pattern.permute.xlu0 0
    %452 = vperm.xlu0 %451, %v426
    %v453 = vpop.permute.xlu0 %452
    %456 = vset.pattern.permute.xlu0 0
    %457 = vperm.xlu0 %456, %v427
    %v458 = vpop.permute.xlu0 %457
    %461 = vset.pattern.permute.xlu0 0
    %462 = vperm.xlu0 %461, %v428
    %v463 = vpop.permute.xlu0 %462
    %466 = vset.pattern.permute.xlu0 0
    %467 = vperm.xlu0 %466, %v429
    %v468 = vpop.permute.xlu0 %467
    %471 = vset.pattern.permute.xlu0 0
    %472 = vperm.xlu0 %471, %v430
    %v473 = vpop.permute.xlu0 %472
    %476 = vset.pattern.permute.xlu0 0
    %477 = vperm.xlu0 %476, %v431
    %v478 = vpop.permute.xlu0 %477
    %481 = vset.pattern.permute.xlu0 0
    %482 = vperm.xlu0 %481, %v432
    %v483 = vpop.permute.xlu0 %482
    %486 = vset.pattern.permute.xlu0 0
    %487 = vperm.xlu0 %486, %v433
    %v488 = vpop.permute.xlu0 %487
    %491 = vset.pattern.permute.xlu0 0
    %492 = vperm.xlu0 %491, %v434
    %v493 = vpop.permute.xlu0 %492
    %v507 = vunpack.c.l.b16 %v363
    %v508 = vunpack.c.l.b16 %v364
    %v509 = vunpack.c.l.b16 %v365
    %v510 = vunpack.c.l.b16 %v366
    %v511 = vunpack.c.l.b16 %v367
    %v512 = vunpack.c.l.b16 %v368
    %v513 = vunpack.c.l.b16 %v369
    %v514 = vunpack.c.l.b16 %v370
    %v515 = vunpack.c.l.b16 %v371
    %v516 = vunpack.c.l.b16 %v372
    %v517 = vunpack.c.l.b16 %v373
    %v518 = vunpack.c.l.b16 %v374
    %v519 = vpack.c.b16 %v508, %v507
    %v520 = vpack.c.b16 %v510, %v509
    %v521 = vpack.c.b16 %v512, %v511
    %v522 = vpack.c.b16 %v514, %v513
    %v523 = vpack.c.b16 %v516, %v515
    %v524 = vpack.c.b16 %v518, %v517
    %vm525 = vcmask 261120
    %v527 = vsel %vm525, %v519, 0
    %v530 = vsel %vm525, %v520, 0
    %v533 = vsel %vm525, %v521, 0
    %v536 = vsel %vm525, %v522, 0
    %v539 = vsel %vm525, %v523, 0
    %v542 = vsel %vm525, %v524, 0
    %544 = vmatpush.bf16.msra.mxu0 0
    %545 = vmatpush.bf16.msra.mxu0 0
    %546 = vmatpush.bf16.msra.mxu0 0
    %547 = vmatpush.bf16.msra.mxu0 0
    %548 = vmatpush.bf16.msra.mxu0 0
    %549 = vmatpush.bf16.msra.mxu0 0
    %550 = vmatpush.bf16.msra.mxu0 %v415
    %551 = vmatpush.bf16.msra.mxu0 %v407
    %552 = vmatmul.bf16.gmra.mxu0 %v527
    %v553 = vpop.f32.mrf.mxu0
    %v554 = vadd.f32 %v438, %v553
    %v555 = vpop.f32.mrf.mxu0
    %v556 = vadd.f32 %v443, %v555
    %557 = vmatmul.bf16.gmra.mxu0 %v530
    %v558 = vpop.f32.mrf.mxu0
    %v559 = vadd.f32 %v448, %v558
    %v560 = vpop.f32.mrf.mxu0
    %v561 = vadd.f32 %v453, %v560
    %562 = vmatmul.bf16.gmra.mxu0 %v533
    %v563 = vpop.f32.mrf.mxu0
    %v564 = vadd.f32 %v458, %v563
    %v565 = vpop.f32.mrf.mxu0
    %v566 = vadd.f32 %v463, %v565
    %567 = vmatmul.bf16.gmra.mxu0 %v536
    %v568 = vpop.f32.mrf.mxu0
    %v569 = vadd.f32 %v468, %v568
    %v570 = vpop.f32.mrf.mxu0
    %v571 = vadd.f32 %v473, %v570
    %572 = vmatmul.bf16.gmra.mxu0 %v539
    %v573 = vpop.f32.mrf.mxu0
    %v574 = vadd.f32 %v478, %v573
    %v575 = vpop.f32.mrf.mxu0
    %v576 = vadd.f32 %v483, %v575
    %577 = vmatmul.bf16.gmra.mxu0 %v542
    %v578 = vpop.f32.mrf.mxu0
    %v579 = vadd.f32 %v488, %v578
    %v580 = vpop.f32.mrf.mxu0
    %v581 = vadd.f32 %v493, %v580
    %582 = vdwg.mxu0
    %583 = vmatpush.bf16.msra.mxu0 0
    %584 = vmatpush.bf16.msra.mxu0 0
    %585 = vmatpush.bf16.msra.mxu0 0
    %586 = vmatpush.bf16.msra.mxu0 0
    %587 = vmatpush.bf16.msra.mxu0 0
    %588 = vmatpush.bf16.msra.mxu0 0
    %589 = vmatpush.bf16.msra.mxu0 %v416
    %590 = vmatpush.bf16.msra.mxu0 %v408
    %591 = vmatmul.bf16.gmra.mxu0 %v527
    %v592 = vpop.f32.mrf.mxu0
    %v593 = vadd.f32 %v438, %v592
    %v594 = vpop.f32.mrf.mxu0
    %v595 = vadd.f32 %v443, %v594
    %596 = vmatmul.bf16.gmra.mxu0 %v530
    %v597 = vpop.f32.mrf.mxu0
    %v598 = vadd.f32 %v448, %v597
    %v599 = vpop.f32.mrf.mxu0
    %v600 = vadd.f32 %v453, %v599
    %601 = vmatmul.bf16.gmra.mxu0 %v533
    %v602 = vpop.f32.mrf.mxu0
    %v603 = vadd.f32 %v458, %v602
    %v604 = vpop.f32.mrf.mxu0
    %v605 = vadd.f32 %v463, %v604
    %606 = vmatmul.bf16.gmra.mxu0 %v536
    %v607 = vpop.f32.mrf.mxu0
    %v608 = vadd.f32 %v468, %v607
    %v609 = vpop.f32.mrf.mxu0
    %v610 = vadd.f32 %v473, %v609
    %611 = vmatmul.bf16.gmra.mxu0 %v539
    %v612 = vpop.f32.mrf.mxu0
    %v613 = vadd.f32 %v478, %v612
    %v614 = vpop.f32.mrf.mxu0
    %v615 = vadd.f32 %v483, %v614
    %616 = vmatmul.bf16.gmra.mxu0 %v542
    %v617 = vpop.f32.mrf.mxu0
    %v618 = vadd.f32 %v488, %v617
    %v619 = vpop.f32.mrf.mxu0
    %v620 = vadd.f32 %v493, %v619
    %621 = vdwg.mxu0
    %622 = vmatpush.bf16.msra.mxu0 0
    %623 = vmatpush.bf16.msra.mxu0 0
    %624 = vmatpush.bf16.msra.mxu0 0
    %625 = vmatpush.bf16.msra.mxu0 0
    %626 = vmatpush.bf16.msra.mxu0 0
    %627 = vmatpush.bf16.msra.mxu0 0
    %628 = vmatpush.bf16.msra.mxu0 %v417
    %629 = vmatpush.bf16.msra.mxu0 %v409
    %630 = vmatmul.bf16.gmra.mxu0 %v527
    %v631 = vpop.f32.mrf.mxu0
    %v632 = vadd.f32 %v438, %v631
    %v633 = vpop.f32.mrf.mxu0
    %v634 = vadd.f32 %v443, %v633
    %635 = vmatmul.bf16.gmra.mxu0 %v530
    %v636 = vpop.f32.mrf.mxu0
    %v637 = vadd.f32 %v448, %v636
    %v638 = vpop.f32.mrf.mxu0
    %v639 = vadd.f32 %v453, %v638
    %640 = vmatmul.bf16.gmra.mxu0 %v533
    %v641 = vpop.f32.mrf.mxu0
    %v642 = vadd.f32 %v458, %v641
    %v643 = vpop.f32.mrf.mxu0
    %v644 = vadd.f32 %v463, %v643
    %645 = vmatmul.bf16.gmra.mxu0 %v536
    %v646 = vpop.f32.mrf.mxu0
    %v647 = vadd.f32 %v468, %v646
    %v648 = vpop.f32.mrf.mxu0
    %v649 = vadd.f32 %v473, %v648
    %650 = vmatmul.bf16.gmra.mxu0 %v539
    %v651 = vpop.f32.mrf.mxu0
    %v652 = vadd.f32 %v478, %v651
    %v653 = vpop.f32.mrf.mxu0
    %v654 = vadd.f32 %v483, %v653
    %655 = vmatmul.bf16.gmra.mxu0 %v542
    %v656 = vpop.f32.mrf.mxu0
    %v657 = vadd.f32 %v488, %v656
    %v658 = vpop.f32.mrf.mxu0
    %v659 = vadd.f32 %v493, %v658
    %660 = vdwg.mxu0
    %661 = vmatpush.bf16.msra.mxu0 0
    %662 = vmatpush.bf16.msra.mxu0 0
    %663 = vmatpush.bf16.msra.mxu0 0
    %664 = vmatpush.bf16.msra.mxu0 0
    %665 = vmatpush.bf16.msra.mxu0 0
    %666 = vmatpush.bf16.msra.mxu0 0
    %667 = vmatpush.bf16.msra.mxu0 %v418
    %668 = vmatpush.bf16.msra.mxu0 %v410
    %669 = vmatmul.bf16.gmra.mxu0 %v527
    %v670 = vpop.f32.mrf.mxu0
    %v671 = vadd.f32 %v438, %v670
    %v672 = vpop.f32.mrf.mxu0
    %v673 = vadd.f32 %v443, %v672
    %674 = vmatmul.bf16.gmra.mxu0 %v530
    %v675 = vpop.f32.mrf.mxu0
    %v676 = vadd.f32 %v448, %v675
    %v677 = vpop.f32.mrf.mxu0
    %v678 = vadd.f32 %v453, %v677
    %679 = vmatmul.bf16.gmra.mxu0 %v533
    %v680 = vpop.f32.mrf.mxu0
    %v681 = vadd.f32 %v458, %v680
    %v682 = vpop.f32.mrf.mxu0
    %v683 = vadd.f32 %v463, %v682
    %684 = vmatmul.bf16.gmra.mxu0 %v536
    %v685 = vpop.f32.mrf.mxu0
    %v686 = vadd.f32 %v468, %v685
    %v687 = vpop.f32.mrf.mxu0
    %v688 = vadd.f32 %v473, %v687
    %689 = vmatmul.bf16.gmra.mxu0 %v539
    %v690 = vpop.f32.mrf.mxu0
    %v691 = vadd.f32 %v478, %v690
    %v692 = vpop.f32.mrf.mxu0
    %v693 = vadd.f32 %v483, %v692
    %694 = vmatmul.bf16.gmra.mxu0 %v542
    %v695 = vpop.f32.mrf.mxu0
    %v696 = vadd.f32 %v488, %v695
    %v697 = vpop.f32.mrf.mxu0
    %v698 = vadd.f32 %v493, %v697
    %699 = vdwg.mxu0
    %700 = vmatpush.bf16.msra.mxu0 0
    %701 = vmatpush.bf16.msra.mxu0 0
    %702 = vmatpush.bf16.msra.mxu0 0
    %703 = vmatpush.bf16.msra.mxu0 0
    %704 = vmatpush.bf16.msra.mxu0 0
    %705 = vmatpush.bf16.msra.mxu0 0
    %706 = vmatpush.bf16.msra.mxu0 %v419
    %707 = vmatpush.bf16.msra.mxu0 %v411
    %708 = vmatmul.bf16.gmra.mxu0 %v527
    %v709 = vpop.f32.mrf.mxu0
    %v710 = vadd.f32 %v438, %v709
    %v711 = vpop.f32.mrf.mxu0
    %v712 = vadd.f32 %v443, %v711
    %713 = vmatmul.bf16.gmra.mxu0 %v530
    %v714 = vpop.f32.mrf.mxu0
    %v715 = vadd.f32 %v448, %v714
    %v716 = vpop.f32.mrf.mxu0
    %v717 = vadd.f32 %v453, %v716
    %718 = vmatmul.bf16.gmra.mxu0 %v533
    %v719 = vpop.f32.mrf.mxu0
    %v720 = vadd.f32 %v458, %v719
    %v721 = vpop.f32.mrf.mxu0
    %v722 = vadd.f32 %v463, %v721
    %723 = vmatmul.bf16.gmra.mxu0 %v536
    %v724 = vpop.f32.mrf.mxu0
    %v725 = vadd.f32 %v468, %v724
    %v726 = vpop.f32.mrf.mxu0
    %v727 = vadd.f32 %v473, %v726
    %728 = vmatmul.bf16.gmra.mxu0 %v539
    %v729 = vpop.f32.mrf.mxu0
    %v730 = vadd.f32 %v478, %v729
    %v731 = vpop.f32.mrf.mxu0
    %v732 = vadd.f32 %v483, %v731
    %733 = vmatmul.bf16.gmra.mxu0 %v542
    %v734 = vpop.f32.mrf.mxu0
    %v735 = vadd.f32 %v488, %v734
    %v736 = vpop.f32.mrf.mxu0
    %v737 = vadd.f32 %v493, %v736
    %738 = vdwg.mxu0
    %739 = vmatpush.bf16.msra.mxu0 0
    %740 = vmatpush.bf16.msra.mxu0 0
    %741 = vmatpush.bf16.msra.mxu0 0
    %742 = vmatpush.bf16.msra.mxu0 0
    %743 = vmatpush.bf16.msra.mxu0 0
    %744 = vmatpush.bf16.msra.mxu0 0
    %745 = vmatpush.bf16.msra.mxu0 %v420
    %746 = vmatpush.bf16.msra.mxu0 %v412
    %747 = vmatmul.bf16.gmra.mxu0 %v527
    %v748 = vpop.f32.mrf.mxu0
    %v749 = vadd.f32 %v438, %v748
    %v750 = vpop.f32.mrf.mxu0
    %v751 = vadd.f32 %v443, %v750
    %752 = vmatmul.bf16.gmra.mxu0 %v530
    %v753 = vpop.f32.mrf.mxu0
    %v754 = vadd.f32 %v448, %v753
    %v755 = vpop.f32.mrf.mxu0
    %v756 = vadd.f32 %v453, %v755
    %757 = vmatmul.bf16.gmra.mxu0 %v533
    %v758 = vpop.f32.mrf.mxu0
    %v759 = vadd.f32 %v458, %v758
    %v760 = vpop.f32.mrf.mxu0
    %v761 = vadd.f32 %v463, %v760
    %762 = vmatmul.bf16.gmra.mxu0 %v536
    %v763 = vpop.f32.mrf.mxu0
    %v764 = vadd.f32 %v468, %v763
    %v765 = vpop.f32.mrf.mxu0
    %v766 = vadd.f32 %v473, %v765
    %767 = vmatmul.bf16.gmra.mxu0 %v539
    %v768 = vpop.f32.mrf.mxu0
    %v769 = vadd.f32 %v478, %v768
    %v770 = vpop.f32.mrf.mxu0
    %v771 = vadd.f32 %v483, %v770
    %772 = vmatmul.bf16.gmra.mxu0 %v542
    %v773 = vpop.f32.mrf.mxu0
    %v774 = vadd.f32 %v488, %v773
    %v775 = vpop.f32.mrf.mxu0
    %v776 = vadd.f32 %v493, %v775
    %777 = vdwg.mxu0
    %778 = vmatpush.bf16.msra.mxu0 0
    %779 = vmatpush.bf16.msra.mxu0 0
    %780 = vmatpush.bf16.msra.mxu0 0
    %781 = vmatpush.bf16.msra.mxu0 0
    %782 = vmatpush.bf16.msra.mxu0 0
    %783 = vmatpush.bf16.msra.mxu0 0
    %784 = vmatpush.bf16.msra.mxu0 %v421
    %785 = vmatpush.bf16.msra.mxu0 %v413
    %786 = vmatmul.bf16.gmra.mxu0 %v527
    %v787 = vpop.f32.mrf.mxu0
    %v788 = vadd.f32 %v438, %v787
    %v789 = vpop.f32.mrf.mxu0
    %v790 = vadd.f32 %v443, %v789
    %791 = vmatmul.bf16.gmra.mxu0 %v530
    %v792 = vpop.f32.mrf.mxu0
    %v793 = vadd.f32 %v448, %v792
    %v794 = vpop.f32.mrf.mxu0
    %v795 = vadd.f32 %v453, %v794
    %796 = vmatmul.bf16.gmra.mxu0 %v533
    %v797 = vpop.f32.mrf.mxu0
    %v798 = vadd.f32 %v458, %v797
    %v799 = vpop.f32.mrf.mxu0
    %v800 = vadd.f32 %v463, %v799
    %801 = vmatmul.bf16.gmra.mxu0 %v536
    %v802 = vpop.f32.mrf.mxu0
    %v803 = vadd.f32 %v468, %v802
    %v804 = vpop.f32.mrf.mxu0
    %v805 = vadd.f32 %v473, %v804
    %806 = vmatmul.bf16.gmra.mxu0 %v539
    %v807 = vpop.f32.mrf.mxu0
    %v808 = vadd.f32 %v478, %v807
    %v809 = vpop.f32.mrf.mxu0
    %v810 = vadd.f32 %v483, %v809
    %811 = vmatmul.bf16.gmra.mxu0 %v542
    %v812 = vpop.f32.mrf.mxu0
    %v813 = vadd.f32 %v488, %v812
    %v814 = vpop.f32.mrf.mxu0
    %v815 = vadd.f32 %v493, %v814
    %816 = vdwg.mxu0
    %817 = vmatpush.bf16.msra.mxu0 0
    %818 = vmatpush.bf16.msra.mxu0 0
    %819 = vmatpush.bf16.msra.mxu0 0
    %820 = vmatpush.bf16.msra.mxu0 0
    %821 = vmatpush.bf16.msra.mxu0 0
    %822 = vmatpush.bf16.msra.mxu0 0
    %823 = vmatpush.bf16.msra.mxu0 %v422
    %824 = vmatpush.bf16.msra.mxu0 %v414
    %825 = vmatmul.bf16.gmra.mxu0 %v527
    %v826 = vpop.f32.mrf.mxu0
    %v827 = vadd.f32 %v438, %v826
    %v828 = vpop.f32.mrf.mxu0
    %v829 = vadd.f32 %v443, %v828
    %830 = vmatmul.bf16.gmra.mxu0 %v530
    %v831 = vpop.f32.mrf.mxu0
    %v832 = vadd.f32 %v448, %v831
    %v833 = vpop.f32.mrf.mxu0
    %v834 = vadd.f32 %v453, %v833
    %835 = vmatmul.bf16.gmra.mxu0 %v533
    %v836 = vpop.f32.mrf.mxu0
    %v837 = vadd.f32 %v458, %v836
    %v838 = vpop.f32.mrf.mxu0
    %v839 = vadd.f32 %v463, %v838
    %840 = vmatmul.bf16.gmra.mxu0 %v536
    %v841 = vpop.f32.mrf.mxu0
    %v842 = vadd.f32 %v468, %v841
    %v843 = vpop.f32.mrf.mxu0
    %v844 = vadd.f32 %v473, %v843
    %845 = vmatmul.bf16.gmra.mxu0 %v539
    %v846 = vpop.f32.mrf.mxu0
    %v847 = vadd.f32 %v478, %v846
    %v848 = vpop.f32.mrf.mxu0
    %v849 = vadd.f32 %v483, %v848
    %850 = vmatmul.bf16.gmra.mxu0 %v542
    %v851 = vpop.f32.mrf.mxu0
    %v852 = vadd.f32 %v488, %v851
    %v853 = vpop.f32.mrf.mxu0
    %v854 = vadd.f32 %v493, %v853
    %855 = vdwg.mxu0
    %856 = vst [vmem:[#allocation3] sm:$0xff] %v554
    %857 = vst [vmem:[#allocation3 + $0x8] sm:$0xff] %v593
    %858 = vst [vmem:[#allocation3 + $0x10] sm:$0xff] %v632
    %859 = vst [vmem:[#allocation3 + $0x18] sm:$0xff] %v671
    %860 = vst [vmem:[#allocation3 + $0x20] sm:$0xff] %v710
    %861 = vst [vmem:[#allocation3 + $0x28] sm:$0xff] %v749
    %862 = vst [vmem:[#allocation3 + $0x30] sm:$0xff] %v788
    %863 = vst [vmem:[#allocation3 + $0x38] sm:$0xff] %v827
    %864 = vst [vmem:[#allocation3 + $0x40] sm:$0xff] %v556
    %865 = vst [vmem:[#allocation3 + $0x48] sm:$0xff] %v595
    %866 = vst [vmem:[#allocation3 + $0x50] sm:$0xff] %v634
    %867 = vst [vmem:[#allocation3 + $0x58] sm:$0xff] %v673
    %868 = vst [vmem:[#allocation3 + $0x60] sm:$0xff] %v712
    %869 = vst [vmem:[#allocation3 + $0x68] sm:$0xff] %v751
    %870 = vst [vmem:[#allocation3 + $0x70] sm:$0xff] %v790
    %871 = vst [vmem:[#allocation3 + $0x78] sm:$0xff] %v829
    %872 = vst [vmem:[#allocation3 + $0x80] sm:$0xff] %v559
    %873 = vst [vmem:[#allocation3 + $0x88] sm:$0xff] %v598
    %874 = vst [vmem:[#allocation3 + $0x90] sm:$0xff] %v637
    %875 = vst [vmem:[#allocation3 + $0x98] sm:$0xff] %v676
    %876 = vst [vmem:[#allocation3 + $0xa0] sm:$0xff] %v715
    %877 = vst [vmem:[#allocation3 + $0xa8] sm:$0xff] %v754
    %878 = vst [vmem:[#allocation3 + $0xb0] sm:$0xff] %v793
    %879 = vst [vmem:[#allocation3 + $0xb8] sm:$0xff] %v832
    %880 = vst [vmem:[#allocation3 + $0xc0] sm:$0xff] %v561
    %881 = vst [vmem:[#allocation3 + $0xc8] sm:$0xff] %v600
    %882 = vst [vmem:[#allocation3 + $0xd0] sm:$0xff] %v639
    %883 = vst [vmem:[#allocation3 + $0xd8] sm:$0xff] %v678
    %884 = vst [vmem:[#allocation3 + $0xe0] sm:$0xff] %v717
    %885 = vst [vmem:[#allocation3 + $0xe8] sm:$0xff] %v756
    %886 = vst [vmem:[#allocation3 + $0xf0] sm:$0xff] %v795
    %887 = vst [vmem:[#allocation3 + $0xf8] sm:$0xff] %v834
    %888 = vst [vmem:[#allocation3 + $0x100] sm:$0xff] %v564
    %889 = vst [vmem:[#allocation3 + $0x108] sm:$0xff] %v603
    %890 = vst [vmem:[#allocation3 + $0x110] sm:$0xff] %v642
    %891 = vst [vmem:[#allocation3 + $0x118] sm:$0xff] %v681
    %892 = vst [vmem:[#allocation3 + $0x120] sm:$0xff] %v720
    %893 = vst [vmem:[#allocation3 + $0x128] sm:$0xff] %v759
    %894 = vst [vmem:[#allocation3 + $0x130] sm:$0xff] %v798
    %895 = vst [vmem:[#allocation3 + $0x138] sm:$0xff] %v837
    %896 = vst [vmem:[#allocation3 + $0x140] sm:$0xff] %v566
    %897 = vst [vmem:[#allocation3 + $0x148] sm:$0xff] %v605
    %898 = vst [vmem:[#allocation3 + $0x150] sm:$0xff] %v644
    %899 = vst [vmem:[#allocation3 + $0x158] sm:$0xff] %v683
    %900 = vst [vmem:[#allocation3 + $0x160] sm:$0xff] %v722
    %901 = vst [vmem:[#allocation3 + $0x168] sm:$0xff] %v761
    %902 = vst [vmem:[#allocation3 + $0x170] sm:$0xff] %v800
    %903 = vst [vmem:[#allocation3 + $0x178] sm:$0xff] %v839
    %904 = vst [vmem:[#allocation3 + $0x180] sm:$0xff] %v569
    %905 = vst [vmem:[#allocation3 + $0x188] sm:$0xff] %v608
    %906 = vst [vmem:[#allocation3 + $0x190] sm:$0xff] %v647
    %907 = vst [vmem:[#allocation3 + $0x198] sm:$0xff] %v686
    %908 = vst [vmem:[#allocation3 + $0x1a0] sm:$0xff] %v725
    %909 = vst [vmem:[#allocation3 + $0x1a8] sm:$0xff] %v764
    %910 = vst [vmem:[#allocation3 + $0x1b0] sm:$0xff] %v803
    %911 = vst [vmem:[#allocation3 + $0x1b8] sm:$0xff] %v842
    %912 = vst [vmem:[#allocation3 + $0x1c0] sm:$0xff] %v571
    %913 = vst [vmem:[#allocation3 + $0x1c8] sm:$0xff] %v610
    %914 = vst [vmem:[#allocation3 + $0x1d0] sm:$0xff] %v649
    %915 = vst [vmem:[#allocation3 + $0x1d8] sm:$0xff] %v688
    %916 = vst [vmem:[#allocation3 + $0x1e0] sm:$0xff] %v727
    %917 = vst [vmem:[#allocation3 + $0x1e8] sm:$0xff] %v766
    %918 = vst [vmem:[#allocation3 + $0x1f0] sm:$0xff] %v805
    %919 = vst [vmem:[#allocation3 + $0x1f8] sm:$0xff] %v844
    %920 = vst [vmem:[#allocation3 + $0x200] sm:$0xff] %v574
    %921 = vst [vmem:[#allocation3 + $0x208] sm:$0xff] %v613
    %922 = vst [vmem:[#allocation3 + $0x210] sm:$0xff] %v652
    %923 = vst [vmem:[#allocation3 + $0x218] sm:$0xff] %v691
    %924 = vst [vmem:[#allocation3 + $0x220] sm:$0xff] %v730
    %925 = vst [vmem:[#allocation3 + $0x228] sm:$0xff] %v769
    %926 = vst [vmem:[#allocation3 + $0x230] sm:$0xff] %v808
    %927 = vst [vmem:[#allocation3 + $0x238] sm:$0xff] %v847
    %928 = vst [vmem:[#allocation3 + $0x240] sm:$0xff] %v576
    %929 = vst [vmem:[#allocation3 + $0x248] sm:$0xff] %v615
    %930 = vst [vmem:[#allocation3 + $0x250] sm:$0xff] %v654
    %931 = vst [vmem:[#allocation3 + $0x258] sm:$0xff] %v693
    %932 = vst [vmem:[#allocation3 + $0x260] sm:$0xff] %v732
    %933 = vst [vmem:[#allocation3 + $0x268] sm:$0xff] %v771
    %934 = vst [vmem:[#allocation3 + $0x270] sm:$0xff] %v810
    %935 = vst [vmem:[#allocation3 + $0x278] sm:$0xff] %v849
    %936 = vst [vmem:[#allocation3 + $0x280] sm:$0xff] %v579
    %937 = vst [vmem:[#allocation3 + $0x288] sm:$0xff] %v618
    %938 = vst [vmem:[#allocation3 + $0x290] sm:$0xff] %v657
    %939 = vst [vmem:[#allocation3 + $0x298] sm:$0xff] %v696
    %940 = vst [vmem:[#allocation3 + $0x2a0] sm:$0xff] %v735
    %941 = vst [vmem:[#allocation3 + $0x2a8] sm:$0xff] %v774
    %942 = vst [vmem:[#allocation3 + $0x2b0] sm:$0xff] %v813
    %943 = vst [vmem:[#allocation3 + $0x2b8] sm:$0xff] %v852
    %944 = vst [vmem:[#allocation3 + $0x2c0] sm:$0xff] %v581
    %945 = vst [vmem:[#allocation3 + $0x2c8] sm:$0xff] %v620
    %946 = vst [vmem:[#allocation3 + $0x2d0] sm:$0xff] %v659
    %947 = vst [vmem:[#allocation3 + $0x2d8] sm:$0xff] %v698
    %948 = vst [vmem:[#allocation3 + $0x2e0] sm:$0xff] %v737
    %949 = vst [vmem:[#allocation3 + $0x2e8] sm:$0xff] %v776
    %950 = vst [vmem:[#allocation3 + $0x2f0] sm:$0xff] %v815
    %951 = vst [vmem:[#allocation3 + $0x2f8] sm:$0xff] %v854
    %v952 = vld [vmem:[%s4] sm:$0xf]
    %v953 = vld [vmem:[%s4 + $0x4] sm:$0xf]
    %v954 = vld [vmem:[%s4 + $0x8] sm:$0xf]
    %v955 = vld [vmem:[%s4 + $0xc] sm:$0xf]
    %v956 = vld [vmem:[%s4 + $0x10] sm:$0xf]
    %v957 = vld [vmem:[%s4 + $0x14] sm:$0xf]
    %v958 = vld [vmem:[%s4 + $0x18] sm:$0xf]
    %v959 = vld [vmem:[%s4 + $0x1c] sm:$0xf]
    %v960 = vld [vmem:[%s4 + $0x20] sm:$0xf]
    %v961 = vld [vmem:[%s4 + $0x24] sm:$0xf]
    %v962 = vld [vmem:[%s4 + $0x28] sm:$0xf]
    %v963 = vld [vmem:[%s4 + $0x2c] sm:$0xf]
    %v964 = vld [vmem:[%s6] sm:$0xff]
    %v965 = vld [vmem:[%s6 + $0x8] sm:$0xff]
    %v966 = vld [vmem:[%s6 + $0x10] sm:$0xff]
    %v967 = vld [vmem:[%s6 + $0x18] sm:$0xff]
    %v980 = vunpack.c.l.b16 %v952
    %v981 = vunpack.c.l.b16 %v953
    %v982 = vunpack.c.l.b16 %v954
    %v983 = vunpack.c.l.b16 %v955
    %v984 = vunpack.c.l.b16 %v956
    %v985 = vunpack.c.l.b16 %v957
    %v986 = vunpack.c.l.b16 %v958
    %v987 = vunpack.c.l.b16 %v959
    %v988 = vunpack.c.l.b16 %v960
    %v989 = vunpack.c.l.b16 %v961
    %v990 = vunpack.c.l.b16 %v962
    %v991 = vunpack.c.l.b16 %v963
    %v992 = vpack.c.b16 %v981, %v980
    %v993 = vpack.c.b16 %v983, %v982
    %v994 = vpack.c.b16 %v985, %v984
    %v995 = vpack.c.b16 %v987, %v986
    %v996 = vpack.c.b16 %v989, %v988
    %v997 = vpack.c.b16 %v991, %v990
    %v999 = vsel %vm525, %v992, 0
    %v1002 = vsel %vm525, %v993, 0
    %v1005 = vsel %vm525, %v994, 0
    %v1008 = vsel %vm525, %v995, 0
    %v1011 = vsel %vm525, %v996, 0
    %v1014 = vsel %vm525, %v997, 0
    %1016 = vmatpush.bf16.msra.mxu0 0
    %1017 = vmatpush.bf16.msra.mxu0 0
    %1018 = vmatpush.bf16.msra.mxu0 0
    %1019 = vmatpush.bf16.msra.mxu0 0
    %1020 = vmatpush.bf16.msra.mxu0 0
    %1021 = vmatpush.bf16.msra.mxu0 0
    %1022 = vmatpush.bf16.msra.mxu0 0
    %1023 = vmatpush.bf16.msra.mxu0 0
    %1024 = vmatmul.bf16.gmra.mxu0 %v999
    %v1025 = vpop.f32.mrf.mxu0
    %v1026 = vadd.f32 0.0, %v1025
    %v1027 = vpop.f32.mrf.mxu0
    %v1028 = vadd.f32 0.0, %v1027
    %1029 = vmatmul.bf16.gmra.mxu0 %v1002
    %v1030 = vpop.f32.mrf.mxu0
    %v1031 = vadd.f32 0.0, %v1030
    %v1032 = vpop.f32.mrf.mxu0
    %v1033 = vadd.f32 0.0, %v1032
    %1034 = vmatmul.bf16.gmra.mxu0 %v1005
    %v1035 = vpop.f32.mrf.mxu0
    %v1036 = vadd.f32 0.0, %v1035
    %v1037 = vpop.f32.mrf.mxu0
    %v1038 = vadd.f32 0.0, %v1037
    %1039 = vmatmul.bf16.gmra.mxu0 %v1008
    %v1040 = vpop.f32.mrf.mxu0
    %v1041 = vadd.f32 0.0, %v1040
    %v1042 = vpop.f32.mrf.mxu0
    %v1043 = vadd.f32 0.0, %v1042
    %1044 = vmatmul.bf16.gmra.mxu0 %v1011
    %v1045 = vpop.f32.mrf.mxu0
    %v1046 = vadd.f32 0.0, %v1045
    %v1047 = vpop.f32.mrf.mxu0
    %v1048 = vadd.f32 0.0, %v1047
    %1049 = vmatmul.bf16.gmra.mxu0 %v1014
    %v1050 = vpop.f32.mrf.mxu0
    %v1051 = vadd.f32 0.0, %v1050
    %v1052 = vpop.f32.mrf.mxu0
    %v1053 = vadd.f32 0.0, %v1052
    %1054 = vdwg.mxu0
    %v1055 = vld [vmem:[#allocation3] sm:$0xff]
    %v1056 = vld [vmem:[#allocation3 + $0x40] sm:$0xff]
    %v1057 = vld [vmem:[#allocation3 + $0x80] sm:$0xff]
    %v1058 = vld [vmem:[#allocation3 + $0xc0] sm:$0xff]
    %v1059 = vadd.f32 %v1055, %v1026
    %v1060 = vadd.f32 %v1056, %v1028
    %v1061 = vadd.f32 %v1057, %v1031
    %v1062 = vadd.f32 %v1058, %v1033
    %v1063 = vxor.u32 %v1059, 2147483648
    %v1064 = vxor.u32 %v1060, 2147483648
    %v1065 = vxor.u32 %v1061, 2147483648
    %v1066 = vxor.u32 %v1062, 2147483648
    %v1067 = vmul.f32 %v1063, 1.442695
    %v1068 = vpow.pop %v1067
    %v1069 = vmul.f32 %v1064, 1.442695
    %v1070 = vpow.pop %v1069
    %v1071 = vmul.f32 %v1065, 1.442695
    %v1072 = vpow.pop %v1071
    %v1073 = vmul.f32 %v1066, 1.442695
    %v1074 = vpow.pop %v1073
    %v1075 = vadd.f32 %v1068, 1.0
    %v1076 = vadd.f32 %v1070, 1.0
    %v1077 = vadd.f32 %v1072, 1.0
    %v1078 = vadd.f32 %v1074, 1.0
    %v1079 = vrcp.pop %v1075
    %v1080 = vmul.f32 %v1075, %v1079
    %v1081 = vsub.f32 1.0, %v1080
    %v1082 = vmul.f32 %v1079, %v1081
    %v1083 = vadd.f32 %v1079, %v1082
    %vm1084 = vweird.f32 %v1075
    %vm1085 = vweird.f32 %v1079
    %vm1086 = vmor %vm1084, %vm1085
    %v1087 = vsel %vm1086, %v1079, %v1083
    %v1088 = vand.u32 2147483647, %v1075
    %vm1089 = vcmp.eq.f32.partialorder %v1088, 8.507059e+37
    %v1090 = vand.u32 %v1075, 2147483648
    %v1091 = vor.u32 1.1754944e-38, %v1090
    %v1092 = vsel %vm1089, %v1091, %v1087
    %v1093 = vmul.f32 1.0, %v1092
    %v1094 = vrcp.pop %v1076
    %v1095 = vmul.f32 %v1076, %v1094
    %v1096 = vsub.f32 1.0, %v1095
    %v1097 = vmul.f32 %v1094, %v1096
    %v1098 = vadd.f32 %v1094, %v1097
    %vm1099 = vweird.f32 %v1076
    %vm1100 = vweird.f32 %v1094
    %vm1101 = vmor %vm1099, %vm1100
    %v1102 = vsel %vm1101, %v1094, %v1098
    %v1103 = vand.u32 2147483647, %v1076
    %vm1104 = vcmp.eq.f32.partialorder %v1103, 8.507059e+37
    %v1105 = vand.u32 %v1076, 2147483648
    %v1106 = vor.u32 1.1754944e-38, %v1105
    %v1107 = vsel %vm1104, %v1106, %v1102
    %v1108 = vmul.f32 1.0, %v1107
    %v1109 = vrcp.pop %v1077
    %v1110 = vmul.f32 %v1077, %v1109
    %v1111 = vsub.f32 1.0, %v1110
    %v1112 = vmul.f32 %v1109, %v1111
    %v1113 = vadd.f32 %v1109, %v1112
    %vm1114 = vweird.f32 %v1077
    %vm1115 = vweird.f32 %v1109
    %vm1116 = vmor %vm1114, %vm1115
    %v1117 = vsel %vm1116, %v1109, %v1113
    %v1118 = vand.u32 2147483647, %v1077
    %vm1119 = vcmp.eq.f32.partialorder %v1118, 8.507059e+37
    %v1120 = vand.u32 %v1077, 2147483648
    %v1121 = vor.u32 1.1754944e-38, %v1120
    %v1122 = vsel %vm1119, %v1121, %v1117
    %v1123 = vmul.f32 1.0, %v1122
    %v1124 = vrcp.pop %v1078
    %v1125 = vmul.f32 %v1078, %v1124
    %v1126 = vsub.f32 1.0, %v1125
    %v1127 = vmul.f32 %v1124, %v1126
    %v1128 = vadd.f32 %v1124, %v1127
    %vm1129 = vweird.f32 %v1078
    %vm1130 = vweird.f32 %v1124
    %vm1131 = vmor %vm1129, %vm1130
    %v1132 = vsel %vm1131, %v1124, %v1128
    %v1133 = vand.u32 2147483647, %v1078
    %vm1134 = vcmp.eq.f32.partialorder %v1133, 8.507059e+37
    %v1135 = vand.u32 %v1078, 2147483648
    %v1136 = vor.u32 1.1754944e-38, %v1135
    %v1137 = vsel %vm1134, %v1136, %v1132
    %v1138 = vmul.f32 1.0, %v1137
    %v1139 = vld [vmem:[#allocation3 + $0x100] sm:$0xff]
    %v1140 = vld [vmem:[#allocation3 + $0x140] sm:$0xff]
    %v1141 = vld [vmem:[#allocation3 + $0x180] sm:$0xff]
    %v1142 = vld [vmem:[#allocation3 + $0x1c0] sm:$0xff]
    %v1143 = vadd.f32 %v1139, %v1036
    %v1144 = vadd.f32 %v1140, %v1038
    %v1145 = vadd.f32 %v1141, %v1041
    %v1146 = vadd.f32 %v1142, %v1043
    %v1147 = vxor.u32 %v1143, 2147483648
    %v1148 = vxor.u32 %v1144, 2147483648
    %v1149 = vxor.u32 %v1145, 2147483648
    %v1150 = vxor.u32 %v1146, 2147483648
    %v1151 = vmul.f32 %v1147, 1.442695
    %v1152 = vpow.pop %v1151
    %v1153 = vmul.f32 %v1148, 1.442695
    %v1154 = vpow.pop %v1153
    %v1155 = vmul.f32 %v1149, 1.442695
    %v1156 = vpow.pop %v1155
    %v1157 = vmul.f32 %v1150, 1.442695
    %v1158 = vpow.pop %v1157
    %v1159 = vadd.f32 %v1152, 1.0
    %v1160 = vadd.f32 %v1154, 1.0
    %v1161 = vadd.f32 %v1156, 1.0
    %v1162 = vadd.f32 %v1158, 1.0
    %v1163 = vrcp.pop %v1159
    %v1164 = vmul.f32 %v1159, %v1163
    %v1165 = vsub.f32 1.0, %v1164
    %v1166 = vmul.f32 %v1163, %v1165
    %v1167 = vadd.f32 %v1163, %v1166
    %vm1168 = vweird.f32 %v1159
    %vm1169 = vweird.f32 %v1163
    %vm1170 = vmor %vm1168, %vm1169
    %v1171 = vsel %vm1170, %v1163, %v1167
    %v1172 = vand.u32 2147483647, %v1159
    %vm1173 = vcmp.eq.f32.partialorder %v1172, 8.507059e+37
    %v1174 = vand.u32 %v1159, 2147483648
    %v1175 = vor.u32 1.1754944e-38, %v1174
    %v1176 = vsel %vm1173, %v1175, %v1171
    %v1177 = vmul.f32 1.0, %v1176
    %v1178 = vrcp.pop %v1160
    %v1179 = vmul.f32 %v1160, %v1178
    %v1180 = vsub.f32 1.0, %v1179
    %v1181 = vmul.f32 %v1178, %v1180
    %v1182 = vadd.f32 %v1178, %v1181
    %vm1183 = vweird.f32 %v1160
    %vm1184 = vweird.f32 %v1178
    %vm1185 = vmor %vm1183, %vm1184
    %v1186 = vsel %vm1185, %v1178, %v1182
    %v1187 = vand.u32 2147483647, %v1160
    %vm1188 = vcmp.eq.f32.partialorder %v1187, 8.507059e+37
    %v1189 = vand.u32 %v1160, 2147483648
    %v1190 = vor.u32 1.1754944e-38, %v1189
    %v1191 = vsel %vm1188, %v1190, %v1186
    %v1192 = vmul.f32 1.0, %v1191
    %v1193 = vrcp.pop %v1161
    %v1194 = vmul.f32 %v1161, %v1193
    %v1195 = vsub.f32 1.0, %v1194
    %v1196 = vmul.f32 %v1193, %v1195
    %v1197 = vadd.f32 %v1193, %v1196
    %vm1198 = vweird.f32 %v1161
    %vm1199 = vweird.f32 %v1193
    %vm1200 = vmor %vm1198, %vm1199
    %v1201 = vsel %vm1200, %v1193, %v1197
    %v1202 = vand.u32 2147483647, %v1161
    %vm1203 = vcmp.eq.f32.partialorder %v1202, 8.507059e+37
    %v1204 = vand.u32 %v1161, 2147483648
    %v1205 = vor.u32 1.1754944e-38, %v1204
    %v1206 = vsel %vm1203, %v1205, %v1201
    %v1207 = vmul.f32 1.0, %v1206
    %v1208 = vrcp.pop %v1162
    %v1209 = vmul.f32 %v1162, %v1208
    %v1210 = vsub.f32 1.0, %v1209
    %v1211 = vmul.f32 %v1208, %v1210
    %v1212 = vadd.f32 %v1208, %v1211
    %vm1213 = vweird.f32 %v1162
    %vm1214 = vweird.f32 %v1208
    %vm1215 = vmor %vm1213, %vm1214
    %v1216 = vsel %vm1215, %v1208, %v1212
    %v1217 = vand.u32 2147483647, %v1162
    %vm1218 = vcmp.eq.f32.partialorder %v1217, 8.507059e+37
    %v1219 = vand.u32 %v1162, 2147483648
    %v1220 = vor.u32 1.1754944e-38, %v1219
    %v1221 = vsel %vm1218, %v1220, %v1216
    %v1222 = vmul.f32 1.0, %v1221
    %v1223 = vld [vmem:[#allocation3 + $0x200] sm:$0xff]
    %v1224 = vld [vmem:[#allocation3 + $0x240] sm:$0xff]
    %v1225 = vld [vmem:[#allocation3 + $0x280] sm:$0xff]
    %v1226 = vld [vmem:[#allocation3 + $0x2c0] sm:$0xff]
    %1228 = vset.pattern.permute.xlu0 0
    %1229 = vperm.xlu0 %1228, %v964
    %v1230 = vpop.permute.xlu0 %1229
    %1233 = vset.pattern.permute.xlu0 0
    %1234 = vperm.xlu0 %1233, %v965
    %v1235 = vpop.permute.xlu0 %1234
    %1238 = vset.pattern.permute.xlu0 0
    %1239 = vperm.xlu0 %1238, %v966
    %v1240 = vpop.permute.xlu0 %1239
    %1243 = vset.pattern.permute.xlu0 0
    %1244 = vperm.xlu0 %1243, %v967
    %v1245 = vpop.permute.xlu0 %1244
    %v1247 = vadd.f32 %v1046, %v1230
    %v1248 = vadd.f32 %v1048, %v1235
    %v1249 = vadd.f32 %v1051, %v1240
    %v1250 = vadd.f32 %v1053, %v1245
    %v1251 = vmul.f32 %v1093, %v1247
    %v1252 = vmul.f32 %v1108, %v1248
    %v1253 = vmul.f32 %v1123, %v1249
    %v1254 = vmul.f32 %v1138, %v1250
    %v1255 = vadd.f32 %v1223, %v1251
    %v1256 = vadd.f32 %v1224, %v1252
    %v1257 = vadd.f32 %v1225, %v1253
    %v1258 = vadd.f32 %v1226, %v1254
    %v1259 = vtanh.pop %v1255
    %v1260 = vtanh.pop %v1256
    %v1261 = vtanh.pop %v1257
    %v1262 = vtanh.pop %v1258
    %v1263 = vsub.f32 1.0, %v1177
    %v1264 = vsub.f32 1.0, %v1192
    %v1265 = vsub.f32 1.0, %v1207
    %v1266 = vsub.f32 1.0, %v1222
    %v1267 = vmul.f32 %v1263, %v1259
    %v1268 = vmul.f32 %v1264, %v1260
    %v1269 = vmul.f32 %v1265, %v1261
    %v1270 = vmul.f32 %v1266, %v1262
    %v1271 = vmul.f32 %v1177, 0.0
    %v1272 = vmul.f32 %v1192, 0.0
    %v1273 = vmul.f32 %v1207, 0.0
    %v1274 = vmul.f32 %v1222, 0.0
    %v1275 = vadd.f32 %v1267, %v1271
    %v1276 = vadd.f32 %v1268, %v1272
    %v1277 = vadd.f32 %v1269, %v1273
    %v1278 = vadd.f32 %v1270, %v1274
    %1279 = vst [vmem:[#allocation2] sm:$0xff] %v1275
    %1280 = vst [vmem:[#allocation2 + $0x40] sm:$0xff] %v1276
    %1281 = vst [vmem:[#allocation2 + $0x80] sm:$0xff] %v1277
    %1282 = vst [vmem:[#allocation2 + $0xc0] sm:$0xff] %v1278
    %v1283 = vpack.c.bf16 %v1276, %v1275
    %v1284 = vpack.c.bf16 %v1278, %v1277
    %1285 = vmatpush.bf16.msra.mxu0 0
    %1286 = vmatpush.bf16.msra.mxu0 0
    %1287 = vmatpush.bf16.msra.mxu0 0
    %1288 = vmatpush.bf16.msra.mxu0 0
    %1289 = vmatpush.bf16.msra.mxu0 0
    %1290 = vmatpush.bf16.msra.mxu0 0
    %1291 = vmatpush.bf16.msra.mxu0 %v1284
    %1292 = vmatpush.bf16.msra.mxu0 %v1283
    %1293 = vmatmul.bf16.gmra.mxu0 %v999
    %v1294 = vpop.f32.mrf.mxu0
    %v1295 = vadd.f32 0.0, %v1294
    %v1296 = vpop.f32.mrf.mxu0
    %v1297 = vadd.f32 0.0, %v1296
    %1298 = vmatmul.bf16.gmra.mxu0 %v1002
    %v1299 = vpop.f32.mrf.mxu0
    %v1300 = vadd.f32 0.0, %v1299
    %v1301 = vpop.f32.mrf.mxu0
    %v1302 = vadd.f32 0.0, %v1301
    %1303 = vmatmul.bf16.gmra.mxu0 %v1005
    %v1304 = vpop.f32.mrf.mxu0
    %v1305 = vadd.f32 0.0, %v1304
    %v1306 = vpop.f32.mrf.mxu0
    %v1307 = vadd.f32 0.0, %v1306
    %1308 = vmatmul.bf16.gmra.mxu0 %v1008
    %v1309 = vpop.f32.mrf.mxu0
    %v1310 = vadd.f32 0.0, %v1309
    %v1311 = vpop.f32.mrf.mxu0
    %v1312 = vadd.f32 0.0, %v1311
    %1313 = vmatmul.bf16.gmra.mxu0 %v1011
    %v1314 = vpop.f32.mrf.mxu0
    %v1315 = vadd.f32 0.0, %v1314
    %v1316 = vpop.f32.mrf.mxu0
    %v1317 = vadd.f32 0.0, %v1316
    %1318 = vmatmul.bf16.gmra.mxu0 %v1014
    %v1319 = vpop.f32.mrf.mxu0
    %v1320 = vadd.f32 0.0, %v1319
    %v1321 = vpop.f32.mrf.mxu0
    %v1322 = vadd.f32 0.0, %v1321
    %1323 = vdwg.mxu0
    %v1324 = vld [vmem:[#allocation3 + $0x8] sm:$0xff]
    %v1325 = vld [vmem:[#allocation3 + $0x48] sm:$0xff]
    %v1326 = vld [vmem:[#allocation3 + $0x88] sm:$0xff]
    %v1327 = vld [vmem:[#allocation3 + $0xc8] sm:$0xff]
    %v1328 = vadd.f32 %v1324, %v1295
    %v1329 = vadd.f32 %v1325, %v1297
    %v1330 = vadd.f32 %v1326, %v1300
    %v1331 = vadd.f32 %v1327, %v1302
    %v1332 = vxor.u32 %v1328, 2147483648
    %v1333 = vxor.u32 %v1329, 2147483648
    %v1334 = vxor.u32 %v1330, 2147483648
    %v1335 = vxor.u32 %v1331, 2147483648
    %v1336 = vmul.f32 %v1332, 1.442695
    %v1337 = vpow.pop %v1336
    %v1338 = vmul.f32 %v1333, 1.442695
    %v1339 = vpow.pop %v1338
    %v1340 = vmul.f32 %v1334, 1.442695
    %v1341 = vpow.pop %v1340
    %v1342 = vmul.f32 %v1335, 1.442695
    %v1343 = vpow.pop %v1342
    %v1344 = vadd.f32 %v1337, 1.0
    %v1345 = vadd.f32 %v1339, 1.0
    %v1346 = vadd.f32 %v1341, 1.0
    %v1347 = vadd.f32 %v1343, 1.0
    %v1348 = vrcp.pop %v1344
    %v1349 = vmul.f32 %v1344, %v1348
    %v1350 = vsub.f32 1.0, %v1349
    %v1351 = vmul.f32 %v1348, %v1350
    %v1352 = vadd.f32 %v1348, %v1351
    %vm1353 = vweird.f32 %v1344
    %vm1354 = vweird.f32 %v1348
    %vm1355 = vmor %vm1353, %vm1354
    %v1356 = vsel %vm1355, %v1348, %v1352
    %v1357 = vand.u32 2147483647, %v1344
    %vm1358 = vcmp.eq.f32.partialorder %v1357, 8.507059e+37
    %v1359 = vand.u32 %v1344, 2147483648
    %v1360 = vor.u32 1.1754944e-38, %v1359
    %v1361 = vsel %vm1358, %v1360, %v1356
    %v1362 = vmul.f32 1.0, %v1361
    %v1363 = vrcp.pop %v1345
    %v1364 = vmul.f32 %v1345, %v1363
    %v1365 = vsub.f32 1.0, %v1364
    %v1366 = vmul.f32 %v1363, %v1365
    %v1367 = vadd.f32 %v1363, %v1366
    %vm1368 = vweird.f32 %v1345
    %vm1369 = vweird.f32 %v1363
    %vm1370 = vmor %vm1368, %vm1369
    %v1371 = vsel %vm1370, %v1363, %v1367
    %v1372 = vand.u32 2147483647, %v1345
    %vm1373 = vcmp.eq.f32.partialorder %v1372, 8.507059e+37
    %v1374 = vand.u32 %v1345, 2147483648
    %v1375 = vor.u32 1.1754944e-38, %v1374
    %v1376 = vsel %vm1373, %v1375, %v1371
    %v1377 = vmul.f32 1.0, %v1376
    %v1378 = vrcp.pop %v1346
    %v1379 = vmul.f32 %v1346, %v1378
    %v1380 = vsub.f32 1.0, %v1379
    %v1381 = vmul.f32 %v1378, %v1380
    %v1382 = vadd.f32 %v1378, %v1381
    %vm1383 = vweird.f32 %v1346
    %vm1384 = vweird.f32 %v1378
    %vm1385 = vmor %vm1383, %vm1384
    %v1386 = vsel %vm1385, %v1378, %v1382
    %v1387 = vand.u32 2147483647, %v1346
    %vm1388 = vcmp.eq.f32.partialorder %v1387, 8.507059e+37
    %v1389 = vand.u32 %v1346, 2147483648
    %v1390 = vor.u32 1.1754944e-38, %v1389
    %v1391 = vsel %vm1388, %v1390, %v1386
    %v1392 = vmul.f32 1.0, %v1391
    %v1393 = vrcp.pop %v1347
    %v1394 = vmul.f32 %v1347, %v1393
    %v1395 = vsub.f32 1.0, %v1394
    %v1396 = vmul.f32 %v1393, %v1395
    %v1397 = vadd.f32 %v1393, %v1396
    %vm1398 = vweird.f32 %v1347
    %vm1399 = vweird.f32 %v1393
    %vm1400 = vmor %vm1398, %vm1399
    %v1401 = vsel %vm1400, %v1393, %v1397
    %v1402 = vand.u32 2147483647, %v1347
    %vm1403 = vcmp.eq.f32.partialorder %v1402, 8.507059e+37
    %v1404 = vand.u32 %v1347, 2147483648
    %v1405 = vor.u32 1.1754944e-38, %v1404
    %v1406 = vsel %vm1403, %v1405, %v1401
    %v1407 = vmul.f32 1.0, %v1406
    %v1408 = vld [vmem:[#allocation3 + $0x108] sm:$0xff]
    %v1409 = vld [vmem:[#allocation3 + $0x148] sm:$0xff]
    %v1410 = vld [vmem:[#allocation3 + $0x188] sm:$0xff]
    %v1411 = vld [vmem:[#allocation3 + $0x1c8] sm:$0xff]
    %v1412 = vadd.f32 %v1408, %v1305
    %v1413 = vadd.f32 %v1409, %v1307
    %v1414 = vadd.f32 %v1410, %v1310
    %v1415 = vadd.f32 %v1411, %v1312
    %v1416 = vxor.u32 %v1412, 2147483648
    %v1417 = vxor.u32 %v1413, 2147483648
    %v1418 = vxor.u32 %v1414, 2147483648
    %v1419 = vxor.u32 %v1415, 2147483648
    %v1420 = vmul.f32 %v1416, 1.442695
    %v1421 = vpow.pop %v1420
    %v1422 = vmul.f32 %v1417, 1.442695
    %v1423 = vpow.pop %v1422
    %v1424 = vmul.f32 %v1418, 1.442695
    %v1425 = vpow.pop %v1424
    %v1426 = vmul.f32 %v1419, 1.442695
    %v1427 = vpow.pop %v1426
    %v1428 = vadd.f32 %v1421, 1.0
    %v1429 = vadd.f32 %v1423, 1.0
    %v1430 = vadd.f32 %v1425, 1.0
    %v1431 = vadd.f32 %v1427, 1.0
    %v1432 = vrcp.pop %v1428
    %v1433 = vmul.f32 %v1428, %v1432
    %v1434 = vsub.f32 1.0, %v1433
    %v1435 = vmul.f32 %v1432, %v1434
    %v1436 = vadd.f32 %v1432, %v1435
    %vm1437 = vweird.f32 %v1428
    %vm1438 = vweird.f32 %v1432
    %vm1439 = vmor %vm1437, %vm1438
    %v1440 = vsel %vm1439, %v1432, %v1436
    %v1441 = vand.u32 2147483647, %v1428
    %vm1442 = vcmp.eq.f32.partialorder %v1441, 8.507059e+37
    %v1443 = vand.u32 %v1428, 2147483648
    %v1444 = vor.u32 1.1754944e-38, %v1443
    %v1445 = vsel %vm1442, %v1444, %v1440
    %v1446 = vmul.f32 1.0, %v1445
    %v1447 = vrcp.pop %v1429
    %v1448 = vmul.f32 %v1429, %v1447
    %v1449 = vsub.f32 1.0, %v1448
    %v1450 = vmul.f32 %v1447, %v1449
    %v1451 = vadd.f32 %v1447, %v1450
    %vm1452 = vweird.f32 %v1429
    %vm1453 = vweird.f32 %v1447
    %vm1454 = vmor %vm1452, %vm1453
    %v1455 = vsel %vm1454, %v1447, %v1451
    %v1456 = vand.u32 2147483647, %v1429
    %vm1457 = vcmp.eq.f32.partialorder %v1456, 8.507059e+37
    %v1458 = vand.u32 %v1429, 2147483648
    %v1459 = vor.u32 1.1754944e-38, %v1458
    %v1460 = vsel %vm1457, %v1459, %v1455
    %v1461 = vmul.f32 1.0, %v1460
    %v1462 = vrcp.pop %v1430
    %v1463 = vmul.f32 %v1430, %v1462
    %v1464 = vsub.f32 1.0, %v1463
    %v1465 = vmul.f32 %v1462, %v1464
    %v1466 = vadd.f32 %v1462, %v1465
    %vm1467 = vweird.f32 %v1430
    %vm1468 = vweird.f32 %v1462
    %vm1469 = vmor %vm1467, %vm1468
    %v1470 = vsel %vm1469, %v1462, %v1466
    %v1471 = vand.u32 2147483647, %v1430
    %vm1472 = vcmp.eq.f32.partialorder %v1471, 8.507059e+37
    %v1473 = vand.u32 %v1430, 2147483648
    %v1474 = vor.u32 1.1754944e-38, %v1473
    %v1475 = vsel %vm1472, %v1474, %v1470
    %v1476 = vmul.f32 1.0, %v1475
    %v1477 = vrcp.pop %v1431
    %v1478 = vmul.f32 %v1431, %v1477
    %v1479 = vsub.f32 1.0, %v1478
    %v1480 = vmul.f32 %v1477, %v1479
    %v1481 = vadd.f32 %v1477, %v1480
    %vm1482 = vweird.f32 %v1431
    %vm1483 = vweird.f32 %v1477
    %vm1484 = vmor %vm1482, %vm1483
    %v1485 = vsel %vm1484, %v1477, %v1481
    %v1486 = vand.u32 2147483647, %v1431
    %vm1487 = vcmp.eq.f32.partialorder %v1486, 8.507059e+37
    %v1488 = vand.u32 %v1431, 2147483648
    %v1489 = vor.u32 1.1754944e-38, %v1488
    %v1490 = vsel %vm1487, %v1489, %v1485
    %v1491 = vmul.f32 1.0, %v1490
    %v1492 = vld [vmem:[#allocation3 + $0x208] sm:$0xff]
    %v1493 = vld [vmem:[#allocation3 + $0x248] sm:$0xff]
    %v1494 = vld [vmem:[#allocation3 + $0x288] sm:$0xff]
    %v1495 = vld [vmem:[#allocation3 + $0x2c8] sm:$0xff]
    %v1496 = vadd.f32 %v1315, %v1230
    %v1497 = vadd.f32 %v1317, %v1235
    %v1498 = vadd.f32 %v1320, %v1240
    %v1499 = vadd.f32 %v1322, %v1245
    %v1500 = vmul.f32 %v1362, %v1496
    %v1501 = vmul.f32 %v1377, %v1497
    %v1502 = vmul.f32 %v1392, %v1498
    %v1503 = vmul.f32 %v1407, %v1499
    %v1504 = vadd.f32 %v1492, %v1500
    %v1505 = vadd.f32 %v1493, %v1501
    %v1506 = vadd.f32 %v1494, %v1502
    %v1507 = vadd.f32 %v1495, %v1503
    %v1508 = vtanh.pop %v1504
    %v1509 = vtanh.pop %v1505
    %v1510 = vtanh.pop %v1506
    %v1511 = vtanh.pop %v1507
    %v1512 = vsub.f32 1.0, %v1446
    %v1513 = vsub.f32 1.0, %v1461
    %v1514 = vsub.f32 1.0, %v1476
    %v1515 = vsub.f32 1.0, %v1491
    %v1516 = vmul.f32 %v1512, %v1508
    %v1517 = vmul.f32 %v1513, %v1509
    %v1518 = vmul.f32 %v1514, %v1510
    %v1519 = vmul.f32 %v1515, %v1511
    %v1520 = vmul.f32 %v1446, %v1275
    %v1521 = vmul.f32 %v1461, %v1276
    %v1522 = vmul.f32 %v1476, %v1277
    %v1523 = vmul.f32 %v1491, %v1278
    %v1524 = vadd.f32 %v1516, %v1520
    %v1525 = vadd.f32 %v1517, %v1521
    %v1526 = vadd.f32 %v1518, %v1522
    %v1527 = vadd.f32 %v1519, %v1523
    %1528 = vst [vmem:[#allocation2 + $0x8] sm:$0xff] %v1524
    %1529 = vst [vmem:[#allocation2 + $0x48] sm:$0xff] %v1525
    %1530 = vst [vmem:[#allocation2 + $0x88] sm:$0xff] %v1526
    %1531 = vst [vmem:[#allocation2 + $0xc8] sm:$0xff] %v1527
    %v1532 = vpack.c.bf16 %v1525, %v1524
    %v1533 = vpack.c.bf16 %v1527, %v1526
    %1534 = vmatpush.bf16.msra.mxu0 0
    %1535 = vmatpush.bf16.msra.mxu0 0
    %1536 = vmatpush.bf16.msra.mxu0 0
    %1537 = vmatpush.bf16.msra.mxu0 0
    %1538 = vmatpush.bf16.msra.mxu0 0
    %1539 = vmatpush.bf16.msra.mxu0 0
    %1540 = vmatpush.bf16.msra.mxu0 %v1533
    %1541 = vmatpush.bf16.msra.mxu0 %v1532
    %1542 = vmatmul.bf16.gmra.mxu0 %v999
    %v1543 = vpop.f32.mrf.mxu0
    %v1544 = vadd.f32 0.0, %v1543
    %v1545 = vpop.f32.mrf.mxu0
    %v1546 = vadd.f32 0.0, %v1545
    %1547 = vmatmul.bf16.gmra.mxu0 %v1002
    %v1548 = vpop.f32.mrf.mxu0
    %v1549 = vadd.f32 0.0, %v1548
    %v1550 = vpop.f32.mrf.mxu0
    %v1551 = vadd.f32 0.0, %v1550
    %1552 = vmatmul.bf16.gmra.mxu0 %v1005
    %v1553 = vpop.f32.mrf.mxu0
    %v1554 = vadd.f32 0.0, %v1553
    %v1555 = vpop.f32.mrf.mxu0
    %v1556 = vadd.f32 0.0, %v1555
    %1557 = vmatmul.bf16.gmra.mxu0 %v1008
    %v1558 = vpop.f32.mrf.mxu0
    %v1559 = vadd.f32 0.0, %v1558
    %v1560 = vpop.f32.mrf.mxu0
    %v1561 = vadd.f32 0.0, %v1560
    %1562 = vmatmul.bf16.gmra.mxu0 %v1011
    %v1563 = vpop.f32.mrf.mxu0
    %v1564 = vadd.f32 0.0, %v1563
    %v1565 = vpop.f32.mrf.mxu0
    %v1566 = vadd.f32 0.0, %v1565
    %1567 = vmatmul.bf16.gmra.mxu0 %v1014
    %v1568 = vpop.f32.mrf.mxu0
    %v1569 = vadd.f32 0.0, %v1568
    %v1570 = vpop.f32.mrf.mxu0
    %v1571 = vadd.f32 0.0, %v1570
    %1572 = vdwg.mxu0
    %v1573 = vld [vmem:[#allocation3 + $0x10] sm:$0xff]
    %v1574 = vld [vmem:[#allocation3 + $0x50] sm:$0xff]
    %v1575 = vld [vmem:[#allocation3 + $0x90] sm:$0xff]
    %v1576 = vld [vmem:[#allocation3 + $0xd0] sm:$0xff]
    %v1577 = vadd.f32 %v1573, %v1544
    %v1578 = vadd.f32 %v1574, %v1546
    %v1579 = vadd.f32 %v1575, %v1549
    %v1580 = vadd.f32 %v1576, %v1551
    %v1581 = vxor.u32 %v1577, 2147483648
    %v1582 = vxor.u32 %v1578, 2147483648
    %v1583 = vxor.u32 %v1579, 2147483648
    %v1584 = vxor.u32 %v1580, 2147483648
    %v1585 = vmul.f32 %v1581, 1.442695
    %v1586 = vpow.pop %v1585
    %v1587 = vmul.f32 %v1582, 1.442695
    %v1588 = vpow.pop %v1587
    %v1589 = vmul.f32 %v1583, 1.442695
    %v1590 = vpow.pop %v1589
    %v1591 = vmul.f32 %v1584, 1.442695
    %v1592 = vpow.pop %v1591
    %v1593 = vadd.f32 %v1586, 1.0
    %v1594 = vadd.f32 %v1588, 1.0
    %v1595 = vadd.f32 %v1590, 1.0
    %v1596 = vadd.f32 %v1592, 1.0
    %v1597 = vrcp.pop %v1593
    %v1598 = vmul.f32 %v1593, %v1597
    %v1599 = vsub.f32 1.0, %v1598
    %v1600 = vmul.f32 %v1597, %v1599
    %v1601 = vadd.f32 %v1597, %v1600
    %vm1602 = vweird.f32 %v1593
    %vm1603 = vweird.f32 %v1597
    %vm1604 = vmor %vm1602, %vm1603
    %v1605 = vsel %vm1604, %v1597, %v1601
    %v1606 = vand.u32 2147483647, %v1593
    %vm1607 = vcmp.eq.f32.partialorder %v1606, 8.507059e+37
    %v1608 = vand.u32 %v1593, 2147483648
    %v1609 = vor.u32 1.1754944e-38, %v1608
    %v1610 = vsel %vm1607, %v1609, %v1605
    %v1611 = vmul.f32 1.0, %v1610
    %v1612 = vrcp.pop %v1594
    %v1613 = vmul.f32 %v1594, %v1612
    %v1614 = vsub.f32 1.0, %v1613
    %v1615 = vmul.f32 %v1612, %v1614
    %v1616 = vadd.f32 %v1612, %v1615
    %vm1617 = vweird.f32 %v1594
    %vm1618 = vweird.f32 %v1612
    %vm1619 = vmor %vm1617, %vm1618
    %v1620 = vsel %vm1619, %v1612, %v1616
    %v1621 = vand.u32 2147483647, %v1594
    %vm1622 = vcmp.eq.f32.partialorder %v1621, 8.507059e+37
    %v1623 = vand.u32 %v1594, 2147483648
    %v1624 = vor.u32 1.1754944e-38, %v1623
    %v1625 = vsel %vm1622, %v1624, %v1620
    %v1626 = vmul.f32 1.0, %v1625
    %v1627 = vrcp.pop %v1595
    %v1628 = vmul.f32 %v1595, %v1627
    %v1629 = vsub.f32 1.0, %v1628
    %v1630 = vmul.f32 %v1627, %v1629
    %v1631 = vadd.f32 %v1627, %v1630
    %vm1632 = vweird.f32 %v1595
    %vm1633 = vweird.f32 %v1627
    %vm1634 = vmor %vm1632, %vm1633
    %v1635 = vsel %vm1634, %v1627, %v1631
    %v1636 = vand.u32 2147483647, %v1595
    %vm1637 = vcmp.eq.f32.partialorder %v1636, 8.507059e+37
    %v1638 = vand.u32 %v1595, 2147483648
    %v1639 = vor.u32 1.1754944e-38, %v1638
    %v1640 = vsel %vm1637, %v1639, %v1635
    %v1641 = vmul.f32 1.0, %v1640
    %v1642 = vrcp.pop %v1596
    %v1643 = vmul.f32 %v1596, %v1642
    %v1644 = vsub.f32 1.0, %v1643
    %v1645 = vmul.f32 %v1642, %v1644
    %v1646 = vadd.f32 %v1642, %v1645
    %vm1647 = vweird.f32 %v1596
    %vm1648 = vweird.f32 %v1642
    %vm1649 = vmor %vm1647, %vm1648
    %v1650 = vsel %vm1649, %v1642, %v1646
    %v1651 = vand.u32 2147483647, %v1596
    %vm1652 = vcmp.eq.f32.partialorder %v1651, 8.507059e+37
    %v1653 = vand.u32 %v1596, 2147483648
    %v1654 = vor.u32 1.1754944e-38, %v1653
    %v1655 = vsel %vm1652, %v1654, %v1650
    %v1656 = vmul.f32 1.0, %v1655
    %v1657 = vld [vmem:[#allocation3 + $0x110] sm:$0xff]
    %v1658 = vld [vmem:[#allocation3 + $0x150] sm:$0xff]
    %v1659 = vld [vmem:[#allocation3 + $0x190] sm:$0xff]
    %v1660 = vld [vmem:[#allocation3 + $0x1d0] sm:$0xff]
    %v1661 = vadd.f32 %v1657, %v1554
    %v1662 = vadd.f32 %v1658, %v1556
    %v1663 = vadd.f32 %v1659, %v1559
    %v1664 = vadd.f32 %v1660, %v1561
    %v1665 = vxor.u32 %v1661, 2147483648
    %v1666 = vxor.u32 %v1662, 2147483648
    %v1667 = vxor.u32 %v1663, 2147483648
    %v1668 = vxor.u32 %v1664, 2147483648
    %v1669 = vmul.f32 %v1665, 1.442695
    %v1670 = vpow.pop %v1669
    %v1671 = vmul.f32 %v1666, 1.442695
    %v1672 = vpow.pop %v1671
    %v1673 = vmul.f32 %v1667, 1.442695
    %v1674 = vpow.pop %v1673
    %v1675 = vmul.f32 %v1668, 1.442695
    %v1676 = vpow.pop %v1675
    %v1677 = vadd.f32 %v1670, 1.0
    %v1678 = vadd.f32 %v1672, 1.0
    %v1679 = vadd.f32 %v1674, 1.0
    %v1680 = vadd.f32 %v1676, 1.0
    %v1681 = vrcp.pop %v1677
    %v1682 = vmul.f32 %v1677, %v1681
    %v1683 = vsub.f32 1.0, %v1682
    %v1684 = vmul.f32 %v1681, %v1683
    %v1685 = vadd.f32 %v1681, %v1684
    %vm1686 = vweird.f32 %v1677
    %vm1687 = vweird.f32 %v1681
    %vm1688 = vmor %vm1686, %vm1687
    %v1689 = vsel %vm1688, %v1681, %v1685
    %v1690 = vand.u32 2147483647, %v1677
    %vm1691 = vcmp.eq.f32.partialorder %v1690, 8.507059e+37
    %v1692 = vand.u32 %v1677, 2147483648
    %v1693 = vor.u32 1.1754944e-38, %v1692
    %v1694 = vsel %vm1691, %v1693, %v1689
    %v1695 = vmul.f32 1.0, %v1694
    %v1696 = vrcp.pop %v1678
    %v1697 = vmul.f32 %v1678, %v1696
    %v1698 = vsub.f32 1.0, %v1697
    %v1699 = vmul.f32 %v1696, %v1698
    %v1700 = vadd.f32 %v1696, %v1699
    %vm1701 = vweird.f32 %v1678
    %vm1702 = vweird.f32 %v1696
    %vm1703 = vmor %vm1701, %vm1702
    %v1704 = vsel %vm1703, %v1696, %v1700
    %v1705 = vand.u32 2147483647, %v1678
    %vm1706 = vcmp.eq.f32.partialorder %v1705, 8.507059e+37
    %v1707 = vand.u32 %v1678, 2147483648
    %v1708 = vor.u32 1.1754944e-38, %v1707
    %v1709 = vsel %vm1706, %v1708, %v1704
    %v1710 = vmul.f32 1.0, %v1709
    %v1711 = vrcp.pop %v1679
    %v1712 = vmul.f32 %v1679, %v1711
    %v1713 = vsub.f32 1.0, %v1712
    %v1714 = vmul.f32 %v1711, %v1713
    %v1715 = vadd.f32 %v1711, %v1714
    %vm1716 = vweird.f32 %v1679
    %vm1717 = vweird.f32 %v1711
    %vm1718 = vmor %vm1716, %vm1717
    %v1719 = vsel %vm1718, %v1711, %v1715
    %v1720 = vand.u32 2147483647, %v1679
    %vm1721 = vcmp.eq.f32.partialorder %v1720, 8.507059e+37
    %v1722 = vand.u32 %v1679, 2147483648
    %v1723 = vor.u32 1.1754944e-38, %v1722
    %v1724 = vsel %vm1721, %v1723, %v1719
    %v1725 = vmul.f32 1.0, %v1724
    %v1726 = vrcp.pop %v1680
    %v1727 = vmul.f32 %v1680, %v1726
    %v1728 = vsub.f32 1.0, %v1727
    %v1729 = vmul.f32 %v1726, %v1728
    %v1730 = vadd.f32 %v1726, %v1729
    %vm1731 = vweird.f32 %v1680
    %vm1732 = vweird.f32 %v1726
    %vm1733 = vmor %vm1731, %vm1732
    %v1734 = vsel %vm1733, %v1726, %v1730
    %v1735 = vand.u32 2147483647, %v1680
    %vm1736 = vcmp.eq.f32.partialorder %v1735, 8.507059e+37
    %v1737 = vand.u32 %v1680, 2147483648
    %v1738 = vor.u32 1.1754944e-38, %v1737
    %v1739 = vsel %vm1736, %v1738, %v1734
    %v1740 = vmul.f32 1.0, %v1739
    %v1741 = vld [vmem:[#allocation3 + $0x210] sm:$0xff]
    %v1742 = vld [vmem:[#allocation3 + $0x250] sm:$0xff]
    %v1743 = vld [vmem:[#allocation3 + $0x290] sm:$0xff]
    %v1744 = vld [vmem:[#allocation3 + $0x2d0] sm:$0xff]
    %v1745 = vadd.f32 %v1564, %v1230
    %v1746 = vadd.f32 %v1566, %v1235
    %v1747 = vadd.f32 %v1569, %v1240
    %v1748 = vadd.f32 %v1571, %v1245
    %v1749 = vmul.f32 %v1611, %v1745
    %v1750 = vmul.f32 %v1626, %v1746
    %v1751 = vmul.f32 %v1641, %v1747
    %v1752 = vmul.f32 %v1656, %v1748
    %v1753 = vadd.f32 %v1741, %v1749
    %v1754 = vadd.f32 %v1742, %v1750
    %v1755 = vadd.f32 %v1743, %v1751
    %v1756 = vadd.f32 %v1744, %v1752
    %v1757 = vtanh.pop %v1753
    %v1758 = vtanh.pop %v1754
    %v1759 = vtanh.pop %v1755
    %v1760 = vtanh.pop %v1756
    %v1761 = vsub.f32 1.0, %v1695
    %v1762 = vsub.f32 1.0, %v1710
    %v1763 = vsub.f32 1.0, %v1725
    %v1764 = vsub.f32 1.0, %v1740
    %v1765 = vmul.f32 %v1761, %v1757
    %v1766 = vmul.f32 %v1762, %v1758
    %v1767 = vmul.f32 %v1763, %v1759
    %v1768 = vmul.f32 %v1764, %v1760
    %v1769 = vmul.f32 %v1695, %v1524
    %v1770 = vmul.f32 %v1710, %v1525
    %v1771 = vmul.f32 %v1725, %v1526
    %v1772 = vmul.f32 %v1740, %v1527
    %v1773 = vadd.f32 %v1765, %v1769
    %v1774 = vadd.f32 %v1766, %v1770
    %v1775 = vadd.f32 %v1767, %v1771
    %v1776 = vadd.f32 %v1768, %v1772
    %1777 = vst [vmem:[#allocation2 + $0x10] sm:$0xff] %v1773
    %1778 = vst [vmem:[#allocation2 + $0x50] sm:$0xff] %v1774
    %1779 = vst [vmem:[#allocation2 + $0x90] sm:$0xff] %v1775
    %1780 = vst [vmem:[#allocation2 + $0xd0] sm:$0xff] %v1776
    %v1781 = vpack.c.bf16 %v1774, %v1773
    %v1782 = vpack.c.bf16 %v1776, %v1775
    %1783 = vmatpush.bf16.msra.mxu0 0
    %1784 = vmatpush.bf16.msra.mxu0 0
    %1785 = vmatpush.bf16.msra.mxu0 0
    %1786 = vmatpush.bf16.msra.mxu0 0
    %1787 = vmatpush.bf16.msra.mxu0 0
    %1788 = vmatpush.bf16.msra.mxu0 0
    %1789 = vmatpush.bf16.msra.mxu0 %v1782
    %1790 = vmatpush.bf16.msra.mxu0 %v1781
    %1791 = vmatmul.bf16.gmra.mxu0 %v999
    %v1792 = vpop.f32.mrf.mxu0
    %v1793 = vadd.f32 0.0, %v1792
    %v1794 = vpop.f32.mrf.mxu0
    %v1795 = vadd.f32 0.0, %v1794
    %1796 = vmatmul.bf16.gmra.mxu0 %v1002
    %v1797 = vpop.f32.mrf.mxu0
    %v1798 = vadd.f32 0.0, %v1797
    %v1799 = vpop.f32.mrf.mxu0
    %v1800 = vadd.f32 0.0, %v1799
    %1801 = vmatmul.bf16.gmra.mxu0 %v1005
    %v1802 = vpop.f32.mrf.mxu0
    %v1803 = vadd.f32 0.0, %v1802
    %v1804 = vpop.f32.mrf.mxu0
    %v1805 = vadd.f32 0.0, %v1804
    %1806 = vmatmul.bf16.gmra.mxu0 %v1008
    %v1807 = vpop.f32.mrf.mxu0
    %v1808 = vadd.f32 0.0, %v1807
    %v1809 = vpop.f32.mrf.mxu0
    %v1810 = vadd.f32 0.0, %v1809
    %1811 = vmatmul.bf16.gmra.mxu0 %v1011
    %v1812 = vpop.f32.mrf.mxu0
    %v1813 = vadd.f32 0.0, %v1812
    %v1814 = vpop.f32.mrf.mxu0
    %v1815 = vadd.f32 0.0, %v1814
    %1816 = vmatmul.bf16.gmra.mxu0 %v1014
    %v1817 = vpop.f32.mrf.mxu0
    %v1818 = vadd.f32 0.0, %v1817
    %v1819 = vpop.f32.mrf.mxu0
    %v1820 = vadd.f32 0.0, %v1819
    %1821 = vdwg.mxu0
    %v1822 = vld [vmem:[#allocation3 + $0x18] sm:$0xff]
    %v1823 = vld [vmem:[#allocation3 + $0x58] sm:$0xff]
    %v1824 = vld [vmem:[#allocation3 + $0x98] sm:$0xff]
    %v1825 = vld [vmem:[#allocation3 + $0xd8] sm:$0xff]
    %v1826 = vadd.f32 %v1822, %v1793
    %v1827 = vadd.f32 %v1823, %v1795
    %v1828 = vadd.f32 %v1824, %v1798
    %v1829 = vadd.f32 %v1825, %v1800
    %v1830 = vxor.u32 %v1826, 2147483648
    %v1831 = vxor.u32 %v1827, 2147483648
    %v1832 = vxor.u32 %v1828, 2147483648
    %v1833 = vxor.u32 %v1829, 2147483648
    %v1834 = vmul.f32 %v1830, 1.442695
    %v1835 = vpow.pop %v1834
    %v1836 = vmul.f32 %v1831, 1.442695
    %v1837 = vpow.pop %v1836
    %v1838 = vmul.f32 %v1832, 1.442695
    %v1839 = vpow.pop %v1838
    %v1840 = vmul.f32 %v1833, 1.442695
    %v1841 = vpow.pop %v1840
    %v1842 = vadd.f32 %v1835, 1.0
    %v1843 = vadd.f32 %v1837, 1.0
    %v1844 = vadd.f32 %v1839, 1.0
    %v1845 = vadd.f32 %v1841, 1.0
    %v1846 = vrcp.pop %v1842
    %v1847 = vmul.f32 %v1842, %v1846
    %v1848 = vsub.f32 1.0, %v1847
    %v1849 = vmul.f32 %v1846, %v1848
    %v1850 = vadd.f32 %v1846, %v1849
    %vm1851 = vweird.f32 %v1842
    %vm1852 = vweird.f32 %v1846
    %vm1853 = vmor %vm1851, %vm1852
    %v1854 = vsel %vm1853, %v1846, %v1850
    %v1855 = vand.u32 2147483647, %v1842
    %vm1856 = vcmp.eq.f32.partialorder %v1855, 8.507059e+37
    %v1857 = vand.u32 %v1842, 2147483648
    %v1858 = vor.u32 1.1754944e-38, %v1857
    %v1859 = vsel %vm1856, %v1858, %v1854
    %v1860 = vmul.f32 1.0, %v1859
    %v1861 = vrcp.pop %v1843
    %v1862 = vmul.f32 %v1843, %v1861
    %v1863 = vsub.f32 1.0, %v1862
    %v1864 = vmul.f32 %v1861, %v1863
    %v1865 = vadd.f32 %v1861, %v1864
    %vm1866 = vweird.f32 %v1843
    %vm1867 = vweird.f32 %v1861
    %vm1868 = vmor %vm1866, %vm1867
    %v1869 = vsel %vm1868, %v1861, %v1865
    %v1870 = vand.u32 2147483647, %v1843
    %vm1871 = vcmp.eq.f32.partialorder %v1870, 8.507059e+37
    %v1872 = vand.u32 %v1843, 2147483648
    %v1873 = vor.u32 1.1754944e-38, %v1872
    %v1874 = vsel %vm1871, %v1873, %v1869
    %v1875 = vmul.f32 1.0, %v1874
    %v1876 = vrcp.pop %v1844
    %v1877 = vmul.f32 %v1844, %v1876
    %v1878 = vsub.f32 1.0, %v1877
    %v1879 = vmul.f32 %v1876, %v1878
    %v1880 = vadd.f32 %v1876, %v1879
    %vm1881 = vweird.f32 %v1844
    %vm1882 = vweird.f32 %v1876
    %vm1883 = vmor %vm1881, %vm1882
    %v1884 = vsel %vm1883, %v1876, %v1880
    %v1885 = vand.u32 2147483647, %v1844
    %vm1886 = vcmp.eq.f32.partialorder %v1885, 8.507059e+37
    %v1887 = vand.u32 %v1844, 2147483648
    %v1888 = vor.u32 1.1754944e-38, %v1887
    %v1889 = vsel %vm1886, %v1888, %v1884
    %v1890 = vmul.f32 1.0, %v1889
    %v1891 = vrcp.pop %v1845
    %v1892 = vmul.f32 %v1845, %v1891
    %v1893 = vsub.f32 1.0, %v1892
    %v1894 = vmul.f32 %v1891, %v1893
    %v1895 = vadd.f32 %v1891, %v1894
    %vm1896 = vweird.f32 %v1845
    %vm1897 = vweird.f32 %v1891
    %vm1898 = vmor %vm1896, %vm1897
    %v1899 = vsel %vm1898, %v1891, %v1895
    %v1900 = vand.u32 2147483647, %v1845
    %vm1901 = vcmp.eq.f32.partialorder %v1900, 8.507059e+37
    %v1902 = vand.u32 %v1845, 2147483648
    %v1903 = vor.u32 1.1754944e-38, %v1902
    %v1904 = vsel %vm1901, %v1903, %v1899
    %v1905 = vmul.f32 1.0, %v1904
    %v1906 = vld [vmem:[#allocation3 + $0x118] sm:$0xff]
    %v1907 = vld [vmem:[#allocation3 + $0x158] sm:$0xff]
    %v1908 = vld [vmem:[#allocation3 + $0x198] sm:$0xff]
    %v1909 = vld [vmem:[#allocation3 + $0x1d8] sm:$0xff]
    %v1910 = vadd.f32 %v1906, %v1803
    %v1911 = vadd.f32 %v1907, %v1805
    %v1912 = vadd.f32 %v1908, %v1808
    %v1913 = vadd.f32 %v1909, %v1810
    %v1914 = vxor.u32 %v1910, 2147483648
    %v1915 = vxor.u32 %v1911, 2147483648
    %v1916 = vxor.u32 %v1912, 2147483648
    %v1917 = vxor.u32 %v1913, 2147483648
    %v1918 = vmul.f32 %v1914, 1.442695
    %v1919 = vpow.pop %v1918
    %v1920 = vmul.f32 %v1915, 1.442695
    %v1921 = vpow.pop %v1920
    %v1922 = vmul.f32 %v1916, 1.442695
    %v1923 = vpow.pop %v1922
    %v1924 = vmul.f32 %v1917, 1.442695
    %v1925 = vpow.pop %v1924
    %v1926 = vadd.f32 %v1919, 1.0
    %v1927 = vadd.f32 %v1921, 1.0
    %v1928 = vadd.f32 %v1923, 1.0
    %v1929 = vadd.f32 %v1925, 1.0
    %v1930 = vrcp.pop %v1926
    %v1931 = vmul.f32 %v1926, %v1930
    %v1932 = vsub.f32 1.0, %v1931
    %v1933 = vmul.f32 %v1930, %v1932
    %v1934 = vadd.f32 %v1930, %v1933
    %vm1935 = vweird.f32 %v1926
    %vm1936 = vweird.f32 %v1930
    %vm1937 = vmor %vm1935, %vm1936
    %v1938 = vsel %vm1937, %v1930, %v1934
    %v1939 = vand.u32 2147483647, %v1926
    %vm1940 = vcmp.eq.f32.partialorder %v1939, 8.507059e+37
    %v1941 = vand.u32 %v1926, 2147483648
    %v1942 = vor.u32 1.1754944e-38, %v1941
    %v1943 = vsel %vm1940, %v1942, %v1938
    %v1944 = vmul.f32 1.0, %v1943
    %v1945 = vrcp.pop %v1927
    %v1946 = vmul.f32 %v1927, %v1945
    %v1947 = vsub.f32 1.0, %v1946
    %v1948 = vmul.f32 %v1945, %v1947
    %v1949 = vadd.f32 %v1945, %v1948
    %vm1950 = vweird.f32 %v1927
    %vm1951 = vweird.f32 %v1945
    %vm1952 = vmor %vm1950, %vm1951
    %v1953 = vsel %vm1952, %v1945, %v1949
    %v1954 = vand.u32 2147483647, %v1927
    %vm1955 = vcmp.eq.f32.partialorder %v1954, 8.507059e+37
    %v1956 = vand.u32 %v1927, 2147483648
    %v1957 = vor.u32 1.1754944e-38, %v1956
    %v1958 = vsel %vm1955, %v1957, %v1953
    %v1959 = vmul.f32 1.0, %v1958
    %v1960 = vrcp.pop %v1928
    %v1961 = vmul.f32 %v1928, %v1960
    %v1962 = vsub.f32 1.0, %v1961
    %v1963 = vmul.f32 %v1960, %v1962
    %v1964 = vadd.f32 %v1960, %v1963
    %vm1965 = vweird.f32 %v1928
    %vm1966 = vweird.f32 %v1960
    %vm1967 = vmor %vm1965, %vm1966
    %v1968 = vsel %vm1967, %v1960, %v1964
    %v1969 = vand.u32 2147483647, %v1928
    %vm1970 = vcmp.eq.f32.partialorder %v1969, 8.507059e+37
    %v1971 = vand.u32 %v1928, 2147483648
    %v1972 = vor.u32 1.1754944e-38, %v1971
    %v1973 = vsel %vm1970, %v1972, %v1968
    %v1974 = vmul.f32 1.0, %v1973
    %v1975 = vrcp.pop %v1929
    %v1976 = vmul.f32 %v1929, %v1975
    %v1977 = vsub.f32 1.0, %v1976
    %v1978 = vmul.f32 %v1975, %v1977
    %v1979 = vadd.f32 %v1975, %v1978
    %vm1980 = vweird.f32 %v1929
    %vm1981 = vweird.f32 %v1975
    %vm1982 = vmor %vm1980, %vm1981
    %v1983 = vsel %vm1982, %v1975, %v1979
    %v1984 = vand.u32 2147483647, %v1929
    %vm1985 = vcmp.eq.f32.partialorder %v1984, 8.507059e+37
    %v1986 = vand.u32 %v1929, 2147483648
    %v1987 = vor.u32 1.1754944e-38, %v1986
    %v1988 = vsel %vm1985, %v1987, %v1983
    %v1989 = vmul.f32 1.0, %v1988
    %v1990 = vld [vmem:[#allocation3 + $0x218] sm:$0xff]
    %v1991 = vld [vmem:[#allocation3 + $0x258] sm:$0xff]
    %v1992 = vld [vmem:[#allocation3 + $0x298] sm:$0xff]
    %v1993 = vld [vmem:[#allocation3 + $0x2d8] sm:$0xff]
    %v1994 = vadd.f32 %v1813, %v1230
    %v1995 = vadd.f32 %v1815, %v1235
    %v1996 = vadd.f32 %v1818, %v1240
    %v1997 = vadd.f32 %v1820, %v1245
    %v1998 = vmul.f32 %v1860, %v1994
    %v1999 = vmul.f32 %v1875, %v1995
    %v2000 = vmul.f32 %v1890, %v1996
    %v2001 = vmul.f32 %v1905, %v1997
    %v2002 = vadd.f32 %v1990, %v1998
    %v2003 = vadd.f32 %v1991, %v1999
    %v2004 = vadd.f32 %v1992, %v2000
    %v2005 = vadd.f32 %v1993, %v2001
    %v2006 = vtanh.pop %v2002
    %v2007 = vtanh.pop %v2003
    %v2008 = vtanh.pop %v2004
    %v2009 = vtanh.pop %v2005
    %v2010 = vsub.f32 1.0, %v1944
    %v2011 = vsub.f32 1.0, %v1959
    %v2012 = vsub.f32 1.0, %v1974
    %v2013 = vsub.f32 1.0, %v1989
    %v2014 = vmul.f32 %v2010, %v2006
    %v2015 = vmul.f32 %v2011, %v2007
    %v2016 = vmul.f32 %v2012, %v2008
    %v2017 = vmul.f32 %v2013, %v2009
    %v2018 = vmul.f32 %v1944, %v1773
    %v2019 = vmul.f32 %v1959, %v1774
    %v2020 = vmul.f32 %v1974, %v1775
    %v2021 = vmul.f32 %v1989, %v1776
    %v2022 = vadd.f32 %v2014, %v2018
    %v2023 = vadd.f32 %v2015, %v2019
    %v2024 = vadd.f32 %v2016, %v2020
    %v2025 = vadd.f32 %v2017, %v2021
    %2026 = vst [vmem:[#allocation2 + $0x18] sm:$0xff] %v2022
    %2027 = vst [vmem:[#allocation2 + $0x58] sm:$0xff] %v2023
    %2028 = vst [vmem:[#allocation2 + $0x98] sm:$0xff] %v2024
    %2029 = vst [vmem:[#allocation2 + $0xd8] sm:$0xff] %v2025
    %v2030 = vpack.c.bf16 %v2023, %v2022
    %v2031 = vpack.c.bf16 %v2025, %v2024
    %2032 = vmatpush.bf16.msra.mxu0 0
    %2033 = vmatpush.bf16.msra.mxu0 0
    %2034 = vmatpush.bf16.msra.mxu0 0
    %2035 = vmatpush.bf16.msra.mxu0 0
    %2036 = vmatpush.bf16.msra.mxu0 0
    %2037 = vmatpush.bf16.msra.mxu0 0
    %2038 = vmatpush.bf16.msra.mxu0 %v2031
    %2039 = vmatpush.bf16.msra.mxu0 %v2030
    %2040 = vmatmul.bf16.gmra.mxu0 %v999
    %v2041 = vpop.f32.mrf.mxu0
    %v2042 = vadd.f32 0.0, %v2041
    %v2043 = vpop.f32.mrf.mxu0
    %v2044 = vadd.f32 0.0, %v2043
    %2045 = vmatmul.bf16.gmra.mxu0 %v1002
    %v2046 = vpop.f32.mrf.mxu0
    %v2047 = vadd.f32 0.0, %v2046
    %v2048 = vpop.f32.mrf.mxu0
    %v2049 = vadd.f32 0.0, %v2048
    %2050 = vmatmul.bf16.gmra.mxu0 %v1005
    %v2051 = vpop.f32.mrf.mxu0
    %v2052 = vadd.f32 0.0, %v2051
    %v2053 = vpop.f32.mrf.mxu0
    %v2054 = vadd.f32 0.0, %v2053
    %2055 = vmatmul.bf16.gmra.mxu0 %v1008
    %v2056 = vpop.f32.mrf.mxu0
    %v2057 = vadd.f32 0.0, %v2056
    %v2058 = vpop.f32.mrf.mxu0
    %v2059 = vadd.f32 0.0, %v2058
    %2060 = vmatmul.bf16.gmra.mxu0 %v1011
    %v2061 = vpop.f32.mrf.mxu0
    %v2062 = vadd.f32 0.0, %v2061
    %v2063 = vpop.f32.mrf.mxu0
    %v2064 = vadd.f32 0.0, %v2063
    %2065 = vmatmul.bf16.gmra.mxu0 %v1014
    %v2066 = vpop.f32.mrf.mxu0
    %v2067 = vadd.f32 0.0, %v2066
    %v2068 = vpop.f32.mrf.mxu0
    %v2069 = vadd.f32 0.0, %v2068
    %2070 = vdwg.mxu0
    %v2071 = vld [vmem:[#allocation3 + $0x20] sm:$0xff]
    %v2072 = vld [vmem:[#allocation3 + $0x60] sm:$0xff]
    %v2073 = vld [vmem:[#allocation3 + $0xa0] sm:$0xff]
    %v2074 = vld [vmem:[#allocation3 + $0xe0] sm:$0xff]
    %v2075 = vadd.f32 %v2071, %v2042
    %v2076 = vadd.f32 %v2072, %v2044
    %v2077 = vadd.f32 %v2073, %v2047
    %v2078 = vadd.f32 %v2074, %v2049
    %v2079 = vxor.u32 %v2075, 2147483648
    %v2080 = vxor.u32 %v2076, 2147483648
    %v2081 = vxor.u32 %v2077, 2147483648
    %v2082 = vxor.u32 %v2078, 2147483648
    %v2083 = vmul.f32 %v2079, 1.442695
    %v2084 = vpow.pop %v2083
    %v2085 = vmul.f32 %v2080, 1.442695
    %v2086 = vpow.pop %v2085
    %v2087 = vmul.f32 %v2081, 1.442695
    %v2088 = vpow.pop %v2087
    %v2089 = vmul.f32 %v2082, 1.442695
    %v2090 = vpow.pop %v2089
    %v2091 = vadd.f32 %v2084, 1.0
    %v2092 = vadd.f32 %v2086, 1.0
    %v2093 = vadd.f32 %v2088, 1.0
    %v2094 = vadd.f32 %v2090, 1.0
    %v2095 = vrcp.pop %v2091
    %v2096 = vmul.f32 %v2091, %v2095
    %v2097 = vsub.f32 1.0, %v2096
    %v2098 = vmul.f32 %v2095, %v2097
    %v2099 = vadd.f32 %v2095, %v2098
    %vm2100 = vweird.f32 %v2091
    %vm2101 = vweird.f32 %v2095
    %vm2102 = vmor %vm2100, %vm2101
    %v2103 = vsel %vm2102, %v2095, %v2099
    %v2104 = vand.u32 2147483647, %v2091
    %vm2105 = vcmp.eq.f32.partialorder %v2104, 8.507059e+37
    %v2106 = vand.u32 %v2091, 2147483648
    %v2107 = vor.u32 1.1754944e-38, %v2106
    %v2108 = vsel %vm2105, %v2107, %v2103
    %v2109 = vmul.f32 1.0, %v2108
    %v2110 = vrcp.pop %v2092
    %v2111 = vmul.f32 %v2092, %v2110
    %v2112 = vsub.f32 1.0, %v2111
    %v2113 = vmul.f32 %v2110, %v2112
    %v2114 = vadd.f32 %v2110, %v2113
    %vm2115 = vweird.f32 %v2092
    %vm2116 = vweird.f32 %v2110
    %vm2117 = vmor %vm2115, %vm2116
    %v2118 = vsel %vm2117, %v2110, %v2114
    %v2119 = vand.u32 2147483647, %v2092
    %vm2120 = vcmp.eq.f32.partialorder %v2119, 8.507059e+37
    %v2121 = vand.u32 %v2092, 2147483648
    %v2122 = vor.u32 1.1754944e-38, %v2121
    %v2123 = vsel %vm2120, %v2122, %v2118
    %v2124 = vmul.f32 1.0, %v2123
    %v2125 = vrcp.pop %v2093
    %v2126 = vmul.f32 %v2093, %v2125
    %v2127 = vsub.f32 1.0, %v2126
    %v2128 = vmul.f32 %v2125, %v2127
    %v2129 = vadd.f32 %v2125, %v2128
    %vm2130 = vweird.f32 %v2093
    %vm2131 = vweird.f32 %v2125
    %vm2132 = vmor %vm2130, %vm2131
    %v2133 = vsel %vm2132, %v2125, %v2129
    %v2134 = vand.u32 2147483647, %v2093
    %vm2135 = vcmp.eq.f32.partialorder %v2134, 8.507059e+37
    %v2136 = vand.u32 %v2093, 2147483648
    %v2137 = vor.u32 1.1754944e-38, %v2136
    %v2138 = vsel %vm2135, %v2137, %v2133
    %v2139 = vmul.f32 1.0, %v2138
    %v2140 = vrcp.pop %v2094
    %v2141 = vmul.f32 %v2094, %v2140
    %v2142 = vsub.f32 1.0, %v2141
    %v2143 = vmul.f32 %v2140, %v2142
    %v2144 = vadd.f32 %v2140, %v2143
    %vm2145 = vweird.f32 %v2094
    %vm2146 = vweird.f32 %v2140
    %vm2147 = vmor %vm2145, %vm2146
    %v2148 = vsel %vm2147, %v2140, %v2144
    %v2149 = vand.u32 2147483647, %v2094
    %vm2150 = vcmp.eq.f32.partialorder %v2149, 8.507059e+37
    %v2151 = vand.u32 %v2094, 2147483648
    %v2152 = vor.u32 1.1754944e-38, %v2151
    %v2153 = vsel %vm2150, %v2152, %v2148
    %v2154 = vmul.f32 1.0, %v2153
    %v2155 = vld [vmem:[#allocation3 + $0x120] sm:$0xff]
    %v2156 = vld [vmem:[#allocation3 + $0x160] sm:$0xff]
    %v2157 = vld [vmem:[#allocation3 + $0x1a0] sm:$0xff]
    %v2158 = vld [vmem:[#allocation3 + $0x1e0] sm:$0xff]
    %v2159 = vadd.f32 %v2155, %v2052
    %v2160 = vadd.f32 %v2156, %v2054
    %v2161 = vadd.f32 %v2157, %v2057
    %v2162 = vadd.f32 %v2158, %v2059
    %v2163 = vxor.u32 %v2159, 2147483648
    %v2164 = vxor.u32 %v2160, 2147483648
    %v2165 = vxor.u32 %v2161, 2147483648
    %v2166 = vxor.u32 %v2162, 2147483648
    %v2167 = vmul.f32 %v2163, 1.442695
    %v2168 = vpow.pop %v2167
    %v2169 = vmul.f32 %v2164, 1.442695
    %v2170 = vpow.pop %v2169
    %v2171 = vmul.f32 %v2165, 1.442695
    %v2172 = vpow.pop %v2171
    %v2173 = vmul.f32 %v2166, 1.442695
    %v2174 = vpow.pop %v2173
    %v2175 = vadd.f32 %v2168, 1.0
    %v2176 = vadd.f32 %v2170, 1.0
    %v2177 = vadd.f32 %v2172, 1.0
    %v2178 = vadd.f32 %v2174, 1.0
    %v2179 = vrcp.pop %v2175
    %v2180 = vmul.f32 %v2175, %v2179
    %v2181 = vsub.f32 1.0, %v2180
    %v2182 = vmul.f32 %v2179, %v2181
    %v2183 = vadd.f32 %v2179, %v2182
    %vm2184 = vweird.f32 %v2175
    %vm2185 = vweird.f32 %v2179
    %vm2186 = vmor %vm2184, %vm2185
    %v2187 = vsel %vm2186, %v2179, %v2183
    %v2188 = vand.u32 2147483647, %v2175
    %vm2189 = vcmp.eq.f32.partialorder %v2188, 8.507059e+37
    %v2190 = vand.u32 %v2175, 2147483648
    %v2191 = vor.u32 1.1754944e-38, %v2190
    %v2192 = vsel %vm2189, %v2191, %v2187
    %v2193 = vmul.f32 1.0, %v2192
    %v2194 = vrcp.pop %v2176
    %v2195 = vmul.f32 %v2176, %v2194
    %v2196 = vsub.f32 1.0, %v2195
    %v2197 = vmul.f32 %v2194, %v2196
    %v2198 = vadd.f32 %v2194, %v2197
    %vm2199 = vweird.f32 %v2176
    %vm2200 = vweird.f32 %v2194
    %vm2201 = vmor %vm2199, %vm2200
    %v2202 = vsel %vm2201, %v2194, %v2198
    %v2203 = vand.u32 2147483647, %v2176
    %vm2204 = vcmp.eq.f32.partialorder %v2203, 8.507059e+37
    %v2205 = vand.u32 %v2176, 2147483648
    %v2206 = vor.u32 1.1754944e-38, %v2205
    %v2207 = vsel %vm2204, %v2206, %v2202
    %v2208 = vmul.f32 1.0, %v2207
    %v2209 = vrcp.pop %v2177
    %v2210 = vmul.f32 %v2177, %v2209
    %v2211 = vsub.f32 1.0, %v2210
    %v2212 = vmul.f32 %v2209, %v2211
    %v2213 = vadd.f32 %v2209, %v2212
    %vm2214 = vweird.f32 %v2177
    %vm2215 = vweird.f32 %v2209
    %vm2216 = vmor %vm2214, %vm2215
    %v2217 = vsel %vm2216, %v2209, %v2213
    %v2218 = vand.u32 2147483647, %v2177
    %vm2219 = vcmp.eq.f32.partialorder %v2218, 8.507059e+37
    %v2220 = vand.u32 %v2177, 2147483648
    %v2221 = vor.u32 1.1754944e-38, %v2220
    %v2222 = vsel %vm2219, %v2221, %v2217
    %v2223 = vmul.f32 1.0, %v2222
    %v2224 = vrcp.pop %v2178
    %v2225 = vmul.f32 %v2178, %v2224
    %v2226 = vsub.f32 1.0, %v2225
    %v2227 = vmul.f32 %v2224, %v2226
    %v2228 = vadd.f32 %v2224, %v2227
    %vm2229 = vweird.f32 %v2178
    %vm2230 = vweird.f32 %v2224
    %vm2231 = vmor %vm2229, %vm2230
    %v2232 = vsel %vm2231, %v2224, %v2228
    %v2233 = vand.u32 2147483647, %v2178
    %vm2234 = vcmp.eq.f32.partialorder %v2233, 8.507059e+37
    %v2235 = vand.u32 %v2178, 2147483648
    %v2236 = vor.u32 1.1754944e-38, %v2235
    %v2237 = vsel %vm2234, %v2236, %v2232
    %v2238 = vmul.f32 1.0, %v2237
    %v2239 = vld [vmem:[#allocation3 + $0x220] sm:$0xff]
    %v2240 = vld [vmem:[#allocation3 + $0x260] sm:$0xff]
    %v2241 = vld [vmem:[#allocation3 + $0x2a0] sm:$0xff]
    %v2242 = vld [vmem:[#allocation3 + $0x2e0] sm:$0xff]
    %v2243 = vadd.f32 %v2062, %v1230
    %v2244 = vadd.f32 %v2064, %v1235
    %v2245 = vadd.f32 %v2067, %v1240
    %v2246 = vadd.f32 %v2069, %v1245
    %v2247 = vmul.f32 %v2109, %v2243
    %v2248 = vmul.f32 %v2124, %v2244
    %v2249 = vmul.f32 %v2139, %v2245
    %v2250 = vmul.f32 %v2154, %v2246
    %v2251 = vadd.f32 %v2239, %v2247
    %v2252 = vadd.f32 %v2240, %v2248
    %v2253 = vadd.f32 %v2241, %v2249
    %v2254 = vadd.f32 %v2242, %v2250
    %v2255 = vtanh.pop %v2251
    %v2256 = vtanh.pop %v2252
    %v2257 = vtanh.pop %v2253
    %v2258 = vtanh.pop %v2254
    %v2259 = vsub.f32 1.0, %v2193
    %v2260 = vsub.f32 1.0, %v2208
    %v2261 = vsub.f32 1.0, %v2223
    %v2262 = vsub.f32 1.0, %v2238
    %v2263 = vmul.f32 %v2259, %v2255
    %v2264 = vmul.f32 %v2260, %v2256
    %v2265 = vmul.f32 %v2261, %v2257
    %v2266 = vmul.f32 %v2262, %v2258
    %v2267 = vmul.f32 %v2193, %v2022
    %v2268 = vmul.f32 %v2208, %v2023
    %v2269 = vmul.f32 %v2223, %v2024
    %v2270 = vmul.f32 %v2238, %v2025
    %v2271 = vadd.f32 %v2263, %v2267
    %v2272 = vadd.f32 %v2264, %v2268
    %v2273 = vadd.f32 %v2265, %v2269
    %v2274 = vadd.f32 %v2266, %v2270
    %2275 = vst [vmem:[#allocation2 + $0x20] sm:$0xff] %v2271
    %2276 = vst [vmem:[#allocation2 + $0x60] sm:$0xff] %v2272
    %2277 = vst [vmem:[#allocation2 + $0xa0] sm:$0xff] %v2273
    %2278 = vst [vmem:[#allocation2 + $0xe0] sm:$0xff] %v2274
    %v2279 = vpack.c.bf16 %v2272, %v2271
    %v2280 = vpack.c.bf16 %v2274, %v2273
    %2281 = vmatpush.bf16.msra.mxu0 0
    %2282 = vmatpush.bf16.msra.mxu0 0
    %2283 = vmatpush.bf16.msra.mxu0 0
    %2284 = vmatpush.bf16.msra.mxu0 0
    %2285 = vmatpush.bf16.msra.mxu0 0
    %2286 = vmatpush.bf16.msra.mxu0 0
    %2287 = vmatpush.bf16.msra.mxu0 %v2280
    %2288 = vmatpush.bf16.msra.mxu0 %v2279
    %2289 = vmatmul.bf16.gmra.mxu0 %v999
    %v2290 = vpop.f32.mrf.mxu0
    %v2291 = vadd.f32 0.0, %v2290
    %v2292 = vpop.f32.mrf.mxu0
    %v2293 = vadd.f32 0.0, %v2292
    %2294 = vmatmul.bf16.gmra.mxu0 %v1002
    %v2295 = vpop.f32.mrf.mxu0
    %v2296 = vadd.f32 0.0, %v2295
    %v2297 = vpop.f32.mrf.mxu0
    %v2298 = vadd.f32 0.0, %v2297
    %2299 = vmatmul.bf16.gmra.mxu0 %v1005
    %v2300 = vpop.f32.mrf.mxu0
    %v2301 = vadd.f32 0.0, %v2300
    %v2302 = vpop.f32.mrf.mxu0
    %v2303 = vadd.f32 0.0, %v2302
    %2304 = vmatmul.bf16.gmra.mxu0 %v1008
    %v2305 = vpop.f32.mrf.mxu0
    %v2306 = vadd.f32 0.0, %v2305
    %v2307 = vpop.f32.mrf.mxu0
    %v2308 = vadd.f32 0.0, %v2307
    %2309 = vmatmul.bf16.gmra.mxu0 %v1011
    %v2310 = vpop.f32.mrf.mxu0
    %v2311 = vadd.f32 0.0, %v2310
    %v2312 = vpop.f32.mrf.mxu0
    %v2313 = vadd.f32 0.0, %v2312
    %2314 = vmatmul.bf16.gmra.mxu0 %v1014
    %v2315 = vpop.f32.mrf.mxu0
    %v2316 = vadd.f32 0.0, %v2315
    %v2317 = vpop.f32.mrf.mxu0
    %v2318 = vadd.f32 0.0, %v2317
    %2319 = vdwg.mxu0
    %v2320 = vld [vmem:[#allocation3 + $0x28] sm:$0xff]
    %v2321 = vld [vmem:[#allocation3 + $0x68] sm:$0xff]
    %v2322 = vld [vmem:[#allocation3 + $0xa8] sm:$0xff]
    %v2323 = vld [vmem:[#allocation3 + $0xe8] sm:$0xff]
    %v2324 = vadd.f32 %v2320, %v2291
    %v2325 = vadd.f32 %v2321, %v2293
    %v2326 = vadd.f32 %v2322, %v2296
    %v2327 = vadd.f32 %v2323, %v2298
    %v2328 = vxor.u32 %v2324, 2147483648
    %v2329 = vxor.u32 %v2325, 2147483648
    %v2330 = vxor.u32 %v2326, 2147483648
    %v2331 = vxor.u32 %v2327, 2147483648
    %v2332 = vmul.f32 %v2328, 1.442695
    %v2333 = vpow.pop %v2332
    %v2334 = vmul.f32 %v2329, 1.442695
    %v2335 = vpow.pop %v2334
    %v2336 = vmul.f32 %v2330, 1.442695
    %v2337 = vpow.pop %v2336
    %v2338 = vmul.f32 %v2331, 1.442695
    %v2339 = vpow.pop %v2338
    %v2340 = vadd.f32 %v2333, 1.0
    %v2341 = vadd.f32 %v2335, 1.0
    %v2342 = vadd.f32 %v2337, 1.0
    %v2343 = vadd.f32 %v2339, 1.0
    %v2344 = vrcp.pop %v2340
    %v2345 = vmul.f32 %v2340, %v2344
    %v2346 = vsub.f32 1.0, %v2345
    %v2347 = vmul.f32 %v2344, %v2346
    %v2348 = vadd.f32 %v2344, %v2347
    %vm2349 = vweird.f32 %v2340
    %vm2350 = vweird.f32 %v2344
    %vm2351 = vmor %vm2349, %vm2350
    %v2352 = vsel %vm2351, %v2344, %v2348
    %v2353 = vand.u32 2147483647, %v2340
    %vm2354 = vcmp.eq.f32.partialorder %v2353, 8.507059e+37
    %v2355 = vand.u32 %v2340, 2147483648
    %v2356 = vor.u32 1.1754944e-38, %v2355
    %v2357 = vsel %vm2354, %v2356, %v2352
    %v2358 = vmul.f32 1.0, %v2357
    %v2359 = vrcp.pop %v2341
    %v2360 = vmul.f32 %v2341, %v2359
    %v2361 = vsub.f32 1.0, %v2360
    %v2362 = vmul.f32 %v2359, %v2361
    %v2363 = vadd.f32 %v2359, %v2362
    %vm2364 = vweird.f32 %v2341
    %vm2365 = vweird.f32 %v2359
    %vm2366 = vmor %vm2364, %vm2365
    %v2367 = vsel %vm2366, %v2359, %v2363
    %v2368 = vand.u32 2147483647, %v2341
    %vm2369 = vcmp.eq.f32.partialorder %v2368, 8.507059e+37
    %v2370 = vand.u32 %v2341, 2147483648
    %v2371 = vor.u32 1.1754944e-38, %v2370
    %v2372 = vsel %vm2369, %v2371, %v2367
    %v2373 = vmul.f32 1.0, %v2372
    %v2374 = vrcp.pop %v2342
    %v2375 = vmul.f32 %v2342, %v2374
    %v2376 = vsub.f32 1.0, %v2375
    %v2377 = vmul.f32 %v2374, %v2376
    %v2378 = vadd.f32 %v2374, %v2377
    %vm2379 = vweird.f32 %v2342
    %vm2380 = vweird.f32 %v2374
    %vm2381 = vmor %vm2379, %vm2380
    %v2382 = vsel %vm2381, %v2374, %v2378
    %v2383 = vand.u32 2147483647, %v2342
    %vm2384 = vcmp.eq.f32.partialorder %v2383, 8.507059e+37
    %v2385 = vand.u32 %v2342, 2147483648
    %v2386 = vor.u32 1.1754944e-38, %v2385
    %v2387 = vsel %vm2384, %v2386, %v2382
    %v2388 = vmul.f32 1.0, %v2387
    %v2389 = vrcp.pop %v2343
    %v2390 = vmul.f32 %v2343, %v2389
    %v2391 = vsub.f32 1.0, %v2390
    %v2392 = vmul.f32 %v2389, %v2391
    %v2393 = vadd.f32 %v2389, %v2392
    %vm2394 = vweird.f32 %v2343
    %vm2395 = vweird.f32 %v2389
    %vm2396 = vmor %vm2394, %vm2395
    %v2397 = vsel %vm2396, %v2389, %v2393
    %v2398 = vand.u32 2147483647, %v2343
    %vm2399 = vcmp.eq.f32.partialorder %v2398, 8.507059e+37
    %v2400 = vand.u32 %v2343, 2147483648
    %v2401 = vor.u32 1.1754944e-38, %v2400
    %v2402 = vsel %vm2399, %v2401, %v2397
    %v2403 = vmul.f32 1.0, %v2402
    %v2404 = vld [vmem:[#allocation3 + $0x128] sm:$0xff]
    %v2405 = vld [vmem:[#allocation3 + $0x168] sm:$0xff]
    %v2406 = vld [vmem:[#allocation3 + $0x1a8] sm:$0xff]
    %v2407 = vld [vmem:[#allocation3 + $0x1e8] sm:$0xff]
    %v2408 = vadd.f32 %v2404, %v2301
    %v2409 = vadd.f32 %v2405, %v2303
    %v2410 = vadd.f32 %v2406, %v2306
    %v2411 = vadd.f32 %v2407, %v2308
    %v2412 = vxor.u32 %v2408, 2147483648
    %v2413 = vxor.u32 %v2409, 2147483648
    %v2414 = vxor.u32 %v2410, 2147483648
    %v2415 = vxor.u32 %v2411, 2147483648
    %v2416 = vmul.f32 %v2412, 1.442695
    %v2417 = vpow.pop %v2416
    %v2418 = vmul.f32 %v2413, 1.442695
    %v2419 = vpow.pop %v2418
    %v2420 = vmul.f32 %v2414, 1.442695
    %v2421 = vpow.pop %v2420
    %v2422 = vmul.f32 %v2415, 1.442695
    %v2423 = vpow.pop %v2422
    %v2424 = vadd.f32 %v2417, 1.0
    %v2425 = vadd.f32 %v2419, 1.0
    %v2426 = vadd.f32 %v2421, 1.0
    %v2427 = vadd.f32 %v2423, 1.0
    %v2428 = vrcp.pop %v2424
    %v2429 = vmul.f32 %v2424, %v2428
    %v2430 = vsub.f32 1.0, %v2429
    %v2431 = vmul.f32 %v2428, %v2430
    %v2432 = vadd.f32 %v2428, %v2431
    %vm2433 = vweird.f32 %v2424
    %vm2434 = vweird.f32 %v2428
    %vm2435 = vmor %vm2433, %vm2434
    %v2436 = vsel %vm2435, %v2428, %v2432
    %v2437 = vand.u32 2147483647, %v2424
    %vm2438 = vcmp.eq.f32.partialorder %v2437, 8.507059e+37
    %v2439 = vand.u32 %v2424, 2147483648
    %v2440 = vor.u32 1.1754944e-38, %v2439
    %v2441 = vsel %vm2438, %v2440, %v2436
    %v2442 = vmul.f32 1.0, %v2441
    %v2443 = vrcp.pop %v2425
    %v2444 = vmul.f32 %v2425, %v2443
    %v2445 = vsub.f32 1.0, %v2444
    %v2446 = vmul.f32 %v2443, %v2445
    %v2447 = vadd.f32 %v2443, %v2446
    %vm2448 = vweird.f32 %v2425
    %vm2449 = vweird.f32 %v2443
    %vm2450 = vmor %vm2448, %vm2449
    %v2451 = vsel %vm2450, %v2443, %v2447
    %v2452 = vand.u32 2147483647, %v2425
    %vm2453 = vcmp.eq.f32.partialorder %v2452, 8.507059e+37
    %v2454 = vand.u32 %v2425, 2147483648
    %v2455 = vor.u32 1.1754944e-38, %v2454
    %v2456 = vsel %vm2453, %v2455, %v2451
    %v2457 = vmul.f32 1.0, %v2456
    %v2458 = vrcp.pop %v2426
    %v2459 = vmul.f32 %v2426, %v2458
    %v2460 = vsub.f32 1.0, %v2459
    %v2461 = vmul.f32 %v2458, %v2460
    %v2462 = vadd.f32 %v2458, %v2461
    %vm2463 = vweird.f32 %v2426
    %vm2464 = vweird.f32 %v2458
    %vm2465 = vmor %vm2463, %vm2464
    %v2466 = vsel %vm2465, %v2458, %v2462
    %v2467 = vand.u32 2147483647, %v2426
    %vm2468 = vcmp.eq.f32.partialorder %v2467, 8.507059e+37
    %v2469 = vand.u32 %v2426, 2147483648
    %v2470 = vor.u32 1.1754944e-38, %v2469
    %v2471 = vsel %vm2468, %v2470, %v2466
    %v2472 = vmul.f32 1.0, %v2471
    %v2473 = vrcp.pop %v2427
    %v2474 = vmul.f32 %v2427, %v2473
    %v2475 = vsub.f32 1.0, %v2474
    %v2476 = vmul.f32 %v2473, %v2475
    %v2477 = vadd.f32 %v2473, %v2476
    %vm2478 = vweird.f32 %v2427
    %vm2479 = vweird.f32 %v2473
    %vm2480 = vmor %vm2478, %vm2479
    %v2481 = vsel %vm2480, %v2473, %v2477
    %v2482 = vand.u32 2147483647, %v2427
    %vm2483 = vcmp.eq.f32.partialorder %v2482, 8.507059e+37
    %v2484 = vand.u32 %v2427, 2147483648
    %v2485 = vor.u32 1.1754944e-38, %v2484
    %v2486 = vsel %vm2483, %v2485, %v2481
    %v2487 = vmul.f32 1.0, %v2486
    %v2488 = vld [vmem:[#allocation3 + $0x228] sm:$0xff]
    %v2489 = vld [vmem:[#allocation3 + $0x268] sm:$0xff]
    %v2490 = vld [vmem:[#allocation3 + $0x2a8] sm:$0xff]
    %v2491 = vld [vmem:[#allocation3 + $0x2e8] sm:$0xff]
    %v2492 = vadd.f32 %v2311, %v1230
    %v2493 = vadd.f32 %v2313, %v1235
    %v2494 = vadd.f32 %v2316, %v1240
    %v2495 = vadd.f32 %v2318, %v1245
    %v2496 = vmul.f32 %v2358, %v2492
    %v2497 = vmul.f32 %v2373, %v2493
    %v2498 = vmul.f32 %v2388, %v2494
    %v2499 = vmul.f32 %v2403, %v2495
    %v2500 = vadd.f32 %v2488, %v2496
    %v2501 = vadd.f32 %v2489, %v2497
    %v2502 = vadd.f32 %v2490, %v2498
    %v2503 = vadd.f32 %v2491, %v2499
    %v2504 = vtanh.pop %v2500
    %v2505 = vtanh.pop %v2501
    %v2506 = vtanh.pop %v2502
    %v2507 = vtanh.pop %v2503
    %v2508 = vsub.f32 1.0, %v2442
    %v2509 = vsub.f32 1.0, %v2457
    %v2510 = vsub.f32 1.0, %v2472
    %v2511 = vsub.f32 1.0, %v2487
    %v2512 = vmul.f32 %v2508, %v2504
    %v2513 = vmul.f32 %v2509, %v2505
    %v2514 = vmul.f32 %v2510, %v2506
    %v2515 = vmul.f32 %v2511, %v2507
    %v2516 = vmul.f32 %v2442, %v2271
    %v2517 = vmul.f32 %v2457, %v2272
    %v2518 = vmul.f32 %v2472, %v2273
    %v2519 = vmul.f32 %v2487, %v2274
    %v2520 = vadd.f32 %v2512, %v2516
    %v2521 = vadd.f32 %v2513, %v2517
    %v2522 = vadd.f32 %v2514, %v2518
    %v2523 = vadd.f32 %v2515, %v2519
    %2524 = vst [vmem:[#allocation2 + $0x28] sm:$0xff] %v2520
    %2525 = vst [vmem:[#allocation2 + $0x68] sm:$0xff] %v2521
    %2526 = vst [vmem:[#allocation2 + $0xa8] sm:$0xff] %v2522
    %2527 = vst [vmem:[#allocation2 + $0xe8] sm:$0xff] %v2523
    %v2528 = vpack.c.bf16 %v2521, %v2520
    %v2529 = vpack.c.bf16 %v2523, %v2522
    %2530 = vmatpush.bf16.msra.mxu0 0
    %2531 = vmatpush.bf16.msra.mxu0 0
    %2532 = vmatpush.bf16.msra.mxu0 0
    %2533 = vmatpush.bf16.msra.mxu0 0
    %2534 = vmatpush.bf16.msra.mxu0 0
    %2535 = vmatpush.bf16.msra.mxu0 0
    %2536 = vmatpush.bf16.msra.mxu0 %v2529
    %2537 = vmatpush.bf16.msra.mxu0 %v2528
    %2538 = vmatmul.bf16.gmra.mxu0 %v999
    %v2539 = vpop.f32.mrf.mxu0
    %v2540 = vadd.f32 0.0, %v2539
    %v2541 = vpop.f32.mrf.mxu0
    %v2542 = vadd.f32 0.0, %v2541
    %2543 = vmatmul.bf16.gmra.mxu0 %v1002
    %v2544 = vpop.f32.mrf.mxu0
    %v2545 = vadd.f32 0.0, %v2544
    %v2546 = vpop.f32.mrf.mxu0
    %v2547 = vadd.f32 0.0, %v2546
    %2548 = vmatmul.bf16.gmra.mxu0 %v1005
    %v2549 = vpop.f32.mrf.mxu0
    %v2550 = vadd.f32 0.0, %v2549
    %v2551 = vpop.f32.mrf.mxu0
    %v2552 = vadd.f32 0.0, %v2551
    %2553 = vmatmul.bf16.gmra.mxu0 %v1008
    %v2554 = vpop.f32.mrf.mxu0
    %v2555 = vadd.f32 0.0, %v2554
    %v2556 = vpop.f32.mrf.mxu0
    %v2557 = vadd.f32 0.0, %v2556
    %2558 = vmatmul.bf16.gmra.mxu0 %v1011
    %v2559 = vpop.f32.mrf.mxu0
    %v2560 = vadd.f32 0.0, %v2559
    %v2561 = vpop.f32.mrf.mxu0
    %v2562 = vadd.f32 0.0, %v2561
    %2563 = vmatmul.bf16.gmra.mxu0 %v1014
    %v2564 = vpop.f32.mrf.mxu0
    %v2565 = vadd.f32 0.0, %v2564
    %v2566 = vpop.f32.mrf.mxu0
    %v2567 = vadd.f32 0.0, %v2566
    %2568 = vdwg.mxu0
    %v2569 = vld [vmem:[#allocation3 + $0x30] sm:$0xff]
    %v2570 = vld [vmem:[#allocation3 + $0x70] sm:$0xff]
    %v2571 = vld [vmem:[#allocation3 + $0xb0] sm:$0xff]
    %v2572 = vld [vmem:[#allocation3 + $0xf0] sm:$0xff]
    %v2573 = vadd.f32 %v2569, %v2540
    %v2574 = vadd.f32 %v2570, %v2542
    %v2575 = vadd.f32 %v2571, %v2545
    %v2576 = vadd.f32 %v2572, %v2547
    %v2577 = vxor.u32 %v2573, 2147483648
    %v2578 = vxor.u32 %v2574, 2147483648
    %v2579 = vxor.u32 %v2575, 2147483648
    %v2580 = vxor.u32 %v2576, 2147483648
    %v2581 = vmul.f32 %v2577, 1.442695
    %v2582 = vpow.pop %v2581
    %v2583 = vmul.f32 %v2578, 1.442695
    %v2584 = vpow.pop %v2583
    %v2585 = vmul.f32 %v2579, 1.442695
    %v2586 = vpow.pop %v2585
    %v2587 = vmul.f32 %v2580, 1.442695
    %v2588 = vpow.pop %v2587
    %v2589 = vadd.f32 %v2582, 1.0
    %v2590 = vadd.f32 %v2584, 1.0
    %v2591 = vadd.f32 %v2586, 1.0
    %v2592 = vadd.f32 %v2588, 1.0
    %v2593 = vrcp.pop %v2589
    %v2594 = vmul.f32 %v2589, %v2593
    %v2595 = vsub.f32 1.0, %v2594
    %v2596 = vmul.f32 %v2593, %v2595
    %v2597 = vadd.f32 %v2593, %v2596
    %vm2598 = vweird.f32 %v2589
    %vm2599 = vweird.f32 %v2593
    %vm2600 = vmor %vm2598, %vm2599
    %v2601 = vsel %vm2600, %v2593, %v2597
    %v2602 = vand.u32 2147483647, %v2589
    %vm2603 = vcmp.eq.f32.partialorder %v2602, 8.507059e+37
    %v2604 = vand.u32 %v2589, 2147483648
    %v2605 = vor.u32 1.1754944e-38, %v2604
    %v2606 = vsel %vm2603, %v2605, %v2601
    %v2607 = vmul.f32 1.0, %v2606
    %v2608 = vrcp.pop %v2590
    %v2609 = vmul.f32 %v2590, %v2608
    %v2610 = vsub.f32 1.0, %v2609
    %v2611 = vmul.f32 %v2608, %v2610
    %v2612 = vadd.f32 %v2608, %v2611
    %vm2613 = vweird.f32 %v2590
    %vm2614 = vweird.f32 %v2608
    %vm2615 = vmor %vm2613, %vm2614
    %v2616 = vsel %vm2615, %v2608, %v2612
    %v2617 = vand.u32 2147483647, %v2590
    %vm2618 = vcmp.eq.f32.partialorder %v2617, 8.507059e+37
    %v2619 = vand.u32 %v2590, 2147483648
    %v2620 = vor.u32 1.1754944e-38, %v2619
    %v2621 = vsel %vm2618, %v2620, %v2616
    %v2622 = vmul.f32 1.0, %v2621
    %v2623 = vrcp.pop %v2591
    %v2624 = vmul.f32 %v2591, %v2623
    %v2625 = vsub.f32 1.0, %v2624
    %v2626 = vmul.f32 %v2623, %v2625
    %v2627 = vadd.f32 %v2623, %v2626
    %vm2628 = vweird.f32 %v2591
    %vm2629 = vweird.f32 %v2623
    %vm2630 = vmor %vm2628, %vm2629
    %v2631 = vsel %vm2630, %v2623, %v2627
    %v2632 = vand.u32 2147483647, %v2591
    %vm2633 = vcmp.eq.f32.partialorder %v2632, 8.507059e+37
    %v2634 = vand.u32 %v2591, 2147483648
    %v2635 = vor.u32 1.1754944e-38, %v2634
    %v2636 = vsel %vm2633, %v2635, %v2631
    %v2637 = vmul.f32 1.0, %v2636
    %v2638 = vrcp.pop %v2592
    %v2639 = vmul.f32 %v2592, %v2638
    %v2640 = vsub.f32 1.0, %v2639
    %v2641 = vmul.f32 %v2638, %v2640
    %v2642 = vadd.f32 %v2638, %v2641
    %vm2643 = vweird.f32 %v2592
    %vm2644 = vweird.f32 %v2638
    %vm2645 = vmor %vm2643, %vm2644
    %v2646 = vsel %vm2645, %v2638, %v2642
    %v2647 = vand.u32 2147483647, %v2592
    %vm2648 = vcmp.eq.f32.partialorder %v2647, 8.507059e+37
    %v2649 = vand.u32 %v2592, 2147483648
    %v2650 = vor.u32 1.1754944e-38, %v2649
    %v2651 = vsel %vm2648, %v2650, %v2646
    %v2652 = vmul.f32 1.0, %v2651
    %v2653 = vld [vmem:[#allocation3 + $0x130] sm:$0xff]
    %v2654 = vld [vmem:[#allocation3 + $0x170] sm:$0xff]
    %v2655 = vld [vmem:[#allocation3 + $0x1b0] sm:$0xff]
    %v2656 = vld [vmem:[#allocation3 + $0x1f0] sm:$0xff]
    %v2657 = vadd.f32 %v2653, %v2550
    %v2658 = vadd.f32 %v2654, %v2552
    %v2659 = vadd.f32 %v2655, %v2555
    %v2660 = vadd.f32 %v2656, %v2557
    %v2661 = vxor.u32 %v2657, 2147483648
    %v2662 = vxor.u32 %v2658, 2147483648
    %v2663 = vxor.u32 %v2659, 2147483648
    %v2664 = vxor.u32 %v2660, 2147483648
    %v2665 = vmul.f32 %v2661, 1.442695
    %v2666 = vpow.pop %v2665
    %v2667 = vmul.f32 %v2662, 1.442695
    %v2668 = vpow.pop %v2667
    %v2669 = vmul.f32 %v2663, 1.442695
    %v2670 = vpow.pop %v2669
    %v2671 = vmul.f32 %v2664, 1.442695
    %v2672 = vpow.pop %v2671
    %v2673 = vadd.f32 %v2666, 1.0
    %v2674 = vadd.f32 %v2668, 1.0
    %v2675 = vadd.f32 %v2670, 1.0
    %v2676 = vadd.f32 %v2672, 1.0
    %v2677 = vrcp.pop %v2673
    %v2678 = vmul.f32 %v2673, %v2677
    %v2679 = vsub.f32 1.0, %v2678
    %v2680 = vmul.f32 %v2677, %v2679
    %v2681 = vadd.f32 %v2677, %v2680
    %vm2682 = vweird.f32 %v2673
    %vm2683 = vweird.f32 %v2677
    %vm2684 = vmor %vm2682, %vm2683
    %v2685 = vsel %vm2684, %v2677, %v2681
    %v2686 = vand.u32 2147483647, %v2673
    %vm2687 = vcmp.eq.f32.partialorder %v2686, 8.507059e+37
    %v2688 = vand.u32 %v2673, 2147483648
    %v2689 = vor.u32 1.1754944e-38, %v2688
    %v2690 = vsel %vm2687, %v2689, %v2685
    %v2691 = vmul.f32 1.0, %v2690
    %v2692 = vrcp.pop %v2674
    %v2693 = vmul.f32 %v2674, %v2692
    %v2694 = vsub.f32 1.0, %v2693
    %v2695 = vmul.f32 %v2692, %v2694
    %v2696 = vadd.f32 %v2692, %v2695
    %vm2697 = vweird.f32 %v2674
    %vm2698 = vweird.f32 %v2692
    %vm2699 = vmor %vm2697, %vm2698
    %v2700 = vsel %vm2699, %v2692, %v2696
    %v2701 = vand.u32 2147483647, %v2674
    %vm2702 = vcmp.eq.f32.partialorder %v2701, 8.507059e+37
    %v2703 = vand.u32 %v2674, 2147483648
    %v2704 = vor.u32 1.1754944e-38, %v2703
    %v2705 = vsel %vm2702, %v2704, %v2700
    %v2706 = vmul.f32 1.0, %v2705
    %v2707 = vrcp.pop %v2675
    %v2708 = vmul.f32 %v2675, %v2707
    %v2709 = vsub.f32 1.0, %v2708
    %v2710 = vmul.f32 %v2707, %v2709
    %v2711 = vadd.f32 %v2707, %v2710
    %vm2712 = vweird.f32 %v2675
    %vm2713 = vweird.f32 %v2707
    %vm2714 = vmor %vm2712, %vm2713
    %v2715 = vsel %vm2714, %v2707, %v2711
    %v2716 = vand.u32 2147483647, %v2675
    %vm2717 = vcmp.eq.f32.partialorder %v2716, 8.507059e+37
    %v2718 = vand.u32 %v2675, 2147483648
    %v2719 = vor.u32 1.1754944e-38, %v2718
    %v2720 = vsel %vm2717, %v2719, %v2715
    %v2721 = vmul.f32 1.0, %v2720
    %v2722 = vrcp.pop %v2676
    %v2723 = vmul.f32 %v2676, %v2722
    %v2724 = vsub.f32 1.0, %v2723
    %v2725 = vmul.f32 %v2722, %v2724
    %v2726 = vadd.f32 %v2722, %v2725
    %vm2727 = vweird.f32 %v2676
    %vm2728 = vweird.f32 %v2722
    %vm2729 = vmor %vm2727, %vm2728
    %v2730 = vsel %vm2729, %v2722, %v2726
    %v2731 = vand.u32 2147483647, %v2676
    %vm2732 = vcmp.eq.f32.partialorder %v2731, 8.507059e+37
    %v2733 = vand.u32 %v2676, 2147483648
    %v2734 = vor.u32 1.1754944e-38, %v2733
    %v2735 = vsel %vm2732, %v2734, %v2730
    %v2736 = vmul.f32 1.0, %v2735
    %v2737 = vld [vmem:[#allocation3 + $0x230] sm:$0xff]
    %v2738 = vld [vmem:[#allocation3 + $0x270] sm:$0xff]
    %v2739 = vld [vmem:[#allocation3 + $0x2b0] sm:$0xff]
    %v2740 = vld [vmem:[#allocation3 + $0x2f0] sm:$0xff]
    %v2741 = vadd.f32 %v2560, %v1230
    %v2742 = vadd.f32 %v2562, %v1235
    %v2743 = vadd.f32 %v2565, %v1240
    %v2744 = vadd.f32 %v2567, %v1245
    %v2745 = vmul.f32 %v2607, %v2741
    %v2746 = vmul.f32 %v2622, %v2742
    %v2747 = vmul.f32 %v2637, %v2743
    %v2748 = vmul.f32 %v2652, %v2744
    %v2749 = vadd.f32 %v2737, %v2745
    %v2750 = vadd.f32 %v2738, %v2746
    %v2751 = vadd.f32 %v2739, %v2747
    %v2752 = vadd.f32 %v2740, %v2748
    %v2753 = vtanh.pop %v2749
    %v2754 = vtanh.pop %v2750
    %v2755 = vtanh.pop %v2751
    %v2756 = vtanh.pop %v2752
    %v2757 = vsub.f32 1.0, %v2691
    %v2758 = vsub.f32 1.0, %v2706
    %v2759 = vsub.f32 1.0, %v2721
    %v2760 = vsub.f32 1.0, %v2736
    %v2761 = vmul.f32 %v2757, %v2753
    %v2762 = vmul.f32 %v2758, %v2754
    %v2763 = vmul.f32 %v2759, %v2755
    %v2764 = vmul.f32 %v2760, %v2756
    %v2765 = vmul.f32 %v2691, %v2520
    %v2766 = vmul.f32 %v2706, %v2521
    %v2767 = vmul.f32 %v2721, %v2522
    %v2768 = vmul.f32 %v2736, %v2523
    %v2769 = vadd.f32 %v2761, %v2765
    %v2770 = vadd.f32 %v2762, %v2766
    %v2771 = vadd.f32 %v2763, %v2767
    %v2772 = vadd.f32 %v2764, %v2768
    %2773 = vst [vmem:[#allocation2 + $0x30] sm:$0xff] %v2769
    %2774 = vst [vmem:[#allocation2 + $0x70] sm:$0xff] %v2770
    %2775 = vst [vmem:[#allocation2 + $0xb0] sm:$0xff] %v2771
    %2776 = vst [vmem:[#allocation2 + $0xf0] sm:$0xff] %v2772
    %v2777 = vpack.c.bf16 %v2770, %v2769
    %v2778 = vpack.c.bf16 %v2772, %v2771
    %2779 = vmatpush.bf16.msra.mxu0 0
    %2780 = vmatpush.bf16.msra.mxu0 0
    %2781 = vmatpush.bf16.msra.mxu0 0
    %2782 = vmatpush.bf16.msra.mxu0 0
    %2783 = vmatpush.bf16.msra.mxu0 0
    %2784 = vmatpush.bf16.msra.mxu0 0
    %2785 = vmatpush.bf16.msra.mxu0 %v2778
    %2786 = vmatpush.bf16.msra.mxu0 %v2777
    %2787 = vmatmul.bf16.gmra.mxu0 %v999
    %v2788 = vpop.f32.mrf.mxu0
    %v2789 = vadd.f32 0.0, %v2788
    %v2790 = vpop.f32.mrf.mxu0
    %v2791 = vadd.f32 0.0, %v2790
    %2792 = vmatmul.bf16.gmra.mxu0 %v1002
    %v2793 = vpop.f32.mrf.mxu0
    %v2794 = vadd.f32 0.0, %v2793
    %v2795 = vpop.f32.mrf.mxu0
    %v2796 = vadd.f32 0.0, %v2795
    %2797 = vmatmul.bf16.gmra.mxu0 %v1005
    %v2798 = vpop.f32.mrf.mxu0
    %v2799 = vadd.f32 0.0, %v2798
    %v2800 = vpop.f32.mrf.mxu0
    %v2801 = vadd.f32 0.0, %v2800
    %2802 = vmatmul.bf16.gmra.mxu0 %v1008
    %v2803 = vpop.f32.mrf.mxu0
    %v2804 = vadd.f32 0.0, %v2803
    %v2805 = vpop.f32.mrf.mxu0
    %v2806 = vadd.f32 0.0, %v2805
    %2807 = vmatmul.bf16.gmra.mxu0 %v1011
    %v2808 = vpop.f32.mrf.mxu0
    %v2809 = vadd.f32 0.0, %v2808
    %v2810 = vpop.f32.mrf.mxu0
    %v2811 = vadd.f32 0.0, %v2810
    %2812 = vmatmul.bf16.gmra.mxu0 %v1014
    %v2813 = vpop.f32.mrf.mxu0
    %v2814 = vadd.f32 0.0, %v2813
    %v2815 = vpop.f32.mrf.mxu0
    %v2816 = vadd.f32 0.0, %v2815
    %2817 = vdwg.mxu0
    %v2818 = vld [vmem:[#allocation3 + $0x38] sm:$0xff]
    %v2819 = vld [vmem:[#allocation3 + $0x78] sm:$0xff]
    %v2820 = vld [vmem:[#allocation3 + $0xb8] sm:$0xff]
    %v2821 = vld [vmem:[#allocation3 + $0xf8] sm:$0xff]
    %v2822 = vadd.f32 %v2818, %v2789
    %v2823 = vadd.f32 %v2819, %v2791
    %v2824 = vadd.f32 %v2820, %v2794
    %v2825 = vadd.f32 %v2821, %v2796
    %v2826 = vxor.u32 %v2822, 2147483648
    %v2827 = vxor.u32 %v2823, 2147483648
    %v2828 = vxor.u32 %v2824, 2147483648
    %v2829 = vxor.u32 %v2825, 2147483648
    %v2830 = vmul.f32 %v2826, 1.442695
    %v2831 = vpow.pop %v2830
    %v2832 = vmul.f32 %v2827, 1.442695
    %v2833 = vpow.pop %v2832
    %v2834 = vmul.f32 %v2828, 1.442695
    %v2835 = vpow.pop %v2834
    %v2836 = vmul.f32 %v2829, 1.442695
    %v2837 = vpow.pop %v2836
    %v2838 = vadd.f32 %v2831, 1.0
    %v2839 = vadd.f32 %v2833, 1.0
    %v2840 = vadd.f32 %v2835, 1.0
    %v2841 = vadd.f32 %v2837, 1.0
    %v2842 = vrcp.pop %v2838
    %v2843 = vmul.f32 %v2838, %v2842
    %v2844 = vsub.f32 1.0, %v2843
    %v2845 = vmul.f32 %v2842, %v2844
    %v2846 = vadd.f32 %v2842, %v2845
    %vm2847 = vweird.f32 %v2838
    %vm2848 = vweird.f32 %v2842
    %vm2849 = vmor %vm2847, %vm2848
    %v2850 = vsel %vm2849, %v2842, %v2846
    %v2851 = vand.u32 2147483647, %v2838
    %vm2852 = vcmp.eq.f32.partialorder %v2851, 8.507059e+37
    %v2853 = vand.u32 %v2838, 2147483648
    %v2854 = vor.u32 1.1754944e-38, %v2853
    %v2855 = vsel %vm2852, %v2854, %v2850
    %v2856 = vmul.f32 1.0, %v2855
    %v2857 = vrcp.pop %v2839
    %v2858 = vmul.f32 %v2839, %v2857
    %v2859 = vsub.f32 1.0, %v2858
    %v2860 = vmul.f32 %v2857, %v2859
    %v2861 = vadd.f32 %v2857, %v2860
    %vm2862 = vweird.f32 %v2839
    %vm2863 = vweird.f32 %v2857
    %vm2864 = vmor %vm2862, %vm2863
    %v2865 = vsel %vm2864, %v2857, %v2861
    %v2866 = vand.u32 2147483647, %v2839
    %vm2867 = vcmp.eq.f32.partialorder %v2866, 8.507059e+37
    %v2868 = vand.u32 %v2839, 2147483648
    %v2869 = vor.u32 1.1754944e-38, %v2868
    %v2870 = vsel %vm2867, %v2869, %v2865
    %v2871 = vmul.f32 1.0, %v2870
    %v2872 = vrcp.pop %v2840
    %v2873 = vmul.f32 %v2840, %v2872
    %v2874 = vsub.f32 1.0, %v2873
    %v2875 = vmul.f32 %v2872, %v2874
    %v2876 = vadd.f32 %v2872, %v2875
    %vm2877 = vweird.f32 %v2840
    %vm2878 = vweird.f32 %v2872
    %vm2879 = vmor %vm2877, %vm2878
    %v2880 = vsel %vm2879, %v2872, %v2876
    %v2881 = vand.u32 2147483647, %v2840
    %vm2882 = vcmp.eq.f32.partialorder %v2881, 8.507059e+37
    %v2883 = vand.u32 %v2840, 2147483648
    %v2884 = vor.u32 1.1754944e-38, %v2883
    %v2885 = vsel %vm2882, %v2884, %v2880
    %v2886 = vmul.f32 1.0, %v2885
    %v2887 = vrcp.pop %v2841
    %v2888 = vmul.f32 %v2841, %v2887
    %v2889 = vsub.f32 1.0, %v2888
    %v2890 = vmul.f32 %v2887, %v2889
    %v2891 = vadd.f32 %v2887, %v2890
    %vm2892 = vweird.f32 %v2841
    %vm2893 = vweird.f32 %v2887
    %vm2894 = vmor %vm2892, %vm2893
    %v2895 = vsel %vm2894, %v2887, %v2891
    %v2896 = vand.u32 2147483647, %v2841
    %vm2897 = vcmp.eq.f32.partialorder %v2896, 8.507059e+37
    %v2898 = vand.u32 %v2841, 2147483648
    %v2899 = vor.u32 1.1754944e-38, %v2898
    %v2900 = vsel %vm2897, %v2899, %v2895
    %v2901 = vmul.f32 1.0, %v2900
    %v2902 = vld [vmem:[#allocation3 + $0x138] sm:$0xff]
    %v2903 = vld [vmem:[#allocation3 + $0x178] sm:$0xff]
    %v2904 = vld [vmem:[#allocation3 + $0x1b8] sm:$0xff]
    %v2905 = vld [vmem:[#allocation3 + $0x1f8] sm:$0xff]
    %v2906 = vadd.f32 %v2902, %v2799
    %v2907 = vadd.f32 %v2903, %v2801
    %v2908 = vadd.f32 %v2904, %v2804
    %v2909 = vadd.f32 %v2905, %v2806
    %v2910 = vxor.u32 %v2906, 2147483648
    %v2911 = vxor.u32 %v2907, 2147483648
    %v2912 = vxor.u32 %v2908, 2147483648
    %v2913 = vxor.u32 %v2909, 2147483648
    %v2914 = vmul.f32 %v2910, 1.442695
    %v2915 = vpow.pop %v2914
    %v2916 = vmul.f32 %v2911, 1.442695
    %v2917 = vpow.pop %v2916
    %v2918 = vmul.f32 %v2912, 1.442695
    %v2919 = vpow.pop %v2918
    %v2920 = vmul.f32 %v2913, 1.442695
    %v2921 = vpow.pop %v2920
    %v2922 = vadd.f32 %v2915, 1.0
    %v2923 = vadd.f32 %v2917, 1.0
    %v2924 = vadd.f32 %v2919, 1.0
    %v2925 = vadd.f32 %v2921, 1.0
    %v2926 = vrcp.pop %v2922
    %v2927 = vmul.f32 %v2922, %v2926
    %v2928 = vsub.f32 1.0, %v2927
    %v2929 = vmul.f32 %v2926, %v2928
    %v2930 = vadd.f32 %v2926, %v2929
    %vm2931 = vweird.f32 %v2922
    %vm2932 = vweird.f32 %v2926
    %vm2933 = vmor %vm2931, %vm2932
    %v2934 = vsel %vm2933, %v2926, %v2930
    %v2935 = vand.u32 2147483647, %v2922
    %vm2936 = vcmp.eq.f32.partialorder %v2935, 8.507059e+37
    %v2937 = vand.u32 %v2922, 2147483648
    %v2938 = vor.u32 1.1754944e-38, %v2937
    %v2939 = vsel %vm2936, %v2938, %v2934
    %v2940 = vmul.f32 1.0, %v2939
    %v2941 = vrcp.pop %v2923
    %v2942 = vmul.f32 %v2923, %v2941
    %v2943 = vsub.f32 1.0, %v2942
    %v2944 = vmul.f32 %v2941, %v2943
    %v2945 = vadd.f32 %v2941, %v2944
    %vm2946 = vweird.f32 %v2923
    %vm2947 = vweird.f32 %v2941
    %vm2948 = vmor %vm2946, %vm2947
    %v2949 = vsel %vm2948, %v2941, %v2945
    %v2950 = vand.u32 2147483647, %v2923
    %vm2951 = vcmp.eq.f32.partialorder %v2950, 8.507059e+37
    %v2952 = vand.u32 %v2923, 2147483648
    %v2953 = vor.u32 1.1754944e-38, %v2952
    %v2954 = vsel %vm2951, %v2953, %v2949
    %v2955 = vmul.f32 1.0, %v2954
    %v2956 = vrcp.pop %v2924
    %v2957 = vmul.f32 %v2924, %v2956
    %v2958 = vsub.f32 1.0, %v2957
    %v2959 = vmul.f32 %v2956, %v2958
    %v2960 = vadd.f32 %v2956, %v2959
    %vm2961 = vweird.f32 %v2924
    %vm2962 = vweird.f32 %v2956
    %vm2963 = vmor %vm2961, %vm2962
    %v2964 = vsel %vm2963, %v2956, %v2960
    %v2965 = vand.u32 2147483647, %v2924
    %vm2966 = vcmp.eq.f32.partialorder %v2965, 8.507059e+37
    %v2967 = vand.u32 %v2924, 2147483648
    %v2968 = vor.u32 1.1754944e-38, %v2967
    %v2969 = vsel %vm2966, %v2968, %v2964
    %v2970 = vmul.f32 1.0, %v2969
    %v2971 = vrcp.pop %v2925
    %v2972 = vmul.f32 %v2925, %v2971
    %v2973 = vsub.f32 1.0, %v2972
    %v2974 = vmul.f32 %v2971, %v2973
    %v2975 = vadd.f32 %v2971, %v2974
    %vm2976 = vweird.f32 %v2925
    %vm2977 = vweird.f32 %v2971
    %vm2978 = vmor %vm2976, %vm2977
    %v2979 = vsel %vm2978, %v2971, %v2975
    %v2980 = vand.u32 2147483647, %v2925
    %vm2981 = vcmp.eq.f32.partialorder %v2980, 8.507059e+37
    %v2982 = vand.u32 %v2925, 2147483648
    %v2983 = vor.u32 1.1754944e-38, %v2982
    %v2984 = vsel %vm2981, %v2983, %v2979
    %v2985 = vmul.f32 1.0, %v2984
    %v2986 = vld [vmem:[#allocation3 + $0x238] sm:$0xff]
    %v2987 = vld [vmem:[#allocation3 + $0x278] sm:$0xff]
    %v2988 = vld [vmem:[#allocation3 + $0x2b8] sm:$0xff]
    %v2989 = vld [vmem:[#allocation3 + $0x2f8] sm:$0xff]
    %v2990 = vadd.f32 %v2809, %v1230
    %v2991 = vadd.f32 %v2811, %v1235
    %v2992 = vadd.f32 %v2814, %v1240
    %v2993 = vadd.f32 %v2816, %v1245
    %v2994 = vmul.f32 %v2856, %v2990
    %v2995 = vmul.f32 %v2871, %v2991
    %v2996 = vmul.f32 %v2886, %v2992
    %v2997 = vmul.f32 %v2901, %v2993
    %v2998 = vadd.f32 %v2986, %v2994
    %v2999 = vadd.f32 %v2987, %v2995
    %v3000 = vadd.f32 %v2988, %v2996
    %v3001 = vadd.f32 %v2989, %v2997
    %v3002 = vtanh.pop %v2998
    %v3003 = vtanh.pop %v2999
    %v3004 = vtanh.pop %v3000
    %v3005 = vtanh.pop %v3001
    %v3006 = vsub.f32 1.0, %v2940
    %v3007 = vsub.f32 1.0, %v2955
    %v3008 = vsub.f32 1.0, %v2970
    %v3009 = vsub.f32 1.0, %v2985
    %v3010 = vmul.f32 %v3006, %v3002
    %v3011 = vmul.f32 %v3007, %v3003
    %v3012 = vmul.f32 %v3008, %v3004
    %v3013 = vmul.f32 %v3009, %v3005
    %v3014 = vmul.f32 %v2940, %v2769
    %v3015 = vmul.f32 %v2955, %v2770
    %v3016 = vmul.f32 %v2970, %v2771
    %v3017 = vmul.f32 %v2985, %v2772
    %v3018 = vadd.f32 %v3010, %v3014
    %v3019 = vadd.f32 %v3011, %v3015
    %v3020 = vadd.f32 %v3012, %v3016
    %v3021 = vadd.f32 %v3013, %v3017
    %3022 = vst [vmem:[#allocation2 + $0x38] sm:$0xff] %v3018
    %3023 = vst [vmem:[#allocation2 + $0x78] sm:$0xff] %v3019
    %3024 = vst [vmem:[#allocation2 + $0xb8] sm:$0xff] %v3020
    %3025 = vst [vmem:[#allocation2 + $0xf8] sm:$0xff] %v3021
    %s3026 = scalar_lea.vmem %s3, 48
    %v3027 = vld [vmem:[%s3026] sm:$0xf]
    %v3028 = vld [vmem:[%s3026 + $0x4] sm:$0xf]
    %v3029 = vld [vmem:[%s3026 + $0x8] sm:$0xf]
    %v3030 = vld [vmem:[%s3026 + $0xc] sm:$0xf]
    %v3031 = vld [vmem:[%s3026 + $0x10] sm:$0xf]
    %v3032 = vld [vmem:[%s3026 + $0x14] sm:$0xf]
    %v3033 = vld [vmem:[%s3026 + $0x18] sm:$0xf]
    %v3034 = vld [vmem:[%s3026 + $0x1c] sm:$0xf]
    %v3035 = vld [vmem:[%s3026 + $0x20] sm:$0xf]
    %v3036 = vld [vmem:[%s3026 + $0x24] sm:$0xf]
    %v3037 = vld [vmem:[%s3026 + $0x28] sm:$0xf]
    %v3038 = vld [vmem:[%s3026 + $0x2c] sm:$0xf]
    %v3039 = vld [vmem:[#allocation2] sm:$0xff]
    %v3040 = vld [vmem:[#allocation2 + $0x8] sm:$0xff]
    %v3041 = vld [vmem:[#allocation2 + $0x10] sm:$0xff]
    %v3042 = vld [vmem:[#allocation2 + $0x18] sm:$0xff]
    %v3043 = vld [vmem:[#allocation2 + $0x20] sm:$0xff]
    %v3044 = vld [vmem:[#allocation2 + $0x28] sm:$0xff]
    %v3045 = vld [vmem:[#allocation2 + $0x30] sm:$0xff]
    %v3046 = vld [vmem:[#allocation2 + $0x38] sm:$0xff]
    %v3047 = vld [vmem:[#allocation2 + $0x40] sm:$0xff]
    %v3048 = vld [vmem:[#allocation2 + $0x48] sm:$0xff]
    %v3049 = vld [vmem:[#allocation2 + $0x50] sm:$0xff]
    %v3050 = vld [vmem:[#allocation2 + $0x58] sm:$0xff]
    %v3051 = vld [vmem:[#allocation2 + $0x60] sm:$0xff]
    %v3052 = vld [vmem:[#allocation2 + $0x68] sm:$0xff]
    %v3053 = vld [vmem:[#allocation2 + $0x70] sm:$0xff]
    %v3054 = vld [vmem:[#allocation2 + $0x78] sm:$0xff]
    %v3055 = vld [vmem:[#allocation2 + $0x80] sm:$0xff]
    %v3056 = vld [vmem:[#allocation2 + $0x88] sm:$0xff]
    %v3057 = vld [vmem:[#allocation2 + $0x90] sm:$0xff]
    %v3058 = vld [vmem:[#allocation2 + $0x98] sm:$0xff]
    %v3059 = vld [vmem:[#allocation2 + $0xa0] sm:$0xff]
    %v3060 = vld [vmem:[#allocation2 + $0xa8] sm:$0xff]
    %v3061 = vld [vmem:[#allocation2 + $0xb0] sm:$0xff]
    %v3062 = vld [vmem:[#allocation2 + $0xb8] sm:$0xff]
    %v3063 = vld [vmem:[#allocation2 + $0xc0] sm:$0xff]
    %v3064 = vld [vmem:[#allocation2 + $0xc8] sm:$0xff]
    %v3065 = vld [vmem:[#allocation2 + $0xd0] sm:$0xff]
    %v3066 = vld [vmem:[#allocation2 + $0xd8] sm:$0xff]
    %v3067 = vld [vmem:[#allocation2 + $0xe0] sm:$0xff]
    %v3068 = vld [vmem:[#allocation2 + $0xe8] sm:$0xff]
    %v3069 = vld [vmem:[#allocation2 + $0xf0] sm:$0xff]
    %v3070 = vld [vmem:[#allocation2 + $0xf8] sm:$0xff]
    %v3071 = vpack.c.bf16 %v3047, %v3039
    %v3072 = vpack.c.bf16 %v3048, %v3040
    %v3073 = vpack.c.bf16 %v3049, %v3041
    %v3074 = vpack.c.bf16 %v3050, %v3042
    %v3075 = vpack.c.bf16 %v3051, %v3043
    %v3076 = vpack.c.bf16 %v3052, %v3044
    %v3077 = vpack.c.bf16 %v3053, %v3045
    %v3078 = vpack.c.bf16 %v3054, %v3046
    %v3079 = vpack.c.bf16 %v3063, %v3055
    %v3080 = vpack.c.bf16 %v3064, %v3056
    %v3081 = vpack.c.bf16 %v3065, %v3057
    %v3082 = vpack.c.bf16 %v3066, %v3058
    %v3083 = vpack.c.bf16 %v3067, %v3059
    %v3084 = vpack.c.bf16 %v3068, %v3060
    %v3085 = vpack.c.bf16 %v3069, %v3061
    %v3086 = vpack.c.bf16 %v3070, %v3062
    %s3087 = scalar_lea.vmem %s5, 96
    %v3088 = vld [vmem:[%s3087] sm:$0xff]
    %v3089 = vld [vmem:[%s3087 + $0x8] sm:$0xff]
    %v3090 = vld [vmem:[%s3087 + $0x10] sm:$0xff]
    %v3091 = vld [vmem:[%s3087 + $0x18] sm:$0xff]
    %v3092 = vld [vmem:[%s3087 + $0x20] sm:$0xff]
    %v3093 = vld [vmem:[%s3087 + $0x28] sm:$0xff]
    %v3094 = vld [vmem:[%s3087 + $0x30] sm:$0xff]
    %v3095 = vld [vmem:[%s3087 + $0x38] sm:$0xff]
    %v3096 = vld [vmem:[%s3087 + $0x40] sm:$0xff]
    %v3097 = vld [vmem:[%s3087 + $0x48] sm:$0xff]
    %v3098 = vld [vmem:[%s3087 + $0x50] sm:$0xff]
    %v3099 = vld [vmem:[%s3087 + $0x58] sm:$0xff]
    %3101 = vset.pattern.permute.xlu0 0
    %3102 = vperm.xlu0 %3101, %v3088
    %v3103 = vpop.permute.xlu0 %3102
    %3106 = vset.pattern.permute.xlu0 0
    %3107 = vperm.xlu0 %3106, %v3089
    %v3108 = vpop.permute.xlu0 %3107
    %3111 = vset.pattern.permute.xlu0 0
    %3112 = vperm.xlu0 %3111, %v3090
    %v3113 = vpop.permute.xlu0 %3112
    %3116 = vset.pattern.permute.xlu0 0
    %3117 = vperm.xlu0 %3116, %v3091
    %v3118 = vpop.permute.xlu0 %3117
    %3121 = vset.pattern.permute.xlu0 0
    %3122 = vperm.xlu0 %3121, %v3092
    %v3123 = vpop.permute.xlu0 %3122
    %3126 = vset.pattern.permute.xlu0 0
    %3127 = vperm.xlu0 %3126, %v3093
    %v3128 = vpop.permute.xlu0 %3127
    %3131 = vset.pattern.permute.xlu0 0
    %3132 = vperm.xlu0 %3131, %v3094
    %v3133 = vpop.permute.xlu0 %3132
    %3136 = vset.pattern.permute.xlu0 0
    %3137 = vperm.xlu0 %3136, %v3095
    %v3138 = vpop.permute.xlu0 %3137
    %3141 = vset.pattern.permute.xlu0 0
    %3142 = vperm.xlu0 %3141, %v3096
    %v3143 = vpop.permute.xlu0 %3142
    %3146 = vset.pattern.permute.xlu0 0
    %3147 = vperm.xlu0 %3146, %v3097
    %v3148 = vpop.permute.xlu0 %3147
    %3151 = vset.pattern.permute.xlu0 0
    %3152 = vperm.xlu0 %3151, %v3098
    %v3153 = vpop.permute.xlu0 %3152
    %3156 = vset.pattern.permute.xlu0 0
    %3157 = vperm.xlu0 %3156, %v3099
    %v3158 = vpop.permute.xlu0 %3157
    %v3172 = vunpack.c.l.b16 %v3027
    %v3173 = vunpack.c.l.b16 %v3028
    %v3174 = vunpack.c.l.b16 %v3029
    %v3175 = vunpack.c.l.b16 %v3030
    %v3176 = vunpack.c.l.b16 %v3031
    %v3177 = vunpack.c.l.b16 %v3032
    %v3178 = vunpack.c.l.b16 %v3033
    %v3179 = vunpack.c.l.b16 %v3034
    %v3180 = vunpack.c.l.b16 %v3035
    %v3181 = vunpack.c.l.b16 %v3036
    %v3182 = vunpack.c.l.b16 %v3037
    %v3183 = vunpack.c.l.b16 %v3038
    %v3184 = vpack.c.b16 %v3173, %v3172
    %v3185 = vpack.c.b16 %v3175, %v3174
    %v3186 = vpack.c.b16 %v3177, %v3176
    %v3187 = vpack.c.b16 %v3179, %v3178
    %v3188 = vpack.c.b16 %v3181, %v3180
    %v3189 = vpack.c.b16 %v3183, %v3182
    %v3191 = vsel %vm525, %v3184, 0
    %v3194 = vsel %vm525, %v3185, 0
    %v3197 = vsel %vm525, %v3186, 0
    %v3200 = vsel %vm525, %v3187, 0
    %v3203 = vsel %vm525, %v3188, 0
    %v3206 = vsel %vm525, %v3189, 0
    %3208 = vmatpush.bf16.msra.mxu0 0
    %3209 = vmatpush.bf16.msra.mxu0 0
    %3210 = vmatpush.bf16.msra.mxu0 0
    %3211 = vmatpush.bf16.msra.mxu0 0
    %3212 = vmatpush.bf16.msra.mxu0 0
    %3213 = vmatpush.bf16.msra.mxu0 0
    %3214 = vmatpush.bf16.msra.mxu0 %v3079
    %3215 = vmatpush.bf16.msra.mxu0 %v3071
    %3216 = vmatmul.bf16.gmra.mxu0 %v3191
    %v3217 = vpop.f32.mrf.mxu0
    %v3218 = vadd.f32 %v3103, %v3217
    %v3219 = vpop.f32.mrf.mxu0
    %v3220 = vadd.f32 %v3108, %v3219
    %3221 = vmatmul.bf16.gmra.mxu0 %v3194
    %v3222 = vpop.f32.mrf.mxu0
    %v3223 = vadd.f32 %v3113, %v3222
    %v3224 = vpop.f32.mrf.mxu0
    %v3225 = vadd.f32 %v3118, %v3224
    %3226 = vmatmul.bf16.gmra.mxu0 %v3197
    %v3227 = vpop.f32.mrf.mxu0
    %v3228 = vadd.f32 %v3123, %v3227
    %v3229 = vpop.f32.mrf.mxu0
    %v3230 = vadd.f32 %v3128, %v3229
    %3231 = vmatmul.bf16.gmra.mxu0 %v3200
    %v3232 = vpop.f32.mrf.mxu0
    %v3233 = vadd.f32 %v3133, %v3232
    %v3234 = vpop.f32.mrf.mxu0
    %v3235 = vadd.f32 %v3138, %v3234
    %3236 = vmatmul.bf16.gmra.mxu0 %v3203
    %v3237 = vpop.f32.mrf.mxu0
    %v3238 = vadd.f32 %v3143, %v3237
    %v3239 = vpop.f32.mrf.mxu0
    %v3240 = vadd.f32 %v3148, %v3239
    %3241 = vmatmul.bf16.gmra.mxu0 %v3206
    %v3242 = vpop.f32.mrf.mxu0
    %v3243 = vadd.f32 %v3153, %v3242
    %v3244 = vpop.f32.mrf.mxu0
    %v3245 = vadd.f32 %v3158, %v3244
    %3246 = vdwg.mxu0
    %3247 = vmatpush.bf16.msra.mxu0 0
    %3248 = vmatpush.bf16.msra.mxu0 0
    %3249 = vmatpush.bf16.msra.mxu0 0
    %3250 = vmatpush.bf16.msra.mxu0 0
    %3251 = vmatpush.bf16.msra.mxu0 0
    %3252 = vmatpush.bf16.msra.mxu0 0
    %3253 = vmatpush.bf16.msra.mxu0 %v3080
    %3254 = vmatpush.bf16.msra.mxu0 %v3072
    %3255 = vmatmul.bf16.gmra.mxu0 %v3191
    %v3256 = vpop.f32.mrf.mxu0
    %v3257 = vadd.f32 %v3103, %v3256
    %v3258 = vpop.f32.mrf.mxu0
    %v3259 = vadd.f32 %v3108, %v3258
    %3260 = vmatmul.bf16.gmra.mxu0 %v3194
    %v3261 = vpop.f32.mrf.mxu0
    %v3262 = vadd.f32 %v3113, %v3261
    %v3263 = vpop.f32.mrf.mxu0
    %v3264 = vadd.f32 %v3118, %v3263
    %3265 = vmatmul.bf16.gmra.mxu0 %v3197
    %v3266 = vpop.f32.mrf.mxu0
    %v3267 = vadd.f32 %v3123, %v3266
    %v3268 = vpop.f32.mrf.mxu0
    %v3269 = vadd.f32 %v3128, %v3268
    %3270 = vmatmul.bf16.gmra.mxu0 %v3200
    %v3271 = vpop.f32.mrf.mxu0
    %v3272 = vadd.f32 %v3133, %v3271
    %v3273 = vpop.f32.mrf.mxu0
    %v3274 = vadd.f32 %v3138, %v3273
    %3275 = vmatmul.bf16.gmra.mxu0 %v3203
    %v3276 = vpop.f32.mrf.mxu0
    %v3277 = vadd.f32 %v3143, %v3276
    %v3278 = vpop.f32.mrf.mxu0
    %v3279 = vadd.f32 %v3148, %v3278
    %3280 = vmatmul.bf16.gmra.mxu0 %v3206
    %v3281 = vpop.f32.mrf.mxu0
    %v3282 = vadd.f32 %v3153, %v3281
    %v3283 = vpop.f32.mrf.mxu0
    %v3284 = vadd.f32 %v3158, %v3283
    %3285 = vdwg.mxu0
    %3286 = vmatpush.bf16.msra.mxu0 0
    %3287 = vmatpush.bf16.msra.mxu0 0
    %3288 = vmatpush.bf16.msra.mxu0 0
    %3289 = vmatpush.bf16.msra.mxu0 0
    %3290 = vmatpush.bf16.msra.mxu0 0
    %3291 = vmatpush.bf16.msra.mxu0 0
    %3292 = vmatpush.bf16.msra.mxu0 %v3081
    %3293 = vmatpush.bf16.msra.mxu0 %v3073
    %3294 = vmatmul.bf16.gmra.mxu0 %v3191
    %v3295 = vpop.f32.mrf.mxu0
    %v3296 = vadd.f32 %v3103, %v3295
    %v3297 = vpop.f32.mrf.mxu0
    %v3298 = vadd.f32 %v3108, %v3297
    %3299 = vmatmul.bf16.gmra.mxu0 %v3194
    %v3300 = vpop.f32.mrf.mxu0
    %v3301 = vadd.f32 %v3113, %v3300
    %v3302 = vpop.f32.mrf.mxu0
    %v3303 = vadd.f32 %v3118, %v3302
    %3304 = vmatmul.bf16.gmra.mxu0 %v3197
    %v3305 = vpop.f32.mrf.mxu0
    %v3306 = vadd.f32 %v3123, %v3305
    %v3307 = vpop.f32.mrf.mxu0
    %v3308 = vadd.f32 %v3128, %v3307
    %3309 = vmatmul.bf16.gmra.mxu0 %v3200
    %v3310 = vpop.f32.mrf.mxu0
    %v3311 = vadd.f32 %v3133, %v3310
    %v3312 = vpop.f32.mrf.mxu0
    %v3313 = vadd.f32 %v3138, %v3312
    %3314 = vmatmul.bf16.gmra.mxu0 %v3203
    %v3315 = vpop.f32.mrf.mxu0
    %v3316 = vadd.f32 %v3143, %v3315
    %v3317 = vpop.f32.mrf.mxu0
    %v3318 = vadd.f32 %v3148, %v3317
    %3319 = vmatmul.bf16.gmra.mxu0 %v3206
    %v3320 = vpop.f32.mrf.mxu0
    %v3321 = vadd.f32 %v3153, %v3320
    %v3322 = vpop.f32.mrf.mxu0
    %v3323 = vadd.f32 %v3158, %v3322
    %3324 = vdwg.mxu0
    %3325 = vmatpush.bf16.msra.mxu0 0
    %3326 = vmatpush.bf16.msra.mxu0 0
    %3327 = vmatpush.bf16.msra.mxu0 0
    %3328 = vmatpush.bf16.msra.mxu0 0
    %3329 = vmatpush.bf16.msra.mxu0 0
    %3330 = vmatpush.bf16.msra.mxu0 0
    %3331 = vmatpush.bf16.msra.mxu0 %v3082
    %3332 = vmatpush.bf16.msra.mxu0 %v3074
    %3333 = vmatmul.bf16.gmra.mxu0 %v3191
    %v3334 = vpop.f32.mrf.mxu0
    %v3335 = vadd.f32 %v3103, %v3334
    %v3336 = vpop.f32.mrf.mxu0
    %v3337 = vadd.f32 %v3108, %v3336
    %3338 = vmatmul.bf16.gmra.mxu0 %v3194
    %v3339 = vpop.f32.mrf.mxu0
    %v3340 = vadd.f32 %v3113, %v3339
    %v3341 = vpop.f32.mrf.mxu0
    %v3342 = vadd.f32 %v3118, %v3341
    %3343 = vmatmul.bf16.gmra.mxu0 %v3197
    %v3344 = vpop.f32.mrf.mxu0
    %v3345 = vadd.f32 %v3123, %v3344
    %v3346 = vpop.f32.mrf.mxu0
    %v3347 = vadd.f32 %v3128, %v3346
    %3348 = vmatmul.bf16.gmra.mxu0 %v3200
    %v3349 = vpop.f32.mrf.mxu0
    %v3350 = vadd.f32 %v3133, %v3349
    %v3351 = vpop.f32.mrf.mxu0
    %v3352 = vadd.f32 %v3138, %v3351
    %3353 = vmatmul.bf16.gmra.mxu0 %v3203
    %v3354 = vpop.f32.mrf.mxu0
    %v3355 = vadd.f32 %v3143, %v3354
    %v3356 = vpop.f32.mrf.mxu0
    %v3357 = vadd.f32 %v3148, %v3356
    %3358 = vmatmul.bf16.gmra.mxu0 %v3206
    %v3359 = vpop.f32.mrf.mxu0
    %v3360 = vadd.f32 %v3153, %v3359
    %v3361 = vpop.f32.mrf.mxu0
    %v3362 = vadd.f32 %v3158, %v3361
    %3363 = vdwg.mxu0
    %3364 = vmatpush.bf16.msra.mxu0 0
    %3365 = vmatpush.bf16.msra.mxu0 0
    %3366 = vmatpush.bf16.msra.mxu0 0
    %3367 = vmatpush.bf16.msra.mxu0 0
    %3368 = vmatpush.bf16.msra.mxu0 0
    %3369 = vmatpush.bf16.msra.mxu0 0
    %3370 = vmatpush.bf16.msra.mxu0 %v3083
    %3371 = vmatpush.bf16.msra.mxu0 %v3075
    %3372 = vmatmul.bf16.gmra.mxu0 %v3191
    %v3373 = vpop.f32.mrf.mxu0
    %v3374 = vadd.f32 %v3103, %v3373
    %v3375 = vpop.f32.mrf.mxu0
    %v3376 = vadd.f32 %v3108, %v3375
    %3377 = vmatmul.bf16.gmra.mxu0 %v3194
    %v3378 = vpop.f32.mrf.mxu0
    %v3379 = vadd.f32 %v3113, %v3378
    %v3380 = vpop.f32.mrf.mxu0
    %v3381 = vadd.f32 %v3118, %v3380
    %3382 = vmatmul.bf16.gmra.mxu0 %v3197
    %v3383 = vpop.f32.mrf.mxu0
    %v3384 = vadd.f32 %v3123, %v3383
    %v3385 = vpop.f32.mrf.mxu0
    %v3386 = vadd.f32 %v3128, %v3385
    %3387 = vmatmul.bf16.gmra.mxu0 %v3200
    %v3388 = vpop.f32.mrf.mxu0
    %v3389 = vadd.f32 %v3133, %v3388
    %v3390 = vpop.f32.mrf.mxu0
    %v3391 = vadd.f32 %v3138, %v3390
    %3392 = vmatmul.bf16.gmra.mxu0 %v3203
    %v3393 = vpop.f32.mrf.mxu0
    %v3394 = vadd.f32 %v3143, %v3393
    %v3395 = vpop.f32.mrf.mxu0
    %v3396 = vadd.f32 %v3148, %v3395
    %3397 = vmatmul.bf16.gmra.mxu0 %v3206
    %v3398 = vpop.f32.mrf.mxu0
    %v3399 = vadd.f32 %v3153, %v3398
    %v3400 = vpop.f32.mrf.mxu0
    %v3401 = vadd.f32 %v3158, %v3400
    %3402 = vdwg.mxu0
    %3403 = vmatpush.bf16.msra.mxu0 0
    %3404 = vmatpush.bf16.msra.mxu0 0
    %3405 = vmatpush.bf16.msra.mxu0 0
    %3406 = vmatpush.bf16.msra.mxu0 0
    %3407 = vmatpush.bf16.msra.mxu0 0
    %3408 = vmatpush.bf16.msra.mxu0 0
    %3409 = vmatpush.bf16.msra.mxu0 %v3084
    %3410 = vmatpush.bf16.msra.mxu0 %v3076
    %3411 = vmatmul.bf16.gmra.mxu0 %v3191
    %v3412 = vpop.f32.mrf.mxu0
    %v3413 = vadd.f32 %v3103, %v3412
    %v3414 = vpop.f32.mrf.mxu0
    %v3415 = vadd.f32 %v3108, %v3414
    %3416 = vmatmul.bf16.gmra.mxu0 %v3194
    %v3417 = vpop.f32.mrf.mxu0
    %v3418 = vadd.f32 %v3113, %v3417
    %v3419 = vpop.f32.mrf.mxu0
    %v3420 = vadd.f32 %v3118, %v3419
    %3421 = vmatmul.bf16.gmra.mxu0 %v3197
    %v3422 = vpop.f32.mrf.mxu0
    %v3423 = vadd.f32 %v3123, %v3422
    %v3424 = vpop.f32.mrf.mxu0
    %v3425 = vadd.f32 %v3128, %v3424
    %3426 = vmatmul.bf16.gmra.mxu0 %v3200
    %v3427 = vpop.f32.mrf.mxu0
    %v3428 = vadd.f32 %v3133, %v3427
    %v3429 = vpop.f32.mrf.mxu0
    %v3430 = vadd.f32 %v3138, %v3429
    %3431 = vmatmul.bf16.gmra.mxu0 %v3203
    %v3432 = vpop.f32.mrf.mxu0
    %v3433 = vadd.f32 %v3143, %v3432
    %v3434 = vpop.f32.mrf.mxu0
    %v3435 = vadd.f32 %v3148, %v3434
    %3436 = vmatmul.bf16.gmra.mxu0 %v3206
    %v3437 = vpop.f32.mrf.mxu0
    %v3438 = vadd.f32 %v3153, %v3437
    %v3439 = vpop.f32.mrf.mxu0
    %v3440 = vadd.f32 %v3158, %v3439
    %3441 = vdwg.mxu0
    %3442 = vmatpush.bf16.msra.mxu0 0
    %3443 = vmatpush.bf16.msra.mxu0 0
    %3444 = vmatpush.bf16.msra.mxu0 0
    %3445 = vmatpush.bf16.msra.mxu0 0
    %3446 = vmatpush.bf16.msra.mxu0 0
    %3447 = vmatpush.bf16.msra.mxu0 0
    %3448 = vmatpush.bf16.msra.mxu0 %v3085
    %3449 = vmatpush.bf16.msra.mxu0 %v3077
    %3450 = vmatmul.bf16.gmra.mxu0 %v3191
    %v3451 = vpop.f32.mrf.mxu0
    %v3452 = vadd.f32 %v3103, %v3451
    %v3453 = vpop.f32.mrf.mxu0
    %v3454 = vadd.f32 %v3108, %v3453
    %3455 = vmatmul.bf16.gmra.mxu0 %v3194
    %v3456 = vpop.f32.mrf.mxu0
    %v3457 = vadd.f32 %v3113, %v3456
    %v3458 = vpop.f32.mrf.mxu0
    %v3459 = vadd.f32 %v3118, %v3458
    %3460 = vmatmul.bf16.gmra.mxu0 %v3197
    %v3461 = vpop.f32.mrf.mxu0
    %v3462 = vadd.f32 %v3123, %v3461
    %v3463 = vpop.f32.mrf.mxu0
    %v3464 = vadd.f32 %v3128, %v3463
    %3465 = vmatmul.bf16.gmra.mxu0 %v3200
    %v3466 = vpop.f32.mrf.mxu0
    %v3467 = vadd.f32 %v3133, %v3466
    %v3468 = vpop.f32.mrf.mxu0
    %v3469 = vadd.f32 %v3138, %v3468
    %3470 = vmatmul.bf16.gmra.mxu0 %v3203
    %v3471 = vpop.f32.mrf.mxu0
    %v3472 = vadd.f32 %v3143, %v3471
    %v3473 = vpop.f32.mrf.mxu0
    %v3474 = vadd.f32 %v3148, %v3473
    %3475 = vmatmul.bf16.gmra.mxu0 %v3206
    %v3476 = vpop.f32.mrf.mxu0
    %v3477 = vadd.f32 %v3153, %v3476
    %v3478 = vpop.f32.mrf.mxu0
    %v3479 = vadd.f32 %v3158, %v3478
    %3480 = vdwg.mxu0
    %3481 = vmatpush.bf16.msra.mxu0 0
    %3482 = vmatpush.bf16.msra.mxu0 0
    %3483 = vmatpush.bf16.msra.mxu0 0
    %3484 = vmatpush.bf16.msra.mxu0 0
    %3485 = vmatpush.bf16.msra.mxu0 0
    %3486 = vmatpush.bf16.msra.mxu0 0
    %3487 = vmatpush.bf16.msra.mxu0 %v3086
    %3488 = vmatpush.bf16.msra.mxu0 %v3078
    %3489 = vmatmul.bf16.gmra.mxu0 %v3191
    %v3490 = vpop.f32.mrf.mxu0
    %v3491 = vadd.f32 %v3103, %v3490
    %v3492 = vpop.f32.mrf.mxu0
    %v3493 = vadd.f32 %v3108, %v3492
    %3494 = vmatmul.bf16.gmra.mxu0 %v3194
    %v3495 = vpop.f32.mrf.mxu0
    %v3496 = vadd.f32 %v3113, %v3495
    %v3497 = vpop.f32.mrf.mxu0
    %v3498 = vadd.f32 %v3118, %v3497
    %3499 = vmatmul.bf16.gmra.mxu0 %v3197
    %v3500 = vpop.f32.mrf.mxu0
    %v3501 = vadd.f32 %v3123, %v3500
    %v3502 = vpop.f32.mrf.mxu0
    %v3503 = vadd.f32 %v3128, %v3502
    %3504 = vmatmul.bf16.gmra.mxu0 %v3200
    %v3505 = vpop.f32.mrf.mxu0
    %v3506 = vadd.f32 %v3133, %v3505
    %v3507 = vpop.f32.mrf.mxu0
    %v3508 = vadd.f32 %v3138, %v3507
    %3509 = vmatmul.bf16.gmra.mxu0 %v3203
    %v3510 = vpop.f32.mrf.mxu0
    %v3511 = vadd.f32 %v3143, %v3510
    %v3512 = vpop.f32.mrf.mxu0
    %v3513 = vadd.f32 %v3148, %v3512
    %3514 = vmatmul.bf16.gmra.mxu0 %v3206
    %v3515 = vpop.f32.mrf.mxu0
    %v3516 = vadd.f32 %v3153, %v3515
    %v3517 = vpop.f32.mrf.mxu0
    %v3518 = vadd.f32 %v3158, %v3517
    %3519 = vdwg.mxu0
    %3520 = vst [vmem:[#allocation3] sm:$0xff] %v3218
    %3521 = vst [vmem:[#allocation3 + $0x8] sm:$0xff] %v3257
    %3522 = vst [vmem:[#allocation3 + $0x10] sm:$0xff] %v3296
    %3523 = vst [vmem:[#allocation3 + $0x18] sm:$0xff] %v3335
    %3524 = vst [vmem:[#allocation3 + $0x20] sm:$0xff] %v3374
    %3525 = vst [vmem:[#allocation3 + $0x28] sm:$0xff] %v3413
    %3526 = vst [vmem:[#allocation3 + $0x30] sm:$0xff] %v3452
    %3527 = vst [vmem:[#allocation3 + $0x38] sm:$0xff] %v3491
    %3528 = vst [vmem:[#allocation3 + $0x40] sm:$0xff] %v3220
    %3529 = vst [vmem:[#allocation3 + $0x48] sm:$0xff] %v3259
    %3530 = vst [vmem:[#allocation3 + $0x50] sm:$0xff] %v3298
    %3531 = vst [vmem:[#allocation3 + $0x58] sm:$0xff] %v3337
    %3532 = vst [vmem:[#allocation3 + $0x60] sm:$0xff] %v3376
    %3533 = vst [vmem:[#allocation3 + $0x68] sm:$0xff] %v3415
    %3534 = vst [vmem:[#allocation3 + $0x70] sm:$0xff] %v3454
    %3535 = vst [vmem:[#allocation3 + $0x78] sm:$0xff] %v3493
    %3536 = vst [vmem:[#allocation3 + $0x80] sm:$0xff] %v3223
    %3537 = vst [vmem:[#allocation3 + $0x88] sm:$0xff] %v3262
    %3538 = vst [vmem:[#allocation3 + $0x90] sm:$0xff] %v3301
    %3539 = vst [vmem:[#allocation3 + $0x98] sm:$0xff] %v3340
    %3540 = vst [vmem:[#allocation3 + $0xa0] sm:$0xff] %v3379
    %3541 = vst [vmem:[#allocation3 + $0xa8] sm:$0xff] %v3418
    %3542 = vst [vmem:[#allocation3 + $0xb0] sm:$0xff] %v3457
    %3543 = vst [vmem:[#allocation3 + $0xb8] sm:$0xff] %v3496
    %3544 = vst [vmem:[#allocation3 + $0xc0] sm:$0xff] %v3225
    %3545 = vst [vmem:[#allocation3 + $0xc8] sm:$0xff] %v3264
    %3546 = vst [vmem:[#allocation3 + $0xd0] sm:$0xff] %v3303
    %3547 = vst [vmem:[#allocation3 + $0xd8] sm:$0xff] %v3342
    %3548 = vst [vmem:[#allocation3 + $0xe0] sm:$0xff] %v3381
    %3549 = vst [vmem:[#allocation3 + $0xe8] sm:$0xff] %v3420
    %3550 = vst [vmem:[#allocation3 + $0xf0] sm:$0xff] %v3459
    %3551 = vst [vmem:[#allocation3 + $0xf8] sm:$0xff] %v3498
    %3552 = vst [vmem:[#allocation3 + $0x100] sm:$0xff] %v3228
    %3553 = vst [vmem:[#allocation3 + $0x108] sm:$0xff] %v3267
    %3554 = vst [vmem:[#allocation3 + $0x110] sm:$0xff] %v3306
    %3555 = vst [vmem:[#allocation3 + $0x118] sm:$0xff] %v3345
    %3556 = vst [vmem:[#allocation3 + $0x120] sm:$0xff] %v3384
    %3557 = vst [vmem:[#allocation3 + $0x128] sm:$0xff] %v3423
    %3558 = vst [vmem:[#allocation3 + $0x130] sm:$0xff] %v3462
    %3559 = vst [vmem:[#allocation3 + $0x138] sm:$0xff] %v3501
    %3560 = vst [vmem:[#allocation3 + $0x140] sm:$0xff] %v3230
    %3561 = vst [vmem:[#allocation3 + $0x148] sm:$0xff] %v3269
    %3562 = vst [vmem:[#allocation3 + $0x150] sm:$0xff] %v3308
    %3563 = vst [vmem:[#allocation3 + $0x158] sm:$0xff] %v3347
    %3564 = vst [vmem:[#allocation3 + $0x160] sm:$0xff] %v3386
    %3565 = vst [vmem:[#allocation3 + $0x168] sm:$0xff] %v3425
    %3566 = vst [vmem:[#allocation3 + $0x170] sm:$0xff] %v3464
    %3567 = vst [vmem:[#allocation3 + $0x178] sm:$0xff] %v3503
    %3568 = vst [vmem:[#allocation3 + $0x180] sm:$0xff] %v3233
    %3569 = vst [vmem:[#allocation3 + $0x188] sm:$0xff] %v3272
    %3570 = vst [vmem:[#allocation3 + $0x190] sm:$0xff] %v3311
    %3571 = vst [vmem:[#allocation3 + $0x198] sm:$0xff] %v3350
    %3572 = vst [vmem:[#allocation3 + $0x1a0] sm:$0xff] %v3389
    %3573 = vst [vmem:[#allocation3 + $0x1a8] sm:$0xff] %v3428
    %3574 = vst [vmem:[#allocation3 + $0x1b0] sm:$0xff] %v3467
    %3575 = vst [vmem:[#allocation3 + $0x1b8] sm:$0xff] %v3506
    %3576 = vst [vmem:[#allocation3 + $0x1c0] sm:$0xff] %v3235
    %3577 = vst [vmem:[#allocation3 + $0x1c8] sm:$0xff] %v3274
    %3578 = vst [vmem:[#allocation3 + $0x1d0] sm:$0xff] %v3313
    %3579 = vst [vmem:[#allocation3 + $0x1d8] sm:$0xff] %v3352
    %3580 = vst [vmem:[#allocation3 + $0x1e0] sm:$0xff] %v3391
    %3581 = vst [vmem:[#allocation3 + $0x1e8] sm:$0xff] %v3430
    %3582 = vst [vmem:[#allocation3 + $0x1f0] sm:$0xff] %v3469
    %3583 = vst [vmem:[#allocation3 + $0x1f8] sm:$0xff] %v3508
    %3584 = vst [vmem:[#allocation3 + $0x200] sm:$0xff] %v3238
    %3585 = vst [vmem:[#allocation3 + $0x208] sm:$0xff] %v3277
    %3586 = vst [vmem:[#allocation3 + $0x210] sm:$0xff] %v3316
    %3587 = vst [vmem:[#allocation3 + $0x218] sm:$0xff] %v3355
    %3588 = vst [vmem:[#allocation3 + $0x220] sm:$0xff] %v3394
    %3589 = vst [vmem:[#allocation3 + $0x228] sm:$0xff] %v3433
    %3590 = vst [vmem:[#allocation3 + $0x230] sm:$0xff] %v3472
    %3591 = vst [vmem:[#allocation3 + $0x238] sm:$0xff] %v3511
    %3592 = vst [vmem:[#allocation3 + $0x240] sm:$0xff] %v3240
    %3593 = vst [vmem:[#allocation3 + $0x248] sm:$0xff] %v3279
    %3594 = vst [vmem:[#allocation3 + $0x250] sm:$0xff] %v3318
    %3595 = vst [vmem:[#allocation3 + $0x258] sm:$0xff] %v3357
    %3596 = vst [vmem:[#allocation3 + $0x260] sm:$0xff] %v3396
    %3597 = vst [vmem:[#allocation3 + $0x268] sm:$0xff] %v3435
    %3598 = vst [vmem:[#allocation3 + $0x270] sm:$0xff] %v3474
    %3599 = vst [vmem:[#allocation3 + $0x278] sm:$0xff] %v3513
    %3600 = vst [vmem:[#allocation3 + $0x280] sm:$0xff] %v3243
    %3601 = vst [vmem:[#allocation3 + $0x288] sm:$0xff] %v3282
    %3602 = vst [vmem:[#allocation3 + $0x290] sm:$0xff] %v3321
    %3603 = vst [vmem:[#allocation3 + $0x298] sm:$0xff] %v3360
    %3604 = vst [vmem:[#allocation3 + $0x2a0] sm:$0xff] %v3399
    %3605 = vst [vmem:[#allocation3 + $0x2a8] sm:$0xff] %v3438
    %3606 = vst [vmem:[#allocation3 + $0x2b0] sm:$0xff] %v3477
    %3607 = vst [vmem:[#allocation3 + $0x2b8] sm:$0xff] %v3516
    %3608 = vst [vmem:[#allocation3 + $0x2c0] sm:$0xff] %v3245
    %3609 = vst [vmem:[#allocation3 + $0x2c8] sm:$0xff] %v3284
    %3610 = vst [vmem:[#allocation3 + $0x2d0] sm:$0xff] %v3323
    %3611 = vst [vmem:[#allocation3 + $0x2d8] sm:$0xff] %v3362
    %3612 = vst [vmem:[#allocation3 + $0x2e0] sm:$0xff] %v3401
    %3613 = vst [vmem:[#allocation3 + $0x2e8] sm:$0xff] %v3440
    %3614 = vst [vmem:[#allocation3 + $0x2f0] sm:$0xff] %v3479
    %3615 = vst [vmem:[#allocation3 + $0x2f8] sm:$0xff] %v3518
    %s3616 = scalar_lea.vmem %s4, 48
    %v3617 = vld [vmem:[%s3616] sm:$0xf]
    %v3618 = vld [vmem:[%s3616 + $0x4] sm:$0xf]
    %v3619 = vld [vmem:[%s3616 + $0x8] sm:$0xf]
    %v3620 = vld [vmem:[%s3616 + $0xc] sm:$0xf]
    %v3621 = vld [vmem:[%s3616 + $0x10] sm:$0xf]
    %v3622 = vld [vmem:[%s3616 + $0x14] sm:$0xf]
    %v3623 = vld [vmem:[%s3616 + $0x18] sm:$0xf]
    %v3624 = vld [vmem:[%s3616 + $0x1c] sm:$0xf]
    %v3625 = vld [vmem:[%s3616 + $0x20] sm:$0xf]
    %v3626 = vld [vmem:[%s3616 + $0x24] sm:$0xf]
    %v3627 = vld [vmem:[%s3616 + $0x28] sm:$0xf]
    %v3628 = vld [vmem:[%s3616 + $0x2c] sm:$0xf]
    %s3629 = scalar_lea.vmem %s6, 32
    %v3630 = vld [vmem:[%s3629] sm:$0xff]
    %v3631 = vld [vmem:[%s3629 + $0x8] sm:$0xff]
    %v3632 = vld [vmem:[%s3629 + $0x10] sm:$0xff]
    %v3633 = vld [vmem:[%s3629 + $0x18] sm:$0xff]
    %v3646 = vunpack.c.l.b16 %v3617
    %v3647 = vunpack.c.l.b16 %v3618
    %v3648 = vunpack.c.l.b16 %v3619
    %v3649 = vunpack.c.l.b16 %v3620
    %v3650 = vunpack.c.l.b16 %v3621
    %v3651 = vunpack.c.l.b16 %v3622
    %v3652 = vunpack.c.l.b16 %v3623
    %v3653 = vunpack.c.l.b16 %v3624
    %v3654 = vunpack.c.l.b16 %v3625
    %v3655 = vunpack.c.l.b16 %v3626
    %v3656 = vunpack.c.l.b16 %v3627
    %v3657 = vunpack.c.l.b16 %v3628
    %v3658 = vpack.c.b16 %v3647, %v3646
    %v3659 = vpack.c.b16 %v3649, %v3648
    %v3660 = vpack.c.b16 %v3651, %v3650
    %v3661 = vpack.c.b16 %v3653, %v3652
    %v3662 = vpack.c.b16 %v3655, %v3654
    %v3663 = vpack.c.b16 %v3657, %v3656
    %v3665 = vsel %vm525, %v3658, 0
    %v3668 = vsel %vm525, %v3659, 0
    %v3671 = vsel %vm525, %v3660, 0
    %v3674 = vsel %vm525, %v3661, 0
    %v3677 = vsel %vm525, %v3662, 0
    %v3680 = vsel %vm525, %v3663, 0
    %3682 = vmatpush.bf16.msra.mxu0 0
    %3683 = vmatpush.bf16.msra.mxu0 0
    %3684 = vmatpush.bf16.msra.mxu0 0
    %3685 = vmatpush.bf16.msra.mxu0 0
    %3686 = vmatpush.bf16.msra.mxu0 0
    %3687 = vmatpush.bf16.msra.mxu0 0
    %3688 = vmatpush.bf16.msra.mxu0 0
    %3689 = vmatpush.bf16.msra.mxu0 0
    %3690 = vmatmul.bf16.gmra.mxu0 %v3665
    %v3691 = vpop.f32.mrf.mxu0
    %v3692 = vadd.f32 0.0, %v3691
    %v3693 = vpop.f32.mrf.mxu0
    %v3694 = vadd.f32 0.0, %v3693
    %3695 = vmatmul.bf16.gmra.mxu0 %v3668
    %v3696 = vpop.f32.mrf.mxu0
    %v3697 = vadd.f32 0.0, %v3696
    %v3698 = vpop.f32.mrf.mxu0
    %v3699 = vadd.f32 0.0, %v3698
    %3700 = vmatmul.bf16.gmra.mxu0 %v3671
    %v3701 = vpop.f32.mrf.mxu0
    %v3702 = vadd.f32 0.0, %v3701
    %v3703 = vpop.f32.mrf.mxu0
    %v3704 = vadd.f32 0.0, %v3703
    %3705 = vmatmul.bf16.gmra.mxu0 %v3674
    %v3706 = vpop.f32.mrf.mxu0
    %v3707 = vadd.f32 0.0, %v3706
    %v3708 = vpop.f32.mrf.mxu0
    %v3709 = vadd.f32 0.0, %v3708
    %3710 = vmatmul.bf16.gmra.mxu0 %v3677
    %v3711 = vpop.f32.mrf.mxu0
    %v3712 = vadd.f32 0.0, %v3711
    %v3713 = vpop.f32.mrf.mxu0
    %v3714 = vadd.f32 0.0, %v3713
    %3715 = vmatmul.bf16.gmra.mxu0 %v3680
    %v3716 = vpop.f32.mrf.mxu0
    %v3717 = vadd.f32 0.0, %v3716
    %v3718 = vpop.f32.mrf.mxu0
    %v3719 = vadd.f32 0.0, %v3718
    %3720 = vdwg.mxu0
    %v3721 = vld [vmem:[#allocation3] sm:$0xff]
    %v3722 = vld [vmem:[#allocation3 + $0x40] sm:$0xff]
    %v3723 = vld [vmem:[#allocation3 + $0x80] sm:$0xff]
    %v3724 = vld [vmem:[#allocation3 + $0xc0] sm:$0xff]
    %v3725 = vadd.f32 %v3721, %v3692
    %v3726 = vadd.f32 %v3722, %v3694
    %v3727 = vadd.f32 %v3723, %v3697
    %v3728 = vadd.f32 %v3724, %v3699
    %v3729 = vxor.u32 %v3725, 2147483648
    %v3730 = vxor.u32 %v3726, 2147483648
    %v3731 = vxor.u32 %v3727, 2147483648
    %v3732 = vxor.u32 %v3728, 2147483648
    %v3733 = vmul.f32 %v3729, 1.442695
    %v3734 = vpow.pop %v3733
    %v3735 = vmul.f32 %v3730, 1.442695
    %v3736 = vpow.pop %v3735
    %v3737 = vmul.f32 %v3731, 1.442695
    %v3738 = vpow.pop %v3737
    %v3739 = vmul.f32 %v3732, 1.442695
    %v3740 = vpow.pop %v3739
    %v3741 = vadd.f32 %v3734, 1.0
    %v3742 = vadd.f32 %v3736, 1.0
    %v3743 = vadd.f32 %v3738, 1.0
    %v3744 = vadd.f32 %v3740, 1.0
    %v3745 = vrcp.pop %v3741
    %v3746 = vmul.f32 %v3741, %v3745
    %v3747 = vsub.f32 1.0, %v3746
    %v3748 = vmul.f32 %v3745, %v3747
    %v3749 = vadd.f32 %v3745, %v3748
    %vm3750 = vweird.f32 %v3741
    %vm3751 = vweird.f32 %v3745
    %vm3752 = vmor %vm3750, %vm3751
    %v3753 = vsel %vm3752, %v3745, %v3749
    %v3754 = vand.u32 2147483647, %v3741
    %vm3755 = vcmp.eq.f32.partialorder %v3754, 8.507059e+37
    %v3756 = vand.u32 %v3741, 2147483648
    %v3757 = vor.u32 1.1754944e-38, %v3756
    %v3758 = vsel %vm3755, %v3757, %v3753
    %v3759 = vmul.f32 1.0, %v3758
    %v3760 = vrcp.pop %v3742
    %v3761 = vmul.f32 %v3742, %v3760
    %v3762 = vsub.f32 1.0, %v3761
    %v3763 = vmul.f32 %v3760, %v3762
    %v3764 = vadd.f32 %v3760, %v3763
    %vm3765 = vweird.f32 %v3742
    %vm3766 = vweird.f32 %v3760
    %vm3767 = vmor %vm3765, %vm3766
    %v3768 = vsel %vm3767, %v3760, %v3764
    %v3769 = vand.u32 2147483647, %v3742
    %vm3770 = vcmp.eq.f32.partialorder %v3769, 8.507059e+37
    %v3771 = vand.u32 %v3742, 2147483648
    %v3772 = vor.u32 1.1754944e-38, %v3771
    %v3773 = vsel %vm3770, %v3772, %v3768
    %v3774 = vmul.f32 1.0, %v3773
    %v3775 = vrcp.pop %v3743
    %v3776 = vmul.f32 %v3743, %v3775
    %v3777 = vsub.f32 1.0, %v3776
    %v3778 = vmul.f32 %v3775, %v3777
    %v3779 = vadd.f32 %v3775, %v3778
    %vm3780 = vweird.f32 %v3743
    %vm3781 = vweird.f32 %v3775
    %vm3782 = vmor %vm3780, %vm3781
    %v3783 = vsel %vm3782, %v3775, %v3779
    %v3784 = vand.u32 2147483647, %v3743
    %vm3785 = vcmp.eq.f32.partialorder %v3784, 8.507059e+37
    %v3786 = vand.u32 %v3743, 2147483648
    %v3787 = vor.u32 1.1754944e-38, %v3786
    %v3788 = vsel %vm3785, %v3787, %v3783
    %v3789 = vmul.f32 1.0, %v3788
    %v3790 = vrcp.pop %v3744
    %v3791 = vmul.f32 %v3744, %v3790
    %v3792 = vsub.f32 1.0, %v3791
    %v3793 = vmul.f32 %v3790, %v3792
    %v3794 = vadd.f32 %v3790, %v3793
    %vm3795 = vweird.f32 %v3744
    %vm3796 = vweird.f32 %v3790
    %vm3797 = vmor %vm3795, %vm3796
    %v3798 = vsel %vm3797, %v3790, %v3794
    %v3799 = vand.u32 2147483647, %v3744
    %vm3800 = vcmp.eq.f32.partialorder %v3799, 8.507059e+37
    %v3801 = vand.u32 %v3744, 2147483648
    %v3802 = vor.u32 1.1754944e-38, %v3801
    %v3803 = vsel %vm3800, %v3802, %v3798
    %v3804 = vmul.f32 1.0, %v3803
    %v3805 = vld [vmem:[#allocation3 + $0x100] sm:$0xff]
    %v3806 = vld [vmem:[#allocation3 + $0x140] sm:$0xff]
    %v3807 = vld [vmem:[#allocation3 + $0x180] sm:$0xff]
    %v3808 = vld [vmem:[#allocation3 + $0x1c0] sm:$0xff]
    %v3809 = vadd.f32 %v3805, %v3702
    %v3810 = vadd.f32 %v3806, %v3704
    %v3811 = vadd.f32 %v3807, %v3707
    %v3812 = vadd.f32 %v3808, %v3709
    %v3813 = vxor.u32 %v3809, 2147483648
    %v3814 = vxor.u32 %v3810, 2147483648
    %v3815 = vxor.u32 %v3811, 2147483648
    %v3816 = vxor.u32 %v3812, 2147483648
    %v3817 = vmul.f32 %v3813, 1.442695
    %v3818 = vpow.pop %v3817
    %v3819 = vmul.f32 %v3814, 1.442695
    %v3820 = vpow.pop %v3819
    %v3821 = vmul.f32 %v3815, 1.442695
    %v3822 = vpow.pop %v3821
    %v3823 = vmul.f32 %v3816, 1.442695
    %v3824 = vpow.pop %v3823
    %v3825 = vadd.f32 %v3818, 1.0
    %v3826 = vadd.f32 %v3820, 1.0
    %v3827 = vadd.f32 %v3822, 1.0
    %v3828 = vadd.f32 %v3824, 1.0
    %v3829 = vrcp.pop %v3825
    %v3830 = vmul.f32 %v3825, %v3829
    %v3831 = vsub.f32 1.0, %v3830
    %v3832 = vmul.f32 %v3829, %v3831
    %v3833 = vadd.f32 %v3829, %v3832
    %vm3834 = vweird.f32 %v3825
    %vm3835 = vweird.f32 %v3829
    %vm3836 = vmor %vm3834, %vm3835
    %v3837 = vsel %vm3836, %v3829, %v3833
    %v3838 = vand.u32 2147483647, %v3825
    %vm3839 = vcmp.eq.f32.partialorder %v3838, 8.507059e+37
    %v3840 = vand.u32 %v3825, 2147483648
    %v3841 = vor.u32 1.1754944e-38, %v3840
    %v3842 = vsel %vm3839, %v3841, %v3837
    %v3843 = vmul.f32 1.0, %v3842
    %v3844 = vrcp.pop %v3826
    %v3845 = vmul.f32 %v3826, %v3844
    %v3846 = vsub.f32 1.0, %v3845
    %v3847 = vmul.f32 %v3844, %v3846
    %v3848 = vadd.f32 %v3844, %v3847
    %vm3849 = vweird.f32 %v3826
    %vm3850 = vweird.f32 %v3844
    %vm3851 = vmor %vm3849, %vm3850
    %v3852 = vsel %vm3851, %v3844, %v3848
    %v3853 = vand.u32 2147483647, %v3826
    %vm3854 = vcmp.eq.f32.partialorder %v3853, 8.507059e+37
    %v3855 = vand.u32 %v3826, 2147483648
    %v3856 = vor.u32 1.1754944e-38, %v3855
    %v3857 = vsel %vm3854, %v3856, %v3852
    %v3858 = vmul.f32 1.0, %v3857
    %v3859 = vrcp.pop %v3827
    %v3860 = vmul.f32 %v3827, %v3859
    %v3861 = vsub.f32 1.0, %v3860
    %v3862 = vmul.f32 %v3859, %v3861
    %v3863 = vadd.f32 %v3859, %v3862
    %vm3864 = vweird.f32 %v3827
    %vm3865 = vweird.f32 %v3859
    %vm3866 = vmor %vm3864, %vm3865
    %v3867 = vsel %vm3866, %v3859, %v3863
    %v3868 = vand.u32 2147483647, %v3827
    %vm3869 = vcmp.eq.f32.partialorder %v3868, 8.507059e+37
    %v3870 = vand.u32 %v3827, 2147483648
    %v3871 = vor.u32 1.1754944e-38, %v3870
    %v3872 = vsel %vm3869, %v3871, %v3867
    %v3873 = vmul.f32 1.0, %v3872
    %v3874 = vrcp.pop %v3828
    %v3875 = vmul.f32 %v3828, %v3874
    %v3876 = vsub.f32 1.0, %v3875
    %v3877 = vmul.f32 %v3874, %v3876
    %v3878 = vadd.f32 %v3874, %v3877
    %vm3879 = vweird.f32 %v3828
    %vm3880 = vweird.f32 %v3874
    %vm3881 = vmor %vm3879, %vm3880
    %v3882 = vsel %vm3881, %v3874, %v3878
    %v3883 = vand.u32 2147483647, %v3828
    %vm3884 = vcmp.eq.f32.partialorder %v3883, 8.507059e+37
    %v3885 = vand.u32 %v3828, 2147483648
    %v3886 = vor.u32 1.1754944e-38, %v3885
    %v3887 = vsel %vm3884, %v3886, %v3882
    %v3888 = vmul.f32 1.0, %v3887
    %v3889 = vld [vmem:[#allocation3 + $0x200] sm:$0xff]
    %v3890 = vld [vmem:[#allocation3 + $0x240] sm:$0xff]
    %v3891 = vld [vmem:[#allocation3 + $0x280] sm:$0xff]
    %v3892 = vld [vmem:[#allocation3 + $0x2c0] sm:$0xff]
    %3894 = vset.pattern.permute.xlu0 0
    %3895 = vperm.xlu0 %3894, %v3630
    %v3896 = vpop.permute.xlu0 %3895
    %3899 = vset.pattern.permute.xlu0 0
    %3900 = vperm.xlu0 %3899, %v3631
    %v3901 = vpop.permute.xlu0 %3900
    %3904 = vset.pattern.permute.xlu0 0
    %3905 = vperm.xlu0 %3904, %v3632
    %v3906 = vpop.permute.xlu0 %3905
    %3909 = vset.pattern.permute.xlu0 0
    %3910 = vperm.xlu0 %3909, %v3633
    %v3911 = vpop.permute.xlu0 %3910
    %v3913 = vadd.f32 %v3712, %v3896
    %v3914 = vadd.f32 %v3714, %v3901
    %v3915 = vadd.f32 %v3717, %v3906
    %v3916 = vadd.f32 %v3719, %v3911
    %v3917 = vmul.f32 %v3759, %v3913
    %v3918 = vmul.f32 %v3774, %v3914
    %v3919 = vmul.f32 %v3789, %v3915
    %v3920 = vmul.f32 %v3804, %v3916
    %v3921 = vadd.f32 %v3889, %v3917
    %v3922 = vadd.f32 %v3890, %v3918
    %v3923 = vadd.f32 %v3891, %v3919
    %v3924 = vadd.f32 %v3892, %v3920
    %v3925 = vtanh.pop %v3921
    %v3926 = vtanh.pop %v3922
    %v3927 = vtanh.pop %v3923
    %v3928 = vtanh.pop %v3924
    %v3929 = vsub.f32 1.0, %v3843
    %v3930 = vsub.f32 1.0, %v3858
    %v3931 = vsub.f32 1.0, %v3873
    %v3932 = vsub.f32 1.0, %v3888
    %v3933 = vmul.f32 %v3929, %v3925
    %v3934 = vmul.f32 %v3930, %v3926
    %v3935 = vmul.f32 %v3931, %v3927
    %v3936 = vmul.f32 %v3932, %v3928
    %v3937 = vmul.f32 %v3843, 0.0
    %v3938 = vmul.f32 %v3858, 0.0
    %v3939 = vmul.f32 %v3873, 0.0
    %v3940 = vmul.f32 %v3888, 0.0
    %v3941 = vadd.f32 %v3933, %v3937
    %v3942 = vadd.f32 %v3934, %v3938
    %v3943 = vadd.f32 %v3935, %v3939
    %v3944 = vadd.f32 %v3936, %v3940
    %3945 = vst [vmem:[#allocation2] sm:$0xff] %v3941
    %3946 = vst [vmem:[#allocation2 + $0x40] sm:$0xff] %v3942
    %3947 = vst [vmem:[#allocation2 + $0x80] sm:$0xff] %v3943
    %3948 = vst [vmem:[#allocation2 + $0xc0] sm:$0xff] %v3944
    %v3949 = vpack.c.bf16 %v3942, %v3941
    %v3950 = vpack.c.bf16 %v3944, %v3943
    %3951 = vmatpush.bf16.msra.mxu0 0
    %3952 = vmatpush.bf16.msra.mxu0 0
    %3953 = vmatpush.bf16.msra.mxu0 0
    %3954 = vmatpush.bf16.msra.mxu0 0
    %3955 = vmatpush.bf16.msra.mxu0 0
    %3956 = vmatpush.bf16.msra.mxu0 0
    %3957 = vmatpush.bf16.msra.mxu0 %v3950
    %3958 = vmatpush.bf16.msra.mxu0 %v3949
    %3959 = vmatmul.bf16.gmra.mxu0 %v3665
    %v3960 = vpop.f32.mrf.mxu0
    %v3961 = vadd.f32 0.0, %v3960
    %v3962 = vpop.f32.mrf.mxu0
    %v3963 = vadd.f32 0.0, %v3962
    %3964 = vmatmul.bf16.gmra.mxu0 %v3668
    %v3965 = vpop.f32.mrf.mxu0
    %v3966 = vadd.f32 0.0, %v3965
    %v3967 = vpop.f32.mrf.mxu0
    %v3968 = vadd.f32 0.0, %v3967
    %3969 = vmatmul.bf16.gmra.mxu0 %v3671
    %v3970 = vpop.f32.mrf.mxu0
    %v3971 = vadd.f32 0.0, %v3970
    %v3972 = vpop.f32.mrf.mxu0
    %v3973 = vadd.f32 0.0, %v3972
    %3974 = vmatmul.bf16.gmra.mxu0 %v3674
    %v3975 = vpop.f32.mrf.mxu0
    %v3976 = vadd.f32 0.0, %v3975
    %v3977 = vpop.f32.mrf.mxu0
    %v3978 = vadd.f32 0.0, %v3977
    %3979 = vmatmul.bf16.gmra.mxu0 %v3677
    %v3980 = vpop.f32.mrf.mxu0
    %v3981 = vadd.f32 0.0, %v3980
    %v3982 = vpop.f32.mrf.mxu0
    %v3983 = vadd.f32 0.0, %v3982
    %3984 = vmatmul.bf16.gmra.mxu0 %v3680
    %v3985 = vpop.f32.mrf.mxu0
    %v3986 = vadd.f32 0.0, %v3985
    %v3987 = vpop.f32.mrf.mxu0
    %v3988 = vadd.f32 0.0, %v3987
    %3989 = vdwg.mxu0
    %v3990 = vld [vmem:[#allocation3 + $0x8] sm:$0xff]
    %v3991 = vld [vmem:[#allocation3 + $0x48] sm:$0xff]
    %v3992 = vld [vmem:[#allocation3 + $0x88] sm:$0xff]
    %v3993 = vld [vmem:[#allocation3 + $0xc8] sm:$0xff]
    %v3994 = vadd.f32 %v3990, %v3961
    %v3995 = vadd.f32 %v3991, %v3963
    %v3996 = vadd.f32 %v3992, %v3966
    %v3997 = vadd.f32 %v3993, %v3968
    %v3998 = vxor.u32 %v3994, 2147483648
    %v3999 = vxor.u32 %v3995, 2147483648
    %v4000 = vxor.u32 %v3996, 2147483648
    %v4001 = vxor.u32 %v3997, 2147483648
    %v4002 = vmul.f32 %v3998, 1.442695
    %v4003 = vpow.pop %v4002
    %v4004 = vmul.f32 %v3999, 1.442695
    %v4005 = vpow.pop %v4004
    %v4006 = vmul.f32 %v4000, 1.442695
    %v4007 = vpow.pop %v4006
    %v4008 = vmul.f32 %v4001, 1.442695
    %v4009 = vpow.pop %v4008
    %v4010 = vadd.f32 %v4003, 1.0
    %v4011 = vadd.f32 %v4005, 1.0
    %v4012 = vadd.f32 %v4007, 1.0
    %v4013 = vadd.f32 %v4009, 1.0
    %v4014 = vrcp.pop %v4010
    %v4015 = vmul.f32 %v4010, %v4014
    %v4016 = vsub.f32 1.0, %v4015
    %v4017 = vmul.f32 %v4014, %v4016
    %v4018 = vadd.f32 %v4014, %v4017
    %vm4019 = vweird.f32 %v4010
    %vm4020 = vweird.f32 %v4014
    %vm4021 = vmor %vm4019, %vm4020
    %v4022 = vsel %vm4021, %v4014, %v4018
    %v4023 = vand.u32 2147483647, %v4010
    %vm4024 = vcmp.eq.f32.partialorder %v4023, 8.507059e+37
    %v4025 = vand.u32 %v4010, 2147483648
    %v4026 = vor.u32 1.1754944e-38, %v4025
    %v4027 = vsel %vm4024, %v4026, %v4022
    %v4028 = vmul.f32 1.0, %v4027
    %v4029 = vrcp.pop %v4011
    %v4030 = vmul.f32 %v4011, %v4029
    %v4031 = vsub.f32 1.0, %v4030
    %v4032 = vmul.f32 %v4029, %v4031
    %v4033 = vadd.f32 %v4029, %v4032
    %vm4034 = vweird.f32 %v4011
    %vm4035 = vweird.f32 %v4029
    %vm4036 = vmor %vm4034, %vm4035
    %v4037 = vsel %vm4036, %v4029, %v4033
    %v4038 = vand.u32 2147483647, %v4011
    %vm4039 = vcmp.eq.f32.partialorder %v4038, 8.507059e+37
    %v4040 = vand.u32 %v4011, 2147483648
    %v4041 = vor.u32 1.1754944e-38, %v4040
    %v4042 = vsel %vm4039, %v4041, %v4037
    %v4043 = vmul.f32 1.0, %v4042
    %v4044 = vrcp.pop %v4012
    %v4045 = vmul.f32 %v4012, %v4044
    %v4046 = vsub.f32 1.0, %v4045
    %v4047 = vmul.f32 %v4044, %v4046
    %v4048 = vadd.f32 %v4044, %v4047
    %vm4049 = vweird.f32 %v4012
    %vm4050 = vweird.f32 %v4044
    %vm4051 = vmor %vm4049, %vm4050
    %v4052 = vsel %vm4051, %v4044, %v4048
    %v4053 = vand.u32 2147483647, %v4012
    %vm4054 = vcmp.eq.f32.partialorder %v4053, 8.507059e+37
    %v4055 = vand.u32 %v4012, 2147483648
    %v4056 = vor.u32 1.1754944e-38, %v4055
    %v4057 = vsel %vm4054, %v4056, %v4052
    %v4058 = vmul.f32 1.0, %v4057
    %v4059 = vrcp.pop %v4013
    %v4060 = vmul.f32 %v4013, %v4059
    %v4061 = vsub.f32 1.0, %v4060
    %v4062 = vmul.f32 %v4059, %v4061
    %v4063 = vadd.f32 %v4059, %v4062
    %vm4064 = vweird.f32 %v4013
    %vm4065 = vweird.f32 %v4059
    %vm4066 = vmor %vm4064, %vm4065
    %v4067 = vsel %vm4066, %v4059, %v4063
    %v4068 = vand.u32 2147483647, %v4013
    %vm4069 = vcmp.eq.f32.partialorder %v4068, 8.507059e+37
    %v4070 = vand.u32 %v4013, 2147483648
    %v4071 = vor.u32 1.1754944e-38, %v4070
    %v4072 = vsel %vm4069, %v4071, %v4067
    %v4073 = vmul.f32 1.0, %v4072
    %v4074 = vld [vmem:[#allocation3 + $0x108] sm:$0xff]
    %v4075 = vld [vmem:[#allocation3 + $0x148] sm:$0xff]
    %v4076 = vld [vmem:[#allocation3 + $0x188] sm:$0xff]
    %v4077 = vld [vmem:[#allocation3 + $0x1c8] sm:$0xff]
    %v4078 = vadd.f32 %v4074, %v3971
    %v4079 = vadd.f32 %v4075, %v3973
    %v4080 = vadd.f32 %v4076, %v3976
    %v4081 = vadd.f32 %v4077, %v3978
    %v4082 = vxor.u32 %v4078, 2147483648
    %v4083 = vxor.u32 %v4079, 2147483648
    %v4084 = vxor.u32 %v4080, 2147483648
    %v4085 = vxor.u32 %v4081, 2147483648
    %v4086 = vmul.f32 %v4082, 1.442695
    %v4087 = vpow.pop %v4086
    %v4088 = vmul.f32 %v4083, 1.442695
    %v4089 = vpow.pop %v4088
    %v4090 = vmul.f32 %v4084, 1.442695
    %v4091 = vpow.pop %v4090
    %v4092 = vmul.f32 %v4085, 1.442695
    %v4093 = vpow.pop %v4092
    %v4094 = vadd.f32 %v4087, 1.0
    %v4095 = vadd.f32 %v4089, 1.0
    %v4096 = vadd.f32 %v4091, 1.0
    %v4097 = vadd.f32 %v4093, 1.0
    %v4098 = vrcp.pop %v4094
    %v4099 = vmul.f32 %v4094, %v4098
    %v4100 = vsub.f32 1.0, %v4099
    %v4101 = vmul.f32 %v4098, %v4100
    %v4102 = vadd.f32 %v4098, %v4101
    %vm4103 = vweird.f32 %v4094
    %vm4104 = vweird.f32 %v4098
    %vm4105 = vmor %vm4103, %vm4104
    %v4106 = vsel %vm4105, %v4098, %v4102
    %v4107 = vand.u32 2147483647, %v4094
    %vm4108 = vcmp.eq.f32.partialorder %v4107, 8.507059e+37
    %v4109 = vand.u32 %v4094, 2147483648
    %v4110 = vor.u32 1.1754944e-38, %v4109
    %v4111 = vsel %vm4108, %v4110, %v4106
    %v4112 = vmul.f32 1.0, %v4111
    %v4113 = vrcp.pop %v4095
    %v4114 = vmul.f32 %v4095, %v4113
    %v4115 = vsub.f32 1.0, %v4114
    %v4116 = vmul.f32 %v4113, %v4115
    %v4117 = vadd.f32 %v4113, %v4116
    %vm4118 = vweird.f32 %v4095
    %vm4119 = vweird.f32 %v4113
    %vm4120 = vmor %vm4118, %vm4119
    %v4121 = vsel %vm4120, %v4113, %v4117
    %v4122 = vand.u32 2147483647, %v4095
    %vm4123 = vcmp.eq.f32.partialorder %v4122, 8.507059e+37
    %v4124 = vand.u32 %v4095, 2147483648
    %v4125 = vor.u32 1.1754944e-38, %v4124
    %v4126 = vsel %vm4123, %v4125, %v4121
    %v4127 = vmul.f32 1.0, %v4126
    %v4128 = vrcp.pop %v4096
    %v4129 = vmul.f32 %v4096, %v4128
    %v4130 = vsub.f32 1.0, %v4129
    %v4131 = vmul.f32 %v4128, %v4130
    %v4132 = vadd.f32 %v4128, %v4131
    %vm4133 = vweird.f32 %v4096
    %vm4134 = vweird.f32 %v4128
    %vm4135 = vmor %vm4133, %vm4134
    %v4136 = vsel %vm4135, %v4128, %v4132
    %v4137 = vand.u32 2147483647, %v4096
    %vm4138 = vcmp.eq.f32.partialorder %v4137, 8.507059e+37
    %v4139 = vand.u32 %v4096, 2147483648
    %v4140 = vor.u32 1.1754944e-38, %v4139
    %v4141 = vsel %vm4138, %v4140, %v4136
    %v4142 = vmul.f32 1.0, %v4141
    %v4143 = vrcp.pop %v4097
    %v4144 = vmul.f32 %v4097, %v4143
    %v4145 = vsub.f32 1.0, %v4144
    %v4146 = vmul.f32 %v4143, %v4145
    %v4147 = vadd.f32 %v4143, %v4146
    %vm4148 = vweird.f32 %v4097
    %vm4149 = vweird.f32 %v4143
    %vm4150 = vmor %vm4148, %vm4149
    %v4151 = vsel %vm4150, %v4143, %v4147
    %v4152 = vand.u32 2147483647, %v4097
    %vm4153 = vcmp.eq.f32.partialorder %v4152, 8.507059e+37
    %v4154 = vand.u32 %v4097, 2147483648
    %v4155 = vor.u32 1.1754944e-38, %v4154
    %v4156 = vsel %vm4153, %v4155, %v4151
    %v4157 = vmul.f32 1.0, %v4156
    %v4158 = vld [vmem:[#allocation3 + $0x208] sm:$0xff]
    %v4159 = vld [vmem:[#allocation3 + $0x248] sm:$0xff]
    %v4160 = vld [vmem:[#allocation3 + $0x288] sm:$0xff]
    %v4161 = vld [vmem:[#allocation3 + $0x2c8] sm:$0xff]
    %v4162 = vadd.f32 %v3981, %v3896
    %v4163 = vadd.f32 %v3983, %v3901
    %v4164 = vadd.f32 %v3986, %v3906
    %v4165 = vadd.f32 %v3988, %v3911
    %v4166 = vmul.f32 %v4028, %v4162
    %v4167 = vmul.f32 %v4043, %v4163
    %v4168 = vmul.f32 %v4058, %v4164
    %v4169 = vmul.f32 %v4073, %v4165
    %v4170 = vadd.f32 %v4158, %v4166
    %v4171 = vadd.f32 %v4159, %v4167
    %v4172 = vadd.f32 %v4160, %v4168
    %v4173 = vadd.f32 %v4161, %v4169
    %v4174 = vtanh.pop %v4170
    %v4175 = vtanh.pop %v4171
    %v4176 = vtanh.pop %v4172
    %v4177 = vtanh.pop %v4173
    %v4178 = vsub.f32 1.0, %v4112
    %v4179 = vsub.f32 1.0, %v4127
    %v4180 = vsub.f32 1.0, %v4142
    %v4181 = vsub.f32 1.0, %v4157
    %v4182 = vmul.f32 %v4178, %v4174
    %v4183 = vmul.f32 %v4179, %v4175
    %v4184 = vmul.f32 %v4180, %v4176
    %v4185 = vmul.f32 %v4181, %v4177
    %v4186 = vmul.f32 %v4112, %v3941
    %v4187 = vmul.f32 %v4127, %v3942
    %v4188 = vmul.f32 %v4142, %v3943
    %v4189 = vmul.f32 %v4157, %v3944
    %v4190 = vadd.f32 %v4182, %v4186
    %v4191 = vadd.f32 %v4183, %v4187
    %v4192 = vadd.f32 %v4184, %v4188
    %v4193 = vadd.f32 %v4185, %v4189
    %4194 = vst [vmem:[#allocation2 + $0x8] sm:$0xff] %v4190
    %4195 = vst [vmem:[#allocation2 + $0x48] sm:$0xff] %v4191
    %4196 = vst [vmem:[#allocation2 + $0x88] sm:$0xff] %v4192
    %4197 = vst [vmem:[#allocation2 + $0xc8] sm:$0xff] %v4193
    %v4198 = vpack.c.bf16 %v4191, %v4190
    %v4199 = vpack.c.bf16 %v4193, %v4192
    %4200 = vmatpush.bf16.msra.mxu0 0
    %4201 = vmatpush.bf16.msra.mxu0 0
    %4202 = vmatpush.bf16.msra.mxu0 0
    %4203 = vmatpush.bf16.msra.mxu0 0
    %4204 = vmatpush.bf16.msra.mxu0 0
    %4205 = vmatpush.bf16.msra.mxu0 0
    %4206 = vmatpush.bf16.msra.mxu0 %v4199
    %4207 = vmatpush.bf16.msra.mxu0 %v4198
    %4208 = vmatmul.bf16.gmra.mxu0 %v3665
    %v4209 = vpop.f32.mrf.mxu0
    %v4210 = vadd.f32 0.0, %v4209
    %v4211 = vpop.f32.mrf.mxu0
    %v4212 = vadd.f32 0.0, %v4211
    %4213 = vmatmul.bf16.gmra.mxu0 %v3668
    %v4214 = vpop.f32.mrf.mxu0
    %v4215 = vadd.f32 0.0, %v4214
    %v4216 = vpop.f32.mrf.mxu0
    %v4217 = vadd.f32 0.0, %v4216
    %4218 = vmatmul.bf16.gmra.mxu0 %v3671
    %v4219 = vpop.f32.mrf.mxu0
    %v4220 = vadd.f32 0.0, %v4219
    %v4221 = vpop.f32.mrf.mxu0
    %v4222 = vadd.f32 0.0, %v4221
    %4223 = vmatmul.bf16.gmra.mxu0 %v3674
    %v4224 = vpop.f32.mrf.mxu0
    %v4225 = vadd.f32 0.0, %v4224
    %v4226 = vpop.f32.mrf.mxu0
    %v4227 = vadd.f32 0.0, %v4226
    %4228 = vmatmul.bf16.gmra.mxu0 %v3677
    %v4229 = vpop.f32.mrf.mxu0
    %v4230 = vadd.f32 0.0, %v4229
    %v4231 = vpop.f32.mrf.mxu0
    %v4232 = vadd.f32 0.0, %v4231
    %4233 = vmatmul.bf16.gmra.mxu0 %v3680
    %v4234 = vpop.f32.mrf.mxu0
    %v4235 = vadd.f32 0.0, %v4234
    %v4236 = vpop.f32.mrf.mxu0
    %v4237 = vadd.f32 0.0, %v4236
    %4238 = vdwg.mxu0
    %v4239 = vld [vmem:[#allocation3 + $0x10] sm:$0xff]
    %v4240 = vld [vmem:[#allocation3 + $0x50] sm:$0xff]
    %v4241 = vld [vmem:[#allocation3 + $0x90] sm:$0xff]
    %v4242 = vld [vmem:[#allocation3 + $0xd0] sm:$0xff]
    %v4243 = vadd.f32 %v4239, %v4210
    %v4244 = vadd.f32 %v4240, %v4212
    %v4245 = vadd.f32 %v4241, %v4215
    %v4246 = vadd.f32 %v4242, %v4217
    %v4247 = vxor.u32 %v4243, 2147483648
    %v4248 = vxor.u32 %v4244, 2147483648
    %v4249 = vxor.u32 %v4245, 2147483648
    %v4250 = vxor.u32 %v4246, 2147483648
    %v4251 = vmul.f32 %v4247, 1.442695
    %v4252 = vpow.pop %v4251
    %v4253 = vmul.f32 %v4248, 1.442695
    %v4254 = vpow.pop %v4253
    %v4255 = vmul.f32 %v4249, 1.442695
    %v4256 = vpow.pop %v4255
    %v4257 = vmul.f32 %v4250, 1.442695
    %v4258 = vpow.pop %v4257
    %v4259 = vadd.f32 %v4252, 1.0
    %v4260 = vadd.f32 %v4254, 1.0
    %v4261 = vadd.f32 %v4256, 1.0
    %v4262 = vadd.f32 %v4258, 1.0
    %v4263 = vrcp.pop %v4259
    %v4264 = vmul.f32 %v4259, %v4263
    %v4265 = vsub.f32 1.0, %v4264
    %v4266 = vmul.f32 %v4263, %v4265
    %v4267 = vadd.f32 %v4263, %v4266
    %vm4268 = vweird.f32 %v4259
    %vm4269 = vweird.f32 %v4263
    %vm4270 = vmor %vm4268, %vm4269
    %v4271 = vsel %vm4270, %v4263, %v4267
    %v4272 = vand.u32 2147483647, %v4259
    %vm4273 = vcmp.eq.f32.partialorder %v4272, 8.507059e+37
    %v4274 = vand.u32 %v4259, 2147483648
    %v4275 = vor.u32 1.1754944e-38, %v4274
    %v4276 = vsel %vm4273, %v4275, %v4271
    %v4277 = vmul.f32 1.0, %v4276
    %v4278 = vrcp.pop %v4260
    %v4279 = vmul.f32 %v4260, %v4278
    %v4280 = vsub.f32 1.0, %v4279
    %v4281 = vmul.f32 %v4278, %v4280
    %v4282 = vadd.f32 %v4278, %v4281
    %vm4283 = vweird.f32 %v4260
    %vm4284 = vweird.f32 %v4278
    %vm4285 = vmor %vm4283, %vm4284
    %v4286 = vsel %vm4285, %v4278, %v4282
    %v4287 = vand.u32 2147483647, %v4260
    %vm4288 = vcmp.eq.f32.partialorder %v4287, 8.507059e+37
    %v4289 = vand.u32 %v4260, 2147483648
    %v4290 = vor.u32 1.1754944e-38, %v4289
    %v4291 = vsel %vm4288, %v4290, %v4286
    %v4292 = vmul.f32 1.0, %v4291
    %v4293 = vrcp.pop %v4261
    %v4294 = vmul.f32 %v4261, %v4293
    %v4295 = vsub.f32 1.0, %v4294
    %v4296 = vmul.f32 %v4293, %v4295
    %v4297 = vadd.f32 %v4293, %v4296
    %vm4298 = vweird.f32 %v4261
    %vm4299 = vweird.f32 %v4293
    %vm4300 = vmor %vm4298, %vm4299
    %v4301 = vsel %vm4300, %v4293, %v4297
    %v4302 = vand.u32 2147483647, %v4261
    %vm4303 = vcmp.eq.f32.partialorder %v4302, 8.507059e+37
    %v4304 = vand.u32 %v4261, 2147483648
    %v4305 = vor.u32 1.1754944e-38, %v4304
    %v4306 = vsel %vm4303, %v4305, %v4301
    %v4307 = vmul.f32 1.0, %v4306
    %v4308 = vrcp.pop %v4262
    %v4309 = vmul.f32 %v4262, %v4308
    %v4310 = vsub.f32 1.0, %v4309
    %v4311 = vmul.f32 %v4308, %v4310
    %v4312 = vadd.f32 %v4308, %v4311
    %vm4313 = vweird.f32 %v4262
    %vm4314 = vweird.f32 %v4308
    %vm4315 = vmor %vm4313, %vm4314
    %v4316 = vsel %vm4315, %v4308, %v4312
    %v4317 = vand.u32 2147483647, %v4262
    %vm4318 = vcmp.eq.f32.partialorder %v4317, 8.507059e+37
    %v4319 = vand.u32 %v4262, 2147483648
    %v4320 = vor.u32 1.1754944e-38, %v4319
    %v4321 = vsel %vm4318, %v4320, %v4316
    %v4322 = vmul.f32 1.0, %v4321
    %v4323 = vld [vmem:[#allocation3 + $0x110] sm:$0xff]
    %v4324 = vld [vmem:[#allocation3 + $0x150] sm:$0xff]
    %v4325 = vld [vmem:[#allocation3 + $0x190] sm:$0xff]
    %v4326 = vld [vmem:[#allocation3 + $0x1d0] sm:$0xff]
    %v4327 = vadd.f32 %v4323, %v4220
    %v4328 = vadd.f32 %v4324, %v4222
    %v4329 = vadd.f32 %v4325, %v4225
    %v4330 = vadd.f32 %v4326, %v4227
    %v4331 = vxor.u32 %v4327, 2147483648
    %v4332 = vxor.u32 %v4328, 2147483648
    %v4333 = vxor.u32 %v4329, 2147483648
    %v4334 = vxor.u32 %v4330, 2147483648
    %v4335 = vmul.f32 %v4331, 1.442695
    %v4336 = vpow.pop %v4335
    %v4337 = vmul.f32 %v4332, 1.442695
    %v4338 = vpow.pop %v4337
    %v4339 = vmul.f32 %v4333, 1.442695
    %v4340 = vpow.pop %v4339
    %v4341 = vmul.f32 %v4334, 1.442695
    %v4342 = vpow.pop %v4341
    %v4343 = vadd.f32 %v4336, 1.0
    %v4344 = vadd.f32 %v4338, 1.0
    %v4345 = vadd.f32 %v4340, 1.0
    %v4346 = vadd.f32 %v4342, 1.0
    %v4347 = vrcp.pop %v4343
    %v4348 = vmul.f32 %v4343, %v4347
    %v4349 = vsub.f32 1.0, %v4348
    %v4350 = vmul.f32 %v4347, %v4349
    %v4351 = vadd.f32 %v4347, %v4350
    %vm4352 = vweird.f32 %v4343
    %vm4353 = vweird.f32 %v4347
    %vm4354 = vmor %vm4352, %vm4353
    %v4355 = vsel %vm4354, %v4347, %v4351
    %v4356 = vand.u32 2147483647, %v4343
    %vm4357 = vcmp.eq.f32.partialorder %v4356, 8.507059e+37
    %v4358 = vand.u32 %v4343, 2147483648
    %v4359 = vor.u32 1.1754944e-38, %v4358
    %v4360 = vsel %vm4357, %v4359, %v4355
    %v4361 = vmul.f32 1.0, %v4360
    %v4362 = vrcp.pop %v4344
    %v4363 = vmul.f32 %v4344, %v4362
    %v4364 = vsub.f32 1.0, %v4363
    %v4365 = vmul.f32 %v4362, %v4364
    %v4366 = vadd.f32 %v4362, %v4365
    %vm4367 = vweird.f32 %v4344
    %vm4368 = vweird.f32 %v4362
    %vm4369 = vmor %vm4367, %vm4368
    %v4370 = vsel %vm4369, %v4362, %v4366
    %v4371 = vand.u32 2147483647, %v4344
    %vm4372 = vcmp.eq.f32.partialorder %v4371, 8.507059e+37
    %v4373 = vand.u32 %v4344, 2147483648
    %v4374 = vor.u32 1.1754944e-38, %v4373
    %v4375 = vsel %vm4372, %v4374, %v4370
    %v4376 = vmul.f32 1.0, %v4375
    %v4377 = vrcp.pop %v4345
    %v4378 = vmul.f32 %v4345, %v4377
    %v4379 = vsub.f32 1.0, %v4378
    %v4380 = vmul.f32 %v4377, %v4379
    %v4381 = vadd.f32 %v4377, %v4380
    %vm4382 = vweird.f32 %v4345
    %vm4383 = vweird.f32 %v4377
    %vm4384 = vmor %vm4382, %vm4383
    %v4385 = vsel %vm4384, %v4377, %v4381
    %v4386 = vand.u32 2147483647, %v4345
    %vm4387 = vcmp.eq.f32.partialorder %v4386, 8.507059e+37
    %v4388 = vand.u32 %v4345, 2147483648
    %v4389 = vor.u32 1.1754944e-38, %v4388
    %v4390 = vsel %vm4387, %v4389, %v4385
    %v4391 = vmul.f32 1.0, %v4390
    %v4392 = vrcp.pop %v4346
    %v4393 = vmul.f32 %v4346, %v4392
    %v4394 = vsub.f32 1.0, %v4393
    %v4395 = vmul.f32 %v4392, %v4394
    %v4396 = vadd.f32 %v4392, %v4395
    %vm4397 = vweird.f32 %v4346
    %vm4398 = vweird.f32 %v4392
    %vm4399 = vmor %vm4397, %vm4398
    %v4400 = vsel %vm4399, %v4392, %v4396
    %v4401 = vand.u32 2147483647, %v4346
    %vm4402 = vcmp.eq.f32.partialorder %v4401, 8.507059e+37
    %v4403 = vand.u32 %v4346, 2147483648
    %v4404 = vor.u32 1.1754944e-38, %v4403
    %v4405 = vsel %vm4402, %v4404, %v4400
    %v4406 = vmul.f32 1.0, %v4405
    %v4407 = vld [vmem:[#allocation3 + $0x210] sm:$0xff]
    %v4408 = vld [vmem:[#allocation3 + $0x250] sm:$0xff]
    %v4409 = vld [vmem:[#allocation3 + $0x290] sm:$0xff]
    %v4410 = vld [vmem:[#allocation3 + $0x2d0] sm:$0xff]
    %v4411 = vadd.f32 %v4230, %v3896
    %v4412 = vadd.f32 %v4232, %v3901
    %v4413 = vadd.f32 %v4235, %v3906
    %v4414 = vadd.f32 %v4237, %v3911
    %v4415 = vmul.f32 %v4277, %v4411
    %v4416 = vmul.f32 %v4292, %v4412
    %v4417 = vmul.f32 %v4307, %v4413
    %v4418 = vmul.f32 %v4322, %v4414
    %v4419 = vadd.f32 %v4407, %v4415
    %v4420 = vadd.f32 %v4408, %v4416
    %v4421 = vadd.f32 %v4409, %v4417
    %v4422 = vadd.f32 %v4410, %v4418
    %v4423 = vtanh.pop %v4419
    %v4424 = vtanh.pop %v4420
    %v4425 = vtanh.pop %v4421
    %v4426 = vtanh.pop %v4422
    %v4427 = vsub.f32 1.0, %v4361
    %v4428 = vsub.f32 1.0, %v4376
    %v4429 = vsub.f32 1.0, %v4391
    %v4430 = vsub.f32 1.0, %v4406
    %v4431 = vmul.f32 %v4427, %v4423
    %v4432 = vmul.f32 %v4428, %v4424
    %v4433 = vmul.f32 %v4429, %v4425
    %v4434 = vmul.f32 %v4430, %v4426
    %v4435 = vmul.f32 %v4361, %v4190
    %v4436 = vmul.f32 %v4376, %v4191
    %v4437 = vmul.f32 %v4391, %v4192
    %v4438 = vmul.f32 %v4406, %v4193
    %v4439 = vadd.f32 %v4431, %v4435
    %v4440 = vadd.f32 %v4432, %v4436
    %v4441 = vadd.f32 %v4433, %v4437
    %v4442 = vadd.f32 %v4434, %v4438
    %4443 = vst [vmem:[#allocation2 + $0x10] sm:$0xff] %v4439
    %4444 = vst [vmem:[#allocation2 + $0x50] sm:$0xff] %v4440
    %4445 = vst [vmem:[#allocation2 + $0x90] sm:$0xff] %v4441
    %4446 = vst [vmem:[#allocation2 + $0xd0] sm:$0xff] %v4442
    %v4447 = vpack.c.bf16 %v4440, %v4439
    %v4448 = vpack.c.bf16 %v4442, %v4441
    %4449 = vmatpush.bf16.msra.mxu0 0
    %4450 = vmatpush.bf16.msra.mxu0 0
    %4451 = vmatpush.bf16.msra.mxu0 0
    %4452 = vmatpush.bf16.msra.mxu0 0
    %4453 = vmatpush.bf16.msra.mxu0 0
    %4454 = vmatpush.bf16.msra.mxu0 0
    %4455 = vmatpush.bf16.msra.mxu0 %v4448
    %4456 = vmatpush.bf16.msra.mxu0 %v4447
    %4457 = vmatmul.bf16.gmra.mxu0 %v3665
    %v4458 = vpop.f32.mrf.mxu0
    %v4459 = vadd.f32 0.0, %v4458
    %v4460 = vpop.f32.mrf.mxu0
    %v4461 = vadd.f32 0.0, %v4460
    %4462 = vmatmul.bf16.gmra.mxu0 %v3668
    %v4463 = vpop.f32.mrf.mxu0
    %v4464 = vadd.f32 0.0, %v4463
    %v4465 = vpop.f32.mrf.mxu0
    %v4466 = vadd.f32 0.0, %v4465
    %4467 = vmatmul.bf16.gmra.mxu0 %v3671
    %v4468 = vpop.f32.mrf.mxu0
    %v4469 = vadd.f32 0.0, %v4468
    %v4470 = vpop.f32.mrf.mxu0
    %v4471 = vadd.f32 0.0, %v4470
    %4472 = vmatmul.bf16.gmra.mxu0 %v3674
    %v4473 = vpop.f32.mrf.mxu0
    %v4474 = vadd.f32 0.0, %v4473
    %v4475 = vpop.f32.mrf.mxu0
    %v4476 = vadd.f32 0.0, %v4475
    %4477 = vmatmul.bf16.gmra.mxu0 %v3677
    %v4478 = vpop.f32.mrf.mxu0
    %v4479 = vadd.f32 0.0, %v4478
    %v4480 = vpop.f32.mrf.mxu0
    %v4481 = vadd.f32 0.0, %v4480
    %4482 = vmatmul.bf16.gmra.mxu0 %v3680
    %v4483 = vpop.f32.mrf.mxu0
    %v4484 = vadd.f32 0.0, %v4483
    %v4485 = vpop.f32.mrf.mxu0
    %v4486 = vadd.f32 0.0, %v4485
    %4487 = vdwg.mxu0
    %v4488 = vld [vmem:[#allocation3 + $0x18] sm:$0xff]
    %v4489 = vld [vmem:[#allocation3 + $0x58] sm:$0xff]
    %v4490 = vld [vmem:[#allocation3 + $0x98] sm:$0xff]
    %v4491 = vld [vmem:[#allocation3 + $0xd8] sm:$0xff]
    %v4492 = vadd.f32 %v4488, %v4459
    %v4493 = vadd.f32 %v4489, %v4461
    %v4494 = vadd.f32 %v4490, %v4464
    %v4495 = vadd.f32 %v4491, %v4466
    %v4496 = vxor.u32 %v4492, 2147483648
    %v4497 = vxor.u32 %v4493, 2147483648
    %v4498 = vxor.u32 %v4494, 2147483648
    %v4499 = vxor.u32 %v4495, 2147483648
    %v4500 = vmul.f32 %v4496, 1.442695
    %v4501 = vpow.pop %v4500
    %v4502 = vmul.f32 %v4497, 1.442695
    %v4503 = vpow.pop %v4502
    %v4504 = vmul.f32 %v4498, 1.442695
    %v4505 = vpow.pop %v4504
    %v4506 = vmul.f32 %v4499, 1.442695
    %v4507 = vpow.pop %v4506
    %v4508 = vadd.f32 %v4501, 1.0
    %v4509 = vadd.f32 %v4503, 1.0
    %v4510 = vadd.f32 %v4505, 1.0
    %v4511 = vadd.f32 %v4507, 1.0
    %v4512 = vrcp.pop %v4508
    %v4513 = vmul.f32 %v4508, %v4512
    %v4514 = vsub.f32 1.0, %v4513
    %v4515 = vmul.f32 %v4512, %v4514
    %v4516 = vadd.f32 %v4512, %v4515
    %vm4517 = vweird.f32 %v4508
    %vm4518 = vweird.f32 %v4512
    %vm4519 = vmor %vm4517, %vm4518
    %v4520 = vsel %vm4519, %v4512, %v4516
    %v4521 = vand.u32 2147483647, %v4508
    %vm4522 = vcmp.eq.f32.partialorder %v4521, 8.507059e+37
    %v4523 = vand.u32 %v4508, 2147483648
    %v4524 = vor.u32 1.1754944e-38, %v4523
    %v4525 = vsel %vm4522, %v4524, %v4520
    %v4526 = vmul.f32 1.0, %v4525
    %v4527 = vrcp.pop %v4509
    %v4528 = vmul.f32 %v4509, %v4527
    %v4529 = vsub.f32 1.0, %v4528
    %v4530 = vmul.f32 %v4527, %v4529
    %v4531 = vadd.f32 %v4527, %v4530
    %vm4532 = vweird.f32 %v4509
    %vm4533 = vweird.f32 %v4527
    %vm4534 = vmor %vm4532, %vm4533
    %v4535 = vsel %vm4534, %v4527, %v4531
    %v4536 = vand.u32 2147483647, %v4509
    %vm4537 = vcmp.eq.f32.partialorder %v4536, 8.507059e+37
    %v4538 = vand.u32 %v4509, 2147483648
    %v4539 = vor.u32 1.1754944e-38, %v4538
    %v4540 = vsel %vm4537, %v4539, %v4535
    %v4541 = vmul.f32 1.0, %v4540
    %v4542 = vrcp.pop %v4510
    %v4543 = vmul.f32 %v4510, %v4542
    %v4544 = vsub.f32 1.0, %v4543
    %v4545 = vmul.f32 %v4542, %v4544
    %v4546 = vadd.f32 %v4542, %v4545
    %vm4547 = vweird.f32 %v4510
    %vm4548 = vweird.f32 %v4542
    %vm4549 = vmor %vm4547, %vm4548
    %v4550 = vsel %vm4549, %v4542, %v4546
    %v4551 = vand.u32 2147483647, %v4510
    %vm4552 = vcmp.eq.f32.partialorder %v4551, 8.507059e+37
    %v4553 = vand.u32 %v4510, 2147483648
    %v4554 = vor.u32 1.1754944e-38, %v4553
    %v4555 = vsel %vm4552, %v4554, %v4550
    %v4556 = vmul.f32 1.0, %v4555
    %v4557 = vrcp.pop %v4511
    %v4558 = vmul.f32 %v4511, %v4557
    %v4559 = vsub.f32 1.0, %v4558
    %v4560 = vmul.f32 %v4557, %v4559
    %v4561 = vadd.f32 %v4557, %v4560
    %vm4562 = vweird.f32 %v4511
    %vm4563 = vweird.f32 %v4557
    %vm4564 = vmor %vm4562, %vm4563
    %v4565 = vsel %vm4564, %v4557, %v4561
    %v4566 = vand.u32 2147483647, %v4511
    %vm4567 = vcmp.eq.f32.partialorder %v4566, 8.507059e+37
    %v4568 = vand.u32 %v4511, 2147483648
    %v4569 = vor.u32 1.1754944e-38, %v4568
    %v4570 = vsel %vm4567, %v4569, %v4565
    %v4571 = vmul.f32 1.0, %v4570
    %v4572 = vld [vmem:[#allocation3 + $0x118] sm:$0xff]
    %v4573 = vld [vmem:[#allocation3 + $0x158] sm:$0xff]
    %v4574 = vld [vmem:[#allocation3 + $0x198] sm:$0xff]
    %v4575 = vld [vmem:[#allocation3 + $0x1d8] sm:$0xff]
    %v4576 = vadd.f32 %v4572, %v4469
    %v4577 = vadd.f32 %v4573, %v4471
    %v4578 = vadd.f32 %v4574, %v4474
    %v4579 = vadd.f32 %v4575, %v4476
    %v4580 = vxor.u32 %v4576, 2147483648
    %v4581 = vxor.u32 %v4577, 2147483648
    %v4582 = vxor.u32 %v4578, 2147483648
    %v4583 = vxor.u32 %v4579, 2147483648
    %v4584 = vmul.f32 %v4580, 1.442695
    %v4585 = vpow.pop %v4584
    %v4586 = vmul.f32 %v4581, 1.442695
    %v4587 = vpow.pop %v4586
    %v4588 = vmul.f32 %v4582, 1.442695
    %v4589 = vpow.pop %v4588
    %v4590 = vmul.f32 %v4583, 1.442695
    %v4591 = vpow.pop %v4590
    %v4592 = vadd.f32 %v4585, 1.0
    %v4593 = vadd.f32 %v4587, 1.0
    %v4594 = vadd.f32 %v4589, 1.0
    %v4595 = vadd.f32 %v4591, 1.0
    %v4596 = vrcp.pop %v4592
    %v4597 = vmul.f32 %v4592, %v4596
    %v4598 = vsub.f32 1.0, %v4597
    %v4599 = vmul.f32 %v4596, %v4598
    %v4600 = vadd.f32 %v4596, %v4599
    %vm4601 = vweird.f32 %v4592
    %vm4602 = vweird.f32 %v4596
    %vm4603 = vmor %vm4601, %vm4602
    %v4604 = vsel %vm4603, %v4596, %v4600
    %v4605 = vand.u32 2147483647, %v4592
    %vm4606 = vcmp.eq.f32.partialorder %v4605, 8.507059e+37
    %v4607 = vand.u32 %v4592, 2147483648
    %v4608 = vor.u32 1.1754944e-38, %v4607
    %v4609 = vsel %vm4606, %v4608, %v4604
    %v4610 = vmul.f32 1.0, %v4609
    %v4611 = vrcp.pop %v4593
    %v4612 = vmul.f32 %v4593, %v4611
    %v4613 = vsub.f32 1.0, %v4612
    %v4614 = vmul.f32 %v4611, %v4613
    %v4615 = vadd.f32 %v4611, %v4614
    %vm4616 = vweird.f32 %v4593
    %vm4617 = vweird.f32 %v4611
    %vm4618 = vmor %vm4616, %vm4617
    %v4619 = vsel %vm4618, %v4611, %v4615
    %v4620 = vand.u32 2147483647, %v4593
    %vm4621 = vcmp.eq.f32.partialorder %v4620, 8.507059e+37
    %v4622 = vand.u32 %v4593, 2147483648
    %v4623 = vor.u32 1.1754944e-38, %v4622
    %v4624 = vsel %vm4621, %v4623, %v4619
    %v4625 = vmul.f32 1.0, %v4624
    %v4626 = vrcp.pop %v4594
    %v4627 = vmul.f32 %v4594, %v4626
    %v4628 = vsub.f32 1.0, %v4627
    %v4629 = vmul.f32 %v4626, %v4628
    %v4630 = vadd.f32 %v4626, %v4629
    %vm4631 = vweird.f32 %v4594
    %vm4632 = vweird.f32 %v4626
    %vm4633 = vmor %vm4631, %vm4632
    %v4634 = vsel %vm4633, %v4626, %v4630
    %v4635 = vand.u32 2147483647, %v4594
    %vm4636 = vcmp.eq.f32.partialorder %v4635, 8.507059e+37
    %v4637 = vand.u32 %v4594, 2147483648
    %v4638 = vor.u32 1.1754944e-38, %v4637
    %v4639 = vsel %vm4636, %v4638, %v4634
    %v4640 = vmul.f32 1.0, %v4639
    %v4641 = vrcp.pop %v4595
    %v4642 = vmul.f32 %v4595, %v4641
    %v4643 = vsub.f32 1.0, %v4642
    %v4644 = vmul.f32 %v4641, %v4643
    %v4645 = vadd.f32 %v4641, %v4644
    %vm4646 = vweird.f32 %v4595
    %vm4647 = vweird.f32 %v4641
    %vm4648 = vmor %vm4646, %vm4647
    %v4649 = vsel %vm4648, %v4641, %v4645
    %v4650 = vand.u32 2147483647, %v4595
    %vm4651 = vcmp.eq.f32.partialorder %v4650, 8.507059e+37
    %v4652 = vand.u32 %v4595, 2147483648
    %v4653 = vor.u32 1.1754944e-38, %v4652
    %v4654 = vsel %vm4651, %v4653, %v4649
    %v4655 = vmul.f32 1.0, %v4654
    %v4656 = vld [vmem:[#allocation3 + $0x218] sm:$0xff]
    %v4657 = vld [vmem:[#allocation3 + $0x258] sm:$0xff]
    %v4658 = vld [vmem:[#allocation3 + $0x298] sm:$0xff]
    %v4659 = vld [vmem:[#allocation3 + $0x2d8] sm:$0xff]
    %v4660 = vadd.f32 %v4479, %v3896
    %v4661 = vadd.f32 %v4481, %v3901
    %v4662 = vadd.f32 %v4484, %v3906
    %v4663 = vadd.f32 %v4486, %v3911
    %v4664 = vmul.f32 %v4526, %v4660
    %v4665 = vmul.f32 %v4541, %v4661
    %v4666 = vmul.f32 %v4556, %v4662
    %v4667 = vmul.f32 %v4571, %v4663
    %v4668 = vadd.f32 %v4656, %v4664
    %v4669 = vadd.f32 %v4657, %v4665
    %v4670 = vadd.f32 %v4658, %v4666
    %v4671 = vadd.f32 %v4659, %v4667
    %v4672 = vtanh.pop %v4668
    %v4673 = vtanh.pop %v4669
    %v4674 = vtanh.pop %v4670
    %v4675 = vtanh.pop %v4671
    %v4676 = vsub.f32 1.0, %v4610
    %v4677 = vsub.f32 1.0, %v4625
    %v4678 = vsub.f32 1.0, %v4640
    %v4679 = vsub.f32 1.0, %v4655
    %v4680 = vmul.f32 %v4676, %v4672
    %v4681 = vmul.f32 %v4677, %v4673
    %v4682 = vmul.f32 %v4678, %v4674
    %v4683 = vmul.f32 %v4679, %v4675
    %v4684 = vmul.f32 %v4610, %v4439
    %v4685 = vmul.f32 %v4625, %v4440
    %v4686 = vmul.f32 %v4640, %v4441
    %v4687 = vmul.f32 %v4655, %v4442
    %v4688 = vadd.f32 %v4680, %v4684
    %v4689 = vadd.f32 %v4681, %v4685
    %v4690 = vadd.f32 %v4682, %v4686
    %v4691 = vadd.f32 %v4683, %v4687
    %4692 = vst [vmem:[#allocation2 + $0x18] sm:$0xff] %v4688
    %4693 = vst [vmem:[#allocation2 + $0x58] sm:$0xff] %v4689
    %4694 = vst [vmem:[#allocation2 + $0x98] sm:$0xff] %v4690
    %4695 = vst [vmem:[#allocation2 + $0xd8] sm:$0xff] %v4691
    %v4696 = vpack.c.bf16 %v4689, %v4688
    %v4697 = vpack.c.bf16 %v4691, %v4690
    %4698 = vmatpush.bf16.msra.mxu0 0
    %4699 = vmatpush.bf16.msra.mxu0 0
    %4700 = vmatpush.bf16.msra.mxu0 0
    %4701 = vmatpush.bf16.msra.mxu0 0
    %4702 = vmatpush.bf16.msra.mxu0 0
    %4703 = vmatpush.bf16.msra.mxu0 0
    %4704 = vmatpush.bf16.msra.mxu0 %v4697
    %4705 = vmatpush.bf16.msra.mxu0 %v4696
    %4706 = vmatmul.bf16.gmra.mxu0 %v3665
    %v4707 = vpop.f32.mrf.mxu0
    %v4708 = vadd.f32 0.0, %v4707
    %v4709 = vpop.f32.mrf.mxu0
    %v4710 = vadd.f32 0.0, %v4709
    %4711 = vmatmul.bf16.gmra.mxu0 %v3668
    %v4712 = vpop.f32.mrf.mxu0
    %v4713 = vadd.f32 0.0, %v4712
    %v4714 = vpop.f32.mrf.mxu0
    %v4715 = vadd.f32 0.0, %v4714
    %4716 = vmatmul.bf16.gmra.mxu0 %v3671
    %v4717 = vpop.f32.mrf.mxu0
    %v4718 = vadd.f32 0.0, %v4717
    %v4719 = vpop.f32.mrf.mxu0
    %v4720 = vadd.f32 0.0, %v4719
    %4721 = vmatmul.bf16.gmra.mxu0 %v3674
    %v4722 = vpop.f32.mrf.mxu0
    %v4723 = vadd.f32 0.0, %v4722
    %v4724 = vpop.f32.mrf.mxu0
    %v4725 = vadd.f32 0.0, %v4724
    %4726 = vmatmul.bf16.gmra.mxu0 %v3677
    %v4727 = vpop.f32.mrf.mxu0
    %v4728 = vadd.f32 0.0, %v4727
    %v4729 = vpop.f32.mrf.mxu0
    %v4730 = vadd.f32 0.0, %v4729
    %4731 = vmatmul.bf16.gmra.mxu0 %v3680
    %v4732 = vpop.f32.mrf.mxu0
    %v4733 = vadd.f32 0.0, %v4732
    %v4734 = vpop.f32.mrf.mxu0
    %v4735 = vadd.f32 0.0, %v4734
    %4736 = vdwg.mxu0
    %v4737 = vld [vmem:[#allocation3 + $0x20] sm:$0xff]
    %v4738 = vld [vmem:[#allocation3 + $0x60] sm:$0xff]
    %v4739 = vld [vmem:[#allocation3 + $0xa0] sm:$0xff]
    %v4740 = vld [vmem:[#allocation3 + $0xe0] sm:$0xff]
    %v4741 = vadd.f32 %v4737, %v4708
    %v4742 = vadd.f32 %v4738, %v4710
    %v4743 = vadd.f32 %v4739, %v4713
    %v4744 = vadd.f32 %v4740, %v4715
    %v4745 = vxor.u32 %v4741, 2147483648
    %v4746 = vxor.u32 %v4742, 2147483648
    %v4747 = vxor.u32 %v4743, 2147483648
    %v4748 = vxor.u32 %v4744, 2147483648
    %v4749 = vmul.f32 %v4745, 1.442695
    %v4750 = vpow.pop %v4749
    %v4751 = vmul.f32 %v4746, 1.442695
    %v4752 = vpow.pop %v4751
    %v4753 = vmul.f32 %v4747, 1.442695
    %v4754 = vpow.pop %v4753
    %v4755 = vmul.f32 %v4748, 1.442695
    %v4756 = vpow.pop %v4755
    %v4757 = vadd.f32 %v4750, 1.0
    %v4758 = vadd.f32 %v4752, 1.0
    %v4759 = vadd.f32 %v4754, 1.0
    %v4760 = vadd.f32 %v4756, 1.0
    %v4761 = vrcp.pop %v4757
    %v4762 = vmul.f32 %v4757, %v4761
    %v4763 = vsub.f32 1.0, %v4762
    %v4764 = vmul.f32 %v4761, %v4763
    %v4765 = vadd.f32 %v4761, %v4764
    %vm4766 = vweird.f32 %v4757
    %vm4767 = vweird.f32 %v4761
    %vm4768 = vmor %vm4766, %vm4767
    %v4769 = vsel %vm4768, %v4761, %v4765
    %v4770 = vand.u32 2147483647, %v4757
    %vm4771 = vcmp.eq.f32.partialorder %v4770, 8.507059e+37
    %v4772 = vand.u32 %v4757, 2147483648
    %v4773 = vor.u32 1.1754944e-38, %v4772
    %v4774 = vsel %vm4771, %v4773, %v4769
    %v4775 = vmul.f32 1.0, %v4774
    %v4776 = vrcp.pop %v4758
    %v4777 = vmul.f32 %v4758, %v4776
    %v4778 = vsub.f32 1.0, %v4777
    %v4779 = vmul.f32 %v4776, %v4778
    %v4780 = vadd.f32 %v4776, %v4779
    %vm4781 = vweird.f32 %v4758
    %vm4782 = vweird.f32 %v4776
    %vm4783 = vmor %vm4781, %vm4782
    %v4784 = vsel %vm4783, %v4776, %v4780
    %v4785 = vand.u32 2147483647, %v4758
    %vm4786 = vcmp.eq.f32.partialorder %v4785, 8.507059e+37
    %v4787 = vand.u32 %v4758, 2147483648
    %v4788 = vor.u32 1.1754944e-38, %v4787
    %v4789 = vsel %vm4786, %v4788, %v4784
    %v4790 = vmul.f32 1.0, %v4789
    %v4791 = vrcp.pop %v4759
    %v4792 = vmul.f32 %v4759, %v4791
    %v4793 = vsub.f32 1.0, %v4792
    %v4794 = vmul.f32 %v4791, %v4793
    %v4795 = vadd.f32 %v4791, %v4794
    %vm4796 = vweird.f32 %v4759
    %vm4797 = vweird.f32 %v4791
    %vm4798 = vmor %vm4796, %vm4797
    %v4799 = vsel %vm4798, %v4791, %v4795
    %v4800 = vand.u32 2147483647, %v4759
    %vm4801 = vcmp.eq.f32.partialorder %v4800, 8.507059e+37
    %v4802 = vand.u32 %v4759, 2147483648
    %v4803 = vor.u32 1.1754944e-38, %v4802
    %v4804 = vsel %vm4801, %v4803, %v4799
    %v4805 = vmul.f32 1.0, %v4804
    %v4806 = vrcp.pop %v4760
    %v4807 = vmul.f32 %v4760, %v4806
    %v4808 = vsub.f32 1.0, %v4807
    %v4809 = vmul.f32 %v4806, %v4808
    %v4810 = vadd.f32 %v4806, %v4809
    %vm4811 = vweird.f32 %v4760
    %vm4812 = vweird.f32 %v4806
    %vm4813 = vmor %vm4811, %vm4812
    %v4814 = vsel %vm4813, %v4806, %v4810
    %v4815 = vand.u32 2147483647, %v4760
    %vm4816 = vcmp.eq.f32.partialorder %v4815, 8.507059e+37
    %v4817 = vand.u32 %v4760, 2147483648
    %v4818 = vor.u32 1.1754944e-38, %v4817
    %v4819 = vsel %vm4816, %v4818, %v4814
    %v4820 = vmul.f32 1.0, %v4819
    %v4821 = vld [vmem:[#allocation3 + $0x120] sm:$0xff]
    %v4822 = vld [vmem:[#allocation3 + $0x160] sm:$0xff]
    %v4823 = vld [vmem:[#allocation3 + $0x1a0] sm:$0xff]
    %v4824 = vld [vmem:[#allocation3 + $0x1e0] sm:$0xff]
    %v4825 = vadd.f32 %v4821, %v4718
    %v4826 = vadd.f32 %v4822, %v4720
    %v4827 = vadd.f32 %v4823, %v4723
    %v4828 = vadd.f32 %v4824, %v4725
    %v4829 = vxor.u32 %v4825, 2147483648
    %v4830 = vxor.u32 %v4826, 2147483648
    %v4831 = vxor.u32 %v4827, 2147483648
    %v4832 = vxor.u32 %v4828, 2147483648
    %v4833 = vmul.f32 %v4829, 1.442695
    %v4834 = vpow.pop %v4833
    %v4835 = vmul.f32 %v4830, 1.442695
    %v4836 = vpow.pop %v4835
    %v4837 = vmul.f32 %v4831, 1.442695
    %v4838 = vpow.pop %v4837
    %v4839 = vmul.f32 %v4832, 1.442695
    %v4840 = vpow.pop %v4839
    %v4841 = vadd.f32 %v4834, 1.0
    %v4842 = vadd.f32 %v4836, 1.0
    %v4843 = vadd.f32 %v4838, 1.0
    %v4844 = vadd.f32 %v4840, 1.0
    %v4845 = vrcp.pop %v4841
    %v4846 = vmul.f32 %v4841, %v4845
    %v4847 = vsub.f32 1.0, %v4846
    %v4848 = vmul.f32 %v4845, %v4847
    %v4849 = vadd.f32 %v4845, %v4848
    %vm4850 = vweird.f32 %v4841
    %vm4851 = vweird.f32 %v4845
    %vm4852 = vmor %vm4850, %vm4851
    %v4853 = vsel %vm4852, %v4845, %v4849
    %v4854 = vand.u32 2147483647, %v4841
    %vm4855 = vcmp.eq.f32.partialorder %v4854, 8.507059e+37
    %v4856 = vand.u32 %v4841, 2147483648
    %v4857 = vor.u32 1.1754944e-38, %v4856
    %v4858 = vsel %vm4855, %v4857, %v4853
    %v4859 = vmul.f32 1.0, %v4858
    %v4860 = vrcp.pop %v4842
    %v4861 = vmul.f32 %v4842, %v4860
    %v4862 = vsub.f32 1.0, %v4861
    %v4863 = vmul.f32 %v4860, %v4862
    %v4864 = vadd.f32 %v4860, %v4863
    %vm4865 = vweird.f32 %v4842
    %vm4866 = vweird.f32 %v4860
    %vm4867 = vmor %vm4865, %vm4866
    %v4868 = vsel %vm4867, %v4860, %v4864
    %v4869 = vand.u32 2147483647, %v4842
    %vm4870 = vcmp.eq.f32.partialorder %v4869, 8.507059e+37
    %v4871 = vand.u32 %v4842, 2147483648
    %v4872 = vor.u32 1.1754944e-38, %v4871
    %v4873 = vsel %vm4870, %v4872, %v4868
    %v4874 = vmul.f32 1.0, %v4873
    %v4875 = vrcp.pop %v4843
    %v4876 = vmul.f32 %v4843, %v4875
    %v4877 = vsub.f32 1.0, %v4876
    %v4878 = vmul.f32 %v4875, %v4877
    %v4879 = vadd.f32 %v4875, %v4878
    %vm4880 = vweird.f32 %v4843
    %vm4881 = vweird.f32 %v4875
    %vm4882 = vmor %vm4880, %vm4881
    %v4883 = vsel %vm4882, %v4875, %v4879
    %v4884 = vand.u32 2147483647, %v4843
    %vm4885 = vcmp.eq.f32.partialorder %v4884, 8.507059e+37
    %v4886 = vand.u32 %v4843, 2147483648
    %v4887 = vor.u32 1.1754944e-38, %v4886
    %v4888 = vsel %vm4885, %v4887, %v4883
    %v4889 = vmul.f32 1.0, %v4888
    %v4890 = vrcp.pop %v4844
    %v4891 = vmul.f32 %v4844, %v4890
    %v4892 = vsub.f32 1.0, %v4891
    %v4893 = vmul.f32 %v4890, %v4892
    %v4894 = vadd.f32 %v4890, %v4893
    %vm4895 = vweird.f32 %v4844
    %vm4896 = vweird.f32 %v4890
    %vm4897 = vmor %vm4895, %vm4896
    %v4898 = vsel %vm4897, %v4890, %v4894
    %v4899 = vand.u32 2147483647, %v4844
    %vm4900 = vcmp.eq.f32.partialorder %v4899, 8.507059e+37
    %v4901 = vand.u32 %v4844, 2147483648
    %v4902 = vor.u32 1.1754944e-38, %v4901
    %v4903 = vsel %vm4900, %v4902, %v4898
    %v4904 = vmul.f32 1.0, %v4903
    %v4905 = vld [vmem:[#allocation3 + $0x220] sm:$0xff]
    %v4906 = vld [vmem:[#allocation3 + $0x260] sm:$0xff]
    %v4907 = vld [vmem:[#allocation3 + $0x2a0] sm:$0xff]
    %v4908 = vld [vmem:[#allocation3 + $0x2e0] sm:$0xff]
    %v4909 = vadd.f32 %v4728, %v3896
    %v4910 = vadd.f32 %v4730, %v3901
    %v4911 = vadd.f32 %v4733, %v3906
    %v4912 = vadd.f32 %v4735, %v3911
    %v4913 = vmul.f32 %v4775, %v4909
    %v4914 = vmul.f32 %v4790, %v4910
    %v4915 = vmul.f32 %v4805, %v4911
    %v4916 = vmul.f32 %v4820, %v4912
    %v4917 = vadd.f32 %v4905, %v4913
    %v4918 = vadd.f32 %v4906, %v4914
    %v4919 = vadd.f32 %v4907, %v4915
    %v4920 = vadd.f32 %v4908, %v4916
    %v4921 = vtanh.pop %v4917
    %v4922 = vtanh.pop %v4918
    %v4923 = vtanh.pop %v4919
    %v4924 = vtanh.pop %v4920
    %v4925 = vsub.f32 1.0, %v4859
    %v4926 = vsub.f32 1.0, %v4874
    %v4927 = vsub.f32 1.0, %v4889
    %v4928 = vsub.f32 1.0, %v4904
    %v4929 = vmul.f32 %v4925, %v4921
    %v4930 = vmul.f32 %v4926, %v4922
    %v4931 = vmul.f32 %v4927, %v4923
    %v4932 = vmul.f32 %v4928, %v4924
    %v4933 = vmul.f32 %v4859, %v4688
    %v4934 = vmul.f32 %v4874, %v4689
    %v4935 = vmul.f32 %v4889, %v4690
    %v4936 = vmul.f32 %v4904, %v4691
    %v4937 = vadd.f32 %v4929, %v4933
    %v4938 = vadd.f32 %v4930, %v4934
    %v4939 = vadd.f32 %v4931, %v4935
    %v4940 = vadd.f32 %v4932, %v4936
    %4941 = vst [vmem:[#allocation2 + $0x20] sm:$0xff] %v4937
    %4942 = vst [vmem:[#allocation2 + $0x60] sm:$0xff] %v4938
    %4943 = vst [vmem:[#allocation2 + $0xa0] sm:$0xff] %v4939
    %4944 = vst [vmem:[#allocation2 + $0xe0] sm:$0xff] %v4940
    %v4945 = vpack.c.bf16 %v4938, %v4937
    %v4946 = vpack.c.bf16 %v4940, %v4939
    %4947 = vmatpush.bf16.msra.mxu0 0
    %4948 = vmatpush.bf16.msra.mxu0 0
    %4949 = vmatpush.bf16.msra.mxu0 0
    %4950 = vmatpush.bf16.msra.mxu0 0
    %4951 = vmatpush.bf16.msra.mxu0 0
    %4952 = vmatpush.bf16.msra.mxu0 0
    %4953 = vmatpush.bf16.msra.mxu0 %v4946
    %4954 = vmatpush.bf16.msra.mxu0 %v4945
    %4955 = vmatmul.bf16.gmra.mxu0 %v3665
    %v4956 = vpop.f32.mrf.mxu0
    %v4957 = vadd.f32 0.0, %v4956
    %v4958 = vpop.f32.mrf.mxu0
    %v4959 = vadd.f32 0.0, %v4958
    %4960 = vmatmul.bf16.gmra.mxu0 %v3668
    %v4961 = vpop.f32.mrf.mxu0
    %v4962 = vadd.f32 0.0, %v4961
    %v4963 = vpop.f32.mrf.mxu0
    %v4964 = vadd.f32 0.0, %v4963
    %4965 = vmatmul.bf16.gmra.mxu0 %v3671
    %v4966 = vpop.f32.mrf.mxu0
    %v4967 = vadd.f32 0.0, %v4966
    %v4968 = vpop.f32.mrf.mxu0
    %v4969 = vadd.f32 0.0, %v4968
    %4970 = vmatmul.bf16.gmra.mxu0 %v3674
    %v4971 = vpop.f32.mrf.mxu0
    %v4972 = vadd.f32 0.0, %v4971
    %v4973 = vpop.f32.mrf.mxu0
    %v4974 = vadd.f32 0.0, %v4973
    %4975 = vmatmul.bf16.gmra.mxu0 %v3677
    %v4976 = vpop.f32.mrf.mxu0
    %v4977 = vadd.f32 0.0, %v4976
    %v4978 = vpop.f32.mrf.mxu0
    %v4979 = vadd.f32 0.0, %v4978
    %4980 = vmatmul.bf16.gmra.mxu0 %v3680
    %v4981 = vpop.f32.mrf.mxu0
    %v4982 = vadd.f32 0.0, %v4981
    %v4983 = vpop.f32.mrf.mxu0
    %v4984 = vadd.f32 0.0, %v4983
    %4985 = vdwg.mxu0
    %v4986 = vld [vmem:[#allocation3 + $0x28] sm:$0xff]
    %v4987 = vld [vmem:[#allocation3 + $0x68] sm:$0xff]
    %v4988 = vld [vmem:[#allocation3 + $0xa8] sm:$0xff]
    %v4989 = vld [vmem:[#allocation3 + $0xe8] sm:$0xff]
    %v4990 = vadd.f32 %v4986, %v4957
    %v4991 = vadd.f32 %v4987, %v4959
    %v4992 = vadd.f32 %v4988, %v4962
    %v4993 = vadd.f32 %v4989, %v4964
    %v4994 = vxor.u32 %v4990, 2147483648
    %v4995 = vxor.u32 %v4991, 2147483648
    %v4996 = vxor.u32 %v4992, 2147483648
    %v4997 = vxor.u32 %v4993, 2147483648
    %v4998 = vmul.f32 %v4994, 1.442695
    %v4999 = vpow.pop %v4998
    %v5000 = vmul.f32 %v4995, 1.442695
    %v5001 = vpow.pop %v5000
    %v5002 = vmul.f32 %v4996, 1.442695
    %v5003 = vpow.pop %v5002
    %v5004 = vmul.f32 %v4997, 1.442695
    %v5005 = vpow.pop %v5004
    %v5006 = vadd.f32 %v4999, 1.0
    %v5007 = vadd.f32 %v5001, 1.0
    %v5008 = vadd.f32 %v5003, 1.0
    %v5009 = vadd.f32 %v5005, 1.0
    %v5010 = vrcp.pop %v5006
    %v5011 = vmul.f32 %v5006, %v5010
    %v5012 = vsub.f32 1.0, %v5011
    %v5013 = vmul.f32 %v5010, %v5012
    %v5014 = vadd.f32 %v5010, %v5013
    %vm5015 = vweird.f32 %v5006
    %vm5016 = vweird.f32 %v5010
    %vm5017 = vmor %vm5015, %vm5016
    %v5018 = vsel %vm5017, %v5010, %v5014
    %v5019 = vand.u32 2147483647, %v5006
    %vm5020 = vcmp.eq.f32.partialorder %v5019, 8.507059e+37
    %v5021 = vand.u32 %v5006, 2147483648
    %v5022 = vor.u32 1.1754944e-38, %v5021
    %v5023 = vsel %vm5020, %v5022, %v5018
    %v5024 = vmul.f32 1.0, %v5023
    %v5025 = vrcp.pop %v5007
    %v5026 = vmul.f32 %v5007, %v5025
    %v5027 = vsub.f32 1.0, %v5026
    %v5028 = vmul.f32 %v5025, %v5027
    %v5029 = vadd.f32 %v5025, %v5028
    %vm5030 = vweird.f32 %v5007
    %vm5031 = vweird.f32 %v5025
    %vm5032 = vmor %vm5030, %vm5031
    %v5033 = vsel %vm5032, %v5025, %v5029
    %v5034 = vand.u32 2147483647, %v5007
    %vm5035 = vcmp.eq.f32.partialorder %v5034, 8.507059e+37
    %v5036 = vand.u32 %v5007, 2147483648
    %v5037 = vor.u32 1.1754944e-38, %v5036
    %v5038 = vsel %vm5035, %v5037, %v5033
    %v5039 = vmul.f32 1.0, %v5038
    %v5040 = vrcp.pop %v5008
    %v5041 = vmul.f32 %v5008, %v5040
    %v5042 = vsub.f32 1.0, %v5041
    %v5043 = vmul.f32 %v5040, %v5042
    %v5044 = vadd.f32 %v5040, %v5043
    %vm5045 = vweird.f32 %v5008
    %vm5046 = vweird.f32 %v5040
    %vm5047 = vmor %vm5045, %vm5046
    %v5048 = vsel %vm5047, %v5040, %v5044
    %v5049 = vand.u32 2147483647, %v5008
    %vm5050 = vcmp.eq.f32.partialorder %v5049, 8.507059e+37
    %v5051 = vand.u32 %v5008, 2147483648
    %v5052 = vor.u32 1.1754944e-38, %v5051
    %v5053 = vsel %vm5050, %v5052, %v5048
    %v5054 = vmul.f32 1.0, %v5053
    %v5055 = vrcp.pop %v5009
    %v5056 = vmul.f32 %v5009, %v5055
    %v5057 = vsub.f32 1.0, %v5056
    %v5058 = vmul.f32 %v5055, %v5057
    %v5059 = vadd.f32 %v5055, %v5058
    %vm5060 = vweird.f32 %v5009
    %vm5061 = vweird.f32 %v5055
    %vm5062 = vmor %vm5060, %vm5061
    %v5063 = vsel %vm5062, %v5055, %v5059
    %v5064 = vand.u32 2147483647, %v5009
    %vm5065 = vcmp.eq.f32.partialorder %v5064, 8.507059e+37
    %v5066 = vand.u32 %v5009, 2147483648
    %v5067 = vor.u32 1.1754944e-38, %v5066
    %v5068 = vsel %vm5065, %v5067, %v5063
    %v5069 = vmul.f32 1.0, %v5068
    %v5070 = vld [vmem:[#allocation3 + $0x128] sm:$0xff]
    %v5071 = vld [vmem:[#allocation3 + $0x168] sm:$0xff]
    %v5072 = vld [vmem:[#allocation3 + $0x1a8] sm:$0xff]
    %v5073 = vld [vmem:[#allocation3 + $0x1e8] sm:$0xff]
    %v5074 = vadd.f32 %v5070, %v4967
    %v5075 = vadd.f32 %v5071, %v4969
    %v5076 = vadd.f32 %v5072, %v4972
    %v5077 = vadd.f32 %v5073, %v4974
    %v5078 = vxor.u32 %v5074, 2147483648
    %v5079 = vxor.u32 %v5075, 2147483648
    %v5080 = vxor.u32 %v5076, 2147483648
    %v5081 = vxor.u32 %v5077, 2147483648
    %v5082 = vmul.f32 %v5078, 1.442695
    %v5083 = vpow.pop %v5082
    %v5084 = vmul.f32 %v5079, 1.442695
    %v5085 = vpow.pop %v5084
    %v5086 = vmul.f32 %v5080, 1.442695
    %v5087 = vpow.pop %v5086
    %v5088 = vmul.f32 %v5081, 1.442695
    %v5089 = vpow.pop %v5088
    %v5090 = vadd.f32 %v5083, 1.0
    %v5091 = vadd.f32 %v5085, 1.0
    %v5092 = vadd.f32 %v5087, 1.0
    %v5093 = vadd.f32 %v5089, 1.0
    %v5094 = vrcp.pop %v5090
    %v5095 = vmul.f32 %v5090, %v5094
    %v5096 = vsub.f32 1.0, %v5095
    %v5097 = vmul.f32 %v5094, %v5096
    %v5098 = vadd.f32 %v5094, %v5097
    %vm5099 = vweird.f32 %v5090
    %vm5100 = vweird.f32 %v5094
    %vm5101 = vmor %vm5099, %vm5100
    %v5102 = vsel %vm5101, %v5094, %v5098
    %v5103 = vand.u32 2147483647, %v5090
    %vm5104 = vcmp.eq.f32.partialorder %v5103, 8.507059e+37
    %v5105 = vand.u32 %v5090, 2147483648
    %v5106 = vor.u32 1.1754944e-38, %v5105
    %v5107 = vsel %vm5104, %v5106, %v5102
    %v5108 = vmul.f32 1.0, %v5107
    %v5109 = vrcp.pop %v5091
    %v5110 = vmul.f32 %v5091, %v5109
    %v5111 = vsub.f32 1.0, %v5110
    %v5112 = vmul.f32 %v5109, %v5111
    %v5113 = vadd.f32 %v5109, %v5112
    %vm5114 = vweird.f32 %v5091
    %vm5115 = vweird.f32 %v5109
    %vm5116 = vmor %vm5114, %vm5115
    %v5117 = vsel %vm5116, %v5109, %v5113
    %v5118 = vand.u32 2147483647, %v5091
    %vm5119 = vcmp.eq.f32.partialorder %v5118, 8.507059e+37
    %v5120 = vand.u32 %v5091, 2147483648
    %v5121 = vor.u32 1.1754944e-38, %v5120
    %v5122 = vsel %vm5119, %v5121, %v5117
    %v5123 = vmul.f32 1.0, %v5122
    %v5124 = vrcp.pop %v5092
    %v5125 = vmul.f32 %v5092, %v5124
    %v5126 = vsub.f32 1.0, %v5125
    %v5127 = vmul.f32 %v5124, %v5126
    %v5128 = vadd.f32 %v5124, %v5127
    %vm5129 = vweird.f32 %v5092
    %vm5130 = vweird.f32 %v5124
    %vm5131 = vmor %vm5129, %vm5130
    %v5132 = vsel %vm5131, %v5124, %v5128
    %v5133 = vand.u32 2147483647, %v5092
    %vm5134 = vcmp.eq.f32.partialorder %v5133, 8.507059e+37
    %v5135 = vand.u32 %v5092, 2147483648
    %v5136 = vor.u32 1.1754944e-38, %v5135
    %v5137 = vsel %vm5134, %v5136, %v5132
    %v5138 = vmul.f32 1.0, %v5137
    %v5139 = vrcp.pop %v5093
    %v5140 = vmul.f32 %v5093, %v5139
    %v5141 = vsub.f32 1.0, %v5140
    %v5142 = vmul.f32 %v5139, %v5141
    %v5143 = vadd.f32 %v5139, %v5142
    %vm5144 = vweird.f32 %v5093
    %vm5145 = vweird.f32 %v5139
    %vm5146 = vmor %vm5144, %vm5145
    %v5147 = vsel %vm5146, %v5139, %v5143
    %v5148 = vand.u32 2147483647, %v5093
    %vm5149 = vcmp.eq.f32.partialorder %v5148, 8.507059e+37
    %v5150 = vand.u32 %v5093, 2147483648
    %v5151 = vor.u32 1.1754944e-38, %v5150
    %v5152 = vsel %vm5149, %v5151, %v5147
    %v5153 = vmul.f32 1.0, %v5152
    %v5154 = vld [vmem:[#allocation3 + $0x228] sm:$0xff]
    %v5155 = vld [vmem:[#allocation3 + $0x268] sm:$0xff]
    %v5156 = vld [vmem:[#allocation3 + $0x2a8] sm:$0xff]
    %v5157 = vld [vmem:[#allocation3 + $0x2e8] sm:$0xff]
    %v5158 = vadd.f32 %v4977, %v3896
    %v5159 = vadd.f32 %v4979, %v3901
    %v5160 = vadd.f32 %v4982, %v3906
    %v5161 = vadd.f32 %v4984, %v3911
    %v5162 = vmul.f32 %v5024, %v5158
    %v5163 = vmul.f32 %v5039, %v5159
    %v5164 = vmul.f32 %v5054, %v5160
    %v5165 = vmul.f32 %v5069, %v5161
    %v5166 = vadd.f32 %v5154, %v5162
    %v5167 = vadd.f32 %v5155, %v5163
    %v5168 = vadd.f32 %v5156, %v5164
    %v5169 = vadd.f32 %v5157, %v5165
    %v5170 = vtanh.pop %v5166
    %v5171 = vtanh.pop %v5167
    %v5172 = vtanh.pop %v5168
    %v5173 = vtanh.pop %v5169
    %v5174 = vsub.f32 1.0, %v5108
    %v5175 = vsub.f32 1.0, %v5123
    %v5176 = vsub.f32 1.0, %v5138
    %v5177 = vsub.f32 1.0, %v5153
    %v5178 = vmul.f32 %v5174, %v5170
    %v5179 = vmul.f32 %v5175, %v5171
    %v5180 = vmul.f32 %v5176, %v5172
    %v5181 = vmul.f32 %v5177, %v5173
    %v5182 = vmul.f32 %v5108, %v4937
    %v5183 = vmul.f32 %v5123, %v4938
    %v5184 = vmul.f32 %v5138, %v4939
    %v5185 = vmul.f32 %v5153, %v4940
    %v5186 = vadd.f32 %v5178, %v5182
    %v5187 = vadd.f32 %v5179, %v5183
    %v5188 = vadd.f32 %v5180, %v5184
    %v5189 = vadd.f32 %v5181, %v5185
    %5190 = vst [vmem:[#allocation2 + $0x28] sm:$0xff] %v5186
    %5191 = vst [vmem:[#allocation2 + $0x68] sm:$0xff] %v5187
    %5192 = vst [vmem:[#allocation2 + $0xa8] sm:$0xff] %v5188
    %5193 = vst [vmem:[#allocation2 + $0xe8] sm:$0xff] %v5189
    %v5194 = vpack.c.bf16 %v5187, %v5186
    %v5195 = vpack.c.bf16 %v5189, %v5188
    %5196 = vmatpush.bf16.msra.mxu0 0
    %5197 = vmatpush.bf16.msra.mxu0 0
    %5198 = vmatpush.bf16.msra.mxu0 0
    %5199 = vmatpush.bf16.msra.mxu0 0
    %5200 = vmatpush.bf16.msra.mxu0 0
    %5201 = vmatpush.bf16.msra.mxu0 0
    %5202 = vmatpush.bf16.msra.mxu0 %v5195
    %5203 = vmatpush.bf16.msra.mxu0 %v5194
    %5204 = vmatmul.bf16.gmra.mxu0 %v3665
    %v5205 = vpop.f32.mrf.mxu0
    %v5206 = vadd.f32 0.0, %v5205
    %v5207 = vpop.f32.mrf.mxu0
    %v5208 = vadd.f32 0.0, %v5207
    %5209 = vmatmul.bf16.gmra.mxu0 %v3668
    %v5210 = vpop.f32.mrf.mxu0
    %v5211 = vadd.f32 0.0, %v5210
    %v5212 = vpop.f32.mrf.mxu0
    %v5213 = vadd.f32 0.0, %v5212
    %5214 = vmatmul.bf16.gmra.mxu0 %v3671
    %v5215 = vpop.f32.mrf.mxu0
    %v5216 = vadd.f32 0.0, %v5215
    %v5217 = vpop.f32.mrf.mxu0
    %v5218 = vadd.f32 0.0, %v5217
    %5219 = vmatmul.bf16.gmra.mxu0 %v3674
    %v5220 = vpop.f32.mrf.mxu0
    %v5221 = vadd.f32 0.0, %v5220
    %v5222 = vpop.f32.mrf.mxu0
    %v5223 = vadd.f32 0.0, %v5222
    %5224 = vmatmul.bf16.gmra.mxu0 %v3677
    %v5225 = vpop.f32.mrf.mxu0
    %v5226 = vadd.f32 0.0, %v5225
    %v5227 = vpop.f32.mrf.mxu0
    %v5228 = vadd.f32 0.0, %v5227
    %5229 = vmatmul.bf16.gmra.mxu0 %v3680
    %v5230 = vpop.f32.mrf.mxu0
    %v5231 = vadd.f32 0.0, %v5230
    %v5232 = vpop.f32.mrf.mxu0
    %v5233 = vadd.f32 0.0, %v5232
    %5234 = vdwg.mxu0
    %v5235 = vld [vmem:[#allocation3 + $0x30] sm:$0xff]
    %v5236 = vld [vmem:[#allocation3 + $0x70] sm:$0xff]
    %v5237 = vld [vmem:[#allocation3 + $0xb0] sm:$0xff]
    %v5238 = vld [vmem:[#allocation3 + $0xf0] sm:$0xff]
    %v5239 = vadd.f32 %v5235, %v5206
    %v5240 = vadd.f32 %v5236, %v5208
    %v5241 = vadd.f32 %v5237, %v5211
    %v5242 = vadd.f32 %v5238, %v5213
    %v5243 = vxor.u32 %v5239, 2147483648
    %v5244 = vxor.u32 %v5240, 2147483648
    %v5245 = vxor.u32 %v5241, 2147483648
    %v5246 = vxor.u32 %v5242, 2147483648
    %v5247 = vmul.f32 %v5243, 1.442695
    %v5248 = vpow.pop %v5247
    %v5249 = vmul.f32 %v5244, 1.442695
    %v5250 = vpow.pop %v5249
    %v5251 = vmul.f32 %v5245, 1.442695
    %v5252 = vpow.pop %v5251
    %v5253 = vmul.f32 %v5246, 1.442695
    %v5254 = vpow.pop %v5253
    %v5255 = vadd.f32 %v5248, 1.0
    %v5256 = vadd.f32 %v5250, 1.0
    %v5257 = vadd.f32 %v5252, 1.0
    %v5258 = vadd.f32 %v5254, 1.0
    %v5259 = vrcp.pop %v5255
    %v5260 = vmul.f32 %v5255, %v5259
    %v5261 = vsub.f32 1.0, %v5260
    %v5262 = vmul.f32 %v5259, %v5261
    %v5263 = vadd.f32 %v5259, %v5262
    %vm5264 = vweird.f32 %v5255
    %vm5265 = vweird.f32 %v5259
    %vm5266 = vmor %vm5264, %vm5265
    %v5267 = vsel %vm5266, %v5259, %v5263
    %v5268 = vand.u32 2147483647, %v5255
    %vm5269 = vcmp.eq.f32.partialorder %v5268, 8.507059e+37
    %v5270 = vand.u32 %v5255, 2147483648
    %v5271 = vor.u32 1.1754944e-38, %v5270
    %v5272 = vsel %vm5269, %v5271, %v5267
    %v5273 = vmul.f32 1.0, %v5272
    %v5274 = vrcp.pop %v5256
    %v5275 = vmul.f32 %v5256, %v5274
    %v5276 = vsub.f32 1.0, %v5275
    %v5277 = vmul.f32 %v5274, %v5276
    %v5278 = vadd.f32 %v5274, %v5277
    %vm5279 = vweird.f32 %v5256
    %vm5280 = vweird.f32 %v5274
    %vm5281 = vmor %vm5279, %vm5280
    %v5282 = vsel %vm5281, %v5274, %v5278
    %v5283 = vand.u32 2147483647, %v5256
    %vm5284 = vcmp.eq.f32.partialorder %v5283, 8.507059e+37
    %v5285 = vand.u32 %v5256, 2147483648
    %v5286 = vor.u32 1.1754944e-38, %v5285
    %v5287 = vsel %vm5284, %v5286, %v5282
    %v5288 = vmul.f32 1.0, %v5287
    %v5289 = vrcp.pop %v5257
    %v5290 = vmul.f32 %v5257, %v5289
    %v5291 = vsub.f32 1.0, %v5290
    %v5292 = vmul.f32 %v5289, %v5291
    %v5293 = vadd.f32 %v5289, %v5292
    %vm5294 = vweird.f32 %v5257
    %vm5295 = vweird.f32 %v5289
    %vm5296 = vmor %vm5294, %vm5295
    %v5297 = vsel %vm5296, %v5289, %v5293
    %v5298 = vand.u32 2147483647, %v5257
    %vm5299 = vcmp.eq.f32.partialorder %v5298, 8.507059e+37
    %v5300 = vand.u32 %v5257, 2147483648
    %v5301 = vor.u32 1.1754944e-38, %v5300
    %v5302 = vsel %vm5299, %v5301, %v5297
    %v5303 = vmul.f32 1.0, %v5302
    %v5304 = vrcp.pop %v5258
    %v5305 = vmul.f32 %v5258, %v5304
    %v5306 = vsub.f32 1.0, %v5305
    %v5307 = vmul.f32 %v5304, %v5306
    %v5308 = vadd.f32 %v5304, %v5307
    %vm5309 = vweird.f32 %v5258
    %vm5310 = vweird.f32 %v5304
    %vm5311 = vmor %vm5309, %vm5310
    %v5312 = vsel %vm5311, %v5304, %v5308
    %v5313 = vand.u32 2147483647, %v5258
    %vm5314 = vcmp.eq.f32.partialorder %v5313, 8.507059e+37
    %v5315 = vand.u32 %v5258, 2147483648
    %v5316 = vor.u32 1.1754944e-38, %v5315
    %v5317 = vsel %vm5314, %v5316, %v5312
    %v5318 = vmul.f32 1.0, %v5317
    %v5319 = vld [vmem:[#allocation3 + $0x130] sm:$0xff]
    %v5320 = vld [vmem:[#allocation3 + $0x170] sm:$0xff]
    %v5321 = vld [vmem:[#allocation3 + $0x1b0] sm:$0xff]
    %v5322 = vld [vmem:[#allocation3 + $0x1f0] sm:$0xff]
    %v5323 = vadd.f32 %v5319, %v5216
    %v5324 = vadd.f32 %v5320, %v5218
    %v5325 = vadd.f32 %v5321, %v5221
    %v5326 = vadd.f32 %v5322, %v5223
    %v5327 = vxor.u32 %v5323, 2147483648
    %v5328 = vxor.u32 %v5324, 2147483648
    %v5329 = vxor.u32 %v5325, 2147483648
    %v5330 = vxor.u32 %v5326, 2147483648
    %v5331 = vmul.f32 %v5327, 1.442695
    %v5332 = vpow.pop %v5331
    %v5333 = vmul.f32 %v5328, 1.442695
    %v5334 = vpow.pop %v5333
    %v5335 = vmul.f32 %v5329, 1.442695
    %v5336 = vpow.pop %v5335
    %v5337 = vmul.f32 %v5330, 1.442695
    %v5338 = vpow.pop %v5337
    %v5339 = vadd.f32 %v5332, 1.0
    %v5340 = vadd.f32 %v5334, 1.0
    %v5341 = vadd.f32 %v5336, 1.0
    %v5342 = vadd.f32 %v5338, 1.0
    %v5343 = vrcp.pop %v5339
    %v5344 = vmul.f32 %v5339, %v5343
    %v5345 = vsub.f32 1.0, %v5344
    %v5346 = vmul.f32 %v5343, %v5345
    %v5347 = vadd.f32 %v5343, %v5346
    %vm5348 = vweird.f32 %v5339
    %vm5349 = vweird.f32 %v5343
    %vm5350 = vmor %vm5348, %vm5349
    %v5351 = vsel %vm5350, %v5343, %v5347
    %v5352 = vand.u32 2147483647, %v5339
    %vm5353 = vcmp.eq.f32.partialorder %v5352, 8.507059e+37
    %v5354 = vand.u32 %v5339, 2147483648
    %v5355 = vor.u32 1.1754944e-38, %v5354
    %v5356 = vsel %vm5353, %v5355, %v5351
    %v5357 = vmul.f32 1.0, %v5356
    %v5358 = vrcp.pop %v5340
    %v5359 = vmul.f32 %v5340, %v5358
    %v5360 = vsub.f32 1.0, %v5359
    %v5361 = vmul.f32 %v5358, %v5360
    %v5362 = vadd.f32 %v5358, %v5361
    %vm5363 = vweird.f32 %v5340
    %vm5364 = vweird.f32 %v5358
    %vm5365 = vmor %vm5363, %vm5364
    %v5366 = vsel %vm5365, %v5358, %v5362
    %v5367 = vand.u32 2147483647, %v5340
    %vm5368 = vcmp.eq.f32.partialorder %v5367, 8.507059e+37
    %v5369 = vand.u32 %v5340, 2147483648
    %v5370 = vor.u32 1.1754944e-38, %v5369
    %v5371 = vsel %vm5368, %v5370, %v5366
    %v5372 = vmul.f32 1.0, %v5371
    %v5373 = vrcp.pop %v5341
    %v5374 = vmul.f32 %v5341, %v5373
    %v5375 = vsub.f32 1.0, %v5374
    %v5376 = vmul.f32 %v5373, %v5375
    %v5377 = vadd.f32 %v5373, %v5376
    %vm5378 = vweird.f32 %v5341
    %vm5379 = vweird.f32 %v5373
    %vm5380 = vmor %vm5378, %vm5379
    %v5381 = vsel %vm5380, %v5373, %v5377
    %v5382 = vand.u32 2147483647, %v5341
    %vm5383 = vcmp.eq.f32.partialorder %v5382, 8.507059e+37
    %v5384 = vand.u32 %v5341, 2147483648
    %v5385 = vor.u32 1.1754944e-38, %v5384
    %v5386 = vsel %vm5383, %v5385, %v5381
    %v5387 = vmul.f32 1.0, %v5386
    %v5388 = vrcp.pop %v5342
    %v5389 = vmul.f32 %v5342, %v5388
    %v5390 = vsub.f32 1.0, %v5389
    %v5391 = vmul.f32 %v5388, %v5390
    %v5392 = vadd.f32 %v5388, %v5391
    %vm5393 = vweird.f32 %v5342
    %vm5394 = vweird.f32 %v5388
    %vm5395 = vmor %vm5393, %vm5394
    %v5396 = vsel %vm5395, %v5388, %v5392
    %v5397 = vand.u32 2147483647, %v5342
    %vm5398 = vcmp.eq.f32.partialorder %v5397, 8.507059e+37
    %v5399 = vand.u32 %v5342, 2147483648
    %v5400 = vor.u32 1.1754944e-38, %v5399
    %v5401 = vsel %vm5398, %v5400, %v5396
    %v5402 = vmul.f32 1.0, %v5401
    %v5403 = vld [vmem:[#allocation3 + $0x230] sm:$0xff]
    %v5404 = vld [vmem:[#allocation3 + $0x270] sm:$0xff]
    %v5405 = vld [vmem:[#allocation3 + $0x2b0] sm:$0xff]
    %v5406 = vld [vmem:[#allocation3 + $0x2f0] sm:$0xff]
    %v5407 = vadd.f32 %v5226, %v3896
    %v5408 = vadd.f32 %v5228, %v3901
    %v5409 = vadd.f32 %v5231, %v3906
    %v5410 = vadd.f32 %v5233, %v3911
    %v5411 = vmul.f32 %v5273, %v5407
    %v5412 = vmul.f32 %v5288, %v5408
    %v5413 = vmul.f32 %v5303, %v5409
    %v5414 = vmul.f32 %v5318, %v5410
    %v5415 = vadd.f32 %v5403, %v5411
    %v5416 = vadd.f32 %v5404, %v5412
    %v5417 = vadd.f32 %v5405, %v5413
    %v5418 = vadd.f32 %v5406, %v5414
    %v5419 = vtanh.pop %v5415
    %v5420 = vtanh.pop %v5416
    %v5421 = vtanh.pop %v5417
    %v5422 = vtanh.pop %v5418
    %v5423 = vsub.f32 1.0, %v5357
    %v5424 = vsub.f32 1.0, %v5372
    %v5425 = vsub.f32 1.0, %v5387
    %v5426 = vsub.f32 1.0, %v5402
    %v5427 = vmul.f32 %v5423, %v5419
    %v5428 = vmul.f32 %v5424, %v5420
    %v5429 = vmul.f32 %v5425, %v5421
    %v5430 = vmul.f32 %v5426, %v5422
    %v5431 = vmul.f32 %v5357, %v5186
    %v5432 = vmul.f32 %v5372, %v5187
    %v5433 = vmul.f32 %v5387, %v5188
    %v5434 = vmul.f32 %v5402, %v5189
    %v5435 = vadd.f32 %v5427, %v5431
    %v5436 = vadd.f32 %v5428, %v5432
    %v5437 = vadd.f32 %v5429, %v5433
    %v5438 = vadd.f32 %v5430, %v5434
    %5439 = vst [vmem:[#allocation2 + $0x30] sm:$0xff] %v5435
    %5440 = vst [vmem:[#allocation2 + $0x70] sm:$0xff] %v5436
    %5441 = vst [vmem:[#allocation2 + $0xb0] sm:$0xff] %v5437
    %5442 = vst [vmem:[#allocation2 + $0xf0] sm:$0xff] %v5438
    %v5443 = vpack.c.bf16 %v5436, %v5435
    %v5444 = vpack.c.bf16 %v5438, %v5437
    %5445 = vmatpush.bf16.msra.mxu0 0
    %5446 = vmatpush.bf16.msra.mxu0 0
    %5447 = vmatpush.bf16.msra.mxu0 0
    %5448 = vmatpush.bf16.msra.mxu0 0
    %5449 = vmatpush.bf16.msra.mxu0 0
    %5450 = vmatpush.bf16.msra.mxu0 0
    %5451 = vmatpush.bf16.msra.mxu0 %v5444
    %5452 = vmatpush.bf16.msra.mxu0 %v5443
    %5453 = vmatmul.bf16.gmra.mxu0 %v3665
    %v5454 = vpop.f32.mrf.mxu0
    %v5455 = vadd.f32 0.0, %v5454
    %v5456 = vpop.f32.mrf.mxu0
    %v5457 = vadd.f32 0.0, %v5456
    %5458 = vmatmul.bf16.gmra.mxu0 %v3668
    %v5459 = vpop.f32.mrf.mxu0
    %v5460 = vadd.f32 0.0, %v5459
    %v5461 = vpop.f32.mrf.mxu0
    %v5462 = vadd.f32 0.0, %v5461
    %5463 = vmatmul.bf16.gmra.mxu0 %v3671
    %v5464 = vpop.f32.mrf.mxu0
    %v5465 = vadd.f32 0.0, %v5464
    %v5466 = vpop.f32.mrf.mxu0
    %v5467 = vadd.f32 0.0, %v5466
    %5468 = vmatmul.bf16.gmra.mxu0 %v3674
    %v5469 = vpop.f32.mrf.mxu0
    %v5470 = vadd.f32 0.0, %v5469
    %v5471 = vpop.f32.mrf.mxu0
    %v5472 = vadd.f32 0.0, %v5471
    %5473 = vmatmul.bf16.gmra.mxu0 %v3677
    %v5474 = vpop.f32.mrf.mxu0
    %v5475 = vadd.f32 0.0, %v5474
    %v5476 = vpop.f32.mrf.mxu0
    %v5477 = vadd.f32 0.0, %v5476
    %5478 = vmatmul.bf16.gmra.mxu0 %v3680
    %v5479 = vpop.f32.mrf.mxu0
    %v5480 = vadd.f32 0.0, %v5479
    %v5481 = vpop.f32.mrf.mxu0
    %v5482 = vadd.f32 0.0, %v5481
    %5483 = vdwg.mxu0
    %v5484 = vld [vmem:[#allocation3 + $0x38] sm:$0xff]
    %v5485 = vld [vmem:[#allocation3 + $0x78] sm:$0xff]
    %v5486 = vld [vmem:[#allocation3 + $0xb8] sm:$0xff]
    %v5487 = vld [vmem:[#allocation3 + $0xf8] sm:$0xff]
    %v5488 = vadd.f32 %v5484, %v5455
    %v5489 = vadd.f32 %v5485, %v5457
    %v5490 = vadd.f32 %v5486, %v5460
    %v5491 = vadd.f32 %v5487, %v5462
    %v5492 = vxor.u32 %v5488, 2147483648
    %v5493 = vxor.u32 %v5489, 2147483648
    %v5494 = vxor.u32 %v5490, 2147483648
    %v5495 = vxor.u32 %v5491, 2147483648
    %v5496 = vmul.f32 %v5492, 1.442695
    %v5497 = vpow.pop %v5496
    %v5498 = vmul.f32 %v5493, 1.442695
    %v5499 = vpow.pop %v5498
    %v5500 = vmul.f32 %v5494, 1.442695
    %v5501 = vpow.pop %v5500
    %v5502 = vmul.f32 %v5495, 1.442695
    %v5503 = vpow.pop %v5502
    %v5504 = vadd.f32 %v5497, 1.0
    %v5505 = vadd.f32 %v5499, 1.0
    %v5506 = vadd.f32 %v5501, 1.0
    %v5507 = vadd.f32 %v5503, 1.0
    %v5508 = vrcp.pop %v5504
    %v5509 = vmul.f32 %v5504, %v5508
    %v5510 = vsub.f32 1.0, %v5509
    %v5511 = vmul.f32 %v5508, %v5510
    %v5512 = vadd.f32 %v5508, %v5511
    %vm5513 = vweird.f32 %v5504
    %vm5514 = vweird.f32 %v5508
    %vm5515 = vmor %vm5513, %vm5514
    %v5516 = vsel %vm5515, %v5508, %v5512
    %v5517 = vand.u32 2147483647, %v5504
    %vm5518 = vcmp.eq.f32.partialorder %v5517, 8.507059e+37
    %v5519 = vand.u32 %v5504, 2147483648
    %v5520 = vor.u32 1.1754944e-38, %v5519
    %v5521 = vsel %vm5518, %v5520, %v5516
    %v5522 = vmul.f32 1.0, %v5521
    %v5523 = vrcp.pop %v5505
    %v5524 = vmul.f32 %v5505, %v5523
    %v5525 = vsub.f32 1.0, %v5524
    %v5526 = vmul.f32 %v5523, %v5525
    %v5527 = vadd.f32 %v5523, %v5526
    %vm5528 = vweird.f32 %v5505
    %vm5529 = vweird.f32 %v5523
    %vm5530 = vmor %vm5528, %vm5529
    %v5531 = vsel %vm5530, %v5523, %v5527
    %v5532 = vand.u32 2147483647, %v5505
    %vm5533 = vcmp.eq.f32.partialorder %v5532, 8.507059e+37
    %v5534 = vand.u32 %v5505, 2147483648
    %v5535 = vor.u32 1.1754944e-38, %v5534
    %v5536 = vsel %vm5533, %v5535, %v5531
    %v5537 = vmul.f32 1.0, %v5536
    %v5538 = vrcp.pop %v5506
    %v5539 = vmul.f32 %v5506, %v5538
    %v5540 = vsub.f32 1.0, %v5539
    %v5541 = vmul.f32 %v5538, %v5540
    %v5542 = vadd.f32 %v5538, %v5541
    %vm5543 = vweird.f32 %v5506
    %vm5544 = vweird.f32 %v5538
    %vm5545 = vmor %vm5543, %vm5544
    %v5546 = vsel %vm5545, %v5538, %v5542
    %v5547 = vand.u32 2147483647, %v5506
    %vm5548 = vcmp.eq.f32.partialorder %v5547, 8.507059e+37
    %v5549 = vand.u32 %v5506, 2147483648
    %v5550 = vor.u32 1.1754944e-38, %v5549
    %v5551 = vsel %vm5548, %v5550, %v5546
    %v5552 = vmul.f32 1.0, %v5551
    %v5553 = vrcp.pop %v5507
    %v5554 = vmul.f32 %v5507, %v5553
    %v5555 = vsub.f32 1.0, %v5554
    %v5556 = vmul.f32 %v5553, %v5555
    %v5557 = vadd.f32 %v5553, %v5556
    %vm5558 = vweird.f32 %v5507
    %vm5559 = vweird.f32 %v5553
    %vm5560 = vmor %vm5558, %vm5559
    %v5561 = vsel %vm5560, %v5553, %v5557
    %v5562 = vand.u32 2147483647, %v5507
    %vm5563 = vcmp.eq.f32.partialorder %v5562, 8.507059e+37
    %v5564 = vand.u32 %v5507, 2147483648
    %v5565 = vor.u32 1.1754944e-38, %v5564
    %v5566 = vsel %vm5563, %v5565, %v5561
    %v5567 = vmul.f32 1.0, %v5566
    %v5568 = vld [vmem:[#allocation3 + $0x138] sm:$0xff]
    %v5569 = vld [vmem:[#allocation3 + $0x178] sm:$0xff]
    %v5570 = vld [vmem:[#allocation3 + $0x1b8] sm:$0xff]
    %v5571 = vld [vmem:[#allocation3 + $0x1f8] sm:$0xff]
    %v5572 = vadd.f32 %v5568, %v5465
    %v5573 = vadd.f32 %v5569, %v5467
    %v5574 = vadd.f32 %v5570, %v5470
    %v5575 = vadd.f32 %v5571, %v5472
    %v5576 = vxor.u32 %v5572, 2147483648
    %v5577 = vxor.u32 %v5573, 2147483648
    %v5578 = vxor.u32 %v5574, 2147483648
    %v5579 = vxor.u32 %v5575, 2147483648
    %v5580 = vmul.f32 %v5576, 1.442695
    %v5581 = vpow.pop %v5580
    %v5582 = vmul.f32 %v5577, 1.442695
    %v5583 = vpow.pop %v5582
    %v5584 = vmul.f32 %v5578, 1.442695
    %v5585 = vpow.pop %v5584
    %v5586 = vmul.f32 %v5579, 1.442695
    %v5587 = vpow.pop %v5586
    %v5588 = vadd.f32 %v5581, 1.0
    %v5589 = vadd.f32 %v5583, 1.0
    %v5590 = vadd.f32 %v5585, 1.0
    %v5591 = vadd.f32 %v5587, 1.0
    %v5592 = vrcp.pop %v5588
    %v5593 = vmul.f32 %v5588, %v5592
    %v5594 = vsub.f32 1.0, %v5593
    %v5595 = vmul.f32 %v5592, %v5594
    %v5596 = vadd.f32 %v5592, %v5595
    %vm5597 = vweird.f32 %v5588
    %vm5598 = vweird.f32 %v5592
    %vm5599 = vmor %vm5597, %vm5598
    %v5600 = vsel %vm5599, %v5592, %v5596
    %v5601 = vand.u32 2147483647, %v5588
    %vm5602 = vcmp.eq.f32.partialorder %v5601, 8.507059e+37
    %v5603 = vand.u32 %v5588, 2147483648
    %v5604 = vor.u32 1.1754944e-38, %v5603
    %v5605 = vsel %vm5602, %v5604, %v5600
    %v5606 = vmul.f32 1.0, %v5605
    %v5607 = vrcp.pop %v5589
    %v5608 = vmul.f32 %v5589, %v5607
    %v5609 = vsub.f32 1.0, %v5608
    %v5610 = vmul.f32 %v5607, %v5609
    %v5611 = vadd.f32 %v5607, %v5610
    %vm5612 = vweird.f32 %v5589
    %vm5613 = vweird.f32 %v5607
    %vm5614 = vmor %vm5612, %vm5613
    %v5615 = vsel %vm5614, %v5607, %v5611
    %v5616 = vand.u32 2147483647, %v5589
    %vm5617 = vcmp.eq.f32.partialorder %v5616, 8.507059e+37
    %v5618 = vand.u32 %v5589, 2147483648
    %v5619 = vor.u32 1.1754944e-38, %v5618
    %v5620 = vsel %vm5617, %v5619, %v5615
    %v5621 = vmul.f32 1.0, %v5620
    %v5622 = vrcp.pop %v5590
    %v5623 = vmul.f32 %v5590, %v5622
    %v5624 = vsub.f32 1.0, %v5623
    %v5625 = vmul.f32 %v5622, %v5624
    %v5626 = vadd.f32 %v5622, %v5625
    %vm5627 = vweird.f32 %v5590
    %vm5628 = vweird.f32 %v5622
    %vm5629 = vmor %vm5627, %vm5628
    %v5630 = vsel %vm5629, %v5622, %v5626
    %v5631 = vand.u32 2147483647, %v5590
    %vm5632 = vcmp.eq.f32.partialorder %v5631, 8.507059e+37
    %v5633 = vand.u32 %v5590, 2147483648
    %v5634 = vor.u32 1.1754944e-38, %v5633
    %v5635 = vsel %vm5632, %v5634, %v5630
    %v5636 = vmul.f32 1.0, %v5635
    %v5637 = vrcp.pop %v5591
    %v5638 = vmul.f32 %v5591, %v5637
    %v5639 = vsub.f32 1.0, %v5638
    %v5640 = vmul.f32 %v5637, %v5639
    %v5641 = vadd.f32 %v5637, %v5640
    %vm5642 = vweird.f32 %v5591
    %vm5643 = vweird.f32 %v5637
    %vm5644 = vmor %vm5642, %vm5643
    %v5645 = vsel %vm5644, %v5637, %v5641
    %v5646 = vand.u32 2147483647, %v5591
    %vm5647 = vcmp.eq.f32.partialorder %v5646, 8.507059e+37
    %v5648 = vand.u32 %v5591, 2147483648
    %v5649 = vor.u32 1.1754944e-38, %v5648
    %v5650 = vsel %vm5647, %v5649, %v5645
    %v5651 = vmul.f32 1.0, %v5650
    %v5652 = vld [vmem:[#allocation3 + $0x238] sm:$0xff]
    %v5653 = vld [vmem:[#allocation3 + $0x278] sm:$0xff]
    %v5654 = vld [vmem:[#allocation3 + $0x2b8] sm:$0xff]
    %v5655 = vld [vmem:[#allocation3 + $0x2f8] sm:$0xff]
    %v5656 = vadd.f32 %v5475, %v3896
    %v5657 = vadd.f32 %v5477, %v3901
    %v5658 = vadd.f32 %v5480, %v3906
    %v5659 = vadd.f32 %v5482, %v3911
    %v5660 = vmul.f32 %v5522, %v5656
    %v5661 = vmul.f32 %v5537, %v5657
    %v5662 = vmul.f32 %v5552, %v5658
    %v5663 = vmul.f32 %v5567, %v5659
    %v5664 = vadd.f32 %v5652, %v5660
    %v5665 = vadd.f32 %v5653, %v5661
    %v5666 = vadd.f32 %v5654, %v5662
    %v5667 = vadd.f32 %v5655, %v5663
    %v5668 = vtanh.pop %v5664
    %v5669 = vtanh.pop %v5665
    %v5670 = vtanh.pop %v5666
    %v5671 = vtanh.pop %v5667
    %v5672 = vsub.f32 1.0, %v5606
    %v5673 = vsub.f32 1.0, %v5621
    %v5674 = vsub.f32 1.0, %v5636
    %v5675 = vsub.f32 1.0, %v5651
    %v5676 = vmul.f32 %v5672, %v5668
    %v5677 = vmul.f32 %v5673, %v5669
    %v5678 = vmul.f32 %v5674, %v5670
    %v5679 = vmul.f32 %v5675, %v5671
    %v5680 = vmul.f32 %v5606, %v5435
    %v5681 = vmul.f32 %v5621, %v5436
    %v5682 = vmul.f32 %v5636, %v5437
    %v5683 = vmul.f32 %v5651, %v5438
    %v5684 = vadd.f32 %v5676, %v5680
    %v5685 = vadd.f32 %v5677, %v5681
    %v5686 = vadd.f32 %v5678, %v5682
    %v5687 = vadd.f32 %v5679, %v5683
    %5688 = vst [vmem:[#allocation2 + $0x38] sm:$0xff] %v5684
    %5689 = vst [vmem:[#allocation2 + $0x78] sm:$0xff] %v5685
    %5690 = vst [vmem:[#allocation2 + $0xb8] sm:$0xff] %v5686
    %5691 = vst [vmem:[#allocation2 + $0xf8] sm:$0xff] %v5687
    %v5692 = vld [vmem:[#allocation2] sm:$0xff]
    %v5693 = vld [vmem:[#allocation2 + $0x8] sm:$0xff]
    %v5694 = vld [vmem:[#allocation2 + $0x10] sm:$0xff]
    %v5695 = vld [vmem:[#allocation2 + $0x18] sm:$0xff]
    %v5696 = vld [vmem:[#allocation2 + $0x20] sm:$0xff]
    %v5697 = vld [vmem:[#allocation2 + $0x28] sm:$0xff]
    %v5698 = vld [vmem:[#allocation2 + $0x30] sm:$0xff]
    %v5699 = vld [vmem:[#allocation2 + $0x38] sm:$0xff]
    %v5700 = vld [vmem:[#allocation2 + $0x40] sm:$0xff]
    %v5701 = vld [vmem:[#allocation2 + $0x48] sm:$0xff]
    %v5702 = vld [vmem:[#allocation2 + $0x50] sm:$0xff]
    %v5703 = vld [vmem:[#allocation2 + $0x58] sm:$0xff]
    %v5704 = vld [vmem:[#allocation2 + $0x60] sm:$0xff]
    %v5705 = vld [vmem:[#allocation2 + $0x68] sm:$0xff]
    %v5706 = vld [vmem:[#allocation2 + $0x70] sm:$0xff]
    %v5707 = vld [vmem:[#allocation2 + $0x78] sm:$0xff]
    %v5708 = vld [vmem:[#allocation2 + $0x80] sm:$0xff]
    %v5709 = vld [vmem:[#allocation2 + $0x88] sm:$0xff]
    %v5710 = vld [vmem:[#allocation2 + $0x90] sm:$0xff]
    %v5711 = vld [vmem:[#allocation2 + $0x98] sm:$0xff]
    %v5712 = vld [vmem:[#allocation2 + $0xa0] sm:$0xff]
    %v5713 = vld [vmem:[#allocation2 + $0xa8] sm:$0xff]
    %v5714 = vld [vmem:[#allocation2 + $0xb0] sm:$0xff]
    %v5715 = vld [vmem:[#allocation2 + $0xb8] sm:$0xff]
    %v5716 = vld [vmem:[#allocation2 + $0xc0] sm:$0xff]
    %v5717 = vld [vmem:[#allocation2 + $0xc8] sm:$0xff]
    %v5718 = vld [vmem:[#allocation2 + $0xd0] sm:$0xff]
    %v5719 = vld [vmem:[#allocation2 + $0xd8] sm:$0xff]
    %v5720 = vld [vmem:[#allocation2 + $0xe0] sm:$0xff]
    %v5721 = vld [vmem:[#allocation2 + $0xe8] sm:$0xff]
    %v5722 = vld [vmem:[#allocation2 + $0xf0] sm:$0xff]
    %v5723 = vld [vmem:[#allocation2 + $0xf8] sm:$0xff]
    %v5724 = vadd.f32 %v5692, %v5700
    %v5725 = vadd.f32 %v5724, %v5708
    %v5726 = vadd.f32 %v5725, %v5716
    %v5727 = vrot.slane %v5726, 4
    %v5728 = vadd.f32 %v5726, %v5727
    %v5729 = vrot.slane %v5728, 2
    %v5730 = vadd.f32 %v5728, %v5729
    %v5731 = vrot.slane %v5730, 1
    %v5732 = vadd.f32 %v5730, %v5731
    %v5733 = vadd.f32 %v5693, %v5701
    %v5734 = vadd.f32 %v5733, %v5709
    %v5735 = vadd.f32 %v5734, %v5717
    %v5736 = vrot.slane %v5735, 4
    %v5737 = vadd.f32 %v5735, %v5736
    %v5738 = vrot.slane %v5737, 2
    %v5739 = vadd.f32 %v5737, %v5738
    %v5740 = vrot.slane %v5739, 1
    %v5741 = vadd.f32 %v5739, %v5740
    %v5742 = vadd.f32 %v5694, %v5702
    %v5743 = vadd.f32 %v5742, %v5710
    %v5744 = vadd.f32 %v5743, %v5718
    %v5745 = vrot.slane %v5744, 4
    %v5746 = vadd.f32 %v5744, %v5745
    %v5747 = vrot.slane %v5746, 2
    %v5748 = vadd.f32 %v5746, %v5747
    %v5749 = vrot.slane %v5748, 1
    %v5750 = vadd.f32 %v5748, %v5749
    %v5751 = vadd.f32 %v5695, %v5703
    %v5752 = vadd.f32 %v5751, %v5711
    %v5753 = vadd.f32 %v5752, %v5719
    %v5754 = vrot.slane %v5753, 4
    %v5755 = vadd.f32 %v5753, %v5754
    %v5756 = vrot.slane %v5755, 2
    %v5757 = vadd.f32 %v5755, %v5756
    %v5758 = vrot.slane %v5757, 1
    %v5759 = vadd.f32 %v5757, %v5758
    %v5760 = vadd.f32 %v5696, %v5704
    %v5761 = vadd.f32 %v5760, %v5712
    %v5762 = vadd.f32 %v5761, %v5720
    %v5763 = vrot.slane %v5762, 4
    %v5764 = vadd.f32 %v5762, %v5763
    %v5765 = vrot.slane %v5764, 2
    %v5766 = vadd.f32 %v5764, %v5765
    %v5767 = vrot.slane %v5766, 1
    %v5768 = vadd.f32 %v5766, %v5767
    %v5769 = vadd.f32 %v5697, %v5705
    %v5770 = vadd.f32 %v5769, %v5713
    %v5771 = vadd.f32 %v5770, %v5721
    %v5772 = vrot.slane %v5771, 4
    %v5773 = vadd.f32 %v5771, %v5772
    %v5774 = vrot.slane %v5773, 2
    %v5775 = vadd.f32 %v5773, %v5774
    %v5776 = vrot.slane %v5775, 1
    %v5777 = vadd.f32 %v5775, %v5776
    %v5778 = vadd.f32 %v5698, %v5706
    %v5779 = vadd.f32 %v5778, %v5714
    %v5780 = vadd.f32 %v5779, %v5722
    %v5781 = vrot.slane %v5780, 4
    %v5782 = vadd.f32 %v5780, %v5781
    %v5783 = vrot.slane %v5782, 2
    %v5784 = vadd.f32 %v5782, %v5783
    %v5785 = vrot.slane %v5784, 1
    %v5786 = vadd.f32 %v5784, %v5785
    %v5787 = vadd.f32 %v5699, %v5707
    %v5788 = vadd.f32 %v5787, %v5715
    %v5789 = vadd.f32 %v5788, %v5723
    %v5790 = vrot.slane %v5789, 4
    %v5791 = vadd.f32 %v5789, %v5790
    %v5792 = vrot.slane %v5791, 2
    %v5793 = vadd.f32 %v5791, %v5792
    %v5794 = vrot.slane %v5793, 1
    %v5795 = vadd.f32 %v5793, %v5794
    %v5796 = vrcp.pop 32.0
    %v5797 = vmul.f32 32.0, %v5796
    %v5798 = vsub.f32 1.0, %v5797
    %v5799 = vmul.f32 %v5796, %v5798
    %v5800 = vadd.f32 %v5796, %v5799
    %vm5801 = vweird.f32 %v5796
    %v5802 = vsel %vm5801, %v5796, %v5800
    %v5803 = vmul.f32 %v5732, %v5802
    %v5804 = vmul.f32 %v5741, %v5802
    %v5805 = vmul.f32 %v5750, %v5802
    %v5806 = vmul.f32 %v5759, %v5802
    %v5807 = vmul.f32 %v5768, %v5802
    %v5808 = vmul.f32 %v5777, %v5802
    %v5809 = vmul.f32 %v5786, %v5802
    %v5810 = vmul.f32 %v5795, %v5802
    %v5811 = vsub.f32 %v5692, %v5803
    %v5812 = vsub.f32 %v5693, %v5804
    %v5813 = vsub.f32 %v5694, %v5805
    %v5814 = vsub.f32 %v5695, %v5806
    %v5815 = vsub.f32 %v5696, %v5807
    %v5816 = vsub.f32 %v5697, %v5808
    %v5817 = vsub.f32 %v5698, %v5809
    %v5818 = vsub.f32 %v5699, %v5810
    %v5819 = vsub.f32 %v5700, %v5803
    %v5820 = vsub.f32 %v5701, %v5804
    %v5821 = vsub.f32 %v5702, %v5805
    %v5822 = vsub.f32 %v5703, %v5806
    %v5823 = vsub.f32 %v5704, %v5807
    %v5824 = vsub.f32 %v5705, %v5808
    %v5825 = vsub.f32 %v5706, %v5809
    %v5826 = vsub.f32 %v5707, %v5810
    %v5827 = vsub.f32 %v5708, %v5803
    %v5828 = vsub.f32 %v5709, %v5804
    %v5829 = vsub.f32 %v5710, %v5805
    %v5830 = vsub.f32 %v5711, %v5806
    %v5831 = vsub.f32 %v5712, %v5807
    %v5832 = vsub.f32 %v5713, %v5808
    %v5833 = vsub.f32 %v5714, %v5809
    %v5834 = vsub.f32 %v5715, %v5810
    %v5835 = vsub.f32 %v5716, %v5803
    %v5836 = vsub.f32 %v5717, %v5804
    %v5837 = vsub.f32 %v5718, %v5805
    %v5838 = vsub.f32 %v5719, %v5806
    %v5839 = vsub.f32 %v5720, %v5807
    %v5840 = vsub.f32 %v5721, %v5808
    %v5841 = vsub.f32 %v5722, %v5809
    %v5842 = vsub.f32 %v5723, %v5810
    %v5843 = vmul.f32 %v5811, %v5811
    %v5844 = vmul.f32 %v5812, %v5812
    %v5845 = vmul.f32 %v5813, %v5813
    %v5846 = vmul.f32 %v5814, %v5814
    %v5847 = vmul.f32 %v5815, %v5815
    %v5848 = vmul.f32 %v5816, %v5816
    %v5849 = vmul.f32 %v5817, %v5817
    %v5850 = vmul.f32 %v5818, %v5818
    %v5851 = vmul.f32 %v5819, %v5819
    %v5852 = vmul.f32 %v5820, %v5820
    %v5853 = vmul.f32 %v5821, %v5821
    %v5854 = vmul.f32 %v5822, %v5822
    %v5855 = vmul.f32 %v5823, %v5823
    %v5856 = vmul.f32 %v5824, %v5824
    %v5857 = vmul.f32 %v5825, %v5825
    %v5858 = vmul.f32 %v5826, %v5826
    %v5859 = vmul.f32 %v5827, %v5827
    %v5860 = vmul.f32 %v5828, %v5828
    %v5861 = vmul.f32 %v5829, %v5829
    %v5862 = vmul.f32 %v5830, %v5830
    %v5863 = vmul.f32 %v5831, %v5831
    %v5864 = vmul.f32 %v5832, %v5832
    %v5865 = vmul.f32 %v5833, %v5833
    %v5866 = vmul.f32 %v5834, %v5834
    %v5867 = vmul.f32 %v5835, %v5835
    %v5868 = vmul.f32 %v5836, %v5836
    %v5869 = vmul.f32 %v5837, %v5837
    %v5870 = vmul.f32 %v5838, %v5838
    %v5871 = vmul.f32 %v5839, %v5839
    %v5872 = vmul.f32 %v5840, %v5840
    %v5873 = vmul.f32 %v5841, %v5841
    %v5874 = vmul.f32 %v5842, %v5842
    %v5875 = vadd.f32 %v5843, %v5851
    %v5876 = vadd.f32 %v5875, %v5859
    %v5877 = vadd.f32 %v5876, %v5867
    %v5878 = vrot.slane %v5877, 4
    %v5879 = vadd.f32 %v5877, %v5878
    %v5880 = vrot.slane %v5879, 2
    %v5881 = vadd.f32 %v5879, %v5880
    %v5882 = vrot.slane %v5881, 1
    %v5883 = vadd.f32 %v5881, %v5882
    %v5884 = vadd.f32 %v5844, %v5852
    %v5885 = vadd.f32 %v5884, %v5860
    %v5886 = vadd.f32 %v5885, %v5868
    %v5887 = vrot.slane %v5886, 4
    %v5888 = vadd.f32 %v5886, %v5887
    %v5889 = vrot.slane %v5888, 2
    %v5890 = vadd.f32 %v5888, %v5889
    %v5891 = vrot.slane %v5890, 1
    %v5892 = vadd.f32 %v5890, %v5891
    %v5893 = vadd.f32 %v5845, %v5853
    %v5894 = vadd.f32 %v5893, %v5861
    %v5895 = vadd.f32 %v5894, %v5869
    %v5896 = vrot.slane %v5895, 4
    %v5897 = vadd.f32 %v5895, %v5896
    %v5898 = vrot.slane %v5897, 2
    %v5899 = vadd.f32 %v5897, %v5898
    %v5900 = vrot.slane %v5899, 1
    %v5901 = vadd.f32 %v5899, %v5900
    %v5902 = vadd.f32 %v5846, %v5854
    %v5903 = vadd.f32 %v5902, %v5862
    %v5904 = vadd.f32 %v5903, %v5870
    %v5905 = vrot.slane %v5904, 4
    %v5906 = vadd.f32 %v5904, %v5905
    %v5907 = vrot.slane %v5906, 2
    %v5908 = vadd.f32 %v5906, %v5907
    %v5909 = vrot.slane %v5908, 1
    %v5910 = vadd.f32 %v5908, %v5909
    %v5911 = vadd.f32 %v5847, %v5855
    %v5912 = vadd.f32 %v5911, %v5863
    %v5913 = vadd.f32 %v5912, %v5871
    %v5914 = vrot.slane %v5913, 4
    %v5915 = vadd.f32 %v5913, %v5914
    %v5916 = vrot.slane %v5915, 2
    %v5917 = vadd.f32 %v5915, %v5916
    %v5918 = vrot.slane %v5917, 1
    %v5919 = vadd.f32 %v5917, %v5918
    %v5920 = vadd.f32 %v5848, %v5856
    %v5921 = vadd.f32 %v5920, %v5864
    %v5922 = vadd.f32 %v5921, %v5872
    %v5923 = vrot.slane %v5922, 4
    %v5924 = vadd.f32 %v5922, %v5923
    %v5925 = vrot.slane %v5924, 2
    %v5926 = vadd.f32 %v5924, %v5925
    %v5927 = vrot.slane %v5926, 1
    %v5928 = vadd.f32 %v5926, %v5927
    %v5929 = vadd.f32 %v5849, %v5857
    %v5930 = vadd.f32 %v5929, %v5865
    %v5931 = vadd.f32 %v5930, %v5873
    %v5932 = vrot.slane %v5931, 4
    %v5933 = vadd.f32 %v5931, %v5932
    %v5934 = vrot.slane %v5933, 2
    %v5935 = vadd.f32 %v5933, %v5934
    %v5936 = vrot.slane %v5935, 1
    %v5937 = vadd.f32 %v5935, %v5936
    %v5938 = vadd.f32 %v5850, %v5858
    %v5939 = vadd.f32 %v5938, %v5866
    %v5940 = vadd.f32 %v5939, %v5874
    %v5941 = vrot.slane %v5940, 4
    %v5942 = vadd.f32 %v5940, %v5941
    %v5943 = vrot.slane %v5942, 2
    %v5944 = vadd.f32 %v5942, %v5943
    %v5945 = vrot.slane %v5944, 1
    %v5946 = vadd.f32 %v5944, %v5945
    %v5947 = vmul.f32 %v5883, %v5802
    %v5948 = vmul.f32 %v5892, %v5802
    %v5949 = vmul.f32 %v5901, %v5802
    %v5950 = vmul.f32 %v5910, %v5802
    %v5951 = vmul.f32 %v5919, %v5802
    %v5952 = vmul.f32 %v5928, %v5802
    %v5953 = vmul.f32 %v5937, %v5802
    %v5954 = vmul.f32 %v5946, %v5802
    %v5955 = vadd.f32 %v5947, 1e-05
    %v5956 = vadd.f32 %v5948, 1e-05
    %v5957 = vadd.f32 %v5949, 1e-05
    %v5958 = vadd.f32 %v5950, 1e-05
    %v5959 = vadd.f32 %v5951, 1e-05
    %v5960 = vadd.f32 %v5952, 1e-05
    %v5961 = vadd.f32 %v5953, 1e-05
    %v5962 = vadd.f32 %v5954, 1e-05
    %v5963 = vrsqrt.pop %v5955
    %v5964 = vmul.f32 %v5963, %v5955
    %v5965 = vmul.f32 %v5964, %v5963
    %v5966 = vmul.f32 0.5, %v5965
    %v5967 = vsub.f32 1.5, %v5966
    %v5968 = vmul.f32 %v5963, %v5967
    %vm5969 = vweird.f32 %v5955
    %vm5970 = vweird.f32 %v5963
    %vm5971 = vmor %vm5969, %vm5970
    %v5972 = vsel %vm5971, %v5963, %v5968
    %v5973 = vrsqrt.pop %v5956
    %v5974 = vmul.f32 %v5973, %v5956
    %v5975 = vmul.f32 %v5974, %v5973
    %v5976 = vmul.f32 0.5, %v5975
    %v5977 = vsub.f32 1.5, %v5976
    %v5978 = vmul.f32 %v5973, %v5977
    %vm5979 = vweird.f32 %v5956
    %vm5980 = vweird.f32 %v5973
    %vm5981 = vmor %vm5979, %vm5980
    %v5982 = vsel %vm5981, %v5973, %v5978
    %v5983 = vrsqrt.pop %v5957
    %v5984 = vmul.f32 %v5983, %v5957
    %v5985 = vmul.f32 %v5984, %v5983
    %v5986 = vmul.f32 0.5, %v5985
    %v5987 = vsub.f32 1.5, %v5986
    %v5988 = vmul.f32 %v5983, %v5987
    %vm5989 = vweird.f32 %v5957
    %vm5990 = vweird.f32 %v5983
    %vm5991 = vmor %vm5989, %vm5990
    %v5992 = vsel %vm5991, %v5983, %v5988
    %v5993 = vrsqrt.pop %v5958
    %v5994 = vmul.f32 %v5993, %v5958
    %v5995 = vmul.f32 %v5994, %v5993
    %v5996 = vmul.f32 0.5, %v5995
    %v5997 = vsub.f32 1.5, %v5996
    %v5998 = vmul.f32 %v5993, %v5997
    %vm5999 = vweird.f32 %v5958
    %vm6000 = vweird.f32 %v5993
    %vm6001 = vmor %vm5999, %vm6000
    %v6002 = vsel %vm6001, %v5993, %v5998
    %v6003 = vrsqrt.pop %v5959
    %v6004 = vmul.f32 %v6003, %v5959
    %v6005 = vmul.f32 %v6004, %v6003
    %v6006 = vmul.f32 0.5, %v6005
    %v6007 = vsub.f32 1.5, %v6006
    %v6008 = vmul.f32 %v6003, %v6007
    %vm6009 = vweird.f32 %v5959
    %vm6010 = vweird.f32 %v6003
    %vm6011 = vmor %vm6009, %vm6010
    %v6012 = vsel %vm6011, %v6003, %v6008
    %v6013 = vrsqrt.pop %v5960
    %v6014 = vmul.f32 %v6013, %v5960
    %v6015 = vmul.f32 %v6014, %v6013
    %v6016 = vmul.f32 0.5, %v6015
    %v6017 = vsub.f32 1.5, %v6016
    %v6018 = vmul.f32 %v6013, %v6017
    %vm6019 = vweird.f32 %v5960
    %vm6020 = vweird.f32 %v6013
    %vm6021 = vmor %vm6019, %vm6020
    %v6022 = vsel %vm6021, %v6013, %v6018
    %v6023 = vrsqrt.pop %v5961
    %v6024 = vmul.f32 %v6023, %v5961
    %v6025 = vmul.f32 %v6024, %v6023
    %v6026 = vmul.f32 0.5, %v6025
    %v6027 = vsub.f32 1.5, %v6026
    %v6028 = vmul.f32 %v6023, %v6027
    %vm6029 = vweird.f32 %v5961
    %vm6030 = vweird.f32 %v6023
    %vm6031 = vmor %vm6029, %vm6030
    %v6032 = vsel %vm6031, %v6023, %v6028
    %v6033 = vrsqrt.pop %v5962
    %v6034 = vmul.f32 %v6033, %v5962
    %v6035 = vmul.f32 %v6034, %v6033
    %v6036 = vmul.f32 0.5, %v6035
    %v6037 = vsub.f32 1.5, %v6036
    %v6038 = vmul.f32 %v6033, %v6037
    %vm6039 = vweird.f32 %v5962
    %vm6040 = vweird.f32 %v6033
    %vm6041 = vmor %vm6039, %vm6040
    %v6042 = vsel %vm6041, %v6033, %v6038
    %v6043 = vmul.f32 %v5811, %v5972
    %v6044 = vmul.f32 %v5812, %v5982
    %v6045 = vmul.f32 %v5813, %v5992
    %v6046 = vmul.f32 %v5814, %v6002
    %v6047 = vmul.f32 %v5815, %v6012
    %v6048 = vmul.f32 %v5816, %v6022
    %v6049 = vmul.f32 %v5817, %v6032
    %v6050 = vmul.f32 %v5818, %v6042
    %v6051 = vmul.f32 %v5819, %v5972
    %v6052 = vmul.f32 %v5820, %v5982
    %v6053 = vmul.f32 %v5821, %v5992
    %v6054 = vmul.f32 %v5822, %v6002
    %v6055 = vmul.f32 %v5823, %v6012
    %v6056 = vmul.f32 %v5824, %v6022
    %v6057 = vmul.f32 %v5825, %v6032
    %v6058 = vmul.f32 %v5826, %v6042
    %v6059 = vmul.f32 %v5827, %v5972
    %v6060 = vmul.f32 %v5828, %v5982
    %v6061 = vmul.f32 %v5829, %v5992
    %v6062 = vmul.f32 %v5830, %v6002
    %v6063 = vmul.f32 %v5831, %v6012
    %v6064 = vmul.f32 %v5832, %v6022
    %v6065 = vmul.f32 %v5833, %v6032
    %v6066 = vmul.f32 %v5834, %v6042
    %v6067 = vmul.f32 %v5835, %v5972
    %v6068 = vmul.f32 %v5836, %v5982
    %v6069 = vmul.f32 %v5837, %v5992
    %v6070 = vmul.f32 %v5838, %v6002
    %v6071 = vmul.f32 %v5839, %v6012
    %v6072 = vmul.f32 %v5840, %v6022
    %v6073 = vmul.f32 %v5841, %v6032
    %v6074 = vmul.f32 %v5842, %v6042
    %v6075 = vld [vmem:[%s7] sm:$0xff]
    %v6076 = vld [vmem:[%s7 + $0x8] sm:$0xff]
    %v6077 = vld [vmem:[%s7 + $0x10] sm:$0xff]
    %v6078 = vld [vmem:[%s7 + $0x18] sm:$0xff]
    %6080 = vset.pattern.permute.xlu0 0
    %6081 = vperm.xlu0 %6080, %v6075
    %v6082 = vpop.permute.xlu0 %6081
    %6085 = vset.pattern.permute.xlu0 0
    %6086 = vperm.xlu0 %6085, %v6076
    %v6087 = vpop.permute.xlu0 %6086
    %6090 = vset.pattern.permute.xlu0 0
    %6091 = vperm.xlu0 %6090, %v6077
    %v6092 = vpop.permute.xlu0 %6091
    %6095 = vset.pattern.permute.xlu0 0
    %6096 = vperm.xlu0 %6095, %v6078
    %v6097 = vpop.permute.xlu0 %6096
    %v6099 = vmul.f32 %v6043, %v6082
    %v6100 = vmul.f32 %v6044, %v6082
    %v6101 = vmul.f32 %v6045, %v6082
    %v6102 = vmul.f32 %v6046, %v6082
    %v6103 = vmul.f32 %v6047, %v6082
    %v6104 = vmul.f32 %v6048, %v6082
    %v6105 = vmul.f32 %v6049, %v6082
    %v6106 = vmul.f32 %v6050, %v6082
    %v6107 = vmul.f32 %v6051, %v6087
    %v6108 = vmul.f32 %v6052, %v6087
    %v6109 = vmul.f32 %v6053, %v6087
    %v6110 = vmul.f32 %v6054, %v6087
    %v6111 = vmul.f32 %v6055, %v6087
    %v6112 = vmul.f32 %v6056, %v6087
    %v6113 = vmul.f32 %v6057, %v6087
    %v6114 = vmul.f32 %v6058, %v6087
    %v6115 = vmul.f32 %v6059, %v6092
    %v6116 = vmul.f32 %v6060, %v6092
    %v6117 = vmul.f32 %v6061, %v6092
    %v6118 = vmul.f32 %v6062, %v6092
    %v6119 = vmul.f32 %v6063, %v6092
    %v6120 = vmul.f32 %v6064, %v6092
    %v6121 = vmul.f32 %v6065, %v6092
    %v6122 = vmul.f32 %v6066, %v6092
    %v6123 = vmul.f32 %v6067, %v6097
    %v6124 = vmul.f32 %v6068, %v6097
    %v6125 = vmul.f32 %v6069, %v6097
    %v6126 = vmul.f32 %v6070, %v6097
    %v6127 = vmul.f32 %v6071, %v6097
    %v6128 = vmul.f32 %v6072, %v6097
    %v6129 = vmul.f32 %v6073, %v6097
    %v6130 = vmul.f32 %v6074, %v6097
    %v6131 = vld [vmem:[%s8] sm:$0xff]
    %v6132 = vld [vmem:[%s8 + $0x8] sm:$0xff]
    %v6133 = vld [vmem:[%s8 + $0x10] sm:$0xff]
    %v6134 = vld [vmem:[%s8 + $0x18] sm:$0xff]
    %6136 = vset.pattern.permute.xlu0 0
    %6137 = vperm.xlu0 %6136, %v6131
    %v6138 = vpop.permute.xlu0 %6137
    %6141 = vset.pattern.permute.xlu0 0
    %6142 = vperm.xlu0 %6141, %v6132
    %v6143 = vpop.permute.xlu0 %6142
    %6146 = vset.pattern.permute.xlu0 0
    %6147 = vperm.xlu0 %6146, %v6133
    %v6148 = vpop.permute.xlu0 %6147
    %6151 = vset.pattern.permute.xlu0 0
    %6152 = vperm.xlu0 %6151, %v6134
    %v6153 = vpop.permute.xlu0 %6152
    %v6155 = vadd.f32 %v6099, %v6138
    %v6156 = vadd.f32 %v6100, %v6138
    %v6157 = vadd.f32 %v6101, %v6138
    %v6158 = vadd.f32 %v6102, %v6138
    %v6159 = vadd.f32 %v6103, %v6138
    %v6160 = vadd.f32 %v6104, %v6138
    %v6161 = vadd.f32 %v6105, %v6138
    %v6162 = vadd.f32 %v6106, %v6138
    %v6163 = vadd.f32 %v6107, %v6143
    %v6164 = vadd.f32 %v6108, %v6143
    %v6165 = vadd.f32 %v6109, %v6143
    %v6166 = vadd.f32 %v6110, %v6143
    %v6167 = vadd.f32 %v6111, %v6143
    %v6168 = vadd.f32 %v6112, %v6143
    %v6169 = vadd.f32 %v6113, %v6143
    %v6170 = vadd.f32 %v6114, %v6143
    %v6171 = vadd.f32 %v6115, %v6148
    %v6172 = vadd.f32 %v6116, %v6148
    %v6173 = vadd.f32 %v6117, %v6148
    %v6174 = vadd.f32 %v6118, %v6148
    %v6175 = vadd.f32 %v6119, %v6148
    %v6176 = vadd.f32 %v6120, %v6148
    %v6177 = vadd.f32 %v6121, %v6148
    %v6178 = vadd.f32 %v6122, %v6148
    %v6179 = vadd.f32 %v6123, %v6153
    %v6180 = vadd.f32 %v6124, %v6153
    %v6181 = vadd.f32 %v6125, %v6153
    %v6182 = vadd.f32 %v6126, %v6153
    %v6183 = vadd.f32 %v6127, %v6153
    %v6184 = vadd.f32 %v6128, %v6153
    %v6185 = vadd.f32 %v6129, %v6153
    %v6186 = vadd.f32 %v6130, %v6153
    %v6187 = vld [vmem:[%s9] sm:$0xf]
    %v6188 = vld [vmem:[%s9 + $0x4] sm:$0xf]
    %v6189 = vpack.c.bf16 %v6163, %v6155
    %v6190 = vpack.c.bf16 %v6164, %v6156
    %v6191 = vpack.c.bf16 %v6165, %v6157
    %v6192 = vpack.c.bf16 %v6166, %v6158
    %v6193 = vpack.c.bf16 %v6167, %v6159
    %v6194 = vpack.c.bf16 %v6168, %v6160
    %v6195 = vpack.c.bf16 %v6169, %v6161
    %v6196 = vpack.c.bf16 %v6170, %v6162
    %v6197 = vpack.c.bf16 %v6179, %v6171
    %v6198 = vpack.c.bf16 %v6180, %v6172
    %v6199 = vpack.c.bf16 %v6181, %v6173
    %v6200 = vpack.c.bf16 %v6182, %v6174
    %v6201 = vpack.c.bf16 %v6183, %v6175
    %v6202 = vpack.c.bf16 %v6184, %v6176
    %v6203 = vpack.c.bf16 %v6185, %v6177
    %v6204 = vpack.c.bf16 %v6186, %v6178
    %v6205 = vld [vmem:[%s10] sm:$0xff]
    %v6206 = vld [vmem:[%s10 + $0x8] sm:$0xff]
    %6208 = vset.pattern.permute.xlu0 0
    %6209 = vperm.xlu0 %6208, %v6205
    %v6210 = vpop.permute.xlu0 %6209
    %6213 = vset.pattern.permute.xlu0 0
    %6214 = vperm.xlu0 %6213, %v6206
    %v6215 = vpop.permute.xlu0 %6214
    %v6219 = vunpack.c.l.b16 %v6187
    %v6220 = vunpack.c.l.b16 %v6188
    %v6221 = vpack.c.b16 %v6220, %v6219
    %v6223 = vsel %vm525, %v6221, 0
    %6225 = vmatpush.bf16.msra.mxu0 0
    %6226 = vmatpush.bf16.msra.mxu0 0
    %6227 = vmatpush.bf16.msra.mxu0 0
    %6228 = vmatpush.bf16.msra.mxu0 0
    %6229 = vmatpush.bf16.msra.mxu0 0
    %6230 = vmatpush.bf16.msra.mxu0 0
    %6231 = vmatpush.bf16.msra.mxu0 %v6197
    %6232 = vmatpush.bf16.msra.mxu0 %v6189
    %6233 = vmatmul.bf16.gmra.mxu0 %v6223
    %v6234 = vpop.f32.mrf.mxu0
    %v6235 = vadd.f32 %v6210, %v6234
    %v6236 = vpop.f32.mrf.mxu0
    %v6237 = vadd.f32 %v6215, %v6236
    %6238 = vdwg.mxu0
    %6239 = vmatpush.bf16.msra.mxu0 0
    %6240 = vmatpush.bf16.msra.mxu0 0
    %6241 = vmatpush.bf16.msra.mxu0 0
    %6242 = vmatpush.bf16.msra.mxu0 0
    %6243 = vmatpush.bf16.msra.mxu0 0
    %6244 = vmatpush.bf16.msra.mxu0 0
    %6245 = vmatpush.bf16.msra.mxu0 %v6198
    %6246 = vmatpush.bf16.msra.mxu0 %v6190
    %6247 = vmatmul.bf16.gmra.mxu0 %v6223
    %v6248 = vpop.f32.mrf.mxu0
    %v6249 = vadd.f32 %v6210, %v6248
    %v6250 = vpop.f32.mrf.mxu0
    %v6251 = vadd.f32 %v6215, %v6250
    %6252 = vdwg.mxu0
    %6253 = vmatpush.bf16.msra.mxu0 0
    %6254 = vmatpush.bf16.msra.mxu0 0
    %6255 = vmatpush.bf16.msra.mxu0 0
    %6256 = vmatpush.bf16.msra.mxu0 0
    %6257 = vmatpush.bf16.msra.mxu0 0
    %6258 = vmatpush.bf16.msra.mxu0 0
    %6259 = vmatpush.bf16.msra.mxu0 %v6199
    %6260 = vmatpush.bf16.msra.mxu0 %v6191
    %6261 = vmatmul.bf16.gmra.mxu0 %v6223
    %v6262 = vpop.f32.mrf.mxu0
    %v6263 = vadd.f32 %v6210, %v6262
    %v6264 = vpop.f32.mrf.mxu0
    %v6265 = vadd.f32 %v6215, %v6264
    %6266 = vdwg.mxu0
    %6267 = vmatpush.bf16.msra.mxu0 0
    %6268 = vmatpush.bf16.msra.mxu0 0
    %6269 = vmatpush.bf16.msra.mxu0 0
    %6270 = vmatpush.bf16.msra.mxu0 0
    %6271 = vmatpush.bf16.msra.mxu0 0
    %6272 = vmatpush.bf16.msra.mxu0 0
    %6273 = vmatpush.bf16.msra.mxu0 %v6200
    %6274 = vmatpush.bf16.msra.mxu0 %v6192
    %6275 = vmatmul.bf16.gmra.mxu0 %v6223
    %v6276 = vpop.f32.mrf.mxu0
    %v6277 = vadd.f32 %v6210, %v6276
    %v6278 = vpop.f32.mrf.mxu0
    %v6279 = vadd.f32 %v6215, %v6278
    %6280 = vdwg.mxu0
    %6281 = vmatpush.bf16.msra.mxu0 0
    %6282 = vmatpush.bf16.msra.mxu0 0
    %6283 = vmatpush.bf16.msra.mxu0 0
    %6284 = vmatpush.bf16.msra.mxu0 0
    %6285 = vmatpush.bf16.msra.mxu0 0
    %6286 = vmatpush.bf16.msra.mxu0 0
    %6287 = vmatpush.bf16.msra.mxu0 %v6201
    %6288 = vmatpush.bf16.msra.mxu0 %v6193
    %6289 = vmatmul.bf16.gmra.mxu0 %v6223
    %v6290 = vpop.f32.mrf.mxu0
    %v6291 = vadd.f32 %v6210, %v6290
    %v6292 = vpop.f32.mrf.mxu0
    %v6293 = vadd.f32 %v6215, %v6292
    %6294 = vdwg.mxu0
    %6295 = vmatpush.bf16.msra.mxu0 0
    %6296 = vmatpush.bf16.msra.mxu0 0
    %6297 = vmatpush.bf16.msra.mxu0 0
    %6298 = vmatpush.bf16.msra.mxu0 0
    %6299 = vmatpush.bf16.msra.mxu0 0
    %6300 = vmatpush.bf16.msra.mxu0 0
    %6301 = vmatpush.bf16.msra.mxu0 %v6202
    %6302 = vmatpush.bf16.msra.mxu0 %v6194
    %6303 = vmatmul.bf16.gmra.mxu0 %v6223
    %v6304 = vpop.f32.mrf.mxu0
    %v6305 = vadd.f32 %v6210, %v6304
    %v6306 = vpop.f32.mrf.mxu0
    %v6307 = vadd.f32 %v6215, %v6306
    %6308 = vdwg.mxu0
    %6309 = vmatpush.bf16.msra.mxu0 0
    %6310 = vmatpush.bf16.msra.mxu0 0
    %6311 = vmatpush.bf16.msra.mxu0 0
    %6312 = vmatpush.bf16.msra.mxu0 0
    %6313 = vmatpush.bf16.msra.mxu0 0
    %6314 = vmatpush.bf16.msra.mxu0 0
    %6315 = vmatpush.bf16.msra.mxu0 %v6203
    %6316 = vmatpush.bf16.msra.mxu0 %v6195
    %6317 = vmatmul.bf16.gmra.mxu0 %v6223
    %v6318 = vpop.f32.mrf.mxu0
    %v6319 = vadd.f32 %v6210, %v6318
    %v6320 = vpop.f32.mrf.mxu0
    %v6321 = vadd.f32 %v6215, %v6320
    %6322 = vdwg.mxu0
    %6323 = vmatpush.bf16.msra.mxu0 0
    %6324 = vmatpush.bf16.msra.mxu0 0
    %6325 = vmatpush.bf16.msra.mxu0 0
    %6326 = vmatpush.bf16.msra.mxu0 0
    %6327 = vmatpush.bf16.msra.mxu0 0
    %6328 = vmatpush.bf16.msra.mxu0 0
    %6329 = vmatpush.bf16.msra.mxu0 %v6204
    %6330 = vmatpush.bf16.msra.mxu0 %v6196
    %6331 = vmatmul.bf16.gmra.mxu0 %v6223
    %v6332 = vpop.f32.mrf.mxu0
    %v6333 = vadd.f32 %v6210, %v6332
    %v6334 = vpop.f32.mrf.mxu0
    %v6335 = vadd.f32 %v6215, %v6334
    %6336 = vdwg.mxu0
    %v6337 = vtanh.pop %v6235
    %v6338 = vtanh.pop %v6249
    %v6339 = vtanh.pop %v6263
    %v6340 = vtanh.pop %v6277
    %v6341 = vtanh.pop %v6291
    %v6342 = vtanh.pop %v6305
    %v6343 = vtanh.pop %v6319
    %v6344 = vtanh.pop %v6333
    %v6345 = vtanh.pop %v6237
    %v6346 = vtanh.pop %v6251
    %v6347 = vtanh.pop %v6265
    %v6348 = vtanh.pop %v6279
    %v6349 = vtanh.pop %v6293
    %v6350 = vtanh.pop %v6307
    %v6351 = vtanh.pop %v6321
    %v6352 = vtanh.pop %v6335
    %v6353 = vld [vmem:[%s11] sm:$0xff]
    %v6354 = vld [vmem:[%s11 + $0x8] sm:$0xff]
    %6356 = vset.pattern.permute.xlu0 0
    %6357 = vperm.xlu0 %6356, %v6353
    %v6358 = vpop.permute.xlu0 %6357
    %6361 = vset.pattern.permute.xlu0 0
    %6362 = vperm.xlu0 %6361, %v6354
    %v6363 = vpop.permute.xlu0 %6362
    %v6365 = vmul.f32 %v6337, %v6358
    %v6366 = vmul.f32 %v6338, %v6358
    %v6367 = vmul.f32 %v6339, %v6358
    %v6368 = vmul.f32 %v6340, %v6358
    %v6369 = vmul.f32 %v6341, %v6358
    %v6370 = vmul.f32 %v6342, %v6358
    %v6371 = vmul.f32 %v6343, %v6358
    %v6372 = vmul.f32 %v6344, %v6358
    %v6373 = vmul.f32 %v6345, %v6363
    %v6374 = vmul.f32 %v6346, %v6363
    %v6375 = vmul.f32 %v6347, %v6363
    %v6376 = vmul.f32 %v6348, %v6363
    %v6377 = vmul.f32 %v6349, %v6363
    %v6378 = vmul.f32 %v6350, %v6363
    %v6379 = vmul.f32 %v6351, %v6363
    %v6380 = vmul.f32 %v6352, %v6363
    %v6381 = vadd.f32 %v6365, %v6373
    %v6382 = vrot.slane %v6381, 4
    %v6383 = vadd.f32 %v6381, %v6382
    %v6384 = vrot.slane %v6383, 2
    %v6385 = vadd.f32 %v6383, %v6384
    %v6386 = vrot.slane %v6385, 1
    %v6387 = vadd.f32 %v6385, %v6386
    %v6388 = vadd.f32 %v6366, %v6374
    %v6389 = vrot.slane %v6388, 4
    %v6390 = vadd.f32 %v6388, %v6389
    %v6391 = vrot.slane %v6390, 2
    %v6392 = vadd.f32 %v6390, %v6391
    %v6393 = vrot.slane %v6392, 1
    %v6394 = vadd.f32 %v6392, %v6393
    %v6395 = vadd.f32 %v6367, %v6375
    %v6396 = vrot.slane %v6395, 4
    %v6397 = vadd.f32 %v6395, %v6396
    %v6398 = vrot.slane %v6397, 2
    %v6399 = vadd.f32 %v6397, %v6398
    %v6400 = vrot.slane %v6399, 1
    %v6401 = vadd.f32 %v6399, %v6400
    %v6402 = vadd.f32 %v6368, %v6376
    %v6403 = vrot.slane %v6402, 4
    %v6404 = vadd.f32 %v6402, %v6403
    %v6405 = vrot.slane %v6404, 2
    %v6406 = vadd.f32 %v6404, %v6405
    %v6407 = vrot.slane %v6406, 1
    %v6408 = vadd.f32 %v6406, %v6407
    %v6409 = vadd.f32 %v6369, %v6377
    %v6410 = vrot.slane %v6409, 4
    %v6411 = vadd.f32 %v6409, %v6410
    %v6412 = vrot.slane %v6411, 2
    %v6413 = vadd.f32 %v6411, %v6412
    %v6414 = vrot.slane %v6413, 1
    %v6415 = vadd.f32 %v6413, %v6414
    %v6416 = vadd.f32 %v6370, %v6378
    %v6417 = vrot.slane %v6416, 4
    %v6418 = vadd.f32 %v6416, %v6417
    %v6419 = vrot.slane %v6418, 2
    %v6420 = vadd.f32 %v6418, %v6419
    %v6421 = vrot.slane %v6420, 1
    %v6422 = vadd.f32 %v6420, %v6421
    %v6423 = vadd.f32 %v6371, %v6379
    %v6424 = vrot.slane %v6423, 4
    %v6425 = vadd.f32 %v6423, %v6424
    %v6426 = vrot.slane %v6425, 2
    %v6427 = vadd.f32 %v6425, %v6426
    %v6428 = vrot.slane %v6427, 1
    %v6429 = vadd.f32 %v6427, %v6428
    %v6430 = vadd.f32 %v6372, %v6380
    %v6431 = vrot.slane %v6430, 4
    %v6432 = vadd.f32 %v6430, %v6431
    %v6433 = vrot.slane %v6432, 2
    %v6434 = vadd.f32 %v6432, %v6433
    %v6435 = vrot.slane %v6434, 1
    %v6436 = vadd.f32 %v6434, %v6435
    %v6437 = vmax.f32 %v6387, %v6394
    %v6438 = vmax.f32 %v6437, %v6401
    %v6439 = vmax.f32 %v6438, %v6408
    %v6440 = vmax.f32 %v6439, %v6415
    %v6441 = vmax.f32 %v6440, %v6422
    %v6442 = vmax.f32 %v6441, %v6429
    %v6443 = vmax.f32 %v6442, %v6436
    %v6444 = vsub.f32 %v6387, %v6443
    %v6445 = vmul.f32 %v6444, 1.442695
    %v6446 = vpow.pop %v6445
    %v6447 = vsub.f32 %v6394, %v6443
    %v6448 = vmul.f32 %v6447, 1.442695
    %v6449 = vpow.pop %v6448
    %v6450 = vsub.f32 %v6401, %v6443
    %v6451 = vmul.f32 %v6450, 1.442695
    %v6452 = vpow.pop %v6451
    %v6453 = vsub.f32 %v6408, %v6443
    %v6454 = vmul.f32 %v6453, 1.442695
    %v6455 = vpow.pop %v6454
    %v6456 = vsub.f32 %v6415, %v6443
    %v6457 = vmul.f32 %v6456, 1.442695
    %v6458 = vpow.pop %v6457
    %v6459 = vsub.f32 %v6422, %v6443
    %v6460 = vmul.f32 %v6459, 1.442695
    %v6461 = vpow.pop %v6460
    %v6462 = vsub.f32 %v6429, %v6443
    %v6463 = vmul.f32 %v6462, 1.442695
    %v6464 = vpow.pop %v6463
    %v6465 = vsub.f32 %v6436, %v6443
    %v6466 = vmul.f32 %v6465, 1.442695
    %v6467 = vpow.pop %v6466
    %v6468 = vadd.f32 %v6446, %v6449
    %v6469 = vadd.f32 %v6468, %v6452
    %v6470 = vadd.f32 %v6469, %v6455
    %v6471 = vadd.f32 %v6470, %v6458
    %v6472 = vadd.f32 %v6471, %v6461
    %v6473 = vadd.f32 %v6472, %v6464
    %v6474 = vadd.f32 %v6473, %v6467
    %v6475 = vrcp.pop %v6474
    %v6476 = vmul.f32 %v6474, %v6475
    %v6477 = vsub.f32 1.0, %v6476
    %v6478 = vmul.f32 %v6475, %v6477
    %v6479 = vadd.f32 %v6475, %v6478
    %vm6480 = vweird.f32 %v6474
    %vm6481 = vweird.f32 %v6475
    %vm6482 = vmor %vm6480, %vm6481
    %v6483 = vsel %vm6482, %v6475, %v6479
    %v6484 = vand.u32 2147483647, %v6474
    %vm6485 = vcmp.eq.f32.partialorder %v6484, 8.507059e+37
    %v6486 = vand.u32 %v6474, 2147483648
    %v6487 = vor.u32 1.1754944e-38, %v6486
    %v6488 = vsel %vm6485, %v6487, %v6483
    %v6489 = vmul.f32 1.0, %v6488
    %v6490 = vmul.f32 %v6446, %v6489
    %v6491 = vmul.f32 %v6155, %v6490
    %v6492 = vmul.f32 %v6163, %v6490
    %v6493 = vmul.f32 %v6171, %v6490
    %v6494 = vmul.f32 %v6179, %v6490
    %v6495 = vadd.f32 %v6491, 0.0
    %v6496 = vadd.f32 %v6492, 0.0
    %v6497 = vadd.f32 %v6493, 0.0
    %v6498 = vadd.f32 %v6494, 0.0
    %v6499 = vmul.f32 %v6449, %v6489
    %v6500 = vmul.f32 %v6156, %v6499
    %v6501 = vmul.f32 %v6164, %v6499
    %v6502 = vmul.f32 %v6172, %v6499
    %v6503 = vmul.f32 %v6180, %v6499
    %v6504 = vadd.f32 %v6495, %v6500
    %v6505 = vadd.f32 %v6496, %v6501
    %v6506 = vadd.f32 %v6497, %v6502
    %v6507 = vadd.f32 %v6498, %v6503
    %v6508 = vmul.f32 %v6452, %v6489
    %v6509 = vmul.f32 %v6157, %v6508
    %v6510 = vmul.f32 %v6165, %v6508
    %v6511 = vmul.f32 %v6173, %v6508
    %v6512 = vmul.f32 %v6181, %v6508
    %v6513 = vadd.f32 %v6504, %v6509
    %v6514 = vadd.f32 %v6505, %v6510
    %v6515 = vadd.f32 %v6506, %v6511
    %v6516 = vadd.f32 %v6507, %v6512
    %v6517 = vmul.f32 %v6455, %v6489
    %v6518 = vmul.f32 %v6158, %v6517
    %v6519 = vmul.f32 %v6166, %v6517
    %v6520 = vmul.f32 %v6174, %v6517
    %v6521 = vmul.f32 %v6182, %v6517
    %v6522 = vadd.f32 %v6513, %v6518
    %v6523 = vadd.f32 %v6514, %v6519
    %v6524 = vadd.f32 %v6515, %v6520
    %v6525 = vadd.f32 %v6516, %v6521
    %v6526 = vmul.f32 %v6458, %v6489
    %v6527 = vmul.f32 %v6159, %v6526
    %v6528 = vmul.f32 %v6167, %v6526
    %v6529 = vmul.f32 %v6175, %v6526
    %v6530 = vmul.f32 %v6183, %v6526
    %v6531 = vadd.f32 %v6522, %v6527
    %v6532 = vadd.f32 %v6523, %v6528
    %v6533 = vadd.f32 %v6524, %v6529
    %v6534 = vadd.f32 %v6525, %v6530
    %v6535 = vmul.f32 %v6461, %v6489
    %v6536 = vmul.f32 %v6160, %v6535
    %v6537 = vmul.f32 %v6168, %v6535
    %v6538 = vmul.f32 %v6176, %v6535
    %v6539 = vmul.f32 %v6184, %v6535
    %v6540 = vadd.f32 %v6531, %v6536
    %v6541 = vadd.f32 %v6532, %v6537
    %v6542 = vadd.f32 %v6533, %v6538
    %v6543 = vadd.f32 %v6534, %v6539
    %v6544 = vmul.f32 %v6464, %v6489
    %v6545 = vmul.f32 %v6161, %v6544
    %v6546 = vmul.f32 %v6169, %v6544
    %v6547 = vmul.f32 %v6177, %v6544
    %v6548 = vmul.f32 %v6185, %v6544
    %v6549 = vadd.f32 %v6540, %v6545
    %v6550 = vadd.f32 %v6541, %v6546
    %v6551 = vadd.f32 %v6542, %v6547
    %v6552 = vadd.f32 %v6543, %v6548
    %v6553 = vmul.f32 %v6467, %v6489
    %v6554 = vmul.f32 %v6162, %v6553
    %v6555 = vmul.f32 %v6170, %v6553
    %v6556 = vmul.f32 %v6178, %v6553
    %v6557 = vmul.f32 %v6186, %v6553
    %v6558 = vadd.f32 %v6549, %v6554
    %v6559 = vadd.f32 %v6550, %v6555
    %v6560 = vadd.f32 %v6551, %v6556
    %v6561 = vadd.f32 %v6552, %v6557
    %v6562 = vld [vmem:[%s12] sm:$0xff]
    %v6563 = vld [vmem:[%s12 + $0x8] sm:$0xff]
    %v6564 = vld [vmem:[%s12 + $0x10] sm:$0xff]
    %v6565 = vld [vmem:[%s12 + $0x18] sm:$0xff]
    %6567 = vset.pattern.permute.xlu0 0
    %6568 = vperm.xlu0 %6567, %v6562
    %v6569 = vpop.permute.xlu0 %6568
    %6572 = vset.pattern.permute.xlu0 0
    %6573 = vperm.xlu0 %6572, %v6563
    %v6574 = vpop.permute.xlu0 %6573
    %6577 = vset.pattern.permute.xlu0 0
    %6578 = vperm.xlu0 %6577, %v6564
    %v6579 = vpop.permute.xlu0 %6578
    %6582 = vset.pattern.permute.xlu0 0
    %6583 = vperm.xlu0 %6582, %v6565
    %v6584 = vpop.permute.xlu0 %6583
    %v6586 = vmul.f32 %v6569, %v6162
    %v6587 = vmul.f32 %v6574, %v6170
    %v6588 = vmul.f32 %v6579, %v6178
    %v6589 = vmul.f32 %v6584, %v6186
    %v6590 = vld [vmem:[%s13] sm:$0xff]
    %v6591 = vld [vmem:[%s13 + $0x8] sm:$0xff]
    %v6592 = vld [vmem:[%s13 + $0x10] sm:$0xff]
    %v6593 = vld [vmem:[%s13 + $0x18] sm:$0xff]
    %6595 = vset.pattern.permute.xlu0 0
    %6596 = vperm.xlu0 %6595, %v6590
    %v6597 = vpop.permute.xlu0 %6596
    %6600 = vset.pattern.permute.xlu0 0
    %6601 = vperm.xlu0 %6600, %v6591
    %v6602 = vpop.permute.xlu0 %6601
    %6605 = vset.pattern.permute.xlu0 0
    %6606 = vperm.xlu0 %6605, %v6592
    %v6607 = vpop.permute.xlu0 %6606
    %6610 = vset.pattern.permute.xlu0 0
    %6611 = vperm.xlu0 %6610, %v6593
    %v6612 = vpop.permute.xlu0 %6611
    %v6614 = vmul.f32 %v6597, %v6558
    %v6615 = vmul.f32 %v6602, %v6559
    %v6616 = vmul.f32 %v6607, %v6560
    %v6617 = vmul.f32 %v6612, %v6561
    %v6618 = vadd.f32 %v6586, %v6614
    %v6619 = vadd.f32 %v6587, %v6615
    %v6620 = vadd.f32 %v6588, %v6616
    %v6621 = vadd.f32 %v6589, %v6617
    %v6622 = vadd.f32 %v6618, %v6619
    %v6623 = vadd.f32 %v6622, %v6620
    %v6624 = vadd.f32 %v6623, %v6621
    %v6625 = vrot.slane %v6624, 4
    %v6626 = vadd.f32 %v6624, %v6625
    %v6627 = vrot.slane %v6626, 2
    %v6628 = vadd.f32 %v6626, %v6627
    %v6629 = vrot.slane %v6628, 1
    %v6630 = vadd.f32 %v6628, %v6629
    %v6631 = vld [vmem:[#allocation4] sm:$0x1]
    %6633 = vset.pattern.permute.xlu0 0
    %6634 = vperm.xlu0 %6633, %v6631
    %v6635 = vpop.permute.xlu0 %6634
    %v6637 = vperm.slane %v6635, 0
    %v6638 = vadd.f32 %v6630, %v6637
    %6639 = vst [vmem:[#allocation5] sm:$0x1] %v6638
    // Predicated region
    $region62: #{tpu_custom_call.1} parent=1 // pred_check
      _
    $region63: #{tpu_custom_call.1} parent=1 // pred_check_branch
      %6641 = sbr.rel (0) target = $region65
    $region64: #{tpu_custom_call.1} parent=1 // pred_region
      %6643 = vsyncadd [#allocation6], 0
      %s6645 = sshll.u32 [#allocation5], 4
      %s6646 = int_to_ptr.vmem [resolvable:$true] %s6645
      %s6647 = sshll.u32 %s15, 4
      %s6648 = int_to_ptr.hbm [resolvable:$true] %s6647
      %6650 = dma.vmem_to_hbm [thread:$0]  %s6646, 16, %s6648, [#allocation6]
    $region65: #{tpu_custom_call.1} parent=1 // pred_fallthru
      _
    // Predicated region
    $region66: #{tpu_custom_call.1} parent=1 // pred_check
      _
    $region67: #{tpu_custom_call.1} parent=1 // pred_check_branch
      %6652 = sbr.rel (0) target = $region69
    $region68: #{tpu_custom_call.1} parent=1 // pred_region
      %6654 = dma.done [#allocation6], 16
    $region69: #{tpu_custom_call.1} parent=1 // pred_fallthru
      _
    %6655 = vsyncpa [#allocation6], 1

</llo_original>
